<compile_context>
chip_gen: v5e
topology: v5e:2x2
jax: 0.10.0
libtpu: 0.0.40
codegen_flags: <defaults>
</compile_context>

<pallas_src>
import functools

import jax
import jax.numpy as jnp
from jax.experimental import pallas as pl
from jax.experimental.pallas import tpu as pltpu

N_GENES = 978
HIDDEN = 2048
OUT_ENC = 100

N_PAD = 1024        # padded node dim (978 -> 1024)
OUT_PAD = 128       # padded encoder output dim (100 -> 128)
MLP_PAD = 128       # padded predictor output-feature dim (4/2 -> 128, lane-dense)
MLP_IN_PAD = 8      # padded predictor input-feature dim (4/5 -> 8)
TN = 1024           # hidden-dim tile (grid = HIDDEN // TN = 2 steps)
ONES_COL = N_GENES  # padded column that carries a constant 1 (bias folding)


def _round_up(x, m):
    return (x + m - 1) // m * m


# ----------------------------------------------------------------------------
# Fused kernel: GCN agg + ReLU -> fc1(tile) + ReLU -> fc2(tile) accumulate
#               -> (last step) Pearson r^2 + 5->4->2 MLP
# ----------------------------------------------------------------------------
def ssgcn_kernel(x_ref, at_ref, w1_ref, w2_ref, b2_ref,
                 oth_ref, w1r_ref, w1o_ref, b1m_ref, w2m_ref, b2m_ref,
                 out_ref, h_scr, acc_scr, *, b_pad):
    k = pl.program_id(0)

    @pl.when(k == 0)
    def _init():
        # GCN aggregation; gcn weight/bias are folded into at_ref (the
        # constant-1 column at ONES_COL carries the bias). ReLU, store bf16.
        agg = jnp.dot(x_ref[...], at_ref[...], preferred_element_type=jnp.float32)
        h_scr[...] = jnp.maximum(agg, 0.0).astype(jnp.bfloat16)
        # Init encoder accumulator with the (zero-padded) fc2 bias.
        acc_scr[...] = jnp.broadcast_to(b2_ref[...], acc_scr.shape)

    # fc1 tile (fc1 bias folded into row ONES_COL of w1) + ReLU, then fc2 tile.
    h1 = jnp.dot(h_scr[...], w1_ref[...], preferred_element_type=jnp.float32)
    h1 = jnp.maximum(h1, 0.0).astype(jnp.bfloat16)
    acc_scr[...] += jnp.dot(h1, w2_ref[...], preferred_element_type=jnp.float32)

    @pl.when(k == pl.num_programs(0) - 1)
    def _finalize():
        acc = acc_scr[...]                       # (2*b_pad, OUT_PAD) f32
        o1 = acc[0:b_pad, :]                     # encoder(input1)
        o2 = acc[b_pad:2 * b_pad, :]             # encoder(input2)

        # Pearson r^2 over the OUT_ENC valid columns (pad columns masked;
        # acc pad columns are exactly zero by construction of w2/b2).
        col = jax.lax.broadcasted_iota(jnp.int32, (1, OUT_PAD), 1)
        valid = (col < OUT_ENC).astype(jnp.float32)
        m1 = jnp.sum(o1, axis=1, keepdims=True) * (1.0 / OUT_ENC)
        m2 = jnp.sum(o2, axis=1, keepdims=True) * (1.0 / OUT_ENC)
        p1 = (o1 - m1) * valid
        p2 = (o2 - m2) * valid
        n1sq = jnp.sum(p1 * p1, axis=1, keepdims=True)
        n2sq = jnp.sum(p2 * p2, axis=1, keepdims=True)
        d12 = jnp.sum(p1 * p2, axis=1, keepdims=True)
        # Approx reciprocal -> EUP slot; epsilon guards degenerate rows.
        r2 = (d12 * d12) * pl.reciprocal(n1sq * n2sq + 1e-12, approx=True)

        # concat([r2, others]) @ W1  ==  r2 * W1[0, :] + others @ W1[1:, :]
        pre = (r2 * w1r_ref[...]
               + jnp.dot(oth_ref[...], w1o_ref[...],
                         preferred_element_type=jnp.float32)
               + b1m_ref[...])
        h_mlp = jnp.maximum(pre, 0.0)            # (b_pad, 128), pad cols stay 0
        # Second MLP layer only needs the first MLP_IN_PAD columns.
        out_ref[...] = (jnp.dot(h_mlp[:, 0:MLP_IN_PAD], w2m_ref[...],
                                preferred_element_type=jnp.float32)
                        + b2m_ref[...])


# ----------------------------------------------------------------------------
# Graph-static packing: dense A^T, bias folding, padding, bf16 cast (run once)
# ----------------------------------------------------------------------------
def pack_params(params, edges):
    src, dst = edges[0], edges[1]

    # A^T[j, i] = (#edges j -> i) * gcn_w ; row ONES_COL carries gcn bias and a
    # 1 at (ONES_COL, ONES_COL) so h[:, ONES_COL] == 1 feeds the fc1 bias row.
    at = jnp.zeros((N_PAD, N_PAD), jnp.float32)
    at = at.at[src, dst].add(params["gcn_w"])
    at = at.at[ONES_COL, :N_GENES].set(params["gcn_b"])
    at = at.at[ONES_COL, ONES_COL].set(1.0)

    w1 = jnp.zeros((N_PAD, HIDDEN), jnp.float32)
    w1 = w1.at[:N_GENES, :].set(params["fc1_w"])
    w1 = w1.at[ONES_COL, :].set(params["fc1_b"][0])   # fold fc1 bias

    w2 = jnp.zeros((HIDDEN, OUT_PAD), jnp.float32).at[:, :OUT_ENC].set(params["fc2_w"])
    b2 = jnp.zeros((1, OUT_PAD), jnp.float32).at[0, :OUT_ENC].set(params["fc2_b"][0])

    # Predictor weights: input-feature dim padded to 8 only (not 128).
    mlp1_w_r2 = jnp.zeros((1, MLP_PAD), jnp.float32).at[0, :4].set(params["mlp1_w"][0])
    mlp1_w_oth = jnp.zeros((MLP_IN_PAD, MLP_PAD), jnp.float32).at[:4, :4].set(params["mlp1_w"][1:])
    mlp1_b = jnp.zeros((1, MLP_PAD), jnp.float32).at[0, :4].set(params["mlp1_b"][0])
    mlp2_w = jnp.zeros((MLP_IN_PAD, MLP_PAD), jnp.float32).at[:4, :2].set(params["mlp2_w"])
    mlp2_b = jnp.zeros((1, MLP_PAD), jnp.float32).at[0, :2].set(params["mlp2_b"][0])

    return dict(
        at=at.astype(jnp.bfloat16),
        w1=w1.astype(jnp.bfloat16),
        w2=w2.astype(jnp.bfloat16),
        b2=b2,
        mlp1_w_r2=mlp1_w_r2, mlp1_w_oth=mlp1_w_oth, mlp1_b=mlp1_b,
        mlp2_w=mlp2_w, mlp2_b=mlp2_b,
    )


# ----------------------------------------------------------------------------
# Forward wrapper: pad/stack inputs, one pallas_call, slice result.
# Batching many (input1, input2) pairs per call is the main perf lever: the
# ~6.7 MiB weight stream is read from HBM exactly once per call here.
# ----------------------------------------------------------------------------
def ssgcn_pallas(packed, input1, input2, input_others):
    B = input1.shape[0]
    b_pad = max(8, _round_up(B, 8))

    # Stack both encoder inputs on the batch axis; pad genes to N_PAD with a
    # constant-1 column (bias carrier).
    x = jnp.zeros((2 * b_pad, N_PAD), jnp.float32)
    x = x.at[0:B, :N_GENES].set(input1)
    x = x.at[b_pad:b_pad + B, :N_GENES].set(input2)
    x = x.at[:, ONES_COL].set(1.0)
    x = x.astype(jnp.bfloat16)

    oth = jnp.zeros((b_pad, MLP_IN_PAD), jnp.float32).at[:B, :4].set(input_others)

    n_k = HIDDEN // TN   # 2 grid steps
    grid_spec = pltpu.PrefetchScalarGridSpec(
        num_scalar_prefetch=0,
        grid=(n_k,),
        in_specs=[
            pl.BlockSpec((2 * b_pad, N_PAD), lambda k: (0, 0)),     # x (stacked)
            pl.BlockSpec((N_PAD, N_PAD), lambda k: (0, 0)),         # A^T (bf16)
            pl.BlockSpec((N_PAD, TN), lambda k: (0, k)),            # W1 tile (bf16)
            pl.BlockSpec((TN, OUT_PAD), lambda k: (k, 0)),          # W2 tile (bf16)
            pl.BlockSpec((1, OUT_PAD), lambda k: (0, 0)),           # fc2 bias
            pl.BlockSpec((b_pad, MLP_IN_PAD), lambda k: (0, 0)),    # input_others (padded to 8)
            pl.BlockSpec((1, MLP_PAD), lambda k: (0, 0)),           # mlp1 W row for r2
            pl.BlockSpec((MLP_IN_PAD, MLP_PAD), lambda k: (0, 0)),  # mlp1 W rest (8,128)
            pl.BlockSpec((1, MLP_PAD), lambda k: (0, 0)),           # mlp1 b
            pl.BlockSpec((MLP_IN_PAD, MLP_PAD), lambda k: (0, 0)),  # mlp2 W (8,128)
            pl.BlockSpec((1, MLP_PAD), lambda k: (0, 0)),           # mlp2 b
        ],
        out_specs=pl.BlockSpec((b_pad, MLP_PAD), lambda k: (0, 0)),
        scratch_shapes=[
            pltpu.VMEM((2 * b_pad, N_PAD), jnp.bfloat16),           # h = relu(gcn(x))
            pltpu.VMEM((2 * b_pad, OUT_PAD), jnp.float32),          # encoder accumulator
        ],
    )
    out = pl.pallas_call(
        functools.partial(ssgcn_kernel, b_pad=b_pad),
        out_shape=jax.ShapeDtypeStruct((b_pad, MLP_PAD), jnp.float32),
        grid_spec=grid_spec,
        compiler_params=pltpu.CompilerParams(
            dimension_semantics=("arbitrary",),
            vmem_limit_bytes=32 * 1024 * 1024,
        ),
    )(x, packed["at"], packed["w1"], packed["w2"], packed["b2"],
      oth, packed["mlp1_w_r2"], packed["mlp1_w_oth"], packed["mlp1_b"],
      packed["mlp2_w"], packed["mlp2_b"])
    return out[:B, :2]


# ----------------------------------------------------------------------------
# Pure-JAX f32 reference (matches the PyTorch module)
# ----------------------------------------------------------------------------
def ssgcn_reference(params, input1, input2, edges, input_others):
    src, dst = edges[0], edges[1]
    a_t = jnp.zeros((N_GENES, N_GENES), jnp.float32).at[src, dst].add(1.0)

    def enc(x):
        h = jnp.maximum(x @ a_t * params["gcn_w"] + params["gcn_b"], 0.0)
        h1 = jnp.maximum(h @ params["fc1_w"] + params["fc1_b"], 0.0)
        return h1 @ params["fc2_w"] + params["fc2_b"]

    o1, o2 = enc(input1), enc(input2)
    p1 = o1 - jnp.mean(o1, axis=1, keepdims=True)
    p2 = o2 - jnp.mean(o2, axis=1, keepdims=True)
    n1 = jnp.sqrt(jnp.sum(p1 * p1, axis=1))
    n2 = jnp.sqrt(jnp.sum(p2 * p2, axis=1))
    r2 = ((jnp.sum(p1 * p2, axis=1) / (n1 * n2)) ** 2)[:, None]
    z = jnp.concatenate([r2, input_others], axis=1)
    h = jnp.maximum(z @ params["mlp1_w"] + params["mlp1_b"], 0.0)
    return h @ params["mlp2_w"] + params["mlp2_b"]


# ----------------------------------------------------------------------------
# Deterministic parameter / input construction
# ----------------------------------------------------------------------------
def init_params(key):
    ks = jax.random.split(key, 10)

    def lin(kw, kb, fan_in, fan_out):
        bound = 1.0 / jnp.sqrt(fan_in)
        w = jax.random.uniform(kw, (fan_in, fan_out), jnp.float32, -bound, bound)
        b = jax.random.uniform(kb, (1, fan_out), jnp.float32, -bound, bound)
        return w, b

    fc1_w, fc1_b = lin(ks[0], ks[1], N_GENES, HIDDEN)
    fc2_w, fc2_b = lin(ks[2], ks[3], HIDDEN, OUT_ENC)
    mlp1_w, mlp1_b = lin(ks[4], ks[5], 5, 4)
    mlp2_w, mlp2_b = lin(ks[6], ks[7], 4, 2)
    return dict(
        gcn_w=jax.random.normal(ks[8], (), jnp.float32) * 0.5,
        gcn_b=jax.random.normal(ks[9], (), jnp.float32) * 0.1,
        fc1_w=fc1_w, fc1_b=fc1_b, fc2_w=fc2_w, fc2_b=fc2_b,
        mlp1_w=mlp1_w, mlp1_b=mlp1_b, mlp2_w=mlp2_w, mlp2_b=mlp2_b,
    )


if __name__ == "__main__":
    key = jax.random.PRNGKey(0)
    kp, k1, k2, k3, ks, kd = jax.random.split(key, 6)

    B = 32           # batch of pairs per call (amortizes the weight stream)
    E = 4000         # number of edges in the shared gene graph

    params = init_params(kp)
    input1 = jax.random.normal(k1, (B, N_GENES), jnp.float32)
    input2 = jax.random.normal(k2, (B, N_GENES), jnp.float32)
    input_others = jax.random.normal(k3, (B, 4), jnp.float32)
    edges = jnp.stack(
        [
            jax.random.randint(ks, (E,), 0, N_GENES, dtype=jnp.int32),
            jax.random.randint(kd, (E,), 0, N_GENES, dtype=jnp.int32),
        ],
        axis=0,
    )

    # Graph-static packing: done once, outside the per-forward hot path.
    packed = pack_params(params, edges)

    fwd = jax.jit(ssgcn_pallas)
    out = jax.block_until_ready(fwd(packed, input1, input2, input_others))

    ref = ssgcn_reference(params, input1, input2, edges, input_others)
    assert out.shape == (B, 2), out.shape
    assert bool(jnp.all(jnp.isfinite(out)))
    # bf16 weights/activations in the encoder -> slightly looser tolerance vs f32 ref.
    assert bool(jnp.allclose(out, ref, rtol=1e-2, atol=1e-2)), (out, ref)

    print("KERNEL_OK")
</pallas_src>

<mosaic_0001>
module attributes {stable_mosaic.version = 11 : i64} {
  func.func @ssgcn_kernel(%arg0: i32, %arg1: memref<64x1024xbf16, #tpu.memory_space<vmem>>, %arg2: memref<1024x1024xbf16, #tpu.memory_space<vmem>>, %arg3: memref<1024x1024xbf16, #tpu.memory_space<vmem>>, %arg4: memref<1024x128xbf16, #tpu.memory_space<vmem>>, %arg5: memref<1x128xf32, #tpu.memory_space<vmem>>, %arg6: memref<32x8xf32, #tpu.memory_space<vmem>>, %arg7: memref<1x128xf32, #tpu.memory_space<vmem>>, %arg8: memref<8x128xf32, #tpu.memory_space<vmem>>, %arg9: memref<1x128xf32, #tpu.memory_space<vmem>>, %arg10: memref<8x128xf32, #tpu.memory_space<vmem>>, %arg11: memref<1x128xf32, #tpu.memory_space<vmem>>, %arg12: memref<32x128xf32, #tpu.memory_space<vmem>>, %arg13: memref<64x1024xbf16, #tpu.memory_space<vmem>>, %arg14: memref<64x128xf32, #tpu.memory_space<vmem>>) attributes {dimension_semantics = [#tpu.dimension_semantics<arbitrary>], iteration_bounds = array<i64: 2>, scalar_prefetch = 0 : i64, scratch_operands = 2 : i64, tpu.core_type = #tpu.core_type<tc>, window_params = [{pipeline_mode = #tpu.pipeline_mode<synchronous>, transform_indices = @transform_0, window_bounds = array<i64: 64, 1024>}, {pipeline_mode = #tpu.pipeline_mode<synchronous>, transform_indices = @transform_1, window_bounds = array<i64: 1024, 1024>}, {transform_indices = @transform_2, window_bounds = array<i64: 1024, 1024>}, {transform_indices = @transform_3, window_bounds = array<i64: 1024, 128>}, {pipeline_mode = #tpu.pipeline_mode<synchronous>, transform_indices = @transform_4, window_bounds = array<i64: 1, 128>}, {pipeline_mode = #tpu.pipeline_mode<synchronous>, transform_indices = @transform_5, window_bounds = array<i64: 32, 8>}, {pipeline_mode = #tpu.pipeline_mode<synchronous>, transform_indices = @transform_6, window_bounds = array<i64: 1, 128>}, {pipeline_mode = #tpu.pipeline_mode<synchronous>, transform_indices = @transform_7, window_bounds = array<i64: 8, 128>}, {pipeline_mode = #tpu.pipeline_mode<synchronous>, transform_indices = @transform_8, window_bounds = array<i64: 1, 128>}, {pipeline_mode = #tpu.pipeline_mode<synchronous>, transform_indices = @transform_9, window_bounds = array<i64: 8, 128>}, {pipeline_mode = #tpu.pipeline_mode<synchronous>, transform_indices = @transform_10, window_bounds = array<i64: 1, 128>}, {pipeline_mode = #tpu.pipeline_mode<synchronous>, transform_indices = @transform_11, window_bounds = array<i64: 32, 128>}]} {
    %c0_i32 = arith.constant 0 : i32
    %0 = arith.cmpi eq, %arg0, %c0_i32 : i32
    %1 = arith.extui %0 : i1 to i32
    %c0_i32_0 = arith.constant 0 : i32
    %2 = arith.cmpi ne, %1, %c0_i32_0 : i32
    scf.if %2 {
      %c0_13 = arith.constant 0 : index
      %c0_14 = arith.constant 0 : index
      %17 = vector.load %arg1[%c0_13, %c0_14] : memref<64x1024xbf16, #tpu.memory_space<vmem>>, vector<64x1024xbf16>
      %c0_15 = arith.constant 0 : index
      %c0_16 = arith.constant 0 : index
      %18 = vector.load %arg2[%c0_15, %c0_16] : memref<1024x1024xbf16, #tpu.memory_space<vmem>>, vector<1024x1024xbf16>
      %cst_17 = arith.constant dense<0.000000e+00> : vector<64x1024xf32>
      %19 = tpu.matmul %17, %18, %cst_17 {dimension_numbers = #tpu.dot_dimension_numbers<[1], [0], [0], [1], [0, 0, 1, 1], [], []>} : vector<64x1024xbf16>, vector<1024x1024xbf16>, vector<64x1024xf32> -> vector<64x1024xf32>
      %cst_18 = arith.constant 0.000000e+00 : f32
      %20 = vector.broadcast %cst_18 : f32 to vector<64x1024xf32>
      %21 = arith.maximumf %19, %20 : vector<64x1024xf32>
      %22 = arith.truncf %21 : vector<64x1024xf32> to vector<64x1024xbf16>
      %c0_19 = arith.constant 0 : index
      %c0_20 = arith.constant 0 : index
      %23 = vector.load %arg13[%c0_19, %c0_20] : memref<64x1024xbf16, #tpu.memory_space<vmem>>, vector<64x1024xbf16>
      tpu.vector_store %arg13[%c0_19, %c0_20], %22 {strides = array<i32>} : memref<64x1024xbf16, #tpu.memory_space<vmem>>, vector<64x1024xbf16>,
      %c0_21 = arith.constant 0 : index
      %c0_22 = arith.constant 0 : index
      %24 = vector.load %arg5[%c0_21, %c0_22] : memref<1x128xf32, #tpu.memory_space<vmem>>, vector<1x128xf32>
      %25 = vector.shape_cast %24 : vector<1x128xf32> to vector<1x128xf32>
      %26 = vector.broadcast %25 : vector<1x128xf32> to vector<64x128xf32>
      %c0_23 = arith.constant 0 : index
      %c0_24 = arith.constant 0 : index
      %27 = vector.load %arg14[%c0_23, %c0_24] : memref<64x128xf32, #tpu.memory_space<vmem>>, vector<64x128xf32>
      tpu.vector_store %arg14[%c0_23, %c0_24], %26 {strides = array<i32>} : memref<64x128xf32, #tpu.memory_space<vmem>>, vector<64x128xf32>,
    } else {
    }
    %c0 = arith.constant 0 : index
    %c0_1 = arith.constant 0 : index
    %3 = vector.load %arg13[%c0, %c0_1] : memref<64x1024xbf16, #tpu.memory_space<vmem>>, vector<64x1024xbf16>
    %c0_2 = arith.constant 0 : index
    %c0_3 = arith.constant 0 : index
    %4 = vector.load %arg3[%c0_2, %c0_3] : memref<1024x1024xbf16, #tpu.memory_space<vmem>>, vector<1024x1024xbf16>
    %cst = arith.constant dense<0.000000e+00> : vector<64x1024xf32>
    %5 = tpu.matmul %3, %4, %cst {dimension_numbers = #tpu.dot_dimension_numbers<[1], [0], [0], [1], [0, 0, 1, 1], [], []>} : vector<64x1024xbf16>, vector<1024x1024xbf16>, vector<64x1024xf32> -> vector<64x1024xf32>
    %cst_4 = arith.constant 0.000000e+00 : f32
    %6 = vector.broadcast %cst_4 : f32 to vector<64x1024xf32>
    %7 = arith.maximumf %5, %6 : vector<64x1024xf32>
    %8 = arith.truncf %7 : vector<64x1024xf32> to vector<64x1024xbf16>
    %c0_5 = arith.constant 0 : index
    %c0_6 = arith.constant 0 : index
    %9 = vector.load %arg14[%c0_5, %c0_6] : memref<64x128xf32, #tpu.memory_space<vmem>>, vector<64x128xf32>
    %c0_7 = arith.constant 0 : index
    %c0_8 = arith.constant 0 : index
    %10 = vector.load %arg4[%c0_7, %c0_8] : memref<1024x128xbf16, #tpu.memory_space<vmem>>, vector<1024x128xbf16>
    %cst_9 = arith.constant dense<0.000000e+00> : vector<64x128xf32>
    %11 = tpu.matmul %8, %10, %cst_9 {dimension_numbers = #tpu.dot_dimension_numbers<[1], [0], [0], [1], [0, 0, 1, 1], [], []>} : vector<64x1024xbf16>, vector<1024x128xbf16>, vector<64x128xf32> -> vector<64x128xf32>
    %12 = arith.addf %9, %11 : vector<64x128xf32>
    %c0_10 = arith.constant 0 : index
    %c0_11 = arith.constant 0 : index
    %13 = vector.load %arg14[%c0_10, %c0_11] : memref<64x128xf32, #tpu.memory_space<vmem>>, vector<64x128xf32>
    tpu.vector_store %arg14[%c0_10, %c0_11], %12 {strides = array<i32>} : memref<64x128xf32, #tpu.memory_space<vmem>>, vector<64x128xf32>,
    %c1_i32 = arith.constant 1 : i32
    %14 = arith.cmpi eq, %arg0, %c1_i32 : i32
    %15 = arith.extui %14 : i1 to i32
    %c0_i32_12 = arith.constant 0 : i32
    %16 = arith.cmpi ne, %15, %c0_i32_12 : i32
    scf.if %16 {
      %c0_13 = arith.constant 0 : index
      %c0_14 = arith.constant 0 : index
      %17 = vector.load %arg14[%c0_13, %c0_14] : memref<64x128xf32, #tpu.memory_space<vmem>>, vector<64x128xf32>
      %18 = vector.extract_strided_slice %17 {offsets = [0, 0], sizes = [32, 128], strides = [1, 1]} : vector<64x128xf32> to vector<32x128xf32>
      %19 = vector.extract_strided_slice %17 {offsets = [32, 0], sizes = [32, 128], strides = [1, 1]} : vector<64x128xf32> to vector<32x128xf32>
      %20 = tpu.iota {dimensions = array<i32: 1>} : vector<1x128xi32>
      %c100_i32 = arith.constant 100 : i32
      %21 = vector.broadcast %c100_i32 : i32 to vector<1x128xi32>
      %22 = arith.cmpi slt, %20, %21 : vector<1x128xi32>
      %23 = arith.extui %22 : vector<1x128xi1> to vector<1x128xi32>
      %24 = arith.sitofp %23 : vector<1x128xi32> to vector<1x128xf32>
      %cst_15 = arith.constant dense<0.000000e+00> : vector<32xf32>
      %25 = vector.multi_reduction <add>, %18, %cst_15 [1] : vector<32x128xf32> to vector<32xf32>
      %26 = vector.shape_cast %25 : vector<32xf32> to vector<32x1xf32>
      %cst_16 = arith.constant 0.00999999977 : f32
      %27 = vector.broadcast %cst_16 : f32 to vector<32x1xf32>
      %28 = arith.mulf %26, %27 : vector<32x1xf32>
      %cst_17 = arith.constant dense<0.000000e+00> : vector<32xf32>
      %29 = vector.multi_reduction <add>, %19, %cst_17 [1] : vector<32x128xf32> to vector<32xf32>
      %30 = vector.shape_cast %29 : vector<32xf32> to vector<32x1xf32>
      %cst_18 = arith.constant 0.00999999977 : f32
      %31 = vector.broadcast %cst_18 : f32 to vector<32x1xf32>
      %32 = arith.mulf %30, %31 : vector<32x1xf32>
      %33 = vector.broadcast %28 : vector<32x1xf32> to vector<32x128xf32>
      %34 = arith.subf %18, %33 : vector<32x128xf32>
      %35 = vector.broadcast %24 : vector<1x128xf32> to vector<32x128xf32>
      %36 = arith.mulf %34, %35 : vector<32x128xf32>
      %37 = vector.broadcast %32 : vector<32x1xf32> to vector<32x128xf32>
      %38 = arith.subf %19, %37 : vector<32x128xf32>
      %39 = vector.broadcast %24 : vector<1x128xf32> to vector<32x128xf32>
      %40 = arith.mulf %38, %39 : vector<32x128xf32>
      %41 = arith.mulf %36, %36 : vector<32x128xf32>
      %cst_19 = arith.constant dense<0.000000e+00> : vector<32xf32>
      %42 = vector.multi_reduction <add>, %41, %cst_19 [1] : vector<32x128xf32> to vector<32xf32>
      %43 = vector.shape_cast %42 : vector<32xf32> to vector<32x1xf32>
      %44 = arith.mulf %40, %40 : vector<32x128xf32>
      %cst_20 = arith.constant dense<0.000000e+00> : vector<32xf32>
      %45 = vector.multi_reduction <add>, %44, %cst_20 [1] : vector<32x128xf32> to vector<32xf32>
      %46 = vector.shape_cast %45 : vector<32xf32> to vector<32x1xf32>
      %47 = arith.mulf %36, %40 : vector<32x128xf32>
      %cst_21 = arith.constant dense<0.000000e+00> : vector<32xf32>
      %48 = vector.multi_reduction <add>, %47, %cst_21 [1] : vector<32x128xf32> to vector<32xf32>
      %49 = vector.shape_cast %48 : vector<32xf32> to vector<32x1xf32>
      %50 = arith.mulf %49, %49 : vector<32x1xf32>
      %51 = arith.mulf %43, %46 : vector<32x1xf32>
      %cst_22 = arith.constant 9.99999996E-13 : f32
      %52 = vector.broadcast %cst_22 : f32 to vector<32x1xf32>
      %53 = arith.addf %51, %52 : vector<32x1xf32>
      %54 = tpu.reciprocal %53 {approx = true} : vector<32x1xf32> -> vector<32x1xf32>
      %55 = arith.mulf %50, %54 : vector<32x1xf32>
      %c0_23 = arith.constant 0 : index
      %c0_24 = arith.constant 0 : index
      %56 = vector.load %arg7[%c0_23, %c0_24] : memref<1x128xf32, #tpu.memory_space<vmem>>, vector<1x128xf32>
      %57 = vector.broadcast %55 : vector<32x1xf32> to vector<32x128xf32>
      %58 = vector.broadcast %56 : vector<1x128xf32> to vector<32x128xf32>
      %59 = arith.mulf %57, %58 : vector<32x128xf32>
      %c0_25 = arith.constant 0 : index
      %c0_26 = arith.constant 0 : index
      %60 = vector.load %arg6[%c0_25, %c0_26] : memref<32x8xf32, #tpu.memory_space<vmem>>, vector<32x8xf32>
      %c0_27 = arith.constant 0 : index
      %c0_28 = arith.constant 0 : index
      %61 = vector.load %arg8[%c0_27, %c0_28] : memref<8x128xf32, #tpu.memory_space<vmem>>, vector<8x128xf32>
      %cst_29 = arith.constant dense<0.000000e+00> : vector<32x128xf32>
      %62 = tpu.matmul %60, %61, %cst_29 {dimension_numbers = #tpu.dot_dimension_numbers<[1], [0], [0], [1], [0, 0, 1, 1], [], []>} : vector<32x8xf32>, vector<8x128xf32>, vector<32x128xf32> -> vector<32x128xf32>
      %63 = arith.addf %59, %62 : vector<32x128xf32>
      %c0_30 = arith.constant 0 : index
      %c0_31 = arith.constant 0 : index
      %64 = vector.load %arg9[%c0_30, %c0_31] : memref<1x128xf32, #tpu.memory_space<vmem>>, vector<1x128xf32>
      %65 = vector.broadcast %64 : vector<1x128xf32> to vector<32x128xf32>
      %66 = arith.addf %63, %65 : vector<32x128xf32>
      %cst_32 = arith.constant 0.000000e+00 : f32
      %67 = vector.broadcast %cst_32 : f32 to vector<32x128xf32>
      %68 = arith.maximumf %66, %67 : vector<32x128xf32>
      %69 = vector.extract_strided_slice %68 {offsets = [0, 0], sizes = [32, 8], strides = [1, 1]} : vector<32x128xf32> to vector<32x8xf32>
      %c0_33 = arith.constant 0 : index
      %c0_34 = arith.constant 0 : index
      %70 = vector.load %arg10[%c0_33, %c0_34] : memref<8x128xf32, #tpu.memory_space<vmem>>, vector<8x128xf32>
      %cst_35 = arith.constant dense<0.000000e+00> : vector<32x128xf32>
      %71 = tpu.matmul %69, %70, %cst_35 {dimension_numbers = #tpu.dot_dimension_numbers<[1], [0], [0], [1], [0, 0, 1, 1], [], []>} : vector<32x8xf32>, vector<8x128xf32>, vector<32x128xf32> -> vector<32x128xf32>
      %c0_36 = arith.constant 0 : index
      %c0_37 = arith.constant 0 : index
      %72 = vector.load %arg11[%c0_36, %c0_37] : memref<1x128xf32, #tpu.memory_space<vmem>>, vector<1x128xf32>
      %73 = vector.broadcast %72 : vector<1x128xf32> to vector<32x128xf32>
      %74 = arith.addf %71, %73 : vector<32x128xf32>
      %c0_38 = arith.constant 0 : index
      %c0_39 = arith.constant 0 : index
      %75 = vector.load %arg12[%c0_38, %c0_39] : memref<32x128xf32, #tpu.memory_space<vmem>>, vector<32x128xf32>
      tpu.vector_store %arg12[%c0_38, %c0_39], %74 {strides = array<i32>} : memref<32x128xf32, #tpu.memory_space<vmem>>, vector<32x128xf32>,
    } else {
    }
    return
  }
  func.func @transform_0(%arg0: i32) -> (i32, i32) {
    %c0_i32 = arith.constant 0 : i32
    %c0_i32_0 = arith.constant 0 : i32
    %c0_i32_1 = arith.constant 0 : i32
    return %c0_i32, %c0_i32_0 : i32, i32
  }
  func.func @transform_1(%arg0: i32) -> (i32, i32) {
    %c0_i32 = arith.constant 0 : i32
    %c0_i32_0 = arith.constant 0 : i32
    %c0_i32_1 = arith.constant 0 : i32
    return %c0_i32, %c0_i32_0 : i32, i32
  }
  func.func @transform_2(%arg0: i32) -> (i32, i32) {
    %c0_i32 = arith.constant 0 : i32
    %c0_i32_0 = arith.constant 0 : i32
    return %c0_i32, %arg0 : i32, i32
  }
  func.func @transform_3(%arg0: i32) -> (i32, i32) {
    %c0_i32 = arith.constant 0 : i32
    %c0_i32_0 = arith.constant 0 : i32
    return %arg0, %c0_i32 : i32, i32
  }
  func.func @transform_4(%arg0: i32) -> (i32, i32) {
    %c0_i32 = arith.constant 0 : i32
    %c0_i32_0 = arith.constant 0 : i32
    %c0_i32_1 = arith.constant 0 : i32
    return %c0_i32, %c0_i32_0 : i32, i32
  }
  func.func @transform_5(%arg0: i32) -> (i32, i32) {
    %c0_i32 = arith.constant 0 : i32
    %c0_i32_0 = arith.constant 0 : i32
    %c0_i32_1 = arith.constant 0 : i32
    return %c0_i32, %c0_i32_0 : i32, i32
  }
  func.func @transform_6(%arg0: i32) -> (i32, i32) {
    %c0_i32 = arith.constant 0 : i32
    %c0_i32_0 = arith.constant 0 : i32
    %c0_i32_1 = arith.constant 0 : i32
    return %c0_i32, %c0_i32_0 : i32, i32
  }
  func.func @transform_7(%arg0: i32) -> (i32, i32) {
    %c0_i32 = arith.constant 0 : i32
    %c0_i32_0 = arith.constant 0 : i32
    %c0_i32_1 = arith.constant 0 : i32
    return %c0_i32, %c0_i32_0 : i32, i32
  }
  func.func @transform_8(%arg0: i32) -> (i32, i32) {
    %c0_i32 = arith.constant 0 : i32
    %c0_i32_0 = arith.constant 0 : i32
    %c0_i32_1 = arith.constant 0 : i32
    return %c0_i32, %c0_i32_0 : i32, i32
  }
  func.func @transform_9(%arg0: i32) -> (i32, i32) {
    %c0_i32 = arith.constant 0 : i32
    %c0_i32_0 = arith.constant 0 : i32
    %c0_i32_1 = arith.constant 0 : i32
    return %c0_i32, %c0_i32_0 : i32, i32
  }
  func.func @transform_10(%arg0: i32) -> (i32, i32) {
    %c0_i32 = arith.constant 0 : i32
    %c0_i32_0 = arith.constant 0 : i32
    %c0_i32_1 = arith.constant 0 : i32
    return %c0_i32, %c0_i32_0 : i32, i32
  }
  func.func @transform_11(%arg0: i32) -> (i32, i32) {
    %c0_i32 = arith.constant 0 : i32
    %c0_i32_0 = arith.constant 0 : i32
    %c0_i32_1 = arith.constant 0 : i32
    return %c0_i32, %c0_i32_0 : i32, i32
  }
}

</mosaic_0001>

<llo_original>
// kernel: ssgcn_pallas.1
$region0: #{ssgcn_pallas.1}
  #allocation0 [shape = 'u32[]', space=smem, size = 0x4, offset = 0x4, fixed_abs, tag = 'smem constant byte address 0x4 - core index']
  #allocation1 [shape = 'u32[72,128]{1,0:T(1,128)}', space=vmem, size = 0x9000, scoped, tag = 'internal scratch']
  #allocation2 [shape = 'bf16[64,1024]{1,0:T(8,128)(2,1)}', space=vmem, size = 0x20000, scoped, tag = 'scratch operand']
  #allocation3 [shape = 'f32[64,128]{1,0:T(8,128)}', space=vmem, size = 0x8000, scoped, tag = 'scratch operand']
  %s0 = inlined_call_operand.vmem [shape: bf16[64,1024], index: 0, kind: input, shape index: {}]
  %s1 = inlined_call_operand.hbm [shape: bf16[1024,1024], index: 1, kind: input, shape index: {}]
  %s2 = inlined_call_operand.hbm [shape: bf16[1024,2048], index: 2, kind: input, shape index: {}]
  %s3 = inlined_call_operand.hbm [shape: bf16[2048,128], index: 3, kind: input, shape index: {}]
  %s4 = inlined_call_operand.hbm [shape: f32[1,128], index: 4, kind: input, shape index: {}]
  %s5 = inlined_call_operand.vmem [shape: f32[32,8], index: 5, kind: input, shape index: {}]
  %s6 = inlined_call_operand.hbm [shape: f32[1,128], index: 6, kind: input, shape index: {}]
  %s7 = inlined_call_operand.hbm [shape: f32[8,128], index: 7, kind: input, shape index: {}]
  %s8 = inlined_call_operand.hbm [shape: f32[1,128], index: 8, kind: input, shape index: {}]
  %s9 = inlined_call_operand.hbm [shape: f32[8,128], index: 9, kind: input, shape index: {}]
  %s10 = inlined_call_operand.hbm [shape: f32[1,128], index: 10, kind: input, shape index: {}]
  %s11 = inlined_call_operand.vmem [shape: f32[32,128], index: 11, kind: output, shape index: {}]
  %s12 = sld [smem:[#allocation0]]
  $region121: #{ssgcn_pallas.1} parent=0
    _
  %s14 = ssub.s32 1, %s12
  %s15 = scalar_select 0, %s14, %s12
  $region1: #{ssgcn_pallas.1} parent=0
    #allocation4 [shape = 'u8[2097152]{0}', space=vmem, size = 0x200000, scoped, tag = 'input window, operand 1, single buffered']
    #allocation5 [shape = 's32[2]{0}', space=sflag, size = 0x8, scoped, tag = 'scoped memory for ssgcn_pallas.1']
    #allocation6 [shape = 'u8[4194304]{0}', space=vmem, size = 0x400000, scoped, tag = 'input window, operand 2']
    #allocation7 [shape = 's32[2]{0}', space=sflag, size = 0x8, scoped, tag = 'scoped memory for ssgcn_pallas.1']
    #allocation8 [shape = 'u8[524288]{0}', space=vmem, size = 0x80000, scoped, tag = 'input window, operand 3']
    #allocation9 [shape = 'u8[512]{0}', space=vmem, size = 0x400, scoped, tag = 'input window, operand 4, single buffered']
    #allocation10 [shape = 's32[1]{0}', space=sflag, size = 0x4, scoped, tag = 'scoped memory for ssgcn_pallas.1']
    #allocation11 [shape = 'u8[512]{0}', space=vmem, size = 0x400, scoped, tag = 'input window, operand 6, single buffered']
    #allocation12 [shape = 'u8[4096]{0}', space=vmem, size = 0x1000, scoped, tag = 'input window, operand 7, single buffered']
    #allocation13 [shape = 's32[1]{0}', space=sflag, size = 0x4, scoped, tag = 'scoped memory for ssgcn_pallas.1']
    #allocation14 [shape = 'u8[512]{0}', space=vmem, size = 0x400, scoped, tag = 'input window, operand 8, single buffered']
    #allocation15 [shape = 'u8[4096]{0}', space=vmem, size = 0x1000, scoped, tag = 'input window, operand 9, single buffered']
    #allocation16 [shape = 's32[1]{0}', space=sflag, size = 0x4, scoped, tag = 'scoped memory for ssgcn_pallas.1']
    #allocation17 [shape = 'u8[512]{0}', space=vmem, size = 0x400, scoped, tag = 'input window, operand 10, single buffered']
    %16 = vsyncpa [#allocation5], 0
    %17 = vsyncpa [#allocation7], 0
    %s18 = scalar_lea.sflag [#allocation7], 1
    %19 = vsyncpa %s18, 0
    %20 = vsyncpa [#allocation10], 0
    %21 = vsyncpa [#allocation13], 0
    %22 = vsyncpa [#allocation16], 0
    loop: start=0, step=1, limit=4
    $region2: #{ssgcn_pallas.1} parent=1 // loop_pre_header
      _
    $region3: #{ssgcn_pallas.1} parent=1 // loop_header
      %s24 = sphi 0, %s28
      %p25 = scmp.ge.s32.totalorder %s24, 4
      %s32 = sphi 0, %s32
      %s34 = sphi 0, %s32
      %s35 = sphi 0, %s34
      %s49 = sphi 0, %s35
      %s53 = sphi 0, %s53
      %s55 = sphi 0, %s53
      %s56 = sphi 0, %s55
      %s70 = sphi 0, %s56
      %s76 = sphi 0, %s78
      %s79 = sphi 0, %s76
      %s80 = sphi 0, %s79
      %s96 = sphi 0, %s80
      %s102 = sphi 0, %s104
      %s105 = sphi 0, %s102
      %s106 = sphi 0, %s105
      %s122 = sphi 0, %s106
      %s126 = sphi 0, %s126
      %s128 = sphi 0, %s126
      %s129 = sphi 0, %s128
      %s143 = sphi 0, %s129
      %s147 = sphi 0, %s147
      %s149 = sphi 0, %s147
      %s150 = sphi 0, %s149
      %s164 = sphi 0, %s150
      %s168 = sphi 0, %s168
      %s170 = sphi 0, %s168
      %s171 = sphi 0, %s170
      %s185 = sphi 0, %s171
      %s189 = sphi 0, %s189
      %s191 = sphi 0, %s189
      %s192 = sphi 0, %s191
      %s206 = sphi 0, %s192
      %s210 = sphi 0, %s210
      %s212 = sphi 0, %s210
      %s213 = sphi 0, %s212
      %s227 = sphi 0, %s213
      %s231 = sphi 0, %s231
      %s233 = sphi 0, %s231
      %s234 = sphi 0, %s233
      %s248 = sphi 0, %s234
      %s252 = sphi 0, %s252
      %s254 = sphi 0, %s252
      %s255 = sphi 0, %s254
      %s269 = sphi 0, %s255
      %s273 = sphi 0, %s273
      %s275 = sphi 0, %s273
      %s276 = sphi 0, %s275
      %s290 = sphi 0, %s276
    $region4: #{ssgcn_pallas.1} parent=1 // loop_header_branch
      %27 = sbr.rel (%p25) target = $region8
    $region5: #{ssgcn_pallas.1} parent=1 // loop_body
      %s29 = ssub.s32 %s24, 1
      %s30 = ssub.s32 %s24, 2
      %s31 = sadd.s32 %s24, 1
      %s33 = sadd.s32 %s32, 1
      %p36 = scmp.eq.s32.totalorder %s24, 1
      %p37 = scmp.ne.s32.totalorder %s32, %s34
      %p38 = scmp.eq.s32.totalorder %s24, 0
      %p39 = por %p37, %p38
      %p40 = scmp.ne.s32.totalorder %s32, %s34
      %p41 = scmp.eq.s32.totalorder %s29, 1
      %p42 = por %p40, %p41
      %p43 = scmp.ne.s32.totalorder %s34, %s35
      %p44 = scmp.eq.s32.totalorder %s29, 0
      %p45 = por %p43, %p44
      %p46 = scmp.ne.s32.totalorder %s34, %s35
      %p47 = scmp.eq.s32.totalorder %s30, 1
      %p48 = por %p46, %p47
      %p50 = scmp.ne.s32.totalorder %s35, %s49
      %p51 = scmp.eq.s32.totalorder %s30, 0
      %p52 = por %p50, %p51
      %s54 = sadd.s32 %s53, 1
      %p57 = scmp.eq.s32.totalorder %s24, 1
      %p58 = scmp.ne.s32.totalorder %s53, %s55
      %p59 = scmp.eq.s32.totalorder %s24, 0
      %p60 = por %p58, %p59
      %p61 = scmp.ne.s32.totalorder %s53, %s55
      %p62 = scmp.eq.s32.totalorder %s29, 1
      %p63 = por %p61, %p62
      %p64 = scmp.ne.s32.totalorder %s55, %s56
      %p65 = scmp.eq.s32.totalorder %s29, 0
      %p66 = por %p64, %p65
      %p67 = scmp.ne.s32.totalorder %s55, %s56
      %p68 = scmp.eq.s32.totalorder %s30, 1
      %p69 = por %p67, %p68
      %p71 = scmp.ne.s32.totalorder %s56, %s70
      %p72 = scmp.eq.s32.totalorder %s30, 0
      %p73 = por %p71, %p72
      %s74 = ssub.s32 %s24, %s31
      %p75 = scmp.eq.s32.totalorder %s74, 0
      %s77 = sadd.s32 %s76, 1
      %s78 = scalar_select %p75, %s76, %s77
      %p81 = pneg %p75
      %p82 = scmp.eq.s32.totalorder %s24, 1
      %p83 = por %p81, %p82
      %p84 = scmp.ne.s32.totalorder %s76, %s79
      %p85 = scmp.eq.s32.totalorder %s24, 0
      %p86 = por %p84, %p85
      %p87 = scmp.ne.s32.totalorder %s76, %s79
      %p88 = scmp.eq.s32.totalorder %s29, 1
      %p89 = por %p87, %p88
      %p90 = scmp.ne.s32.totalorder %s79, %s80
      %p91 = scmp.eq.s32.totalorder %s29, 0
      %p92 = por %p90, %p91
      %p93 = scmp.ne.s32.totalorder %s79, %s80
      %p94 = scmp.eq.s32.totalorder %s30, 1
      %p95 = por %p93, %p94
      %p97 = scmp.ne.s32.totalorder %s80, %s96
      %p98 = scmp.eq.s32.totalorder %s30, 0
      %p99 = por %p97, %p98
      %s100 = ssub.s32 %s24, %s31
      %p101 = scmp.eq.s32.totalorder %s100, 0
      %s103 = sadd.s32 %s102, 1
      %s104 = scalar_select %p101, %s102, %s103
      %p107 = pneg %p101
      %p108 = scmp.eq.s32.totalorder %s24, 1
      %p109 = por %p107, %p108
      %p110 = scmp.ne.s32.totalorder %s102, %s105
      %p111 = scmp.eq.s32.totalorder %s24, 0
      %p112 = por %p110, %p111
      %p113 = scmp.ne.s32.totalorder %s102, %s105
      %p114 = scmp.eq.s32.totalorder %s29, 1
      %p115 = por %p113, %p114
      %p116 = scmp.ne.s32.totalorder %s105, %s106
      %p117 = scmp.eq.s32.totalorder %s29, 0
      %p118 = por %p116, %p117
      %p119 = scmp.ne.s32.totalorder %s105, %s106
      %p120 = scmp.eq.s32.totalorder %s30, 1
      %p121 = por %p119, %p120
      %p123 = scmp.ne.s32.totalorder %s106, %s122
      %p124 = scmp.eq.s32.totalorder %s30, 0
      %p125 = por %p123, %p124
      %s127 = sadd.s32 %s126, 1
      %p130 = scmp.eq.s32.totalorder %s24, 1
      %p131 = scmp.ne.s32.totalorder %s126, %s128
      %p132 = scmp.eq.s32.totalorder %s24, 0
      %p133 = por %p131, %p132
      %p134 = scmp.ne.s32.totalorder %s126, %s128
      %p135 = scmp.eq.s32.totalorder %s29, 1
      %p136 = por %p134, %p135
      %p137 = scmp.ne.s32.totalorder %s128, %s129
      %p138 = scmp.eq.s32.totalorder %s29, 0
      %p139 = por %p137, %p138
      %p140 = scmp.ne.s32.totalorder %s128, %s129
      %p141 = scmp.eq.s32.totalorder %s30, 1
      %p142 = por %p140, %p141
      %p144 = scmp.ne.s32.totalorder %s129, %s143
      %p145 = scmp.eq.s32.totalorder %s30, 0
      %p146 = por %p144, %p145
      %s148 = sadd.s32 %s147, 1
      %p151 = scmp.eq.s32.totalorder %s24, 1
      %p152 = scmp.ne.s32.totalorder %s147, %s149
      %p153 = scmp.eq.s32.totalorder %s24, 0
      %p154 = por %p152, %p153
      %p155 = scmp.ne.s32.totalorder %s147, %s149
      %p156 = scmp.eq.s32.totalorder %s29, 1
      %p157 = por %p155, %p156
      %p158 = scmp.ne.s32.totalorder %s149, %s150
      %p159 = scmp.eq.s32.totalorder %s29, 0
      %p160 = por %p158, %p159
      %p161 = scmp.ne.s32.totalorder %s149, %s150
      %p162 = scmp.eq.s32.totalorder %s30, 1
      %p163 = por %p161, %p162
      %p165 = scmp.ne.s32.totalorder %s150, %s164
      %p166 = scmp.eq.s32.totalorder %s30, 0
      %p167 = por %p165, %p166
      %s169 = sadd.s32 %s168, 1
      %p172 = scmp.eq.s32.totalorder %s24, 1
      %p173 = scmp.ne.s32.totalorder %s168, %s170
      %p174 = scmp.eq.s32.totalorder %s24, 0
      %p175 = por %p173, %p174
      %p176 = scmp.ne.s32.totalorder %s168, %s170
      %p177 = scmp.eq.s32.totalorder %s29, 1
      %p178 = por %p176, %p177
      %p179 = scmp.ne.s32.totalorder %s170, %s171
      %p180 = scmp.eq.s32.totalorder %s29, 0
      %p181 = por %p179, %p180
      %p182 = scmp.ne.s32.totalorder %s170, %s171
      %p183 = scmp.eq.s32.totalorder %s30, 1
      %p184 = por %p182, %p183
      %p186 = scmp.ne.s32.totalorder %s171, %s185
      %p187 = scmp.eq.s32.totalorder %s30, 0
      %p188 = por %p186, %p187
      %s190 = sadd.s32 %s189, 1
      %p193 = scmp.eq.s32.totalorder %s24, 1
      %p194 = scmp.ne.s32.totalorder %s189, %s191
      %p195 = scmp.eq.s32.totalorder %s24, 0
      %p196 = por %p194, %p195
      %p197 = scmp.ne.s32.totalorder %s189, %s191
      %p198 = scmp.eq.s32.totalorder %s29, 1
      %p199 = por %p197, %p198
      %p200 = scmp.ne.s32.totalorder %s191, %s192
      %p201 = scmp.eq.s32.totalorder %s29, 0
      %p202 = por %p200, %p201
      %p203 = scmp.ne.s32.totalorder %s191, %s192
      %p204 = scmp.eq.s32.totalorder %s30, 1
      %p205 = por %p203, %p204
      %p207 = scmp.ne.s32.totalorder %s192, %s206
      %p208 = scmp.eq.s32.totalorder %s30, 0
      %p209 = por %p207, %p208
      %s211 = sadd.s32 %s210, 1
      %p214 = scmp.eq.s32.totalorder %s24, 1
      %p215 = scmp.ne.s32.totalorder %s210, %s212
      %p216 = scmp.eq.s32.totalorder %s24, 0
      %p217 = por %p215, %p216
      %p218 = scmp.ne.s32.totalorder %s210, %s212
      %p219 = scmp.eq.s32.totalorder %s29, 1
      %p220 = por %p218, %p219
      %p221 = scmp.ne.s32.totalorder %s212, %s213
      %p222 = scmp.eq.s32.totalorder %s29, 0
      %p223 = por %p221, %p222
      %p224 = scmp.ne.s32.totalorder %s212, %s213
      %p225 = scmp.eq.s32.totalorder %s30, 1
      %p226 = por %p224, %p225
      %p228 = scmp.ne.s32.totalorder %s213, %s227
      %p229 = scmp.eq.s32.totalorder %s30, 0
      %p230 = por %p228, %p229
      %s232 = sadd.s32 %s231, 1
      %p235 = scmp.eq.s32.totalorder %s24, 1
      %p236 = scmp.ne.s32.totalorder %s231, %s233
      %p237 = scmp.eq.s32.totalorder %s24, 0
      %p238 = por %p236, %p237
      %p239 = scmp.ne.s32.totalorder %s231, %s233
      %p240 = scmp.eq.s32.totalorder %s29, 1
      %p241 = por %p239, %p240
      %p242 = scmp.ne.s32.totalorder %s233, %s234
      %p243 = scmp.eq.s32.totalorder %s29, 0
      %p244 = por %p242, %p243
      %p245 = scmp.ne.s32.totalorder %s233, %s234
      %p246 = scmp.eq.s32.totalorder %s30, 1
      %p247 = por %p245, %p246
      %p249 = scmp.ne.s32.totalorder %s234, %s248
      %p250 = scmp.eq.s32.totalorder %s30, 0
      %p251 = por %p249, %p250
      %s253 = sadd.s32 %s252, 1
      %p256 = scmp.eq.s32.totalorder %s24, 1
      %p257 = scmp.ne.s32.totalorder %s252, %s254
      %p258 = scmp.eq.s32.totalorder %s24, 0
      %p259 = por %p257, %p258
      %p260 = scmp.ne.s32.totalorder %s252, %s254
      %p261 = scmp.eq.s32.totalorder %s29, 1
      %p262 = por %p260, %p261
      %p263 = scmp.ne.s32.totalorder %s254, %s255
      %p264 = scmp.eq.s32.totalorder %s29, 0
      %p265 = por %p263, %p264
      %p266 = scmp.ne.s32.totalorder %s254, %s255
      %p267 = scmp.eq.s32.totalorder %s30, 1
      %p268 = por %p266, %p267
      %p270 = scmp.ne.s32.totalorder %s255, %s269
      %p271 = scmp.eq.s32.totalorder %s30, 0
      %p272 = por %p270, %p271
      %s274 = sadd.s32 %s273, 1
      %p277 = scmp.eq.s32.totalorder %s24, 1
      %p278 = scmp.ne.s32.totalorder %s273, %s275
      %p279 = scmp.eq.s32.totalorder %s24, 0
      %p280 = por %p278, %p279
      %p281 = scmp.ne.s32.totalorder %s273, %s275
      %p282 = scmp.eq.s32.totalorder %s29, 1
      %p283 = por %p281, %p282
      %p284 = scmp.ne.s32.totalorder %s275, %s276
      %p285 = scmp.eq.s32.totalorder %s29, 0
      %p286 = por %p284, %p285
      %p287 = scmp.ne.s32.totalorder %s275, %s276
      %p288 = scmp.eq.s32.totalorder %s30, 1
      %p289 = por %p287, %p288
      %p291 = scmp.ne.s32.totalorder %s276, %s290
      %p292 = scmp.eq.s32.totalorder %s30, 0
      %p293 = por %p291, %p292
      %p294 = scmp.le.s32.totalorder 1, %s24
      %p295 = scmp.lt.s32.totalorder %s24, 3
      %p296 = pnand %p294, %p295
      %p297 = pneg %p296
      // Predicated region
      $region9: #{ssgcn_pallas.1} parent=5 // pred_check
        _
      $region10: #{ssgcn_pallas.1} parent=5 // pred_check_branch
        %299 = sbr.rel (%p296) target = $region12
      $region11: #{ssgcn_pallas.1} parent=5 // pred_region
        %s300 = ssub.s32 %s24, 1
        // Predicated region
        $region13: #{ssgcn_pallas.1} parent=11 // pred_check
          %p301 = pneg %p45
        $region14: #{ssgcn_pallas.1} parent=11 // pred_check_branch
          %303 = sbr.rel (%p301) target = $region16
        $region15: #{ssgcn_pallas.1} parent=11 // pred_region
          _
        $region16: #{ssgcn_pallas.1} parent=11 // pred_fallthru
          _
        // Predicated region
        $region17: #{ssgcn_pallas.1} parent=11 // pred_check
          %p304 = pneg %p66
        $region18: #{ssgcn_pallas.1} parent=11 // pred_check_branch
          %306 = sbr.rel (%p304) target = $region20
        $region19: #{ssgcn_pallas.1} parent=11 // pred_region
          %308 = vsyncadd [#allocation5], 0
          %s309 = sshll.u32 %s1, 4
          %s310 = int_to_ptr.hbm [resolvable:$true] %s309
          %s311 = sshll.u32 [#allocation4], 4
          %s312 = int_to_ptr.vmem [resolvable:$true] %s311
          %317 = dma.hbm_to_vmem [thread:$0]  %s310, 65536, %s312, [#allocation5], 512, 512, 32
        $region20: #{ssgcn_pallas.1} parent=11 // pred_fallthru
          _
        // Predicated region
        $region21: #{ssgcn_pallas.1} parent=11 // pred_check
          %p318 = pneg %p139
        $region22: #{ssgcn_pallas.1} parent=11 // pred_check_branch
          %320 = sbr.rel (%p318) target = $region24
        $region23: #{ssgcn_pallas.1} parent=11 // pred_region
          %322 = vsyncadd [#allocation10], 0
          %s324 = sshll.u32 %s4, 4
          %s325 = int_to_ptr.hbm [resolvable:$true] %s324
          %s326 = sshll.u32 [#allocation9], 4
          %s327 = int_to_ptr.vmem [resolvable:$true] %s326
          %329 = dma.hbm_to_vmem [thread:$0]  %s325, 16, %s327, [#allocation10]
        $region24: #{ssgcn_pallas.1} parent=11 // pred_fallthru
          _
        // Predicated region
        $region25: #{ssgcn_pallas.1} parent=11 // pred_check
          %p330 = pneg %p160
        $region26: #{ssgcn_pallas.1} parent=11 // pred_check_branch
          %332 = sbr.rel (%p330) target = $region28
        $region27: #{ssgcn_pallas.1} parent=11 // pred_region
          _
        $region28: #{ssgcn_pallas.1} parent=11 // pred_fallthru
          _
        // Predicated region
        $region29: #{ssgcn_pallas.1} parent=11 // pred_check
          %p333 = pneg %p181
        $region30: #{ssgcn_pallas.1} parent=11 // pred_check_branch
          %335 = sbr.rel (%p333) target = $region32
        $region31: #{ssgcn_pallas.1} parent=11 // pred_region
          %337 = vsyncadd [#allocation10], 0
          %s339 = sshll.u32 %s6, 4
          %s340 = int_to_ptr.hbm [resolvable:$true] %s339
          %s341 = sshll.u32 [#allocation11], 4
          %s342 = int_to_ptr.vmem [resolvable:$true] %s341
          %344 = dma.hbm_to_vmem [thread:$0]  %s340, 16, %s342, [#allocation10]
        $region32: #{ssgcn_pallas.1} parent=11 // pred_fallthru
          _
        // Predicated region
        $region33: #{ssgcn_pallas.1} parent=11 // pred_check
          %p345 = pneg %p202
        $region34: #{ssgcn_pallas.1} parent=11 // pred_check_branch
          %347 = sbr.rel (%p345) target = $region36
        $region35: #{ssgcn_pallas.1} parent=11 // pred_region
          %349 = vsyncadd [#allocation13], 0
          %s351 = sshll.u32 %s7, 4
          %s352 = int_to_ptr.hbm [resolvable:$true] %s351
          %s353 = sshll.u32 [#allocation12], 4
          %s354 = int_to_ptr.vmem [resolvable:$true] %s353
          %356 = dma.hbm_to_vmem [thread:$0]  %s352, 128, %s354, [#allocation13]
        $region36: #{ssgcn_pallas.1} parent=11 // pred_fallthru
          _
        // Predicated region
        $region37: #{ssgcn_pallas.1} parent=11 // pred_check
          %p357 = pneg %p223
        $region38: #{ssgcn_pallas.1} parent=11 // pred_check_branch
          %359 = sbr.rel (%p357) target = $region40
        $region39: #{ssgcn_pallas.1} parent=11 // pred_region
          %361 = vsyncadd [#allocation13], 0
          %s363 = sshll.u32 %s8, 4
          %s364 = int_to_ptr.hbm [resolvable:$true] %s363
          %s365 = sshll.u32 [#allocation14], 4
          %s366 = int_to_ptr.vmem [resolvable:$true] %s365
          %368 = dma.hbm_to_vmem [thread:$0]  %s364, 16, %s366, [#allocation13]
        $region40: #{ssgcn_pallas.1} parent=11 // pred_fallthru
          _
        // Predicated region
        $region41: #{ssgcn_pallas.1} parent=11 // pred_check
          %p369 = pneg %p244
        $region42: #{ssgcn_pallas.1} parent=11 // pred_check_branch
          %371 = sbr.rel (%p369) target = $region44
        $region43: #{ssgcn_pallas.1} parent=11 // pred_region
          %373 = vsyncadd [#allocation16], 0
          %s375 = sshll.u32 %s9, 4
          %s376 = int_to_ptr.hbm [resolvable:$true] %s375
          %s377 = sshll.u32 [#allocation15], 4
          %s378 = int_to_ptr.vmem [resolvable:$true] %s377
          %380 = dma.hbm_to_vmem [thread:$0]  %s376, 128, %s378, [#allocation16]
        $region44: #{ssgcn_pallas.1} parent=11 // pred_fallthru
          _
        // Predicated region
        $region45: #{ssgcn_pallas.1} parent=11 // pred_check
          %p381 = pneg %p265
        $region46: #{ssgcn_pallas.1} parent=11 // pred_check_branch
          %383 = sbr.rel (%p381) target = $region48
        $region47: #{ssgcn_pallas.1} parent=11 // pred_region
          %385 = vsyncadd [#allocation16], 0
          %s387 = sshll.u32 %s10, 4
          %s388 = int_to_ptr.hbm [resolvable:$true] %s387
          %s389 = sshll.u32 [#allocation17], 4
          %s390 = int_to_ptr.vmem [resolvable:$true] %s389
          %392 = dma.hbm_to_vmem [thread:$0]  %s388, 16, %s390, [#allocation16]
        $region48: #{ssgcn_pallas.1} parent=11 // pred_fallthru
          _
      $region12: #{ssgcn_pallas.1} parent=5 // pred_fallthru
        _
      %p393 = scmp.lt.s32.totalorder %s24, 2
      // Predicated region
      $region49: #{ssgcn_pallas.1} parent=5 // pred_check
        %p394 = pneg %p393
      $region50: #{ssgcn_pallas.1} parent=5 // pred_check_branch
        %396 = sbr.rel (%p394) target = $region52
      $region51: #{ssgcn_pallas.1} parent=5 // pred_region
        // Predicated region
        $region53: #{ssgcn_pallas.1} parent=51 // pred_check
          %p397 = pneg %p86
        $region54: #{ssgcn_pallas.1} parent=51 // pred_check_branch
          %399 = sbr.rel (%p397) target = $region56
        $region55: #{ssgcn_pallas.1} parent=51 // pred_region
          %s400 = sand.u32 %s24, 1
          %s401 = scalar_lea.sflag [#allocation7], %s400
          %s402 = sand.u32 %s76, 1
          %s403 = smul.addr %s402, 4096
          %s404 = scalar_lea.vmem [#allocation6], %s403
          %s405 = smul.u32 8, %s24
          %407 = vsyncadd %s401, 0
          %s408 = smul.addr %s405, 4
          %s409 = scalar_lea.hbm %s2, %s408
          %s410 = sshll.u32 %s409, 4
          %s411 = int_to_ptr.hbm [resolvable:$true] %s410
          %s412 = sshll.u32 %s404, 4
          %s413 = int_to_ptr.vmem [resolvable:$true] %s412
          %418 = dma.hbm_to_vmem [thread:$0]  %s411, 65536, %s413, %s401, 1024, 512, 32
        $region56: #{ssgcn_pallas.1} parent=51 // pred_fallthru
          _
        // Predicated region
        $region57: #{ssgcn_pallas.1} parent=51 // pred_check
          %p419 = pneg %p112
        $region58: #{ssgcn_pallas.1} parent=51 // pred_check_branch
          %421 = sbr.rel (%p419) target = $region60
        $region59: #{ssgcn_pallas.1} parent=51 // pred_region
          %s422 = sand.u32 %s24, 1
          %s423 = scalar_lea.sflag [#allocation7], %s422
          %s424 = sand.u32 %s102, 1
          %s425 = smul.addr %s424, 512
          %s426 = scalar_lea.vmem [#allocation8], %s425
          %s427 = smul.u32 128, %s24
          %429 = vsyncadd %s423, 0
          %s430 = smul.addr %s427, 4
          %s431 = scalar_lea.hbm %s3, %s430
          %s432 = sshll.u32 %s431, 4
          %s433 = int_to_ptr.hbm [resolvable:$true] %s432
          %s434 = sshll.u32 %s426, 4
          %s435 = int_to_ptr.vmem [resolvable:$true] %s434
          %440 = dma.hbm_to_vmem [thread:$0]  %s433, 8192, %s435, %s423, 64, 64, 4
        $region60: #{ssgcn_pallas.1} parent=51 // pred_fallthru
          _
      $region52: #{ssgcn_pallas.1} parent=5 // pred_fallthru
        _
      %p441 = scmp.le.s32.totalorder 1, %s24
      %p442 = scmp.lt.s32.totalorder %s24, 3
      %p443 = pnand %p441, %p442
      %p444 = pneg %p443
      // Predicated region
      $region61: #{ssgcn_pallas.1} parent=5 // pred_check
        _
      $region62: #{ssgcn_pallas.1} parent=5 // pred_check_branch
        %446 = sbr.rel (%p443) target = $region64
      $region63: #{ssgcn_pallas.1} parent=5 // pred_region
        %s447 = ssub.s32 %s24, 1
        // Predicated region
        $region65: #{ssgcn_pallas.1} parent=63 // pred_check
          %p448 = pneg %p66
        $region66: #{ssgcn_pallas.1} parent=63 // pred_check_branch
          %450 = sbr.rel (%p448) target = $region68
        $region67: #{ssgcn_pallas.1} parent=63 // pred_region
          %452 = dma.done [#allocation5], 65536
        $region68: #{ssgcn_pallas.1} parent=63 // pred_fallthru
          _
        %s453 = sand.u32 %s29, 1
        %s454 = scalar_lea.sflag [#allocation7], %s453
        %s455 = sand.u32 %s79, 1
        %s456 = smul.addr %s455, 4096
        %s457 = scalar_lea.vmem [#allocation6], %s456
        // Predicated region
        $region69: #{ssgcn_pallas.1} parent=63 // pred_check
          %p458 = pneg %p92
        $region70: #{ssgcn_pallas.1} parent=63 // pred_check_branch
          %460 = sbr.rel (%p458) target = $region72
        $region71: #{ssgcn_pallas.1} parent=63 // pred_region
          %462 = dma.done %s454, 65536
        $region72: #{ssgcn_pallas.1} parent=63 // pred_fallthru
          _
        %s463 = sand.u32 %s29, 1
        %s464 = scalar_lea.sflag [#allocation7], %s463
        %s465 = sand.u32 %s105, 1
        %s466 = smul.addr %s465, 512
        %s467 = scalar_lea.vmem [#allocation8], %s466
        // Predicated region
        $region73: #{ssgcn_pallas.1} parent=63 // pred_check
          %p468 = pneg %p118
        $region74: #{ssgcn_pallas.1} parent=63 // pred_check_branch
          %470 = sbr.rel (%p468) target = $region76
        $region75: #{ssgcn_pallas.1} parent=63 // pred_region
          %472 = dma.done %s464, 8192
        $region76: #{ssgcn_pallas.1} parent=63 // pred_fallthru
          _
        // Predicated region
        $region77: #{ssgcn_pallas.1} parent=63 // pred_check
          %p473 = pneg %p139
        $region78: #{ssgcn_pallas.1} parent=63 // pred_check_branch
          %475 = sbr.rel (%p473) target = $region80
        $region79: #{ssgcn_pallas.1} parent=63 // pred_region
          %477 = dma.done [#allocation10], 16
        $region80: #{ssgcn_pallas.1} parent=63 // pred_fallthru
          _
        // Predicated region
        $region81: #{ssgcn_pallas.1} parent=63 // pred_check
          %p478 = pneg %p181
        $region82: #{ssgcn_pallas.1} parent=63 // pred_check_branch
          %480 = sbr.rel (%p478) target = $region84
        $region83: #{ssgcn_pallas.1} parent=63 // pred_region
          %482 = dma.done [#allocation10], 16
        $region84: #{ssgcn_pallas.1} parent=63 // pred_fallthru
          _
        // Predicated region
        $region85: #{ssgcn_pallas.1} parent=63 // pred_check
          %p483 = pneg %p202
        $region86: #{ssgcn_pallas.1} parent=63 // pred_check_branch
          %485 = sbr.rel (%p483) target = $region88
        $region87: #{ssgcn_pallas.1} parent=63 // pred_region
          %487 = dma.done [#allocation13], 128
        $region88: #{ssgcn_pallas.1} parent=63 // pred_fallthru
          _
        // Predicated region
        $region89: #{ssgcn_pallas.1} parent=63 // pred_check
          %p488 = pneg %p223
        $region90: #{ssgcn_pallas.1} parent=63 // pred_check_branch
          %490 = sbr.rel (%p488) target = $region92
        $region91: #{ssgcn_pallas.1} parent=63 // pred_region
          %492 = dma.done [#allocation13], 16
        $region92: #{ssgcn_pallas.1} parent=63 // pred_fallthru
          _
        // Predicated region
        $region93: #{ssgcn_pallas.1} parent=63 // pred_check
          %p493 = pneg %p244
        $region94: #{ssgcn_pallas.1} parent=63 // pred_check_branch
          %495 = sbr.rel (%p493) target = $region96
        $region95: #{ssgcn_pallas.1} parent=63 // pred_region
          %497 = dma.done [#allocation16], 128
        $region96: #{ssgcn_pallas.1} parent=63 // pred_fallthru
          _
        // Predicated region
        $region97: #{ssgcn_pallas.1} parent=63 // pred_check
          %p498 = pneg %p265
        $region98: #{ssgcn_pallas.1} parent=63 // pred_check_branch
          %500 = sbr.rel (%p498) target = $region100
        $region99: #{ssgcn_pallas.1} parent=63 // pred_region
          %502 = dma.done [#allocation16], 16
        $region100: #{ssgcn_pallas.1} parent=63 // pred_fallthru
          _
        %p503 = pneg %p45
        %p504 = pneg %p42
        %p505 = pneg %p66
        %p506 = pneg %p63
        %s507 = sand.u32 %s29, 1
        %s508 = scalar_lea.sflag [#allocation7], %s507
        %s509 = sand.u32 %s79, 1
        %s510 = smul.addr %s509, 4096
        %s511 = scalar_lea.vmem [#allocation6], %s510
        %p512 = pneg %p92
        %p513 = pneg %p89
        %s514 = sand.u32 %s29, 1
        %s515 = scalar_lea.sflag [#allocation7], %s514
        %s516 = sand.u32 %s105, 1
        %s517 = smul.addr %s516, 512
        %s518 = scalar_lea.vmem [#allocation8], %s517
        %p519 = pneg %p118
        %p520 = pneg %p115
        %p521 = pneg %p139
        %p522 = pneg %p136
        %p523 = pneg %p160
        %p524 = pneg %p157
        %p525 = pneg %p181
        %p526 = pneg %p178
        %p527 = pneg %p202
        %p528 = pneg %p199
        %p529 = pneg %p223
        %p530 = pneg %p220
        %p531 = pneg %p244
        %p532 = pneg %p241
        %p533 = pneg %p265
        %p534 = pneg %p262
        %p535 = pneg %p286
        %p536 = pneg %p283
        %s537 = smul.u32 8, %s29
        %s538 = smul.u32 128, %s29
        %p539 = scmp.eq.s32.totalorder %s29, 0
        // Predicated region
        $region101: #{ssgcn_pallas.1} parent=63 // pred_check
          %p540 = pneg %p539
        $region102: #{ssgcn_pallas.1} parent=63 // pred_check_branch
          %542 = sbr.rel (%p540) target = $region104
        $region103: #{ssgcn_pallas.1} parent=63 // pred_region
          %v543 = vld [vmem:[%s0] sm:$0xff]
          %v544 = vld [vmem:[%s0 + $0x8] sm:$0xff]
          %v545 = vld [vmem:[%s0 + $0x10] sm:$0xff]
          %v546 = vld [vmem:[%s0 + $0x18] sm:$0xff]
          %v547 = vld [vmem:[%s0 + $0x20] sm:$0xff]
          %v548 = vld [vmem:[%s0 + $0x28] sm:$0xff]
          %v549 = vld [vmem:[%s0 + $0x30] sm:$0xff]
          %v550 = vld [vmem:[%s0 + $0x38] sm:$0xff]
          %v551 = vld [vmem:[%s0 + $0x40] sm:$0xff]
          %v552 = vld [vmem:[%s0 + $0x48] sm:$0xff]
          %v553 = vld [vmem:[%s0 + $0x50] sm:$0xff]
          %v554 = vld [vmem:[%s0 + $0x58] sm:$0xff]
          %v555 = vld [vmem:[%s0 + $0x60] sm:$0xff]
          %v556 = vld [vmem:[%s0 + $0x68] sm:$0xff]
          %v557 = vld [vmem:[%s0 + $0x70] sm:$0xff]
          %v558 = vld [vmem:[%s0 + $0x78] sm:$0xff]
          %v559 = vld [vmem:[%s0 + $0x80] sm:$0xff]
          %v560 = vld [vmem:[%s0 + $0x88] sm:$0xff]
          %v561 = vld [vmem:[%s0 + $0x90] sm:$0xff]
          %v562 = vld [vmem:[%s0 + $0x98] sm:$0xff]
          %v563 = vld [vmem:[%s0 + $0xa0] sm:$0xff]
          %v564 = vld [vmem:[%s0 + $0xa8] sm:$0xff]
          %v565 = vld [vmem:[%s0 + $0xb0] sm:$0xff]
          %v566 = vld [vmem:[%s0 + $0xb8] sm:$0xff]
          %v567 = vld [vmem:[%s0 + $0xc0] sm:$0xff]
          %v568 = vld [vmem:[%s0 + $0xc8] sm:$0xff]
          %v569 = vld [vmem:[%s0 + $0xd0] sm:$0xff]
          %v570 = vld [vmem:[%s0 + $0xd8] sm:$0xff]
          %v571 = vld [vmem:[%s0 + $0xe0] sm:$0xff]
          %v572 = vld [vmem:[%s0 + $0xe8] sm:$0xff]
          %v573 = vld [vmem:[%s0 + $0xf0] sm:$0xff]
          %v574 = vld [vmem:[%s0 + $0xf8] sm:$0xff]
          %v575 = vld [vmem:[#allocation4] sm:$0xff]
          %v576 = vld [vmem:[#allocation4 + $0x8] sm:$0xff]
          %v577 = vld [vmem:[#allocation4 + $0x10] sm:$0xff]
          %v578 = vld [vmem:[#allocation4 + $0x18] sm:$0xff]
          %v579 = vld [vmem:[#allocation4 + $0x20] sm:$0xff]
          %v580 = vld [vmem:[#allocation4 + $0x28] sm:$0xff]
          %v581 = vld [vmem:[#allocation4 + $0x30] sm:$0xff]
          %v582 = vld [vmem:[#allocation4 + $0x38] sm:$0xff]
          %v583 = vld [vmem:[#allocation4 + $0x40] sm:$0xff]
          %v584 = vld [vmem:[#allocation4 + $0x48] sm:$0xff]
          %v585 = vld [vmem:[#allocation4 + $0x50] sm:$0xff]
          %v586 = vld [vmem:[#allocation4 + $0x58] sm:$0xff]
          %v587 = vld [vmem:[#allocation4 + $0x60] sm:$0xff]
          %v588 = vld [vmem:[#allocation4 + $0x68] sm:$0xff]
          %v589 = vld [vmem:[#allocation4 + $0x70] sm:$0xff]
          %v590 = vld [vmem:[#allocation4 + $0x78] sm:$0xff]
          %v591 = vld [vmem:[#allocation4 + $0x80] sm:$0xff]
          %v592 = vld [vmem:[#allocation4 + $0x88] sm:$0xff]
          %v593 = vld [vmem:[#allocation4 + $0x90] sm:$0xff]
          %v594 = vld [vmem:[#allocation4 + $0x98] sm:$0xff]
          %v595 = vld [vmem:[#allocation4 + $0xa0] sm:$0xff]
          %v596 = vld [vmem:[#allocation4 + $0xa8] sm:$0xff]
          %v597 = vld [vmem:[#allocation4 + $0xb0] sm:$0xff]
          %v598 = vld [vmem:[#allocation4 + $0xb8] sm:$0xff]
          %v599 = vld [vmem:[#allocation4 + $0xc0] sm:$0xff]
          %v600 = vld [vmem:[#allocation4 + $0xc8] sm:$0xff]
          %v601 = vld [vmem:[#allocation4 + $0xd0] sm:$0xff]
          %v602 = vld [vmem:[#allocation4 + $0xd8] sm:$0xff]
          %v603 = vld [vmem:[#allocation4 + $0xe0] sm:$0xff]
          %v604 = vld [vmem:[#allocation4 + $0xe8] sm:$0xff]
          %v605 = vld [vmem:[#allocation4 + $0xf0] sm:$0xff]
          %v606 = vld [vmem:[#allocation4 + $0xf8] sm:$0xff]
          %v607 = vld [vmem:[#allocation4 + $0x100] sm:$0xff]
          %v608 = vld [vmem:[#allocation4 + $0x108] sm:$0xff]
          %v609 = vld [vmem:[#allocation4 + $0x110] sm:$0xff]
          %v610 = vld [vmem:[#allocation4 + $0x118] sm:$0xff]
          %v611 = vld [vmem:[#allocation4 + $0x120] sm:$0xff]
          %v612 = vld [vmem:[#allocation4 + $0x128] sm:$0xff]
          %v613 = vld [vmem:[#allocation4 + $0x130] sm:$0xff]
          %v614 = vld [vmem:[#allocation4 + $0x138] sm:$0xff]
          %v615 = vld [vmem:[#allocation4 + $0x140] sm:$0xff]
          %v616 = vld [vmem:[#allocation4 + $0x148] sm:$0xff]
          %v617 = vld [vmem:[#allocation4 + $0x150] sm:$0xff]
          %v618 = vld [vmem:[#allocation4 + $0x158] sm:$0xff]
          %v619 = vld [vmem:[#allocation4 + $0x160] sm:$0xff]
          %v620 = vld [vmem:[#allocation4 + $0x168] sm:$0xff]
          %v621 = vld [vmem:[#allocation4 + $0x170] sm:$0xff]
          %v622 = vld [vmem:[#allocation4 + $0x178] sm:$0xff]
          %v623 = vld [vmem:[#allocation4 + $0x180] sm:$0xff]
          %v624 = vld [vmem:[#allocation4 + $0x188] sm:$0xff]
          %v625 = vld [vmem:[#allocation4 + $0x190] sm:$0xff]
          %v626 = vld [vmem:[#allocation4 + $0x198] sm:$0xff]
          %v627 = vld [vmem:[#allocation4 + $0x1a0] sm:$0xff]
          %v628 = vld [vmem:[#allocation4 + $0x1a8] sm:$0xff]
          %v629 = vld [vmem:[#allocation4 + $0x1b0] sm:$0xff]
          %v630 = vld [vmem:[#allocation4 + $0x1b8] sm:$0xff]
          %v631 = vld [vmem:[#allocation4 + $0x1c0] sm:$0xff]
          %v632 = vld [vmem:[#allocation4 + $0x1c8] sm:$0xff]
          %v633 = vld [vmem:[#allocation4 + $0x1d0] sm:$0xff]
          %v634 = vld [vmem:[#allocation4 + $0x1d8] sm:$0xff]
          %v635 = vld [vmem:[#allocation4 + $0x1e0] sm:$0xff]
          %v636 = vld [vmem:[#allocation4 + $0x1e8] sm:$0xff]
          %v637 = vld [vmem:[#allocation4 + $0x1f0] sm:$0xff]
          %v638 = vld [vmem:[#allocation4 + $0x1f8] sm:$0xff]
          %v639 = vld [vmem:[#allocation4 + $0x200] sm:$0xff]
          %v640 = vld [vmem:[#allocation4 + $0x208] sm:$0xff]
          %v641 = vld [vmem:[#allocation4 + $0x210] sm:$0xff]
          %v642 = vld [vmem:[#allocation4 + $0x218] sm:$0xff]
          %v643 = vld [vmem:[#allocation4 + $0x220] sm:$0xff]
          %v644 = vld [vmem:[#allocation4 + $0x228] sm:$0xff]
          %v645 = vld [vmem:[#allocation4 + $0x230] sm:$0xff]
          %v646 = vld [vmem:[#allocation4 + $0x238] sm:$0xff]
          %v647 = vld [vmem:[#allocation4 + $0x240] sm:$0xff]
          %v648 = vld [vmem:[#allocation4 + $0x248] sm:$0xff]
          %v649 = vld [vmem:[#allocation4 + $0x250] sm:$0xff]
          %v650 = vld [vmem:[#allocation4 + $0x258] sm:$0xff]
          %v651 = vld [vmem:[#allocation4 + $0x260] sm:$0xff]
          %v652 = vld [vmem:[#allocation4 + $0x268] sm:$0xff]
          %v653 = vld [vmem:[#allocation4 + $0x270] sm:$0xff]
          %v654 = vld [vmem:[#allocation4 + $0x278] sm:$0xff]
          %v655 = vld [vmem:[#allocation4 + $0x280] sm:$0xff]
          %v656 = vld [vmem:[#allocation4 + $0x288] sm:$0xff]
          %v657 = vld [vmem:[#allocation4 + $0x290] sm:$0xff]
          %v658 = vld [vmem:[#allocation4 + $0x298] sm:$0xff]
          %v659 = vld [vmem:[#allocation4 + $0x2a0] sm:$0xff]
          %v660 = vld [vmem:[#allocation4 + $0x2a8] sm:$0xff]
          %v661 = vld [vmem:[#allocation4 + $0x2b0] sm:$0xff]
          %v662 = vld [vmem:[#allocation4 + $0x2b8] sm:$0xff]
          %v663 = vld [vmem:[#allocation4 + $0x2c0] sm:$0xff]
          %v664 = vld [vmem:[#allocation4 + $0x2c8] sm:$0xff]
          %v665 = vld [vmem:[#allocation4 + $0x2d0] sm:$0xff]
          %v666 = vld [vmem:[#allocation4 + $0x2d8] sm:$0xff]
          %v667 = vld [vmem:[#allocation4 + $0x2e0] sm:$0xff]
          %v668 = vld [vmem:[#allocation4 + $0x2e8] sm:$0xff]
          %v669 = vld [vmem:[#allocation4 + $0x2f0] sm:$0xff]
          %v670 = vld [vmem:[#allocation4 + $0x2f8] sm:$0xff]
          %v671 = vld [vmem:[#allocation4 + $0x300] sm:$0xff]
          %v672 = vld [vmem:[#allocation4 + $0x308] sm:$0xff]
          %v673 = vld [vmem:[#allocation4 + $0x310] sm:$0xff]
          %v674 = vld [vmem:[#allocation4 + $0x318] sm:$0xff]
          %v675 = vld [vmem:[#allocation4 + $0x320] sm:$0xff]
          %v676 = vld [vmem:[#allocation4 + $0x328] sm:$0xff]
          %v677 = vld [vmem:[#allocation4 + $0x330] sm:$0xff]
          %v678 = vld [vmem:[#allocation4 + $0x338] sm:$0xff]
          %v679 = vld [vmem:[#allocation4 + $0x340] sm:$0xff]
          %v680 = vld [vmem:[#allocation4 + $0x348] sm:$0xff]
          %v681 = vld [vmem:[#allocation4 + $0x350] sm:$0xff]
          %v682 = vld [vmem:[#allocation4 + $0x358] sm:$0xff]
          %v683 = vld [vmem:[#allocation4 + $0x360] sm:$0xff]
          %v684 = vld [vmem:[#allocation4 + $0x368] sm:$0xff]
          %v685 = vld [vmem:[#allocation4 + $0x370] sm:$0xff]
          %v686 = vld [vmem:[#allocation4 + $0x378] sm:$0xff]
          %v687 = vld [vmem:[#allocation4 + $0x380] sm:$0xff]
          %v688 = vld [vmem:[#allocation4 + $0x388] sm:$0xff]
          %v689 = vld [vmem:[#allocation4 + $0x390] sm:$0xff]
          %v690 = vld [vmem:[#allocation4 + $0x398] sm:$0xff]
          %v691 = vld [vmem:[#allocation4 + $0x3a0] sm:$0xff]
          %v692 = vld [vmem:[#allocation4 + $0x3a8] sm:$0xff]
          %v693 = vld [vmem:[#allocation4 + $0x3b0] sm:$0xff]
          %v694 = vld [vmem:[#allocation4 + $0x3b8] sm:$0xff]
          %v695 = vld [vmem:[#allocation4 + $0x3c0] sm:$0xff]
          %v696 = vld [vmem:[#allocation4 + $0x3c8] sm:$0xff]
          %v697 = vld [vmem:[#allocation4 + $0x3d0] sm:$0xff]
          %v698 = vld [vmem:[#allocation4 + $0x3d8] sm:$0xff]
          %v699 = vld [vmem:[#allocation4 + $0x3e0] sm:$0xff]
          %v700 = vld [vmem:[#allocation4 + $0x3e8] sm:$0xff]
          %v701 = vld [vmem:[#allocation4 + $0x3f0] sm:$0xff]
          %v702 = vld [vmem:[#allocation4 + $0x3f8] sm:$0xff]
          %v703 = vld [vmem:[#allocation4 + $0x400] sm:$0xff]
          %v704 = vld [vmem:[#allocation4 + $0x408] sm:$0xff]
          %v705 = vld [vmem:[#allocation4 + $0x410] sm:$0xff]
          %v706 = vld [vmem:[#allocation4 + $0x418] sm:$0xff]
          %v707 = vld [vmem:[#allocation4 + $0x420] sm:$0xff]
          %v708 = vld [vmem:[#allocation4 + $0x428] sm:$0xff]
          %v709 = vld [vmem:[#allocation4 + $0x430] sm:$0xff]
          %v710 = vld [vmem:[#allocation4 + $0x438] sm:$0xff]
          %v711 = vld [vmem:[#allocation4 + $0x440] sm:$0xff]
          %v712 = vld [vmem:[#allocation4 + $0x448] sm:$0xff]
          %v713 = vld [vmem:[#allocation4 + $0x450] sm:$0xff]
          %v714 = vld [vmem:[#allocation4 + $0x458] sm:$0xff]
          %v715 = vld [vmem:[#allocation4 + $0x460] sm:$0xff]
          %v716 = vld [vmem:[#allocation4 + $0x468] sm:$0xff]
          %v717 = vld [vmem:[#allocation4 + $0x470] sm:$0xff]
          %v718 = vld [vmem:[#allocation4 + $0x478] sm:$0xff]
          %v719 = vld [vmem:[#allocation4 + $0x480] sm:$0xff]
          %v720 = vld [vmem:[#allocation4 + $0x488] sm:$0xff]
          %v721 = vld [vmem:[#allocation4 + $0x490] sm:$0xff]
          %v722 = vld [vmem:[#allocation4 + $0x498] sm:$0xff]
          %v723 = vld [vmem:[#allocation4 + $0x4a0] sm:$0xff]
          %v724 = vld [vmem:[#allocation4 + $0x4a8] sm:$0xff]
          %v725 = vld [vmem:[#allocation4 + $0x4b0] sm:$0xff]
          %v726 = vld [vmem:[#allocation4 + $0x4b8] sm:$0xff]
          %v727 = vld [vmem:[#allocation4 + $0x4c0] sm:$0xff]
          %v728 = vld [vmem:[#allocation4 + $0x4c8] sm:$0xff]
          %v729 = vld [vmem:[#allocation4 + $0x4d0] sm:$0xff]
          %v730 = vld [vmem:[#allocation4 + $0x4d8] sm:$0xff]
          %v731 = vld [vmem:[#allocation4 + $0x4e0] sm:$0xff]
          %v732 = vld [vmem:[#allocation4 + $0x4e8] sm:$0xff]
          %v733 = vld [vmem:[#allocation4 + $0x4f0] sm:$0xff]
          %v734 = vld [vmem:[#allocation4 + $0x4f8] sm:$0xff]
          %v735 = vld [vmem:[#allocation4 + $0x500] sm:$0xff]
          %v736 = vld [vmem:[#allocation4 + $0x508] sm:$0xff]
          %v737 = vld [vmem:[#allocation4 + $0x510] sm:$0xff]
          %v738 = vld [vmem:[#allocation4 + $0x518] sm:$0xff]
          %v739 = vld [vmem:[#allocation4 + $0x520] sm:$0xff]
          %v740 = vld [vmem:[#allocation4 + $0x528] sm:$0xff]
          %v741 = vld [vmem:[#allocation4 + $0x530] sm:$0xff]
          %v742 = vld [vmem:[#allocation4 + $0x538] sm:$0xff]
          %v743 = vld [vmem:[#allocation4 + $0x540] sm:$0xff]
          %v744 = vld [vmem:[#allocation4 + $0x548] sm:$0xff]
          %v745 = vld [vmem:[#allocation4 + $0x550] sm:$0xff]
          %v746 = vld [vmem:[#allocation4 + $0x558] sm:$0xff]
          %v747 = vld [vmem:[#allocation4 + $0x560] sm:$0xff]
          %v748 = vld [vmem:[#allocation4 + $0x568] sm:$0xff]
          %v749 = vld [vmem:[#allocation4 + $0x570] sm:$0xff]
          %v750 = vld [vmem:[#allocation4 + $0x578] sm:$0xff]
          %v751 = vld [vmem:[#allocation4 + $0x580] sm:$0xff]
          %v752 = vld [vmem:[#allocation4 + $0x588] sm:$0xff]
          %v753 = vld [vmem:[#allocation4 + $0x590] sm:$0xff]
          %v754 = vld [vmem:[#allocation4 + $0x598] sm:$0xff]
          %v755 = vld [vmem:[#allocation4 + $0x5a0] sm:$0xff]
          %v756 = vld [vmem:[#allocation4 + $0x5a8] sm:$0xff]
          %v757 = vld [vmem:[#allocation4 + $0x5b0] sm:$0xff]
          %v758 = vld [vmem:[#allocation4 + $0x5b8] sm:$0xff]
          %v759 = vld [vmem:[#allocation4 + $0x5c0] sm:$0xff]
          %v760 = vld [vmem:[#allocation4 + $0x5c8] sm:$0xff]
          %v761 = vld [vmem:[#allocation4 + $0x5d0] sm:$0xff]
          %v762 = vld [vmem:[#allocation4 + $0x5d8] sm:$0xff]
          %v763 = vld [vmem:[#allocation4 + $0x5e0] sm:$0xff]
          %v764 = vld [vmem:[#allocation4 + $0x5e8] sm:$0xff]
          %v765 = vld [vmem:[#allocation4 + $0x5f0] sm:$0xff]
          %v766 = vld [vmem:[#allocation4 + $0x5f8] sm:$0xff]
          %v767 = vld [vmem:[#allocation4 + $0x600] sm:$0xff]
          %v768 = vld [vmem:[#allocation4 + $0x608] sm:$0xff]
          %v769 = vld [vmem:[#allocation4 + $0x610] sm:$0xff]
          %v770 = vld [vmem:[#allocation4 + $0x618] sm:$0xff]
          %v771 = vld [vmem:[#allocation4 + $0x620] sm:$0xff]
          %v772 = vld [vmem:[#allocation4 + $0x628] sm:$0xff]
          %v773 = vld [vmem:[#allocation4 + $0x630] sm:$0xff]
          %v774 = vld [vmem:[#allocation4 + $0x638] sm:$0xff]
          %v775 = vld [vmem:[#allocation4 + $0x640] sm:$0xff]
          %v776 = vld [vmem:[#allocation4 + $0x648] sm:$0xff]
          %v777 = vld [vmem:[#allocation4 + $0x650] sm:$0xff]
          %v778 = vld [vmem:[#allocation4 + $0x658] sm:$0xff]
          %v779 = vld [vmem:[#allocation4 + $0x660] sm:$0xff]
          %v780 = vld [vmem:[#allocation4 + $0x668] sm:$0xff]
          %v781 = vld [vmem:[#allocation4 + $0x670] sm:$0xff]
          %v782 = vld [vmem:[#allocation4 + $0x678] sm:$0xff]
          %v783 = vld [vmem:[#allocation4 + $0x680] sm:$0xff]
          %v784 = vld [vmem:[#allocation4 + $0x688] sm:$0xff]
          %v785 = vld [vmem:[#allocation4 + $0x690] sm:$0xff]
          %v786 = vld [vmem:[#allocation4 + $0x698] sm:$0xff]
          %v787 = vld [vmem:[#allocation4 + $0x6a0] sm:$0xff]
          %v788 = vld [vmem:[#allocation4 + $0x6a8] sm:$0xff]
          %v789 = vld [vmem:[#allocation4 + $0x6b0] sm:$0xff]
          %v790 = vld [vmem:[#allocation4 + $0x6b8] sm:$0xff]
          %v791 = vld [vmem:[#allocation4 + $0x6c0] sm:$0xff]
          %v792 = vld [vmem:[#allocation4 + $0x6c8] sm:$0xff]
          %v793 = vld [vmem:[#allocation4 + $0x6d0] sm:$0xff]
          %v794 = vld [vmem:[#allocation4 + $0x6d8] sm:$0xff]
          %v795 = vld [vmem:[#allocation4 + $0x6e0] sm:$0xff]
          %v796 = vld [vmem:[#allocation4 + $0x6e8] sm:$0xff]
          %v797 = vld [vmem:[#allocation4 + $0x6f0] sm:$0xff]
          %v798 = vld [vmem:[#allocation4 + $0x6f8] sm:$0xff]
          %v799 = vld [vmem:[#allocation4 + $0x700] sm:$0xff]
          %v800 = vld [vmem:[#allocation4 + $0x708] sm:$0xff]
          %v801 = vld [vmem:[#allocation4 + $0x710] sm:$0xff]
          %v802 = vld [vmem:[#allocation4 + $0x718] sm:$0xff]
          %v803 = vld [vmem:[#allocation4 + $0x720] sm:$0xff]
          %v804 = vld [vmem:[#allocation4 + $0x728] sm:$0xff]
          %v805 = vld [vmem:[#allocation4 + $0x730] sm:$0xff]
          %v806 = vld [vmem:[#allocation4 + $0x738] sm:$0xff]
          %v807 = vld [vmem:[#allocation4 + $0x740] sm:$0xff]
          %v808 = vld [vmem:[#allocation4 + $0x748] sm:$0xff]
          %v809 = vld [vmem:[#allocation4 + $0x750] sm:$0xff]
          %v810 = vld [vmem:[#allocation4 + $0x758] sm:$0xff]
          %v811 = vld [vmem:[#allocation4 + $0x760] sm:$0xff]
          %v812 = vld [vmem:[#allocation4 + $0x768] sm:$0xff]
          %v813 = vld [vmem:[#allocation4 + $0x770] sm:$0xff]
          %v814 = vld [vmem:[#allocation4 + $0x778] sm:$0xff]
          %v815 = vld [vmem:[#allocation4 + $0x780] sm:$0xff]
          %v816 = vld [vmem:[#allocation4 + $0x788] sm:$0xff]
          %v817 = vld [vmem:[#allocation4 + $0x790] sm:$0xff]
          %v818 = vld [vmem:[#allocation4 + $0x798] sm:$0xff]
          %v819 = vld [vmem:[#allocation4 + $0x7a0] sm:$0xff]
          %v820 = vld [vmem:[#allocation4 + $0x7a8] sm:$0xff]
          %v821 = vld [vmem:[#allocation4 + $0x7b0] sm:$0xff]
          %v822 = vld [vmem:[#allocation4 + $0x7b8] sm:$0xff]
          %v823 = vld [vmem:[#allocation4 + $0x7c0] sm:$0xff]
          %v824 = vld [vmem:[#allocation4 + $0x7c8] sm:$0xff]
          %v825 = vld [vmem:[#allocation4 + $0x7d0] sm:$0xff]
          %v826 = vld [vmem:[#allocation4 + $0x7d8] sm:$0xff]
          %v827 = vld [vmem:[#allocation4 + $0x7e0] sm:$0xff]
          %v828 = vld [vmem:[#allocation4 + $0x7e8] sm:$0xff]
          %v829 = vld [vmem:[#allocation4 + $0x7f0] sm:$0xff]
          %v830 = vld [vmem:[#allocation4 + $0x7f8] sm:$0xff]
          %v831 = vld [vmem:[#allocation4 + $0x800] sm:$0xff]
          %v832 = vld [vmem:[#allocation4 + $0x808] sm:$0xff]
          %v833 = vld [vmem:[#allocation4 + $0x810] sm:$0xff]
          %v834 = vld [vmem:[#allocation4 + $0x818] sm:$0xff]
          %v835 = vld [vmem:[#allocation4 + $0x820] sm:$0xff]
          %v836 = vld [vmem:[#allocation4 + $0x828] sm:$0xff]
          %v837 = vld [vmem:[#allocation4 + $0x830] sm:$0xff]
          %v838 = vld [vmem:[#allocation4 + $0x838] sm:$0xff]
          %v839 = vld [vmem:[#allocation4 + $0x840] sm:$0xff]
          %v840 = vld [vmem:[#allocation4 + $0x848] sm:$0xff]
          %v841 = vld [vmem:[#allocation4 + $0x850] sm:$0xff]
          %v842 = vld [vmem:[#allocation4 + $0x858] sm:$0xff]
          %v843 = vld [vmem:[#allocation4 + $0x860] sm:$0xff]
          %v844 = vld [vmem:[#allocation4 + $0x868] sm:$0xff]
          %v845 = vld [vmem:[#allocation4 + $0x870] sm:$0xff]
          %v846 = vld [vmem:[#allocation4 + $0x878] sm:$0xff]
          %v847 = vld [vmem:[#allocation4 + $0x880] sm:$0xff]
          %v848 = vld [vmem:[#allocation4 + $0x888] sm:$0xff]
          %v849 = vld [vmem:[#allocation4 + $0x890] sm:$0xff]
          %v850 = vld [vmem:[#allocation4 + $0x898] sm:$0xff]
          %v851 = vld [vmem:[#allocation4 + $0x8a0] sm:$0xff]
          %v852 = vld [vmem:[#allocation4 + $0x8a8] sm:$0xff]
          %v853 = vld [vmem:[#allocation4 + $0x8b0] sm:$0xff]
          %v854 = vld [vmem:[#allocation4 + $0x8b8] sm:$0xff]
          %v855 = vld [vmem:[#allocation4 + $0x8c0] sm:$0xff]
          %v856 = vld [vmem:[#allocation4 + $0x8c8] sm:$0xff]
          %v857 = vld [vmem:[#allocation4 + $0x8d0] sm:$0xff]
          %v858 = vld [vmem:[#allocation4 + $0x8d8] sm:$0xff]
          %v859 = vld [vmem:[#allocation4 + $0x8e0] sm:$0xff]
          %v860 = vld [vmem:[#allocation4 + $0x8e8] sm:$0xff]
          %v861 = vld [vmem:[#allocation4 + $0x8f0] sm:$0xff]
          %v862 = vld [vmem:[#allocation4 + $0x8f8] sm:$0xff]
          %v863 = vld [vmem:[#allocation4 + $0x900] sm:$0xff]
          %v864 = vld [vmem:[#allocation4 + $0x908] sm:$0xff]
          %v865 = vld [vmem:[#allocation4 + $0x910] sm:$0xff]
          %v866 = vld [vmem:[#allocation4 + $0x918] sm:$0xff]
          %v867 = vld [vmem:[#allocation4 + $0x920] sm:$0xff]
          %v868 = vld [vmem:[#allocation4 + $0x928] sm:$0xff]
          %v869 = vld [vmem:[#allocation4 + $0x930] sm:$0xff]
          %v870 = vld [vmem:[#allocation4 + $0x938] sm:$0xff]
          %v871 = vld [vmem:[#allocation4 + $0x940] sm:$0xff]
          %v872 = vld [vmem:[#allocation4 + $0x948] sm:$0xff]
          %v873 = vld [vmem:[#allocation4 + $0x950] sm:$0xff]
          %v874 = vld [vmem:[#allocation4 + $0x958] sm:$0xff]
          %v875 = vld [vmem:[#allocation4 + $0x960] sm:$0xff]
          %v876 = vld [vmem:[#allocation4 + $0x968] sm:$0xff]
          %v877 = vld [vmem:[#allocation4 + $0x970] sm:$0xff]
          %v878 = vld [vmem:[#allocation4 + $0x978] sm:$0xff]
          %v879 = vld [vmem:[#allocation4 + $0x980] sm:$0xff]
          %v880 = vld [vmem:[#allocation4 + $0x988] sm:$0xff]
          %v881 = vld [vmem:[#allocation4 + $0x990] sm:$0xff]
          %v882 = vld [vmem:[#allocation4 + $0x998] sm:$0xff]
          %v883 = vld [vmem:[#allocation4 + $0x9a0] sm:$0xff]
          %v884 = vld [vmem:[#allocation4 + $0x9a8] sm:$0xff]
          %v885 = vld [vmem:[#allocation4 + $0x9b0] sm:$0xff]
          %v886 = vld [vmem:[#allocation4 + $0x9b8] sm:$0xff]
          %v887 = vld [vmem:[#allocation4 + $0x9c0] sm:$0xff]
          %v888 = vld [vmem:[#allocation4 + $0x9c8] sm:$0xff]
          %v889 = vld [vmem:[#allocation4 + $0x9d0] sm:$0xff]
          %v890 = vld [vmem:[#allocation4 + $0x9d8] sm:$0xff]
          %v891 = vld [vmem:[#allocation4 + $0x9e0] sm:$0xff]
          %v892 = vld [vmem:[#allocation4 + $0x9e8] sm:$0xff]
          %v893 = vld [vmem:[#allocation4 + $0x9f0] sm:$0xff]
          %v894 = vld [vmem:[#allocation4 + $0x9f8] sm:$0xff]
          %v895 = vld [vmem:[#allocation4 + $0xa00] sm:$0xff]
          %v896 = vld [vmem:[#allocation4 + $0xa08] sm:$0xff]
          %v897 = vld [vmem:[#allocation4 + $0xa10] sm:$0xff]
          %v898 = vld [vmem:[#allocation4 + $0xa18] sm:$0xff]
          %v899 = vld [vmem:[#allocation4 + $0xa20] sm:$0xff]
          %v900 = vld [vmem:[#allocation4 + $0xa28] sm:$0xff]
          %v901 = vld [vmem:[#allocation4 + $0xa30] sm:$0xff]
          %v902 = vld [vmem:[#allocation4 + $0xa38] sm:$0xff]
          %v903 = vld [vmem:[#allocation4 + $0xa40] sm:$0xff]
          %v904 = vld [vmem:[#allocation4 + $0xa48] sm:$0xff]
          %v905 = vld [vmem:[#allocation4 + $0xa50] sm:$0xff]
          %v906 = vld [vmem:[#allocation4 + $0xa58] sm:$0xff]
          %v907 = vld [vmem:[#allocation4 + $0xa60] sm:$0xff]
          %v908 = vld [vmem:[#allocation4 + $0xa68] sm:$0xff]
          %v909 = vld [vmem:[#allocation4 + $0xa70] sm:$0xff]
          %v910 = vld [vmem:[#allocation4 + $0xa78] sm:$0xff]
          %v911 = vld [vmem:[#allocation4 + $0xa80] sm:$0xff]
          %v912 = vld [vmem:[#allocation4 + $0xa88] sm:$0xff]
          %v913 = vld [vmem:[#allocation4 + $0xa90] sm:$0xff]
          %v914 = vld [vmem:[#allocation4 + $0xa98] sm:$0xff]
          %v915 = vld [vmem:[#allocation4 + $0xaa0] sm:$0xff]
          %v916 = vld [vmem:[#allocation4 + $0xaa8] sm:$0xff]
          %v917 = vld [vmem:[#allocation4 + $0xab0] sm:$0xff]
          %v918 = vld [vmem:[#allocation4 + $0xab8] sm:$0xff]
          %v919 = vld [vmem:[#allocation4 + $0xac0] sm:$0xff]
          %v920 = vld [vmem:[#allocation4 + $0xac8] sm:$0xff]
          %v921 = vld [vmem:[#allocation4 + $0xad0] sm:$0xff]
          %v922 = vld [vmem:[#allocation4 + $0xad8] sm:$0xff]
          %v923 = vld [vmem:[#allocation4 + $0xae0] sm:$0xff]
          %v924 = vld [vmem:[#allocation4 + $0xae8] sm:$0xff]
          %v925 = vld [vmem:[#allocation4 + $0xaf0] sm:$0xff]
          %v926 = vld [vmem:[#allocation4 + $0xaf8] sm:$0xff]
          %v927 = vld [vmem:[#allocation4 + $0xb00] sm:$0xff]
          %v928 = vld [vmem:[#allocation4 + $0xb08] sm:$0xff]
          %v929 = vld [vmem:[#allocation4 + $0xb10] sm:$0xff]
          %v930 = vld [vmem:[#allocation4 + $0xb18] sm:$0xff]
          %v931 = vld [vmem:[#allocation4 + $0xb20] sm:$0xff]
          %v932 = vld [vmem:[#allocation4 + $0xb28] sm:$0xff]
          %v933 = vld [vmem:[#allocation4 + $0xb30] sm:$0xff]
          %v934 = vld [vmem:[#allocation4 + $0xb38] sm:$0xff]
          %v935 = vld [vmem:[#allocation4 + $0xb40] sm:$0xff]
          %v936 = vld [vmem:[#allocation4 + $0xb48] sm:$0xff]
          %v937 = vld [vmem:[#allocation4 + $0xb50] sm:$0xff]
          %v938 = vld [vmem:[#allocation4 + $0xb58] sm:$0xff]
          %v939 = vld [vmem:[#allocation4 + $0xb60] sm:$0xff]
          %v940 = vld [vmem:[#allocation4 + $0xb68] sm:$0xff]
          %v941 = vld [vmem:[#allocation4 + $0xb70] sm:$0xff]
          %v942 = vld [vmem:[#allocation4 + $0xb78] sm:$0xff]
          %v943 = vld [vmem:[#allocation4 + $0xb80] sm:$0xff]
          %v944 = vld [vmem:[#allocation4 + $0xb88] sm:$0xff]
          %v945 = vld [vmem:[#allocation4 + $0xb90] sm:$0xff]
          %v946 = vld [vmem:[#allocation4 + $0xb98] sm:$0xff]
          %v947 = vld [vmem:[#allocation4 + $0xba0] sm:$0xff]
          %v948 = vld [vmem:[#allocation4 + $0xba8] sm:$0xff]
          %v949 = vld [vmem:[#allocation4 + $0xbb0] sm:$0xff]
          %v950 = vld [vmem:[#allocation4 + $0xbb8] sm:$0xff]
          %v951 = vld [vmem:[#allocation4 + $0xbc0] sm:$0xff]
          %v952 = vld [vmem:[#allocation4 + $0xbc8] sm:$0xff]
          %v953 = vld [vmem:[#allocation4 + $0xbd0] sm:$0xff]
          %v954 = vld [vmem:[#allocation4 + $0xbd8] sm:$0xff]
          %v955 = vld [vmem:[#allocation4 + $0xbe0] sm:$0xff]
          %v956 = vld [vmem:[#allocation4 + $0xbe8] sm:$0xff]
          %v957 = vld [vmem:[#allocation4 + $0xbf0] sm:$0xff]
          %v958 = vld [vmem:[#allocation4 + $0xbf8] sm:$0xff]
          %v959 = vld [vmem:[#allocation4 + $0xc00] sm:$0xff]
          %v960 = vld [vmem:[#allocation4 + $0xc08] sm:$0xff]
          %v961 = vld [vmem:[#allocation4 + $0xc10] sm:$0xff]
          %v962 = vld [vmem:[#allocation4 + $0xc18] sm:$0xff]
          %v963 = vld [vmem:[#allocation4 + $0xc20] sm:$0xff]
          %v964 = vld [vmem:[#allocation4 + $0xc28] sm:$0xff]
          %v965 = vld [vmem:[#allocation4 + $0xc30] sm:$0xff]
          %v966 = vld [vmem:[#allocation4 + $0xc38] sm:$0xff]
          %v967 = vld [vmem:[#allocation4 + $0xc40] sm:$0xff]
          %v968 = vld [vmem:[#allocation4 + $0xc48] sm:$0xff]
          %v969 = vld [vmem:[#allocation4 + $0xc50] sm:$0xff]
          %v970 = vld [vmem:[#allocation4 + $0xc58] sm:$0xff]
          %v971 = vld [vmem:[#allocation4 + $0xc60] sm:$0xff]
          %v972 = vld [vmem:[#allocation4 + $0xc68] sm:$0xff]
          %v973 = vld [vmem:[#allocation4 + $0xc70] sm:$0xff]
          %v974 = vld [vmem:[#allocation4 + $0xc78] sm:$0xff]
          %v975 = vld [vmem:[#allocation4 + $0xc80] sm:$0xff]
          %v976 = vld [vmem:[#allocation4 + $0xc88] sm:$0xff]
          %v977 = vld [vmem:[#allocation4 + $0xc90] sm:$0xff]
          %v978 = vld [vmem:[#allocation4 + $0xc98] sm:$0xff]
          %v979 = vld [vmem:[#allocation4 + $0xca0] sm:$0xff]
          %v980 = vld [vmem:[#allocation4 + $0xca8] sm:$0xff]
          %v981 = vld [vmem:[#allocation4 + $0xcb0] sm:$0xff]
          %v982 = vld [vmem:[#allocation4 + $0xcb8] sm:$0xff]
          %v983 = vld [vmem:[#allocation4 + $0xcc0] sm:$0xff]
          %v984 = vld [vmem:[#allocation4 + $0xcc8] sm:$0xff]
          %v985 = vld [vmem:[#allocation4 + $0xcd0] sm:$0xff]
          %v986 = vld [vmem:[#allocation4 + $0xcd8] sm:$0xff]
          %v987 = vld [vmem:[#allocation4 + $0xce0] sm:$0xff]
          %v988 = vld [vmem:[#allocation4 + $0xce8] sm:$0xff]
          %v989 = vld [vmem:[#allocation4 + $0xcf0] sm:$0xff]
          %v990 = vld [vmem:[#allocation4 + $0xcf8] sm:$0xff]
          %v991 = vld [vmem:[#allocation4 + $0xd00] sm:$0xff]
          %v992 = vld [vmem:[#allocation4 + $0xd08] sm:$0xff]
          %v993 = vld [vmem:[#allocation4 + $0xd10] sm:$0xff]
          %v994 = vld [vmem:[#allocation4 + $0xd18] sm:$0xff]
          %v995 = vld [vmem:[#allocation4 + $0xd20] sm:$0xff]
          %v996 = vld [vmem:[#allocation4 + $0xd28] sm:$0xff]
          %v997 = vld [vmem:[#allocation4 + $0xd30] sm:$0xff]
          %v998 = vld [vmem:[#allocation4 + $0xd38] sm:$0xff]
          %v999 = vld [vmem:[#allocation4 + $0xd40] sm:$0xff]
          %v1000 = vld [vmem:[#allocation4 + $0xd48] sm:$0xff]
          %v1001 = vld [vmem:[#allocation4 + $0xd50] sm:$0xff]
          %v1002 = vld [vmem:[#allocation4 + $0xd58] sm:$0xff]
          %v1003 = vld [vmem:[#allocation4 + $0xd60] sm:$0xff]
          %v1004 = vld [vmem:[#allocation4 + $0xd68] sm:$0xff]
          %v1005 = vld [vmem:[#allocation4 + $0xd70] sm:$0xff]
          %v1006 = vld [vmem:[#allocation4 + $0xd78] sm:$0xff]
          %v1007 = vld [vmem:[#allocation4 + $0xd80] sm:$0xff]
          %v1008 = vld [vmem:[#allocation4 + $0xd88] sm:$0xff]
          %v1009 = vld [vmem:[#allocation4 + $0xd90] sm:$0xff]
          %v1010 = vld [vmem:[#allocation4 + $0xd98] sm:$0xff]
          %v1011 = vld [vmem:[#allocation4 + $0xda0] sm:$0xff]
          %v1012 = vld [vmem:[#allocation4 + $0xda8] sm:$0xff]
          %v1013 = vld [vmem:[#allocation4 + $0xdb0] sm:$0xff]
          %v1014 = vld [vmem:[#allocation4 + $0xdb8] sm:$0xff]
          %v1015 = vld [vmem:[#allocation4 + $0xdc0] sm:$0xff]
          %v1016 = vld [vmem:[#allocation4 + $0xdc8] sm:$0xff]
          %v1017 = vld [vmem:[#allocation4 + $0xdd0] sm:$0xff]
          %v1018 = vld [vmem:[#allocation4 + $0xdd8] sm:$0xff]
          %v1019 = vld [vmem:[#allocation4 + $0xde0] sm:$0xff]
          %v1020 = vld [vmem:[#allocation4 + $0xde8] sm:$0xff]
          %v1021 = vld [vmem:[#allocation4 + $0xdf0] sm:$0xff]
          %v1022 = vld [vmem:[#allocation4 + $0xdf8] sm:$0xff]
          %v1023 = vld [vmem:[#allocation4 + $0xe00] sm:$0xff]
          %v1024 = vld [vmem:[#allocation4 + $0xe08] sm:$0xff]
          %v1025 = vld [vmem:[#allocation4 + $0xe10] sm:$0xff]
          %v1026 = vld [vmem:[#allocation4 + $0xe18] sm:$0xff]
          %v1027 = vld [vmem:[#allocation4 + $0xe20] sm:$0xff]
          %v1028 = vld [vmem:[#allocation4 + $0xe28] sm:$0xff]
          %v1029 = vld [vmem:[#allocation4 + $0xe30] sm:$0xff]
          %v1030 = vld [vmem:[#allocation4 + $0xe38] sm:$0xff]
          %v1031 = vld [vmem:[#allocation4 + $0xe40] sm:$0xff]
          %v1032 = vld [vmem:[#allocation4 + $0xe48] sm:$0xff]
          %v1033 = vld [vmem:[#allocation4 + $0xe50] sm:$0xff]
          %v1034 = vld [vmem:[#allocation4 + $0xe58] sm:$0xff]
          %v1035 = vld [vmem:[#allocation4 + $0xe60] sm:$0xff]
          %v1036 = vld [vmem:[#allocation4 + $0xe68] sm:$0xff]
          %v1037 = vld [vmem:[#allocation4 + $0xe70] sm:$0xff]
          %v1038 = vld [vmem:[#allocation4 + $0xe78] sm:$0xff]
          %v1039 = vld [vmem:[#allocation4 + $0xe80] sm:$0xff]
          %v1040 = vld [vmem:[#allocation4 + $0xe88] sm:$0xff]
          %v1041 = vld [vmem:[#allocation4 + $0xe90] sm:$0xff]
          %v1042 = vld [vmem:[#allocation4 + $0xe98] sm:$0xff]
          %v1043 = vld [vmem:[#allocation4 + $0xea0] sm:$0xff]
          %v1044 = vld [vmem:[#allocation4 + $0xea8] sm:$0xff]
          %v1045 = vld [vmem:[#allocation4 + $0xeb0] sm:$0xff]
          %v1046 = vld [vmem:[#allocation4 + $0xeb8] sm:$0xff]
          %v1047 = vld [vmem:[#allocation4 + $0xec0] sm:$0xff]
          %v1048 = vld [vmem:[#allocation4 + $0xec8] sm:$0xff]
          %v1049 = vld [vmem:[#allocation4 + $0xed0] sm:$0xff]
          %v1050 = vld [vmem:[#allocation4 + $0xed8] sm:$0xff]
          %v1051 = vld [vmem:[#allocation4 + $0xee0] sm:$0xff]
          %v1052 = vld [vmem:[#allocation4 + $0xee8] sm:$0xff]
          %v1053 = vld [vmem:[#allocation4 + $0xef0] sm:$0xff]
          %v1054 = vld [vmem:[#allocation4 + $0xef8] sm:$0xff]
          %v1055 = vld [vmem:[#allocation4 + $0xf00] sm:$0xff]
          %v1056 = vld [vmem:[#allocation4 + $0xf08] sm:$0xff]
          %v1057 = vld [vmem:[#allocation4 + $0xf10] sm:$0xff]
          %v1058 = vld [vmem:[#allocation4 + $0xf18] sm:$0xff]
          %v1059 = vld [vmem:[#allocation4 + $0xf20] sm:$0xff]
          %v1060 = vld [vmem:[#allocation4 + $0xf28] sm:$0xff]
          %v1061 = vld [vmem:[#allocation4 + $0xf30] sm:$0xff]
          %v1062 = vld [vmem:[#allocation4 + $0xf38] sm:$0xff]
          %v1063 = vld [vmem:[#allocation4 + $0xf40] sm:$0xff]
          %v1064 = vld [vmem:[#allocation4 + $0xf48] sm:$0xff]
          %v1065 = vld [vmem:[#allocation4 + $0xf50] sm:$0xff]
          %v1066 = vld [vmem:[#allocation4 + $0xf58] sm:$0xff]
          %v1067 = vld [vmem:[#allocation4 + $0xf60] sm:$0xff]
          %v1068 = vld [vmem:[#allocation4 + $0xf68] sm:$0xff]
          %v1069 = vld [vmem:[#allocation4 + $0xf70] sm:$0xff]
          %v1070 = vld [vmem:[#allocation4 + $0xf78] sm:$0xff]
          %v1071 = vld [vmem:[#allocation4 + $0xf80] sm:$0xff]
          %v1072 = vld [vmem:[#allocation4 + $0xf88] sm:$0xff]
          %v1073 = vld [vmem:[#allocation4 + $0xf90] sm:$0xff]
          %v1074 = vld [vmem:[#allocation4 + $0xf98] sm:$0xff]
          %v1075 = vld [vmem:[#allocation4 + $0xfa0] sm:$0xff]
          %v1076 = vld [vmem:[#allocation4 + $0xfa8] sm:$0xff]
          %v1077 = vld [vmem:[#allocation4 + $0xfb0] sm:$0xff]
          %v1078 = vld [vmem:[#allocation4 + $0xfb8] sm:$0xff]
          %v1079 = vld [vmem:[#allocation4 + $0xfc0] sm:$0xff]
          %v1080 = vld [vmem:[#allocation4 + $0xfc8] sm:$0xff]
          %v1081 = vld [vmem:[#allocation4 + $0xfd0] sm:$0xff]
          %v1082 = vld [vmem:[#allocation4 + $0xfd8] sm:$0xff]
          %v1083 = vld [vmem:[#allocation4 + $0xfe0] sm:$0xff]
          %v1084 = vld [vmem:[#allocation4 + $0xfe8] sm:$0xff]
          %v1085 = vld [vmem:[#allocation4 + $0xff0] sm:$0xff]
          %v1086 = vld [vmem:[#allocation4 + $0xff8] sm:$0xff]
          %v1119 = vunpack.c.l.b16 %v543
          %v1120 = vunpack.c.h.b16 %v543
          %v1121 = vunpack.c.l.b16 %v544
          %v1122 = vunpack.c.h.b16 %v544
          %v1123 = vunpack.c.l.b16 %v545
          %v1124 = vunpack.c.h.b16 %v545
          %v1125 = vunpack.c.l.b16 %v546
          %v1126 = vunpack.c.h.b16 %v546
          %v1127 = vunpack.c.l.b16 %v547
          %v1128 = vunpack.c.h.b16 %v547
          %v1129 = vunpack.c.l.b16 %v548
          %v1130 = vunpack.c.h.b16 %v548
          %v1131 = vunpack.c.l.b16 %v549
          %v1132 = vunpack.c.h.b16 %v549
          %v1133 = vunpack.c.l.b16 %v550
          %v1134 = vunpack.c.h.b16 %v550
          %v1135 = vunpack.c.l.b16 %v551
          %v1136 = vunpack.c.h.b16 %v551
          %v1137 = vunpack.c.l.b16 %v552
          %v1138 = vunpack.c.h.b16 %v552
          %v1139 = vunpack.c.l.b16 %v553
          %v1140 = vunpack.c.h.b16 %v553
          %v1141 = vunpack.c.l.b16 %v554
          %v1142 = vunpack.c.h.b16 %v554
          %v1143 = vunpack.c.l.b16 %v555
          %v1144 = vunpack.c.h.b16 %v555
          %v1145 = vunpack.c.l.b16 %v556
          %v1146 = vunpack.c.h.b16 %v556
          %v1147 = vunpack.c.l.b16 %v557
          %v1148 = vunpack.c.h.b16 %v557
          %v1149 = vunpack.c.l.b16 %v558
          %v1150 = vunpack.c.h.b16 %v558
          %v1151 = vunpack.c.l.b16 %v559
          %v1152 = vunpack.c.h.b16 %v559
          %v1153 = vunpack.c.l.b16 %v560
          %v1154 = vunpack.c.h.b16 %v560
          %v1155 = vunpack.c.l.b16 %v561
          %v1156 = vunpack.c.h.b16 %v561
          %v1157 = vunpack.c.l.b16 %v562
          %v1158 = vunpack.c.h.b16 %v562
          %v1159 = vunpack.c.l.b16 %v563
          %v1160 = vunpack.c.h.b16 %v563
          %v1161 = vunpack.c.l.b16 %v564
          %v1162 = vunpack.c.h.b16 %v564
          %v1163 = vunpack.c.l.b16 %v565
          %v1164 = vunpack.c.h.b16 %v565
          %v1165 = vunpack.c.l.b16 %v566
          %v1166 = vunpack.c.h.b16 %v566
          %v1167 = vunpack.c.l.b16 %v567
          %v1168 = vunpack.c.h.b16 %v567
          %v1169 = vunpack.c.l.b16 %v568
          %v1170 = vunpack.c.h.b16 %v568
          %v1171 = vunpack.c.l.b16 %v569
          %v1172 = vunpack.c.h.b16 %v569
          %v1173 = vunpack.c.l.b16 %v570
          %v1174 = vunpack.c.h.b16 %v570
          %v1175 = vunpack.c.l.b16 %v571
          %v1176 = vunpack.c.h.b16 %v571
          %v1177 = vunpack.c.l.b16 %v572
          %v1178 = vunpack.c.h.b16 %v572
          %v1179 = vunpack.c.l.b16 %v573
          %v1180 = vunpack.c.h.b16 %v573
          %v1181 = vunpack.c.l.b16 %v574
          %v1182 = vunpack.c.h.b16 %v574
          %v1183 = vpack.c.b16 %v1127, %v1119
          %v1184 = vpack.c.b16 %v1128, %v1120
          %v1185 = vpack.c.b16 %v1129, %v1121
          %v1186 = vpack.c.b16 %v1130, %v1122
          %v1187 = vpack.c.b16 %v1131, %v1123
          %v1188 = vpack.c.b16 %v1132, %v1124
          %v1189 = vpack.c.b16 %v1133, %v1125
          %v1190 = vpack.c.b16 %v1134, %v1126
          %v1191 = vpack.c.b16 %v1143, %v1135
          %v1192 = vpack.c.b16 %v1144, %v1136
          %v1193 = vpack.c.b16 %v1145, %v1137
          %v1194 = vpack.c.b16 %v1146, %v1138
          %v1195 = vpack.c.b16 %v1147, %v1139
          %v1196 = vpack.c.b16 %v1148, %v1140
          %v1197 = vpack.c.b16 %v1149, %v1141
          %v1198 = vpack.c.b16 %v1150, %v1142
          %v1199 = vpack.c.b16 %v1159, %v1151
          %v1200 = vpack.c.b16 %v1160, %v1152
          %v1201 = vpack.c.b16 %v1161, %v1153
          %v1202 = vpack.c.b16 %v1162, %v1154
          %v1203 = vpack.c.b16 %v1163, %v1155
          %v1204 = vpack.c.b16 %v1164, %v1156
          %v1205 = vpack.c.b16 %v1165, %v1157
          %v1206 = vpack.c.b16 %v1166, %v1158
          %v1207 = vpack.c.b16 %v1175, %v1167
          %v1208 = vpack.c.b16 %v1176, %v1168
          %v1209 = vpack.c.b16 %v1177, %v1169
          %v1210 = vpack.c.b16 %v1178, %v1170
          %v1211 = vpack.c.b16 %v1179, %v1171
          %v1212 = vpack.c.b16 %v1180, %v1172
          %v1213 = vpack.c.b16 %v1181, %v1173
          %v1214 = vpack.c.b16 %v1182, %v1174
          %v1759 = vunpack.c.l.b16 %v575
          %v1760 = vunpack.c.h.b16 %v575
          %v1761 = vunpack.c.l.b16 %v576
          %v1762 = vunpack.c.h.b16 %v576
          %v1763 = vunpack.c.l.b16 %v577
          %v1764 = vunpack.c.h.b16 %v577
          %v1765 = vunpack.c.l.b16 %v578
          %v1766 = vunpack.c.h.b16 %v578
          %v1767 = vunpack.c.l.b16 %v579
          %v1768 = vunpack.c.h.b16 %v579
          %v1769 = vunpack.c.l.b16 %v580
          %v1770 = vunpack.c.h.b16 %v580
          %v1771 = vunpack.c.l.b16 %v581
          %v1772 = vunpack.c.h.b16 %v581
          %v1773 = vunpack.c.l.b16 %v582
          %v1774 = vunpack.c.h.b16 %v582
          %v1775 = vunpack.c.l.b16 %v583
          %v1776 = vunpack.c.h.b16 %v583
          %v1777 = vunpack.c.l.b16 %v584
          %v1778 = vunpack.c.h.b16 %v584
          %v1779 = vunpack.c.l.b16 %v585
          %v1780 = vunpack.c.h.b16 %v585
          %v1781 = vunpack.c.l.b16 %v586
          %v1782 = vunpack.c.h.b16 %v586
          %v1783 = vunpack.c.l.b16 %v587
          %v1784 = vunpack.c.h.b16 %v587
          %v1785 = vunpack.c.l.b16 %v588
          %v1786 = vunpack.c.h.b16 %v588
          %v1787 = vunpack.c.l.b16 %v589
          %v1788 = vunpack.c.h.b16 %v589
          %v1789 = vunpack.c.l.b16 %v590
          %v1790 = vunpack.c.h.b16 %v590
          %v1791 = vunpack.c.l.b16 %v591
          %v1792 = vunpack.c.h.b16 %v591
          %v1793 = vunpack.c.l.b16 %v592
          %v1794 = vunpack.c.h.b16 %v592
          %v1795 = vunpack.c.l.b16 %v593
          %v1796 = vunpack.c.h.b16 %v593
          %v1797 = vunpack.c.l.b16 %v594
          %v1798 = vunpack.c.h.b16 %v594
          %v1799 = vunpack.c.l.b16 %v595
          %v1800 = vunpack.c.h.b16 %v595
          %v1801 = vunpack.c.l.b16 %v596
          %v1802 = vunpack.c.h.b16 %v596
          %v1803 = vunpack.c.l.b16 %v597
          %v1804 = vunpack.c.h.b16 %v597
          %v1805 = vunpack.c.l.b16 %v598
          %v1806 = vunpack.c.h.b16 %v598
          %v1807 = vunpack.c.l.b16 %v599
          %v1808 = vunpack.c.h.b16 %v599
          %v1809 = vunpack.c.l.b16 %v600
          %v1810 = vunpack.c.h.b16 %v600
          %v1811 = vunpack.c.l.b16 %v601
          %v1812 = vunpack.c.h.b16 %v601
          %v1813 = vunpack.c.l.b16 %v602
          %v1814 = vunpack.c.h.b16 %v602
          %v1815 = vunpack.c.l.b16 %v603
          %v1816 = vunpack.c.h.b16 %v603
          %v1817 = vunpack.c.l.b16 %v604
          %v1818 = vunpack.c.h.b16 %v604
          %v1819 = vunpack.c.l.b16 %v605
          %v1820 = vunpack.c.h.b16 %v605
          %v1821 = vunpack.c.l.b16 %v606
          %v1822 = vunpack.c.h.b16 %v606
          %v1823 = vunpack.c.l.b16 %v607
          %v1824 = vunpack.c.h.b16 %v607
          %v1825 = vunpack.c.l.b16 %v608
          %v1826 = vunpack.c.h.b16 %v608
          %v1827 = vunpack.c.l.b16 %v609
          %v1828 = vunpack.c.h.b16 %v609
          %v1829 = vunpack.c.l.b16 %v610
          %v1830 = vunpack.c.h.b16 %v610
          %v1831 = vunpack.c.l.b16 %v611
          %v1832 = vunpack.c.h.b16 %v611
          %v1833 = vunpack.c.l.b16 %v612
          %v1834 = vunpack.c.h.b16 %v612
          %v1835 = vunpack.c.l.b16 %v613
          %v1836 = vunpack.c.h.b16 %v613
          %v1837 = vunpack.c.l.b16 %v614
          %v1838 = vunpack.c.h.b16 %v614
          %v1839 = vunpack.c.l.b16 %v615
          %v1840 = vunpack.c.h.b16 %v615
          %v1841 = vunpack.c.l.b16 %v616
          %v1842 = vunpack.c.h.b16 %v616
          %v1843 = vunpack.c.l.b16 %v617
          %v1844 = vunpack.c.h.b16 %v617
          %v1845 = vunpack.c.l.b16 %v618
          %v1846 = vunpack.c.h.b16 %v618
          %v1847 = vunpack.c.l.b16 %v619
          %v1848 = vunpack.c.h.b16 %v619
          %v1849 = vunpack.c.l.b16 %v620
          %v1850 = vunpack.c.h.b16 %v620
          %v1851 = vunpack.c.l.b16 %v621
          %v1852 = vunpack.c.h.b16 %v621
          %v1853 = vunpack.c.l.b16 %v622
          %v1854 = vunpack.c.h.b16 %v622
          %v1855 = vunpack.c.l.b16 %v623
          %v1856 = vunpack.c.h.b16 %v623
          %v1857 = vunpack.c.l.b16 %v624
          %v1858 = vunpack.c.h.b16 %v624
          %v1859 = vunpack.c.l.b16 %v625
          %v1860 = vunpack.c.h.b16 %v625
          %v1861 = vunpack.c.l.b16 %v626
          %v1862 = vunpack.c.h.b16 %v626
          %v1863 = vunpack.c.l.b16 %v627
          %v1864 = vunpack.c.h.b16 %v627
          %v1865 = vunpack.c.l.b16 %v628
          %v1866 = vunpack.c.h.b16 %v628
          %v1867 = vunpack.c.l.b16 %v629
          %v1868 = vunpack.c.h.b16 %v629
          %v1869 = vunpack.c.l.b16 %v630
          %v1870 = vunpack.c.h.b16 %v630
          %v1871 = vunpack.c.l.b16 %v631
          %v1872 = vunpack.c.h.b16 %v631
          %v1873 = vunpack.c.l.b16 %v632
          %v1874 = vunpack.c.h.b16 %v632
          %v1875 = vunpack.c.l.b16 %v633
          %v1876 = vunpack.c.h.b16 %v633
          %v1877 = vunpack.c.l.b16 %v634
          %v1878 = vunpack.c.h.b16 %v634
          %v1879 = vunpack.c.l.b16 %v635
          %v1880 = vunpack.c.h.b16 %v635
          %v1881 = vunpack.c.l.b16 %v636
          %v1882 = vunpack.c.h.b16 %v636
          %v1883 = vunpack.c.l.b16 %v637
          %v1884 = vunpack.c.h.b16 %v637
          %v1885 = vunpack.c.l.b16 %v638
          %v1886 = vunpack.c.h.b16 %v638
          %v1887 = vunpack.c.l.b16 %v639
          %v1888 = vunpack.c.h.b16 %v639
          %v1889 = vunpack.c.l.b16 %v640
          %v1890 = vunpack.c.h.b16 %v640
          %v1891 = vunpack.c.l.b16 %v641
          %v1892 = vunpack.c.h.b16 %v641
          %v1893 = vunpack.c.l.b16 %v642
          %v1894 = vunpack.c.h.b16 %v642
          %v1895 = vunpack.c.l.b16 %v643
          %v1896 = vunpack.c.h.b16 %v643
          %v1897 = vunpack.c.l.b16 %v644
          %v1898 = vunpack.c.h.b16 %v644
          %v1899 = vunpack.c.l.b16 %v645
          %v1900 = vunpack.c.h.b16 %v645
          %v1901 = vunpack.c.l.b16 %v646
          %v1902 = vunpack.c.h.b16 %v646
          %v1903 = vunpack.c.l.b16 %v647
          %v1904 = vunpack.c.h.b16 %v647
          %v1905 = vunpack.c.l.b16 %v648
          %v1906 = vunpack.c.h.b16 %v648
          %v1907 = vunpack.c.l.b16 %v649
          %v1908 = vunpack.c.h.b16 %v649
          %v1909 = vunpack.c.l.b16 %v650
          %v1910 = vunpack.c.h.b16 %v650
          %v1911 = vunpack.c.l.b16 %v651
          %v1912 = vunpack.c.h.b16 %v651
          %v1913 = vunpack.c.l.b16 %v652
          %v1914 = vunpack.c.h.b16 %v652
          %v1915 = vunpack.c.l.b16 %v653
          %v1916 = vunpack.c.h.b16 %v653
          %v1917 = vunpack.c.l.b16 %v654
          %v1918 = vunpack.c.h.b16 %v654
          %v1919 = vunpack.c.l.b16 %v655
          %v1920 = vunpack.c.h.b16 %v655
          %v1921 = vunpack.c.l.b16 %v656
          %v1922 = vunpack.c.h.b16 %v656
          %v1923 = vunpack.c.l.b16 %v657
          %v1924 = vunpack.c.h.b16 %v657
          %v1925 = vunpack.c.l.b16 %v658
          %v1926 = vunpack.c.h.b16 %v658
          %v1927 = vunpack.c.l.b16 %v659
          %v1928 = vunpack.c.h.b16 %v659
          %v1929 = vunpack.c.l.b16 %v660
          %v1930 = vunpack.c.h.b16 %v660
          %v1931 = vunpack.c.l.b16 %v661
          %v1932 = vunpack.c.h.b16 %v661
          %v1933 = vunpack.c.l.b16 %v662
          %v1934 = vunpack.c.h.b16 %v662
          %v1935 = vunpack.c.l.b16 %v663
          %v1936 = vunpack.c.h.b16 %v663
          %v1937 = vunpack.c.l.b16 %v664
          %v1938 = vunpack.c.h.b16 %v664
          %v1939 = vunpack.c.l.b16 %v665
          %v1940 = vunpack.c.h.b16 %v665
          %v1941 = vunpack.c.l.b16 %v666
          %v1942 = vunpack.c.h.b16 %v666
          %v1943 = vunpack.c.l.b16 %v667
          %v1944 = vunpack.c.h.b16 %v667
          %v1945 = vunpack.c.l.b16 %v668
          %v1946 = vunpack.c.h.b16 %v668
          %v1947 = vunpack.c.l.b16 %v669
          %v1948 = vunpack.c.h.b16 %v669
          %v1949 = vunpack.c.l.b16 %v670
          %v1950 = vunpack.c.h.b16 %v670
          %v1951 = vunpack.c.l.b16 %v671
          %v1952 = vunpack.c.h.b16 %v671
          %v1953 = vunpack.c.l.b16 %v672
          %v1954 = vunpack.c.h.b16 %v672
          %v1955 = vunpack.c.l.b16 %v673
          %v1956 = vunpack.c.h.b16 %v673
          %v1957 = vunpack.c.l.b16 %v674
          %v1958 = vunpack.c.h.b16 %v674
          %v1959 = vunpack.c.l.b16 %v675
          %v1960 = vunpack.c.h.b16 %v675
          %v1961 = vunpack.c.l.b16 %v676
          %v1962 = vunpack.c.h.b16 %v676
          %v1963 = vunpack.c.l.b16 %v677
          %v1964 = vunpack.c.h.b16 %v677
          %v1965 = vunpack.c.l.b16 %v678
          %v1966 = vunpack.c.h.b16 %v678
          %v1967 = vunpack.c.l.b16 %v679
          %v1968 = vunpack.c.h.b16 %v679
          %v1969 = vunpack.c.l.b16 %v680
          %v1970 = vunpack.c.h.b16 %v680
          %v1971 = vunpack.c.l.b16 %v681
          %v1972 = vunpack.c.h.b16 %v681
          %v1973 = vunpack.c.l.b16 %v682
          %v1974 = vunpack.c.h.b16 %v682
          %v1975 = vunpack.c.l.b16 %v683
          %v1976 = vunpack.c.h.b16 %v683
          %v1977 = vunpack.c.l.b16 %v684
          %v1978 = vunpack.c.h.b16 %v684
          %v1979 = vunpack.c.l.b16 %v685
          %v1980 = vunpack.c.h.b16 %v685
          %v1981 = vunpack.c.l.b16 %v686
          %v1982 = vunpack.c.h.b16 %v686
          %v1983 = vunpack.c.l.b16 %v687
          %v1984 = vunpack.c.h.b16 %v687
          %v1985 = vunpack.c.l.b16 %v688
          %v1986 = vunpack.c.h.b16 %v688
          %v1987 = vunpack.c.l.b16 %v689
          %v1988 = vunpack.c.h.b16 %v689
          %v1989 = vunpack.c.l.b16 %v690
          %v1990 = vunpack.c.h.b16 %v690
          %v1991 = vunpack.c.l.b16 %v691
          %v1992 = vunpack.c.h.b16 %v691
          %v1993 = vunpack.c.l.b16 %v692
          %v1994 = vunpack.c.h.b16 %v692
          %v1995 = vunpack.c.l.b16 %v693
          %v1996 = vunpack.c.h.b16 %v693
          %v1997 = vunpack.c.l.b16 %v694
          %v1998 = vunpack.c.h.b16 %v694
          %v1999 = vunpack.c.l.b16 %v695
          %v2000 = vunpack.c.h.b16 %v695
          %v2001 = vunpack.c.l.b16 %v696
          %v2002 = vunpack.c.h.b16 %v696
          %v2003 = vunpack.c.l.b16 %v697
          %v2004 = vunpack.c.h.b16 %v697
          %v2005 = vunpack.c.l.b16 %v698
          %v2006 = vunpack.c.h.b16 %v698
          %v2007 = vunpack.c.l.b16 %v699
          %v2008 = vunpack.c.h.b16 %v699
          %v2009 = vunpack.c.l.b16 %v700
          %v2010 = vunpack.c.h.b16 %v700
          %v2011 = vunpack.c.l.b16 %v701
          %v2012 = vunpack.c.h.b16 %v701
          %v2013 = vunpack.c.l.b16 %v702
          %v2014 = vunpack.c.h.b16 %v702
          %v2015 = vunpack.c.l.b16 %v703
          %v2016 = vunpack.c.h.b16 %v703
          %v2017 = vunpack.c.l.b16 %v704
          %v2018 = vunpack.c.h.b16 %v704
          %v2019 = vunpack.c.l.b16 %v705
          %v2020 = vunpack.c.h.b16 %v705
          %v2021 = vunpack.c.l.b16 %v706
          %v2022 = vunpack.c.h.b16 %v706
          %v2023 = vunpack.c.l.b16 %v707
          %v2024 = vunpack.c.h.b16 %v707
          %v2025 = vunpack.c.l.b16 %v708
          %v2026 = vunpack.c.h.b16 %v708
          %v2027 = vunpack.c.l.b16 %v709
          %v2028 = vunpack.c.h.b16 %v709
          %v2029 = vunpack.c.l.b16 %v710
          %v2030 = vunpack.c.h.b16 %v710
          %v2031 = vunpack.c.l.b16 %v711
          %v2032 = vunpack.c.h.b16 %v711
          %v2033 = vunpack.c.l.b16 %v712
          %v2034 = vunpack.c.h.b16 %v712
          %v2035 = vunpack.c.l.b16 %v713
          %v2036 = vunpack.c.h.b16 %v713
          %v2037 = vunpack.c.l.b16 %v714
          %v2038 = vunpack.c.h.b16 %v714
          %v2039 = vunpack.c.l.b16 %v715
          %v2040 = vunpack.c.h.b16 %v715
          %v2041 = vunpack.c.l.b16 %v716
          %v2042 = vunpack.c.h.b16 %v716
          %v2043 = vunpack.c.l.b16 %v717
          %v2044 = vunpack.c.h.b16 %v717
          %v2045 = vunpack.c.l.b16 %v718
          %v2046 = vunpack.c.h.b16 %v718
          %v2047 = vunpack.c.l.b16 %v719
          %v2048 = vunpack.c.h.b16 %v719
          %v2049 = vunpack.c.l.b16 %v720
          %v2050 = vunpack.c.h.b16 %v720
          %v2051 = vunpack.c.l.b16 %v721
          %v2052 = vunpack.c.h.b16 %v721
          %v2053 = vunpack.c.l.b16 %v722
          %v2054 = vunpack.c.h.b16 %v722
          %v2055 = vunpack.c.l.b16 %v723
          %v2056 = vunpack.c.h.b16 %v723
          %v2057 = vunpack.c.l.b16 %v724
          %v2058 = vunpack.c.h.b16 %v724
          %v2059 = vunpack.c.l.b16 %v725
          %v2060 = vunpack.c.h.b16 %v725
          %v2061 = vunpack.c.l.b16 %v726
          %v2062 = vunpack.c.h.b16 %v726
          %v2063 = vunpack.c.l.b16 %v727
          %v2064 = vunpack.c.h.b16 %v727
          %v2065 = vunpack.c.l.b16 %v728
          %v2066 = vunpack.c.h.b16 %v728
          %v2067 = vunpack.c.l.b16 %v729
          %v2068 = vunpack.c.h.b16 %v729
          %v2069 = vunpack.c.l.b16 %v730
          %v2070 = vunpack.c.h.b16 %v730
          %v2071 = vunpack.c.l.b16 %v731
          %v2072 = vunpack.c.h.b16 %v731
          %v2073 = vunpack.c.l.b16 %v732
          %v2074 = vunpack.c.h.b16 %v732
          %v2075 = vunpack.c.l.b16 %v733
          %v2076 = vunpack.c.h.b16 %v733
          %v2077 = vunpack.c.l.b16 %v734
          %v2078 = vunpack.c.h.b16 %v734
          %v2079 = vunpack.c.l.b16 %v735
          %v2080 = vunpack.c.h.b16 %v735
          %v2081 = vunpack.c.l.b16 %v736
          %v2082 = vunpack.c.h.b16 %v736
          %v2083 = vunpack.c.l.b16 %v737
          %v2084 = vunpack.c.h.b16 %v737
          %v2085 = vunpack.c.l.b16 %v738
          %v2086 = vunpack.c.h.b16 %v738
          %v2087 = vunpack.c.l.b16 %v739
          %v2088 = vunpack.c.h.b16 %v739
          %v2089 = vunpack.c.l.b16 %v740
          %v2090 = vunpack.c.h.b16 %v740
          %v2091 = vunpack.c.l.b16 %v741
          %v2092 = vunpack.c.h.b16 %v741
          %v2093 = vunpack.c.l.b16 %v742
          %v2094 = vunpack.c.h.b16 %v742
          %v2095 = vunpack.c.l.b16 %v743
          %v2096 = vunpack.c.h.b16 %v743
          %v2097 = vunpack.c.l.b16 %v744
          %v2098 = vunpack.c.h.b16 %v744
          %v2099 = vunpack.c.l.b16 %v745
          %v2100 = vunpack.c.h.b16 %v745
          %v2101 = vunpack.c.l.b16 %v746
          %v2102 = vunpack.c.h.b16 %v746
          %v2103 = vunpack.c.l.b16 %v747
          %v2104 = vunpack.c.h.b16 %v747
          %v2105 = vunpack.c.l.b16 %v748
          %v2106 = vunpack.c.h.b16 %v748
          %v2107 = vunpack.c.l.b16 %v749
          %v2108 = vunpack.c.h.b16 %v749
          %v2109 = vunpack.c.l.b16 %v750
          %v2110 = vunpack.c.h.b16 %v750
          %v2111 = vunpack.c.l.b16 %v751
          %v2112 = vunpack.c.h.b16 %v751
          %v2113 = vunpack.c.l.b16 %v752
          %v2114 = vunpack.c.h.b16 %v752
          %v2115 = vunpack.c.l.b16 %v753
          %v2116 = vunpack.c.h.b16 %v753
          %v2117 = vunpack.c.l.b16 %v754
          %v2118 = vunpack.c.h.b16 %v754
          %v2119 = vunpack.c.l.b16 %v755
          %v2120 = vunpack.c.h.b16 %v755
          %v2121 = vunpack.c.l.b16 %v756
          %v2122 = vunpack.c.h.b16 %v756
          %v2123 = vunpack.c.l.b16 %v757
          %v2124 = vunpack.c.h.b16 %v757
          %v2125 = vunpack.c.l.b16 %v758
          %v2126 = vunpack.c.h.b16 %v758
          %v2127 = vunpack.c.l.b16 %v759
          %v2128 = vunpack.c.h.b16 %v759
          %v2129 = vunpack.c.l.b16 %v760
          %v2130 = vunpack.c.h.b16 %v760
          %v2131 = vunpack.c.l.b16 %v761
          %v2132 = vunpack.c.h.b16 %v761
          %v2133 = vunpack.c.l.b16 %v762
          %v2134 = vunpack.c.h.b16 %v762
          %v2135 = vunpack.c.l.b16 %v763
          %v2136 = vunpack.c.h.b16 %v763
          %v2137 = vunpack.c.l.b16 %v764
          %v2138 = vunpack.c.h.b16 %v764
          %v2139 = vunpack.c.l.b16 %v765
          %v2140 = vunpack.c.h.b16 %v765
          %v2141 = vunpack.c.l.b16 %v766
          %v2142 = vunpack.c.h.b16 %v766
          %v2143 = vunpack.c.l.b16 %v767
          %v2144 = vunpack.c.h.b16 %v767
          %v2145 = vunpack.c.l.b16 %v768
          %v2146 = vunpack.c.h.b16 %v768
          %v2147 = vunpack.c.l.b16 %v769
          %v2148 = vunpack.c.h.b16 %v769
          %v2149 = vunpack.c.l.b16 %v770
          %v2150 = vunpack.c.h.b16 %v770
          %v2151 = vunpack.c.l.b16 %v771
          %v2152 = vunpack.c.h.b16 %v771
          %v2153 = vunpack.c.l.b16 %v772
          %v2154 = vunpack.c.h.b16 %v772
          %v2155 = vunpack.c.l.b16 %v773
          %v2156 = vunpack.c.h.b16 %v773
          %v2157 = vunpack.c.l.b16 %v774
          %v2158 = vunpack.c.h.b16 %v774
          %v2159 = vunpack.c.l.b16 %v775
          %v2160 = vunpack.c.h.b16 %v775
          %v2161 = vunpack.c.l.b16 %v776
          %v2162 = vunpack.c.h.b16 %v776
          %v2163 = vunpack.c.l.b16 %v777
          %v2164 = vunpack.c.h.b16 %v777
          %v2165 = vunpack.c.l.b16 %v778
          %v2166 = vunpack.c.h.b16 %v778
          %v2167 = vunpack.c.l.b16 %v779
          %v2168 = vunpack.c.h.b16 %v779
          %v2169 = vunpack.c.l.b16 %v780
          %v2170 = vunpack.c.h.b16 %v780
          %v2171 = vunpack.c.l.b16 %v781
          %v2172 = vunpack.c.h.b16 %v781
          %v2173 = vunpack.c.l.b16 %v782
          %v2174 = vunpack.c.h.b16 %v782
          %v2175 = vunpack.c.l.b16 %v783
          %v2176 = vunpack.c.h.b16 %v783
          %v2177 = vunpack.c.l.b16 %v784
          %v2178 = vunpack.c.h.b16 %v784
          %v2179 = vunpack.c.l.b16 %v785
          %v2180 = vunpack.c.h.b16 %v785
          %v2181 = vunpack.c.l.b16 %v786
          %v2182 = vunpack.c.h.b16 %v786
          %v2183 = vunpack.c.l.b16 %v787
          %v2184 = vunpack.c.h.b16 %v787
          %v2185 = vunpack.c.l.b16 %v788
          %v2186 = vunpack.c.h.b16 %v788
          %v2187 = vunpack.c.l.b16 %v789
          %v2188 = vunpack.c.h.b16 %v789
          %v2189 = vunpack.c.l.b16 %v790
          %v2190 = vunpack.c.h.b16 %v790
          %v2191 = vunpack.c.l.b16 %v791
          %v2192 = vunpack.c.h.b16 %v791
          %v2193 = vunpack.c.l.b16 %v792
          %v2194 = vunpack.c.h.b16 %v792
          %v2195 = vunpack.c.l.b16 %v793
          %v2196 = vunpack.c.h.b16 %v793
          %v2197 = vunpack.c.l.b16 %v794
          %v2198 = vunpack.c.h.b16 %v794
          %v2199 = vunpack.c.l.b16 %v795
          %v2200 = vunpack.c.h.b16 %v795
          %v2201 = vunpack.c.l.b16 %v796
          %v2202 = vunpack.c.h.b16 %v796
          %v2203 = vunpack.c.l.b16 %v797
          %v2204 = vunpack.c.h.b16 %v797
          %v2205 = vunpack.c.l.b16 %v798
          %v2206 = vunpack.c.h.b16 %v798
          %v2207 = vunpack.c.l.b16 %v799
          %v2208 = vunpack.c.h.b16 %v799
          %v2209 = vunpack.c.l.b16 %v800
          %v2210 = vunpack.c.h.b16 %v800
          %v2211 = vunpack.c.l.b16 %v801
          %v2212 = vunpack.c.h.b16 %v801
          %v2213 = vunpack.c.l.b16 %v802
          %v2214 = vunpack.c.h.b16 %v802
          %v2215 = vunpack.c.l.b16 %v803
          %v2216 = vunpack.c.h.b16 %v803
          %v2217 = vunpack.c.l.b16 %v804
          %v2218 = vunpack.c.h.b16 %v804
          %v2219 = vunpack.c.l.b16 %v805
          %v2220 = vunpack.c.h.b16 %v805
          %v2221 = vunpack.c.l.b16 %v806
          %v2222 = vunpack.c.h.b16 %v806
          %v2223 = vunpack.c.l.b16 %v807
          %v2224 = vunpack.c.h.b16 %v807
          %v2225 = vunpack.c.l.b16 %v808
          %v2226 = vunpack.c.h.b16 %v808
          %v2227 = vunpack.c.l.b16 %v809
          %v2228 = vunpack.c.h.b16 %v809
          %v2229 = vunpack.c.l.b16 %v810
          %v2230 = vunpack.c.h.b16 %v810
          %v2231 = vunpack.c.l.b16 %v811
          %v2232 = vunpack.c.h.b16 %v811
          %v2233 = vunpack.c.l.b16 %v812
          %v2234 = vunpack.c.h.b16 %v812
          %v2235 = vunpack.c.l.b16 %v813
          %v2236 = vunpack.c.h.b16 %v813
          %v2237 = vunpack.c.l.b16 %v814
          %v2238 = vunpack.c.h.b16 %v814
          %v2239 = vunpack.c.l.b16 %v815
          %v2240 = vunpack.c.h.b16 %v815
          %v2241 = vunpack.c.l.b16 %v816
          %v2242 = vunpack.c.h.b16 %v816
          %v2243 = vunpack.c.l.b16 %v817
          %v2244 = vunpack.c.h.b16 %v817
          %v2245 = vunpack.c.l.b16 %v818
          %v2246 = vunpack.c.h.b16 %v818
          %v2247 = vunpack.c.l.b16 %v819
          %v2248 = vunpack.c.h.b16 %v819
          %v2249 = vunpack.c.l.b16 %v820
          %v2250 = vunpack.c.h.b16 %v820
          %v2251 = vunpack.c.l.b16 %v821
          %v2252 = vunpack.c.h.b16 %v821
          %v2253 = vunpack.c.l.b16 %v822
          %v2254 = vunpack.c.h.b16 %v822
          %v2255 = vunpack.c.l.b16 %v823
          %v2256 = vunpack.c.h.b16 %v823
          %v2257 = vunpack.c.l.b16 %v824
          %v2258 = vunpack.c.h.b16 %v824
          %v2259 = vunpack.c.l.b16 %v825
          %v2260 = vunpack.c.h.b16 %v825
          %v2261 = vunpack.c.l.b16 %v826
          %v2262 = vunpack.c.h.b16 %v826
          %v2263 = vunpack.c.l.b16 %v827
          %v2264 = vunpack.c.h.b16 %v827
          %v2265 = vunpack.c.l.b16 %v828
          %v2266 = vunpack.c.h.b16 %v828
          %v2267 = vunpack.c.l.b16 %v829
          %v2268 = vunpack.c.h.b16 %v829
          %v2269 = vunpack.c.l.b16 %v830
          %v2270 = vunpack.c.h.b16 %v830
          %v2271 = vunpack.c.l.b16 %v831
          %v2272 = vunpack.c.h.b16 %v831
          %v2273 = vunpack.c.l.b16 %v832
          %v2274 = vunpack.c.h.b16 %v832
          %v2275 = vunpack.c.l.b16 %v833
          %v2276 = vunpack.c.h.b16 %v833
          %v2277 = vunpack.c.l.b16 %v834
          %v2278 = vunpack.c.h.b16 %v834
          %v2279 = vunpack.c.l.b16 %v835
          %v2280 = vunpack.c.h.b16 %v835
          %v2281 = vunpack.c.l.b16 %v836
          %v2282 = vunpack.c.h.b16 %v836
          %v2283 = vunpack.c.l.b16 %v837
          %v2284 = vunpack.c.h.b16 %v837
          %v2285 = vunpack.c.l.b16 %v838
          %v2286 = vunpack.c.h.b16 %v838
          %v2287 = vunpack.c.l.b16 %v839
          %v2288 = vunpack.c.h.b16 %v839
          %v2289 = vunpack.c.l.b16 %v840
          %v2290 = vunpack.c.h.b16 %v840
          %v2291 = vunpack.c.l.b16 %v841
          %v2292 = vunpack.c.h.b16 %v841
          %v2293 = vunpack.c.l.b16 %v842
          %v2294 = vunpack.c.h.b16 %v842
          %v2295 = vunpack.c.l.b16 %v843
          %v2296 = vunpack.c.h.b16 %v843
          %v2297 = vunpack.c.l.b16 %v844
          %v2298 = vunpack.c.h.b16 %v844
          %v2299 = vunpack.c.l.b16 %v845
          %v2300 = vunpack.c.h.b16 %v845
          %v2301 = vunpack.c.l.b16 %v846
          %v2302 = vunpack.c.h.b16 %v846
          %v2303 = vunpack.c.l.b16 %v847
          %v2304 = vunpack.c.h.b16 %v847
          %v2305 = vunpack.c.l.b16 %v848
          %v2306 = vunpack.c.h.b16 %v848
          %v2307 = vunpack.c.l.b16 %v849
          %v2308 = vunpack.c.h.b16 %v849
          %v2309 = vunpack.c.l.b16 %v850
          %v2310 = vunpack.c.h.b16 %v850
          %v2311 = vunpack.c.l.b16 %v851
          %v2312 = vunpack.c.h.b16 %v851
          %v2313 = vunpack.c.l.b16 %v852
          %v2314 = vunpack.c.h.b16 %v852
          %v2315 = vunpack.c.l.b16 %v853
          %v2316 = vunpack.c.h.b16 %v853
          %v2317 = vunpack.c.l.b16 %v854
          %v2318 = vunpack.c.h.b16 %v854
          %v2319 = vunpack.c.l.b16 %v855
          %v2320 = vunpack.c.h.b16 %v855
          %v2321 = vunpack.c.l.b16 %v856
          %v2322 = vunpack.c.h.b16 %v856
          %v2323 = vunpack.c.l.b16 %v857
          %v2324 = vunpack.c.h.b16 %v857
          %v2325 = vunpack.c.l.b16 %v858
          %v2326 = vunpack.c.h.b16 %v858
          %v2327 = vunpack.c.l.b16 %v859
          %v2328 = vunpack.c.h.b16 %v859
          %v2329 = vunpack.c.l.b16 %v860
          %v2330 = vunpack.c.h.b16 %v860
          %v2331 = vunpack.c.l.b16 %v861
          %v2332 = vunpack.c.h.b16 %v861
          %v2333 = vunpack.c.l.b16 %v862
          %v2334 = vunpack.c.h.b16 %v862
          %v2335 = vunpack.c.l.b16 %v863
          %v2336 = vunpack.c.h.b16 %v863
          %v2337 = vunpack.c.l.b16 %v864
          %v2338 = vunpack.c.h.b16 %v864
          %v2339 = vunpack.c.l.b16 %v865
          %v2340 = vunpack.c.h.b16 %v865
          %v2341 = vunpack.c.l.b16 %v866
          %v2342 = vunpack.c.h.b16 %v866
          %v2343 = vunpack.c.l.b16 %v867
          %v2344 = vunpack.c.h.b16 %v867
          %v2345 = vunpack.c.l.b16 %v868
          %v2346 = vunpack.c.h.b16 %v868
          %v2347 = vunpack.c.l.b16 %v869
          %v2348 = vunpack.c.h.b16 %v869
          %v2349 = vunpack.c.l.b16 %v870
          %v2350 = vunpack.c.h.b16 %v870
          %v2351 = vunpack.c.l.b16 %v871
          %v2352 = vunpack.c.h.b16 %v871
          %v2353 = vunpack.c.l.b16 %v872
          %v2354 = vunpack.c.h.b16 %v872
          %v2355 = vunpack.c.l.b16 %v873
          %v2356 = vunpack.c.h.b16 %v873
          %v2357 = vunpack.c.l.b16 %v874
          %v2358 = vunpack.c.h.b16 %v874
          %v2359 = vunpack.c.l.b16 %v875
          %v2360 = vunpack.c.h.b16 %v875
          %v2361 = vunpack.c.l.b16 %v876
          %v2362 = vunpack.c.h.b16 %v876
          %v2363 = vunpack.c.l.b16 %v877
          %v2364 = vunpack.c.h.b16 %v877
          %v2365 = vunpack.c.l.b16 %v878
          %v2366 = vunpack.c.h.b16 %v878
          %v2367 = vunpack.c.l.b16 %v879
          %v2368 = vunpack.c.h.b16 %v879
          %v2369 = vunpack.c.l.b16 %v880
          %v2370 = vunpack.c.h.b16 %v880
          %v2371 = vunpack.c.l.b16 %v881
          %v2372 = vunpack.c.h.b16 %v881
          %v2373 = vunpack.c.l.b16 %v882
          %v2374 = vunpack.c.h.b16 %v882
          %v2375 = vunpack.c.l.b16 %v883
          %v2376 = vunpack.c.h.b16 %v883
          %v2377 = vunpack.c.l.b16 %v884
          %v2378 = vunpack.c.h.b16 %v884
          %v2379 = vunpack.c.l.b16 %v885
          %v2380 = vunpack.c.h.b16 %v885
          %v2381 = vunpack.c.l.b16 %v886
          %v2382 = vunpack.c.h.b16 %v886
          %v2383 = vunpack.c.l.b16 %v887
          %v2384 = vunpack.c.h.b16 %v887
          %v2385 = vunpack.c.l.b16 %v888
          %v2386 = vunpack.c.h.b16 %v888
          %v2387 = vunpack.c.l.b16 %v889
          %v2388 = vunpack.c.h.b16 %v889
          %v2389 = vunpack.c.l.b16 %v890
          %v2390 = vunpack.c.h.b16 %v890
          %v2391 = vunpack.c.l.b16 %v891
          %v2392 = vunpack.c.h.b16 %v891
          %v2393 = vunpack.c.l.b16 %v892
          %v2394 = vunpack.c.h.b16 %v892
          %v2395 = vunpack.c.l.b16 %v893
          %v2396 = vunpack.c.h.b16 %v893
          %v2397 = vunpack.c.l.b16 %v894
          %v2398 = vunpack.c.h.b16 %v894
          %v2399 = vunpack.c.l.b16 %v895
          %v2400 = vunpack.c.h.b16 %v895
          %v2401 = vunpack.c.l.b16 %v896
          %v2402 = vunpack.c.h.b16 %v896
          %v2403 = vunpack.c.l.b16 %v897
          %v2404 = vunpack.c.h.b16 %v897
          %v2405 = vunpack.c.l.b16 %v898
          %v2406 = vunpack.c.h.b16 %v898
          %v2407 = vunpack.c.l.b16 %v899
          %v2408 = vunpack.c.h.b16 %v899
          %v2409 = vunpack.c.l.b16 %v900
          %v2410 = vunpack.c.h.b16 %v900
          %v2411 = vunpack.c.l.b16 %v901
          %v2412 = vunpack.c.h.b16 %v901
          %v2413 = vunpack.c.l.b16 %v902
          %v2414 = vunpack.c.h.b16 %v902
          %v2415 = vunpack.c.l.b16 %v903
          %v2416 = vunpack.c.h.b16 %v903
          %v2417 = vunpack.c.l.b16 %v904
          %v2418 = vunpack.c.h.b16 %v904
          %v2419 = vunpack.c.l.b16 %v905
          %v2420 = vunpack.c.h.b16 %v905
          %v2421 = vunpack.c.l.b16 %v906
          %v2422 = vunpack.c.h.b16 %v906
          %v2423 = vunpack.c.l.b16 %v907
          %v2424 = vunpack.c.h.b16 %v907
          %v2425 = vunpack.c.l.b16 %v908
          %v2426 = vunpack.c.h.b16 %v908
          %v2427 = vunpack.c.l.b16 %v909
          %v2428 = vunpack.c.h.b16 %v909
          %v2429 = vunpack.c.l.b16 %v910
          %v2430 = vunpack.c.h.b16 %v910
          %v2431 = vunpack.c.l.b16 %v911
          %v2432 = vunpack.c.h.b16 %v911
          %v2433 = vunpack.c.l.b16 %v912
          %v2434 = vunpack.c.h.b16 %v912
          %v2435 = vunpack.c.l.b16 %v913
          %v2436 = vunpack.c.h.b16 %v913
          %v2437 = vunpack.c.l.b16 %v914
          %v2438 = vunpack.c.h.b16 %v914
          %v2439 = vunpack.c.l.b16 %v915
          %v2440 = vunpack.c.h.b16 %v915
          %v2441 = vunpack.c.l.b16 %v916
          %v2442 = vunpack.c.h.b16 %v916
          %v2443 = vunpack.c.l.b16 %v917
          %v2444 = vunpack.c.h.b16 %v917
          %v2445 = vunpack.c.l.b16 %v918
          %v2446 = vunpack.c.h.b16 %v918
          %v2447 = vunpack.c.l.b16 %v919
          %v2448 = vunpack.c.h.b16 %v919
          %v2449 = vunpack.c.l.b16 %v920
          %v2450 = vunpack.c.h.b16 %v920
          %v2451 = vunpack.c.l.b16 %v921
          %v2452 = vunpack.c.h.b16 %v921
          %v2453 = vunpack.c.l.b16 %v922
          %v2454 = vunpack.c.h.b16 %v922
          %v2455 = vunpack.c.l.b16 %v923
          %v2456 = vunpack.c.h.b16 %v923
          %v2457 = vunpack.c.l.b16 %v924
          %v2458 = vunpack.c.h.b16 %v924
          %v2459 = vunpack.c.l.b16 %v925
          %v2460 = vunpack.c.h.b16 %v925
          %v2461 = vunpack.c.l.b16 %v926
          %v2462 = vunpack.c.h.b16 %v926
          %v2463 = vunpack.c.l.b16 %v927
          %v2464 = vunpack.c.h.b16 %v927
          %v2465 = vunpack.c.l.b16 %v928
          %v2466 = vunpack.c.h.b16 %v928
          %v2467 = vunpack.c.l.b16 %v929
          %v2468 = vunpack.c.h.b16 %v929
          %v2469 = vunpack.c.l.b16 %v930
          %v2470 = vunpack.c.h.b16 %v930
          %v2471 = vunpack.c.l.b16 %v931
          %v2472 = vunpack.c.h.b16 %v931
          %v2473 = vunpack.c.l.b16 %v932
          %v2474 = vunpack.c.h.b16 %v932
          %v2475 = vunpack.c.l.b16 %v933
          %v2476 = vunpack.c.h.b16 %v933
          %v2477 = vunpack.c.l.b16 %v934
          %v2478 = vunpack.c.h.b16 %v934
          %v2479 = vunpack.c.l.b16 %v935
          %v2480 = vunpack.c.h.b16 %v935
          %v2481 = vunpack.c.l.b16 %v936
          %v2482 = vunpack.c.h.b16 %v936
          %v2483 = vunpack.c.l.b16 %v937
          %v2484 = vunpack.c.h.b16 %v937
          %v2485 = vunpack.c.l.b16 %v938
          %v2486 = vunpack.c.h.b16 %v938
          %v2487 = vunpack.c.l.b16 %v939
          %v2488 = vunpack.c.h.b16 %v939
          %v2489 = vunpack.c.l.b16 %v940
          %v2490 = vunpack.c.h.b16 %v940
          %v2491 = vunpack.c.l.b16 %v941
          %v2492 = vunpack.c.h.b16 %v941
          %v2493 = vunpack.c.l.b16 %v942
          %v2494 = vunpack.c.h.b16 %v942
          %v2495 = vunpack.c.l.b16 %v943
          %v2496 = vunpack.c.h.b16 %v943
          %v2497 = vunpack.c.l.b16 %v944
          %v2498 = vunpack.c.h.b16 %v944
          %v2499 = vunpack.c.l.b16 %v945
          %v2500 = vunpack.c.h.b16 %v945
          %v2501 = vunpack.c.l.b16 %v946
          %v2502 = vunpack.c.h.b16 %v946
          %v2503 = vunpack.c.l.b16 %v947
          %v2504 = vunpack.c.h.b16 %v947
          %v2505 = vunpack.c.l.b16 %v948
          %v2506 = vunpack.c.h.b16 %v948
          %v2507 = vunpack.c.l.b16 %v949
          %v2508 = vunpack.c.h.b16 %v949
          %v2509 = vunpack.c.l.b16 %v950
          %v2510 = vunpack.c.h.b16 %v950
          %v2511 = vunpack.c.l.b16 %v951
          %v2512 = vunpack.c.h.b16 %v951
          %v2513 = vunpack.c.l.b16 %v952
          %v2514 = vunpack.c.h.b16 %v952
          %v2515 = vunpack.c.l.b16 %v953
          %v2516 = vunpack.c.h.b16 %v953
          %v2517 = vunpack.c.l.b16 %v954
          %v2518 = vunpack.c.h.b16 %v954
          %v2519 = vunpack.c.l.b16 %v955
          %v2520 = vunpack.c.h.b16 %v955
          %v2521 = vunpack.c.l.b16 %v956
          %v2522 = vunpack.c.h.b16 %v956
          %v2523 = vunpack.c.l.b16 %v957
          %v2524 = vunpack.c.h.b16 %v957
          %v2525 = vunpack.c.l.b16 %v958
          %v2526 = vunpack.c.h.b16 %v958
          %v2527 = vunpack.c.l.b16 %v959
          %v2528 = vunpack.c.h.b16 %v959
          %v2529 = vunpack.c.l.b16 %v960
          %v2530 = vunpack.c.h.b16 %v960
          %v2531 = vunpack.c.l.b16 %v961
          %v2532 = vunpack.c.h.b16 %v961
          %v2533 = vunpack.c.l.b16 %v962
          %v2534 = vunpack.c.h.b16 %v962
          %v2535 = vunpack.c.l.b16 %v963
          %v2536 = vunpack.c.h.b16 %v963
          %v2537 = vunpack.c.l.b16 %v964
          %v2538 = vunpack.c.h.b16 %v964
          %v2539 = vunpack.c.l.b16 %v965
          %v2540 = vunpack.c.h.b16 %v965
          %v2541 = vunpack.c.l.b16 %v966
          %v2542 = vunpack.c.h.b16 %v966
          %v2543 = vunpack.c.l.b16 %v967
          %v2544 = vunpack.c.h.b16 %v967
          %v2545 = vunpack.c.l.b16 %v968
          %v2546 = vunpack.c.h.b16 %v968
          %v2547 = vunpack.c.l.b16 %v969
          %v2548 = vunpack.c.h.b16 %v969
          %v2549 = vunpack.c.l.b16 %v970
          %v2550 = vunpack.c.h.b16 %v970
          %v2551 = vunpack.c.l.b16 %v971
          %v2552 = vunpack.c.h.b16 %v971
          %v2553 = vunpack.c.l.b16 %v972
          %v2554 = vunpack.c.h.b16 %v972
          %v2555 = vunpack.c.l.b16 %v973
          %v2556 = vunpack.c.h.b16 %v973
          %v2557 = vunpack.c.l.b16 %v974
          %v2558 = vunpack.c.h.b16 %v974
          %v2559 = vunpack.c.l.b16 %v975
          %v2560 = vunpack.c.h.b16 %v975
          %v2561 = vunpack.c.l.b16 %v976
          %v2562 = vunpack.c.h.b16 %v976
          %v2563 = vunpack.c.l.b16 %v977
          %v2564 = vunpack.c.h.b16 %v977
          %v2565 = vunpack.c.l.b16 %v978
          %v2566 = vunpack.c.h.b16 %v978
          %v2567 = vunpack.c.l.b16 %v979
          %v2568 = vunpack.c.h.b16 %v979
          %v2569 = vunpack.c.l.b16 %v980
          %v2570 = vunpack.c.h.b16 %v980
          %v2571 = vunpack.c.l.b16 %v981
          %v2572 = vunpack.c.h.b16 %v981
          %v2573 = vunpack.c.l.b16 %v982
          %v2574 = vunpack.c.h.b16 %v982
          %v2575 = vunpack.c.l.b16 %v983
          %v2576 = vunpack.c.h.b16 %v983
          %v2577 = vunpack.c.l.b16 %v984
          %v2578 = vunpack.c.h.b16 %v984
          %v2579 = vunpack.c.l.b16 %v985
          %v2580 = vunpack.c.h.b16 %v985
          %v2581 = vunpack.c.l.b16 %v986
          %v2582 = vunpack.c.h.b16 %v986
          %v2583 = vunpack.c.l.b16 %v987
          %v2584 = vunpack.c.h.b16 %v987
          %v2585 = vunpack.c.l.b16 %v988
          %v2586 = vunpack.c.h.b16 %v988
          %v2587 = vunpack.c.l.b16 %v989
          %v2588 = vunpack.c.h.b16 %v989
          %v2589 = vunpack.c.l.b16 %v990
          %v2590 = vunpack.c.h.b16 %v990
          %v2591 = vunpack.c.l.b16 %v991
          %v2592 = vunpack.c.h.b16 %v991
          %v2593 = vunpack.c.l.b16 %v992
          %v2594 = vunpack.c.h.b16 %v992
          %v2595 = vunpack.c.l.b16 %v993
          %v2596 = vunpack.c.h.b16 %v993
          %v2597 = vunpack.c.l.b16 %v994
          %v2598 = vunpack.c.h.b16 %v994
          %v2599 = vunpack.c.l.b16 %v995
          %v2600 = vunpack.c.h.b16 %v995
          %v2601 = vunpack.c.l.b16 %v996
          %v2602 = vunpack.c.h.b16 %v996
          %v2603 = vunpack.c.l.b16 %v997
          %v2604 = vunpack.c.h.b16 %v997
          %v2605 = vunpack.c.l.b16 %v998
          %v2606 = vunpack.c.h.b16 %v998
          %v2607 = vunpack.c.l.b16 %v999
          %v2608 = vunpack.c.h.b16 %v999
          %v2609 = vunpack.c.l.b16 %v1000
          %v2610 = vunpack.c.h.b16 %v1000
          %v2611 = vunpack.c.l.b16 %v1001
          %v2612 = vunpack.c.h.b16 %v1001
          %v2613 = vunpack.c.l.b16 %v1002
          %v2614 = vunpack.c.h.b16 %v1002
          %v2615 = vunpack.c.l.b16 %v1003
          %v2616 = vunpack.c.h.b16 %v1003
          %v2617 = vunpack.c.l.b16 %v1004
          %v2618 = vunpack.c.h.b16 %v1004
          %v2619 = vunpack.c.l.b16 %v1005
          %v2620 = vunpack.c.h.b16 %v1005
          %v2621 = vunpack.c.l.b16 %v1006
          %v2622 = vunpack.c.h.b16 %v1006
          %v2623 = vunpack.c.l.b16 %v1007
          %v2624 = vunpack.c.h.b16 %v1007
          %v2625 = vunpack.c.l.b16 %v1008
          %v2626 = vunpack.c.h.b16 %v1008
          %v2627 = vunpack.c.l.b16 %v1009
          %v2628 = vunpack.c.h.b16 %v1009
          %v2629 = vunpack.c.l.b16 %v1010
          %v2630 = vunpack.c.h.b16 %v1010
          %v2631 = vunpack.c.l.b16 %v1011
          %v2632 = vunpack.c.h.b16 %v1011
          %v2633 = vunpack.c.l.b16 %v1012
          %v2634 = vunpack.c.h.b16 %v1012
          %v2635 = vunpack.c.l.b16 %v1013
          %v2636 = vunpack.c.h.b16 %v1013
          %v2637 = vunpack.c.l.b16 %v1014
          %v2638 = vunpack.c.h.b16 %v1014
          %v2639 = vunpack.c.l.b16 %v1015
          %v2640 = vunpack.c.h.b16 %v1015
          %v2641 = vunpack.c.l.b16 %v1016
          %v2642 = vunpack.c.h.b16 %v1016
          %v2643 = vunpack.c.l.b16 %v1017
          %v2644 = vunpack.c.h.b16 %v1017
          %v2645 = vunpack.c.l.b16 %v1018
          %v2646 = vunpack.c.h.b16 %v1018
          %v2647 = vunpack.c.l.b16 %v1019
          %v2648 = vunpack.c.h.b16 %v1019
          %v2649 = vunpack.c.l.b16 %v1020
          %v2650 = vunpack.c.h.b16 %v1020
          %v2651 = vunpack.c.l.b16 %v1021
          %v2652 = vunpack.c.h.b16 %v1021
          %v2653 = vunpack.c.l.b16 %v1022
          %v2654 = vunpack.c.h.b16 %v1022
          %v2655 = vunpack.c.l.b16 %v1023
          %v2656 = vunpack.c.h.b16 %v1023
          %v2657 = vunpack.c.l.b16 %v1024
          %v2658 = vunpack.c.h.b16 %v1024
          %v2659 = vunpack.c.l.b16 %v1025
          %v2660 = vunpack.c.h.b16 %v1025
          %v2661 = vunpack.c.l.b16 %v1026
          %v2662 = vunpack.c.h.b16 %v1026
          %v2663 = vunpack.c.l.b16 %v1027
          %v2664 = vunpack.c.h.b16 %v1027
          %v2665 = vunpack.c.l.b16 %v1028
          %v2666 = vunpack.c.h.b16 %v1028
          %v2667 = vunpack.c.l.b16 %v1029
          %v2668 = vunpack.c.h.b16 %v1029
          %v2669 = vunpack.c.l.b16 %v1030
          %v2670 = vunpack.c.h.b16 %v1030
          %v2671 = vunpack.c.l.b16 %v1031
          %v2672 = vunpack.c.h.b16 %v1031
          %v2673 = vunpack.c.l.b16 %v1032
          %v2674 = vunpack.c.h.b16 %v1032
          %v2675 = vunpack.c.l.b16 %v1033
          %v2676 = vunpack.c.h.b16 %v1033
          %v2677 = vunpack.c.l.b16 %v1034
          %v2678 = vunpack.c.h.b16 %v1034
          %v2679 = vunpack.c.l.b16 %v1035
          %v2680 = vunpack.c.h.b16 %v1035
          %v2681 = vunpack.c.l.b16 %v1036
          %v2682 = vunpack.c.h.b16 %v1036
          %v2683 = vunpack.c.l.b16 %v1037
          %v2684 = vunpack.c.h.b16 %v1037
          %v2685 = vunpack.c.l.b16 %v1038
          %v2686 = vunpack.c.h.b16 %v1038
          %v2687 = vunpack.c.l.b16 %v1039
          %v2688 = vunpack.c.h.b16 %v1039
          %v2689 = vunpack.c.l.b16 %v1040
          %v2690 = vunpack.c.h.b16 %v1040
          %v2691 = vunpack.c.l.b16 %v1041
          %v2692 = vunpack.c.h.b16 %v1041
          %v2693 = vunpack.c.l.b16 %v1042
          %v2694 = vunpack.c.h.b16 %v1042
          %v2695 = vunpack.c.l.b16 %v1043
          %v2696 = vunpack.c.h.b16 %v1043
          %v2697 = vunpack.c.l.b16 %v1044
          %v2698 = vunpack.c.h.b16 %v1044
          %v2699 = vunpack.c.l.b16 %v1045
          %v2700 = vunpack.c.h.b16 %v1045
          %v2701 = vunpack.c.l.b16 %v1046
          %v2702 = vunpack.c.h.b16 %v1046
          %v2703 = vunpack.c.l.b16 %v1047
          %v2704 = vunpack.c.h.b16 %v1047
          %v2705 = vunpack.c.l.b16 %v1048
          %v2706 = vunpack.c.h.b16 %v1048
          %v2707 = vunpack.c.l.b16 %v1049
          %v2708 = vunpack.c.h.b16 %v1049
          %v2709 = vunpack.c.l.b16 %v1050
          %v2710 = vunpack.c.h.b16 %v1050
          %v2711 = vunpack.c.l.b16 %v1051
          %v2712 = vunpack.c.h.b16 %v1051
          %v2713 = vunpack.c.l.b16 %v1052
          %v2714 = vunpack.c.h.b16 %v1052
          %v2715 = vunpack.c.l.b16 %v1053
          %v2716 = vunpack.c.h.b16 %v1053
          %v2717 = vunpack.c.l.b16 %v1054
          %v2718 = vunpack.c.h.b16 %v1054
          %v2719 = vunpack.c.l.b16 %v1055
          %v2720 = vunpack.c.h.b16 %v1055
          %v2721 = vunpack.c.l.b16 %v1056
          %v2722 = vunpack.c.h.b16 %v1056
          %v2723 = vunpack.c.l.b16 %v1057
          %v2724 = vunpack.c.h.b16 %v1057
          %v2725 = vunpack.c.l.b16 %v1058
          %v2726 = vunpack.c.h.b16 %v1058
          %v2727 = vunpack.c.l.b16 %v1059
          %v2728 = vunpack.c.h.b16 %v1059
          %v2729 = vunpack.c.l.b16 %v1060
          %v2730 = vunpack.c.h.b16 %v1060
          %v2731 = vunpack.c.l.b16 %v1061
          %v2732 = vunpack.c.h.b16 %v1061
          %v2733 = vunpack.c.l.b16 %v1062
          %v2734 = vunpack.c.h.b16 %v1062
          %v2735 = vunpack.c.l.b16 %v1063
          %v2736 = vunpack.c.h.b16 %v1063
          %v2737 = vunpack.c.l.b16 %v1064
          %v2738 = vunpack.c.h.b16 %v1064
          %v2739 = vunpack.c.l.b16 %v1065
          %v2740 = vunpack.c.h.b16 %v1065
          %v2741 = vunpack.c.l.b16 %v1066
          %v2742 = vunpack.c.h.b16 %v1066
          %v2743 = vunpack.c.l.b16 %v1067
          %v2744 = vunpack.c.h.b16 %v1067
          %v2745 = vunpack.c.l.b16 %v1068
          %v2746 = vunpack.c.h.b16 %v1068
          %v2747 = vunpack.c.l.b16 %v1069
          %v2748 = vunpack.c.h.b16 %v1069
          %v2749 = vunpack.c.l.b16 %v1070
          %v2750 = vunpack.c.h.b16 %v1070
          %v2751 = vunpack.c.l.b16 %v1071
          %v2752 = vunpack.c.h.b16 %v1071
          %v2753 = vunpack.c.l.b16 %v1072
          %v2754 = vunpack.c.h.b16 %v1072
          %v2755 = vunpack.c.l.b16 %v1073
          %v2756 = vunpack.c.h.b16 %v1073
          %v2757 = vunpack.c.l.b16 %v1074
          %v2758 = vunpack.c.h.b16 %v1074
          %v2759 = vunpack.c.l.b16 %v1075
          %v2760 = vunpack.c.h.b16 %v1075
          %v2761 = vunpack.c.l.b16 %v1076
          %v2762 = vunpack.c.h.b16 %v1076
          %v2763 = vunpack.c.l.b16 %v1077
          %v2764 = vunpack.c.h.b16 %v1077
          %v2765 = vunpack.c.l.b16 %v1078
          %v2766 = vunpack.c.h.b16 %v1078
          %v2767 = vunpack.c.l.b16 %v1079
          %v2768 = vunpack.c.h.b16 %v1079
          %v2769 = vunpack.c.l.b16 %v1080
          %v2770 = vunpack.c.h.b16 %v1080
          %v2771 = vunpack.c.l.b16 %v1081
          %v2772 = vunpack.c.h.b16 %v1081
          %v2773 = vunpack.c.l.b16 %v1082
          %v2774 = vunpack.c.h.b16 %v1082
          %v2775 = vunpack.c.l.b16 %v1083
          %v2776 = vunpack.c.h.b16 %v1083
          %v2777 = vunpack.c.l.b16 %v1084
          %v2778 = vunpack.c.h.b16 %v1084
          %v2779 = vunpack.c.l.b16 %v1085
          %v2780 = vunpack.c.h.b16 %v1085
          %v2781 = vunpack.c.l.b16 %v1086
          %v2782 = vunpack.c.h.b16 %v1086
          %v2783 = vpack.c.b16 %v1767, %v1759
          %v2784 = vpack.c.b16 %v1768, %v1760
          %v2785 = vpack.c.b16 %v1769, %v1761
          %v2786 = vpack.c.b16 %v1770, %v1762
          %v2787 = vpack.c.b16 %v1771, %v1763
          %v2788 = vpack.c.b16 %v1772, %v1764
          %v2789 = vpack.c.b16 %v1773, %v1765
          %v2790 = vpack.c.b16 %v1774, %v1766
          %v2791 = vpack.c.b16 %v1783, %v1775
          %v2792 = vpack.c.b16 %v1784, %v1776
          %v2793 = vpack.c.b16 %v1785, %v1777
          %v2794 = vpack.c.b16 %v1786, %v1778
          %v2795 = vpack.c.b16 %v1787, %v1779
          %v2796 = vpack.c.b16 %v1788, %v1780
          %v2797 = vpack.c.b16 %v1789, %v1781
          %v2798 = vpack.c.b16 %v1790, %v1782
          %v2799 = vpack.c.b16 %v1799, %v1791
          %v2800 = vpack.c.b16 %v1800, %v1792
          %v2801 = vpack.c.b16 %v1801, %v1793
          %v2802 = vpack.c.b16 %v1802, %v1794
          %v2803 = vpack.c.b16 %v1803, %v1795
          %v2804 = vpack.c.b16 %v1804, %v1796
          %v2805 = vpack.c.b16 %v1805, %v1797
          %v2806 = vpack.c.b16 %v1806, %v1798
          %v2807 = vpack.c.b16 %v1815, %v1807
          %v2808 = vpack.c.b16 %v1816, %v1808
          %v2809 = vpack.c.b16 %v1817, %v1809
          %v2810 = vpack.c.b16 %v1818, %v1810
          %v2811 = vpack.c.b16 %v1819, %v1811
          %v2812 = vpack.c.b16 %v1820, %v1812
          %v2813 = vpack.c.b16 %v1821, %v1813
          %v2814 = vpack.c.b16 %v1822, %v1814
          %v2815 = vpack.c.b16 %v1831, %v1823
          %v2816 = vpack.c.b16 %v1832, %v1824
          %v2817 = vpack.c.b16 %v1833, %v1825
          %v2818 = vpack.c.b16 %v1834, %v1826
          %v2819 = vpack.c.b16 %v1835, %v1827
          %v2820 = vpack.c.b16 %v1836, %v1828
          %v2821 = vpack.c.b16 %v1837, %v1829
          %v2822 = vpack.c.b16 %v1838, %v1830
          %v2823 = vpack.c.b16 %v1847, %v1839
          %v2824 = vpack.c.b16 %v1848, %v1840
          %v2825 = vpack.c.b16 %v1849, %v1841
          %v2826 = vpack.c.b16 %v1850, %v1842
          %v2827 = vpack.c.b16 %v1851, %v1843
          %v2828 = vpack.c.b16 %v1852, %v1844
          %v2829 = vpack.c.b16 %v1853, %v1845
          %v2830 = vpack.c.b16 %v1854, %v1846
          %v2831 = vpack.c.b16 %v1863, %v1855
          %v2832 = vpack.c.b16 %v1864, %v1856
          %v2833 = vpack.c.b16 %v1865, %v1857
          %v2834 = vpack.c.b16 %v1866, %v1858
          %v2835 = vpack.c.b16 %v1867, %v1859
          %v2836 = vpack.c.b16 %v1868, %v1860
          %v2837 = vpack.c.b16 %v1869, %v1861
          %v2838 = vpack.c.b16 %v1870, %v1862
          %v2839 = vpack.c.b16 %v1879, %v1871
          %v2840 = vpack.c.b16 %v1880, %v1872
          %v2841 = vpack.c.b16 %v1881, %v1873
          %v2842 = vpack.c.b16 %v1882, %v1874
          %v2843 = vpack.c.b16 %v1883, %v1875
          %v2844 = vpack.c.b16 %v1884, %v1876
          %v2845 = vpack.c.b16 %v1885, %v1877
          %v2846 = vpack.c.b16 %v1886, %v1878
          %v2847 = vpack.c.b16 %v1895, %v1887
          %v2848 = vpack.c.b16 %v1896, %v1888
          %v2849 = vpack.c.b16 %v1897, %v1889
          %v2850 = vpack.c.b16 %v1898, %v1890
          %v2851 = vpack.c.b16 %v1899, %v1891
          %v2852 = vpack.c.b16 %v1900, %v1892
          %v2853 = vpack.c.b16 %v1901, %v1893
          %v2854 = vpack.c.b16 %v1902, %v1894
          %v2855 = vpack.c.b16 %v1911, %v1903
          %v2856 = vpack.c.b16 %v1912, %v1904
          %v2857 = vpack.c.b16 %v1913, %v1905
          %v2858 = vpack.c.b16 %v1914, %v1906
          %v2859 = vpack.c.b16 %v1915, %v1907
          %v2860 = vpack.c.b16 %v1916, %v1908
          %v2861 = vpack.c.b16 %v1917, %v1909
          %v2862 = vpack.c.b16 %v1918, %v1910
          %v2863 = vpack.c.b16 %v1927, %v1919
          %v2864 = vpack.c.b16 %v1928, %v1920
          %v2865 = vpack.c.b16 %v1929, %v1921
          %v2866 = vpack.c.b16 %v1930, %v1922
          %v2867 = vpack.c.b16 %v1931, %v1923
          %v2868 = vpack.c.b16 %v1932, %v1924
          %v2869 = vpack.c.b16 %v1933, %v1925
          %v2870 = vpack.c.b16 %v1934, %v1926
          %v2871 = vpack.c.b16 %v1943, %v1935
          %v2872 = vpack.c.b16 %v1944, %v1936
          %v2873 = vpack.c.b16 %v1945, %v1937
          %v2874 = vpack.c.b16 %v1946, %v1938
          %v2875 = vpack.c.b16 %v1947, %v1939
          %v2876 = vpack.c.b16 %v1948, %v1940
          %v2877 = vpack.c.b16 %v1949, %v1941
          %v2878 = vpack.c.b16 %v1950, %v1942
          %v2879 = vpack.c.b16 %v1959, %v1951
          %v2880 = vpack.c.b16 %v1960, %v1952
          %v2881 = vpack.c.b16 %v1961, %v1953
          %v2882 = vpack.c.b16 %v1962, %v1954
          %v2883 = vpack.c.b16 %v1963, %v1955
          %v2884 = vpack.c.b16 %v1964, %v1956
          %v2885 = vpack.c.b16 %v1965, %v1957
          %v2886 = vpack.c.b16 %v1966, %v1958
          %v2887 = vpack.c.b16 %v1975, %v1967
          %v2888 = vpack.c.b16 %v1976, %v1968
          %v2889 = vpack.c.b16 %v1977, %v1969
          %v2890 = vpack.c.b16 %v1978, %v1970
          %v2891 = vpack.c.b16 %v1979, %v1971
          %v2892 = vpack.c.b16 %v1980, %v1972
          %v2893 = vpack.c.b16 %v1981, %v1973
          %v2894 = vpack.c.b16 %v1982, %v1974
          %v2895 = vpack.c.b16 %v1991, %v1983
          %v2896 = vpack.c.b16 %v1992, %v1984
          %v2897 = vpack.c.b16 %v1993, %v1985
          %v2898 = vpack.c.b16 %v1994, %v1986
          %v2899 = vpack.c.b16 %v1995, %v1987
          %v2900 = vpack.c.b16 %v1996, %v1988
          %v2901 = vpack.c.b16 %v1997, %v1989
          %v2902 = vpack.c.b16 %v1998, %v1990
          %v2903 = vpack.c.b16 %v2007, %v1999
          %v2904 = vpack.c.b16 %v2008, %v2000
          %v2905 = vpack.c.b16 %v2009, %v2001
          %v2906 = vpack.c.b16 %v2010, %v2002
          %v2907 = vpack.c.b16 %v2011, %v2003
          %v2908 = vpack.c.b16 %v2012, %v2004
          %v2909 = vpack.c.b16 %v2013, %v2005
          %v2910 = vpack.c.b16 %v2014, %v2006
          %v2911 = vpack.c.b16 %v2023, %v2015
          %v2912 = vpack.c.b16 %v2024, %v2016
          %v2913 = vpack.c.b16 %v2025, %v2017
          %v2914 = vpack.c.b16 %v2026, %v2018
          %v2915 = vpack.c.b16 %v2027, %v2019
          %v2916 = vpack.c.b16 %v2028, %v2020
          %v2917 = vpack.c.b16 %v2029, %v2021
          %v2918 = vpack.c.b16 %v2030, %v2022
          %v2919 = vpack.c.b16 %v2039, %v2031
          %v2920 = vpack.c.b16 %v2040, %v2032
          %v2921 = vpack.c.b16 %v2041, %v2033
          %v2922 = vpack.c.b16 %v2042, %v2034
          %v2923 = vpack.c.b16 %v2043, %v2035
          %v2924 = vpack.c.b16 %v2044, %v2036
          %v2925 = vpack.c.b16 %v2045, %v2037
          %v2926 = vpack.c.b16 %v2046, %v2038
          %v2927 = vpack.c.b16 %v2055, %v2047
          %v2928 = vpack.c.b16 %v2056, %v2048
          %v2929 = vpack.c.b16 %v2057, %v2049
          %v2930 = vpack.c.b16 %v2058, %v2050
          %v2931 = vpack.c.b16 %v2059, %v2051
          %v2932 = vpack.c.b16 %v2060, %v2052
          %v2933 = vpack.c.b16 %v2061, %v2053
          %v2934 = vpack.c.b16 %v2062, %v2054
          %v2935 = vpack.c.b16 %v2071, %v2063
          %v2936 = vpack.c.b16 %v2072, %v2064
          %v2937 = vpack.c.b16 %v2073, %v2065
          %v2938 = vpack.c.b16 %v2074, %v2066
          %v2939 = vpack.c.b16 %v2075, %v2067
          %v2940 = vpack.c.b16 %v2076, %v2068
          %v2941 = vpack.c.b16 %v2077, %v2069
          %v2942 = vpack.c.b16 %v2078, %v2070
          %v2943 = vpack.c.b16 %v2087, %v2079
          %v2944 = vpack.c.b16 %v2088, %v2080
          %v2945 = vpack.c.b16 %v2089, %v2081
          %v2946 = vpack.c.b16 %v2090, %v2082
          %v2947 = vpack.c.b16 %v2091, %v2083
          %v2948 = vpack.c.b16 %v2092, %v2084
          %v2949 = vpack.c.b16 %v2093, %v2085
          %v2950 = vpack.c.b16 %v2094, %v2086
          %v2951 = vpack.c.b16 %v2103, %v2095
          %v2952 = vpack.c.b16 %v2104, %v2096
          %v2953 = vpack.c.b16 %v2105, %v2097
          %v2954 = vpack.c.b16 %v2106, %v2098
          %v2955 = vpack.c.b16 %v2107, %v2099
          %v2956 = vpack.c.b16 %v2108, %v2100
          %v2957 = vpack.c.b16 %v2109, %v2101
          %v2958 = vpack.c.b16 %v2110, %v2102
          %v2959 = vpack.c.b16 %v2119, %v2111
          %v2960 = vpack.c.b16 %v2120, %v2112
          %v2961 = vpack.c.b16 %v2121, %v2113
          %v2962 = vpack.c.b16 %v2122, %v2114
          %v2963 = vpack.c.b16 %v2123, %v2115
          %v2964 = vpack.c.b16 %v2124, %v2116
          %v2965 = vpack.c.b16 %v2125, %v2117
          %v2966 = vpack.c.b16 %v2126, %v2118
          %v2967 = vpack.c.b16 %v2135, %v2127
          %v2968 = vpack.c.b16 %v2136, %v2128
          %v2969 = vpack.c.b16 %v2137, %v2129
          %v2970 = vpack.c.b16 %v2138, %v2130
          %v2971 = vpack.c.b16 %v2139, %v2131
          %v2972 = vpack.c.b16 %v2140, %v2132
          %v2973 = vpack.c.b16 %v2141, %v2133
          %v2974 = vpack.c.b16 %v2142, %v2134
          %v2975 = vpack.c.b16 %v2151, %v2143
          %v2976 = vpack.c.b16 %v2152, %v2144
          %v2977 = vpack.c.b16 %v2153, %v2145
          %v2978 = vpack.c.b16 %v2154, %v2146
          %v2979 = vpack.c.b16 %v2155, %v2147
          %v2980 = vpack.c.b16 %v2156, %v2148
          %v2981 = vpack.c.b16 %v2157, %v2149
          %v2982 = vpack.c.b16 %v2158, %v2150
          %v2983 = vpack.c.b16 %v2167, %v2159
          %v2984 = vpack.c.b16 %v2168, %v2160
          %v2985 = vpack.c.b16 %v2169, %v2161
          %v2986 = vpack.c.b16 %v2170, %v2162
          %v2987 = vpack.c.b16 %v2171, %v2163
          %v2988 = vpack.c.b16 %v2172, %v2164
          %v2989 = vpack.c.b16 %v2173, %v2165
          %v2990 = vpack.c.b16 %v2174, %v2166
          %v2991 = vpack.c.b16 %v2183, %v2175
          %v2992 = vpack.c.b16 %v2184, %v2176
          %v2993 = vpack.c.b16 %v2185, %v2177
          %v2994 = vpack.c.b16 %v2186, %v2178
          %v2995 = vpack.c.b16 %v2187, %v2179
          %v2996 = vpack.c.b16 %v2188, %v2180
          %v2997 = vpack.c.b16 %v2189, %v2181
          %v2998 = vpack.c.b16 %v2190, %v2182
          %v2999 = vpack.c.b16 %v2199, %v2191
          %v3000 = vpack.c.b16 %v2200, %v2192
          %v3001 = vpack.c.b16 %v2201, %v2193
          %v3002 = vpack.c.b16 %v2202, %v2194
          %v3003 = vpack.c.b16 %v2203, %v2195
          %v3004 = vpack.c.b16 %v2204, %v2196
          %v3005 = vpack.c.b16 %v2205, %v2197
          %v3006 = vpack.c.b16 %v2206, %v2198
          %v3007 = vpack.c.b16 %v2215, %v2207
          %v3008 = vpack.c.b16 %v2216, %v2208
          %v3009 = vpack.c.b16 %v2217, %v2209
          %v3010 = vpack.c.b16 %v2218, %v2210
          %v3011 = vpack.c.b16 %v2219, %v2211
          %v3012 = vpack.c.b16 %v2220, %v2212
          %v3013 = vpack.c.b16 %v2221, %v2213
          %v3014 = vpack.c.b16 %v2222, %v2214
          %v3015 = vpack.c.b16 %v2231, %v2223
          %v3016 = vpack.c.b16 %v2232, %v2224
          %v3017 = vpack.c.b16 %v2233, %v2225
          %v3018 = vpack.c.b16 %v2234, %v2226
          %v3019 = vpack.c.b16 %v2235, %v2227
          %v3020 = vpack.c.b16 %v2236, %v2228
          %v3021 = vpack.c.b16 %v2237, %v2229
          %v3022 = vpack.c.b16 %v2238, %v2230
          %v3023 = vpack.c.b16 %v2247, %v2239
          %v3024 = vpack.c.b16 %v2248, %v2240
          %v3025 = vpack.c.b16 %v2249, %v2241
          %v3026 = vpack.c.b16 %v2250, %v2242
          %v3027 = vpack.c.b16 %v2251, %v2243
          %v3028 = vpack.c.b16 %v2252, %v2244
          %v3029 = vpack.c.b16 %v2253, %v2245
          %v3030 = vpack.c.b16 %v2254, %v2246
          %v3031 = vpack.c.b16 %v2263, %v2255
          %v3032 = vpack.c.b16 %v2264, %v2256
          %v3033 = vpack.c.b16 %v2265, %v2257
          %v3034 = vpack.c.b16 %v2266, %v2258
          %v3035 = vpack.c.b16 %v2267, %v2259
          %v3036 = vpack.c.b16 %v2268, %v2260
          %v3037 = vpack.c.b16 %v2269, %v2261
          %v3038 = vpack.c.b16 %v2270, %v2262
          %v3039 = vpack.c.b16 %v2279, %v2271
          %v3040 = vpack.c.b16 %v2280, %v2272
          %v3041 = vpack.c.b16 %v2281, %v2273
          %v3042 = vpack.c.b16 %v2282, %v2274
          %v3043 = vpack.c.b16 %v2283, %v2275
          %v3044 = vpack.c.b16 %v2284, %v2276
          %v3045 = vpack.c.b16 %v2285, %v2277
          %v3046 = vpack.c.b16 %v2286, %v2278
          %v3047 = vpack.c.b16 %v2295, %v2287
          %v3048 = vpack.c.b16 %v2296, %v2288
          %v3049 = vpack.c.b16 %v2297, %v2289
          %v3050 = vpack.c.b16 %v2298, %v2290
          %v3051 = vpack.c.b16 %v2299, %v2291
          %v3052 = vpack.c.b16 %v2300, %v2292
          %v3053 = vpack.c.b16 %v2301, %v2293
          %v3054 = vpack.c.b16 %v2302, %v2294
          %v3055 = vpack.c.b16 %v2311, %v2303
          %v3056 = vpack.c.b16 %v2312, %v2304
          %v3057 = vpack.c.b16 %v2313, %v2305
          %v3058 = vpack.c.b16 %v2314, %v2306
          %v3059 = vpack.c.b16 %v2315, %v2307
          %v3060 = vpack.c.b16 %v2316, %v2308
          %v3061 = vpack.c.b16 %v2317, %v2309
          %v3062 = vpack.c.b16 %v2318, %v2310
          %v3063 = vpack.c.b16 %v2327, %v2319
          %v3064 = vpack.c.b16 %v2328, %v2320
          %v3065 = vpack.c.b16 %v2329, %v2321
          %v3066 = vpack.c.b16 %v2330, %v2322
          %v3067 = vpack.c.b16 %v2331, %v2323
          %v3068 = vpack.c.b16 %v2332, %v2324
          %v3069 = vpack.c.b16 %v2333, %v2325
          %v3070 = vpack.c.b16 %v2334, %v2326
          %v3071 = vpack.c.b16 %v2343, %v2335
          %v3072 = vpack.c.b16 %v2344, %v2336
          %v3073 = vpack.c.b16 %v2345, %v2337
          %v3074 = vpack.c.b16 %v2346, %v2338
          %v3075 = vpack.c.b16 %v2347, %v2339
          %v3076 = vpack.c.b16 %v2348, %v2340
          %v3077 = vpack.c.b16 %v2349, %v2341
          %v3078 = vpack.c.b16 %v2350, %v2342
          %v3079 = vpack.c.b16 %v2359, %v2351
          %v3080 = vpack.c.b16 %v2360, %v2352
          %v3081 = vpack.c.b16 %v2361, %v2353
          %v3082 = vpack.c.b16 %v2362, %v2354
          %v3083 = vpack.c.b16 %v2363, %v2355
          %v3084 = vpack.c.b16 %v2364, %v2356
          %v3085 = vpack.c.b16 %v2365, %v2357
          %v3086 = vpack.c.b16 %v2366, %v2358
          %v3087 = vpack.c.b16 %v2375, %v2367
          %v3088 = vpack.c.b16 %v2376, %v2368
          %v3089 = vpack.c.b16 %v2377, %v2369
          %v3090 = vpack.c.b16 %v2378, %v2370
          %v3091 = vpack.c.b16 %v2379, %v2371
          %v3092 = vpack.c.b16 %v2380, %v2372
          %v3093 = vpack.c.b16 %v2381, %v2373
          %v3094 = vpack.c.b16 %v2382, %v2374
          %v3095 = vpack.c.b16 %v2391, %v2383
          %v3096 = vpack.c.b16 %v2392, %v2384
          %v3097 = vpack.c.b16 %v2393, %v2385
          %v3098 = vpack.c.b16 %v2394, %v2386
          %v3099 = vpack.c.b16 %v2395, %v2387
          %v3100 = vpack.c.b16 %v2396, %v2388
          %v3101 = vpack.c.b16 %v2397, %v2389
          %v3102 = vpack.c.b16 %v2398, %v2390
          %v3103 = vpack.c.b16 %v2407, %v2399
          %v3104 = vpack.c.b16 %v2408, %v2400
          %v3105 = vpack.c.b16 %v2409, %v2401
          %v3106 = vpack.c.b16 %v2410, %v2402
          %v3107 = vpack.c.b16 %v2411, %v2403
          %v3108 = vpack.c.b16 %v2412, %v2404
          %v3109 = vpack.c.b16 %v2413, %v2405
          %v3110 = vpack.c.b16 %v2414, %v2406
          %v3111 = vpack.c.b16 %v2423, %v2415
          %v3112 = vpack.c.b16 %v2424, %v2416
          %v3113 = vpack.c.b16 %v2425, %v2417
          %v3114 = vpack.c.b16 %v2426, %v2418
          %v3115 = vpack.c.b16 %v2427, %v2419
          %v3116 = vpack.c.b16 %v2428, %v2420
          %v3117 = vpack.c.b16 %v2429, %v2421
          %v3118 = vpack.c.b16 %v2430, %v2422
          %v3119 = vpack.c.b16 %v2439, %v2431
          %v3120 = vpack.c.b16 %v2440, %v2432
          %v3121 = vpack.c.b16 %v2441, %v2433
          %v3122 = vpack.c.b16 %v2442, %v2434
          %v3123 = vpack.c.b16 %v2443, %v2435
          %v3124 = vpack.c.b16 %v2444, %v2436
          %v3125 = vpack.c.b16 %v2445, %v2437
          %v3126 = vpack.c.b16 %v2446, %v2438
          %v3127 = vpack.c.b16 %v2455, %v2447
          %v3128 = vpack.c.b16 %v2456, %v2448
          %v3129 = vpack.c.b16 %v2457, %v2449
          %v3130 = vpack.c.b16 %v2458, %v2450
          %v3131 = vpack.c.b16 %v2459, %v2451
          %v3132 = vpack.c.b16 %v2460, %v2452
          %v3133 = vpack.c.b16 %v2461, %v2453
          %v3134 = vpack.c.b16 %v2462, %v2454
          %v3135 = vpack.c.b16 %v2471, %v2463
          %v3136 = vpack.c.b16 %v2472, %v2464
          %v3137 = vpack.c.b16 %v2473, %v2465
          %v3138 = vpack.c.b16 %v2474, %v2466
          %v3139 = vpack.c.b16 %v2475, %v2467
          %v3140 = vpack.c.b16 %v2476, %v2468
          %v3141 = vpack.c.b16 %v2477, %v2469
          %v3142 = vpack.c.b16 %v2478, %v2470
          %v3143 = vpack.c.b16 %v2487, %v2479
          %v3144 = vpack.c.b16 %v2488, %v2480
          %v3145 = vpack.c.b16 %v2489, %v2481
          %v3146 = vpack.c.b16 %v2490, %v2482
          %v3147 = vpack.c.b16 %v2491, %v2483
          %v3148 = vpack.c.b16 %v2492, %v2484
          %v3149 = vpack.c.b16 %v2493, %v2485
          %v3150 = vpack.c.b16 %v2494, %v2486
          %v3151 = vpack.c.b16 %v2503, %v2495
          %v3152 = vpack.c.b16 %v2504, %v2496
          %v3153 = vpack.c.b16 %v2505, %v2497
          %v3154 = vpack.c.b16 %v2506, %v2498
          %v3155 = vpack.c.b16 %v2507, %v2499
          %v3156 = vpack.c.b16 %v2508, %v2500
          %v3157 = vpack.c.b16 %v2509, %v2501
          %v3158 = vpack.c.b16 %v2510, %v2502
          %v3159 = vpack.c.b16 %v2519, %v2511
          %v3160 = vpack.c.b16 %v2520, %v2512
          %v3161 = vpack.c.b16 %v2521, %v2513
          %v3162 = vpack.c.b16 %v2522, %v2514
          %v3163 = vpack.c.b16 %v2523, %v2515
          %v3164 = vpack.c.b16 %v2524, %v2516
          %v3165 = vpack.c.b16 %v2525, %v2517
          %v3166 = vpack.c.b16 %v2526, %v2518
          %v3167 = vpack.c.b16 %v2535, %v2527
          %v3168 = vpack.c.b16 %v2536, %v2528
          %v3169 = vpack.c.b16 %v2537, %v2529
          %v3170 = vpack.c.b16 %v2538, %v2530
          %v3171 = vpack.c.b16 %v2539, %v2531
          %v3172 = vpack.c.b16 %v2540, %v2532
          %v3173 = vpack.c.b16 %v2541, %v2533
          %v3174 = vpack.c.b16 %v2542, %v2534
          %v3175 = vpack.c.b16 %v2551, %v2543
          %v3176 = vpack.c.b16 %v2552, %v2544
          %v3177 = vpack.c.b16 %v2553, %v2545
          %v3178 = vpack.c.b16 %v2554, %v2546
          %v3179 = vpack.c.b16 %v2555, %v2547
          %v3180 = vpack.c.b16 %v2556, %v2548
          %v3181 = vpack.c.b16 %v2557, %v2549
          %v3182 = vpack.c.b16 %v2558, %v2550
          %v3183 = vpack.c.b16 %v2567, %v2559
          %v3184 = vpack.c.b16 %v2568, %v2560
          %v3185 = vpack.c.b16 %v2569, %v2561
          %v3186 = vpack.c.b16 %v2570, %v2562
          %v3187 = vpack.c.b16 %v2571, %v2563
          %v3188 = vpack.c.b16 %v2572, %v2564
          %v3189 = vpack.c.b16 %v2573, %v2565
          %v3190 = vpack.c.b16 %v2574, %v2566
          %v3191 = vpack.c.b16 %v2583, %v2575
          %v3192 = vpack.c.b16 %v2584, %v2576
          %v3193 = vpack.c.b16 %v2585, %v2577
          %v3194 = vpack.c.b16 %v2586, %v2578
          %v3195 = vpack.c.b16 %v2587, %v2579
          %v3196 = vpack.c.b16 %v2588, %v2580
          %v3197 = vpack.c.b16 %v2589, %v2581
          %v3198 = vpack.c.b16 %v2590, %v2582
          %v3199 = vpack.c.b16 %v2599, %v2591
          %v3200 = vpack.c.b16 %v2600, %v2592
          %v3201 = vpack.c.b16 %v2601, %v2593
          %v3202 = vpack.c.b16 %v2602, %v2594
          %v3203 = vpack.c.b16 %v2603, %v2595
          %v3204 = vpack.c.b16 %v2604, %v2596
          %v3205 = vpack.c.b16 %v2605, %v2597
          %v3206 = vpack.c.b16 %v2606, %v2598
          %v3207 = vpack.c.b16 %v2615, %v2607
          %v3208 = vpack.c.b16 %v2616, %v2608
          %v3209 = vpack.c.b16 %v2617, %v2609
          %v3210 = vpack.c.b16 %v2618, %v2610
          %v3211 = vpack.c.b16 %v2619, %v2611
          %v3212 = vpack.c.b16 %v2620, %v2612
          %v3213 = vpack.c.b16 %v2621, %v2613
          %v3214 = vpack.c.b16 %v2622, %v2614
          %v3215 = vpack.c.b16 %v2631, %v2623
          %v3216 = vpack.c.b16 %v2632, %v2624
          %v3217 = vpack.c.b16 %v2633, %v2625
          %v3218 = vpack.c.b16 %v2634, %v2626
          %v3219 = vpack.c.b16 %v2635, %v2627
          %v3220 = vpack.c.b16 %v2636, %v2628
          %v3221 = vpack.c.b16 %v2637, %v2629
          %v3222 = vpack.c.b16 %v2638, %v2630
          %v3223 = vpack.c.b16 %v2647, %v2639
          %v3224 = vpack.c.b16 %v2648, %v2640
          %v3225 = vpack.c.b16 %v2649, %v2641
          %v3226 = vpack.c.b16 %v2650, %v2642
          %v3227 = vpack.c.b16 %v2651, %v2643
          %v3228 = vpack.c.b16 %v2652, %v2644
          %v3229 = vpack.c.b16 %v2653, %v2645
          %v3230 = vpack.c.b16 %v2654, %v2646
          %v3231 = vpack.c.b16 %v2663, %v2655
          %v3232 = vpack.c.b16 %v2664, %v2656
          %v3233 = vpack.c.b16 %v2665, %v2657
          %v3234 = vpack.c.b16 %v2666, %v2658
          %v3235 = vpack.c.b16 %v2667, %v2659
          %v3236 = vpack.c.b16 %v2668, %v2660
          %v3237 = vpack.c.b16 %v2669, %v2661
          %v3238 = vpack.c.b16 %v2670, %v2662
          %v3239 = vpack.c.b16 %v2679, %v2671
          %v3240 = vpack.c.b16 %v2680, %v2672
          %v3241 = vpack.c.b16 %v2681, %v2673
          %v3242 = vpack.c.b16 %v2682, %v2674
          %v3243 = vpack.c.b16 %v2683, %v2675
          %v3244 = vpack.c.b16 %v2684, %v2676
          %v3245 = vpack.c.b16 %v2685, %v2677
          %v3246 = vpack.c.b16 %v2686, %v2678
          %v3247 = vpack.c.b16 %v2695, %v2687
          %v3248 = vpack.c.b16 %v2696, %v2688
          %v3249 = vpack.c.b16 %v2697, %v2689
          %v3250 = vpack.c.b16 %v2698, %v2690
          %v3251 = vpack.c.b16 %v2699, %v2691
          %v3252 = vpack.c.b16 %v2700, %v2692
          %v3253 = vpack.c.b16 %v2701, %v2693
          %v3254 = vpack.c.b16 %v2702, %v2694
          %v3255 = vpack.c.b16 %v2711, %v2703
          %v3256 = vpack.c.b16 %v2712, %v2704
          %v3257 = vpack.c.b16 %v2713, %v2705
          %v3258 = vpack.c.b16 %v2714, %v2706
          %v3259 = vpack.c.b16 %v2715, %v2707
          %v3260 = vpack.c.b16 %v2716, %v2708
          %v3261 = vpack.c.b16 %v2717, %v2709
          %v3262 = vpack.c.b16 %v2718, %v2710
          %v3263 = vpack.c.b16 %v2727, %v2719
          %v3264 = vpack.c.b16 %v2728, %v2720
          %v3265 = vpack.c.b16 %v2729, %v2721
          %v3266 = vpack.c.b16 %v2730, %v2722
          %v3267 = vpack.c.b16 %v2731, %v2723
          %v3268 = vpack.c.b16 %v2732, %v2724
          %v3269 = vpack.c.b16 %v2733, %v2725
          %v3270 = vpack.c.b16 %v2734, %v2726
          %v3271 = vpack.c.b16 %v2743, %v2735
          %v3272 = vpack.c.b16 %v2744, %v2736
          %v3273 = vpack.c.b16 %v2745, %v2737
          %v3274 = vpack.c.b16 %v2746, %v2738
          %v3275 = vpack.c.b16 %v2747, %v2739
          %v3276 = vpack.c.b16 %v2748, %v2740
          %v3277 = vpack.c.b16 %v2749, %v2741
          %v3278 = vpack.c.b16 %v2750, %v2742
          %v3279 = vpack.c.b16 %v2759, %v2751
          %v3280 = vpack.c.b16 %v2760, %v2752
          %v3281 = vpack.c.b16 %v2761, %v2753
          %v3282 = vpack.c.b16 %v2762, %v2754
          %v3283 = vpack.c.b16 %v2763, %v2755
          %v3284 = vpack.c.b16 %v2764, %v2756
          %v3285 = vpack.c.b16 %v2765, %v2757
          %v3286 = vpack.c.b16 %v2766, %v2758
          %v3287 = vpack.c.b16 %v2775, %v2767
          %v3288 = vpack.c.b16 %v2776, %v2768
          %v3289 = vpack.c.b16 %v2777, %v2769
          %v3290 = vpack.c.b16 %v2778, %v2770
          %v3291 = vpack.c.b16 %v2779, %v2771
          %v3292 = vpack.c.b16 %v2780, %v2772
          %v3293 = vpack.c.b16 %v2781, %v2773
          %v3294 = vpack.c.b16 %v2782, %v2774
          %3807 = vmatpush.bf16.msra.mxu0 %v2839
          %3808 = vmatpush.bf16.msra.mxu0 %v2831
          %3809 = vmatpush.bf16.msra.mxu0 %v2823
          %3810 = vmatpush.bf16.msra.mxu0 %v2815
          %3811 = vmatpush.bf16.msra.mxu0 %v2807
          %3812 = vmatpush.bf16.msra.mxu0 %v2799
          %3813 = vmatpush.bf16.msra.mxu0 %v2791
          %3814 = vmatpush.bf16.msra.mxu0 %v2783
          %3815 = vmatmul.bf16.gmra.mxu0 %v1183
          %v3816 = vpop.f32.mrf.mxu0
          %v3817 = vadd.f32 0.0, %v3816
          %v3818 = vpop.f32.mrf.mxu0
          %v3819 = vadd.f32 0.0, %v3818
          %3820 = vmatmul.bf16.gmra.mxu0 %v1191
          %v3821 = vpop.f32.mrf.mxu0
          %v3822 = vadd.f32 0.0, %v3821
          %v3823 = vpop.f32.mrf.mxu0
          %v3824 = vadd.f32 0.0, %v3823
          %3825 = vmatmul.bf16.gmra.mxu0 %v1199
          %v3826 = vpop.f32.mrf.mxu0
          %v3827 = vadd.f32 0.0, %v3826
          %v3828 = vpop.f32.mrf.mxu0
          %v3829 = vadd.f32 0.0, %v3828
          %3830 = vmatmul.bf16.gmra.mxu0 %v1207
          %v3831 = vpop.f32.mrf.mxu0
          %v3832 = vadd.f32 0.0, %v3831
          %v3833 = vpop.f32.mrf.mxu0
          %v3834 = vadd.f32 0.0, %v3833
          %3835 = vdwg.mxu0
          %3836 = vmatpush.bf16.msra.mxu0 %v2903
          %3837 = vmatpush.bf16.msra.mxu0 %v2895
          %3838 = vmatpush.bf16.msra.mxu0 %v2887
          %3839 = vmatpush.bf16.msra.mxu0 %v2879
          %3840 = vmatpush.bf16.msra.mxu0 %v2871
          %3841 = vmatpush.bf16.msra.mxu0 %v2863
          %3842 = vmatpush.bf16.msra.mxu0 %v2855
          %3843 = vmatpush.bf16.msra.mxu0 %v2847
          %3844 = vmatmul.bf16.gmra.mxu0 %v1184
          %v3845 = vpop.f32.mrf.mxu0
          %v3846 = vadd.f32 %v3817, %v3845
          %v3847 = vpop.f32.mrf.mxu0
          %v3848 = vadd.f32 %v3819, %v3847
          %3849 = vmatmul.bf16.gmra.mxu0 %v1192
          %v3850 = vpop.f32.mrf.mxu0
          %v3851 = vadd.f32 %v3822, %v3850
          %v3852 = vpop.f32.mrf.mxu0
          %v3853 = vadd.f32 %v3824, %v3852
          %3854 = vmatmul.bf16.gmra.mxu0 %v1200
          %v3855 = vpop.f32.mrf.mxu0
          %v3856 = vadd.f32 %v3827, %v3855
          %v3857 = vpop.f32.mrf.mxu0
          %v3858 = vadd.f32 %v3829, %v3857
          %3859 = vmatmul.bf16.gmra.mxu0 %v1208
          %v3860 = vpop.f32.mrf.mxu0
          %v3861 = vadd.f32 %v3832, %v3860
          %v3862 = vpop.f32.mrf.mxu0
          %v3863 = vadd.f32 %v3834, %v3862
          %3864 = vdwg.mxu0
          %3865 = vmatpush.bf16.msra.mxu0 %v2967
          %3866 = vmatpush.bf16.msra.mxu0 %v2959
          %3867 = vmatpush.bf16.msra.mxu0 %v2951
          %3868 = vmatpush.bf16.msra.mxu0 %v2943
          %3869 = vmatpush.bf16.msra.mxu0 %v2935
          %3870 = vmatpush.bf16.msra.mxu0 %v2927
          %3871 = vmatpush.bf16.msra.mxu0 %v2919
          %3872 = vmatpush.bf16.msra.mxu0 %v2911
          %3873 = vmatmul.bf16.gmra.mxu0 %v1185
          %v3874 = vpop.f32.mrf.mxu0
          %v3875 = vadd.f32 %v3846, %v3874
          %v3876 = vpop.f32.mrf.mxu0
          %v3877 = vadd.f32 %v3848, %v3876
          %3878 = vmatmul.bf16.gmra.mxu0 %v1193
          %v3879 = vpop.f32.mrf.mxu0
          %v3880 = vadd.f32 %v3851, %v3879
          %v3881 = vpop.f32.mrf.mxu0
          %v3882 = vadd.f32 %v3853, %v3881
          %3883 = vmatmul.bf16.gmra.mxu0 %v1201
          %v3884 = vpop.f32.mrf.mxu0
          %v3885 = vadd.f32 %v3856, %v3884
          %v3886 = vpop.f32.mrf.mxu0
          %v3887 = vadd.f32 %v3858, %v3886
          %3888 = vmatmul.bf16.gmra.mxu0 %v1209
          %v3889 = vpop.f32.mrf.mxu0
          %v3890 = vadd.f32 %v3861, %v3889
          %v3891 = vpop.f32.mrf.mxu0
          %v3892 = vadd.f32 %v3863, %v3891
          %3893 = vdwg.mxu0
          %3894 = vmatpush.bf16.msra.mxu0 %v3031
          %3895 = vmatpush.bf16.msra.mxu0 %v3023
          %3896 = vmatpush.bf16.msra.mxu0 %v3015
          %3897 = vmatpush.bf16.msra.mxu0 %v3007
          %3898 = vmatpush.bf16.msra.mxu0 %v2999
          %3899 = vmatpush.bf16.msra.mxu0 %v2991
          %3900 = vmatpush.bf16.msra.mxu0 %v2983
          %3901 = vmatpush.bf16.msra.mxu0 %v2975
          %3902 = vmatmul.bf16.gmra.mxu0 %v1186
          %v3903 = vpop.f32.mrf.mxu0
          %v3904 = vadd.f32 %v3875, %v3903
          %v3905 = vpop.f32.mrf.mxu0
          %v3906 = vadd.f32 %v3877, %v3905
          %3907 = vmatmul.bf16.gmra.mxu0 %v1194
          %v3908 = vpop.f32.mrf.mxu0
          %v3909 = vadd.f32 %v3880, %v3908
          %v3910 = vpop.f32.mrf.mxu0
          %v3911 = vadd.f32 %v3882, %v3910
          %3912 = vmatmul.bf16.gmra.mxu0 %v1202
          %v3913 = vpop.f32.mrf.mxu0
          %v3914 = vadd.f32 %v3885, %v3913
          %v3915 = vpop.f32.mrf.mxu0
          %v3916 = vadd.f32 %v3887, %v3915
          %3917 = vmatmul.bf16.gmra.mxu0 %v1210
          %v3918 = vpop.f32.mrf.mxu0
          %v3919 = vadd.f32 %v3890, %v3918
          %v3920 = vpop.f32.mrf.mxu0
          %v3921 = vadd.f32 %v3892, %v3920
          %3922 = vdwg.mxu0
          %3923 = vmatpush.bf16.msra.mxu0 %v3095
          %3924 = vmatpush.bf16.msra.mxu0 %v3087
          %3925 = vmatpush.bf16.msra.mxu0 %v3079
          %3926 = vmatpush.bf16.msra.mxu0 %v3071
          %3927 = vmatpush.bf16.msra.mxu0 %v3063
          %3928 = vmatpush.bf16.msra.mxu0 %v3055
          %3929 = vmatpush.bf16.msra.mxu0 %v3047
          %3930 = vmatpush.bf16.msra.mxu0 %v3039
          %3931 = vmatmul.bf16.gmra.mxu0 %v1187
          %v3932 = vpop.f32.mrf.mxu0
          %v3933 = vadd.f32 %v3904, %v3932
          %v3934 = vpop.f32.mrf.mxu0
          %v3935 = vadd.f32 %v3906, %v3934
          %3936 = vmatmul.bf16.gmra.mxu0 %v1195
          %v3937 = vpop.f32.mrf.mxu0
          %v3938 = vadd.f32 %v3909, %v3937
          %v3939 = vpop.f32.mrf.mxu0
          %v3940 = vadd.f32 %v3911, %v3939
          %3941 = vmatmul.bf16.gmra.mxu0 %v1203
          %v3942 = vpop.f32.mrf.mxu0
          %v3943 = vadd.f32 %v3914, %v3942
          %v3944 = vpop.f32.mrf.mxu0
          %v3945 = vadd.f32 %v3916, %v3944
          %3946 = vmatmul.bf16.gmra.mxu0 %v1211
          %v3947 = vpop.f32.mrf.mxu0
          %v3948 = vadd.f32 %v3919, %v3947
          %v3949 = vpop.f32.mrf.mxu0
          %v3950 = vadd.f32 %v3921, %v3949
          %3951 = vdwg.mxu0
          %3952 = vmatpush.bf16.msra.mxu0 %v3159
          %3953 = vmatpush.bf16.msra.mxu0 %v3151
          %3954 = vmatpush.bf16.msra.mxu0 %v3143
          %3955 = vmatpush.bf16.msra.mxu0 %v3135
          %3956 = vmatpush.bf16.msra.mxu0 %v3127
          %3957 = vmatpush.bf16.msra.mxu0 %v3119
          %3958 = vmatpush.bf16.msra.mxu0 %v3111
          %3959 = vmatpush.bf16.msra.mxu0 %v3103
          %3960 = vmatmul.bf16.gmra.mxu0 %v1188
          %v3961 = vpop.f32.mrf.mxu0
          %v3962 = vadd.f32 %v3933, %v3961
          %v3963 = vpop.f32.mrf.mxu0
          %v3964 = vadd.f32 %v3935, %v3963
          %3965 = vmatmul.bf16.gmra.mxu0 %v1196
          %v3966 = vpop.f32.mrf.mxu0
          %v3967 = vadd.f32 %v3938, %v3966
          %v3968 = vpop.f32.mrf.mxu0
          %v3969 = vadd.f32 %v3940, %v3968
          %3970 = vmatmul.bf16.gmra.mxu0 %v1204
          %v3971 = vpop.f32.mrf.mxu0
          %v3972 = vadd.f32 %v3943, %v3971
          %v3973 = vpop.f32.mrf.mxu0
          %v3974 = vadd.f32 %v3945, %v3973
          %3975 = vmatmul.bf16.gmra.mxu0 %v1212
          %v3976 = vpop.f32.mrf.mxu0
          %v3977 = vadd.f32 %v3948, %v3976
          %v3978 = vpop.f32.mrf.mxu0
          %v3979 = vadd.f32 %v3950, %v3978
          %3980 = vdwg.mxu0
          %3981 = vmatpush.bf16.msra.mxu0 %v3223
          %3982 = vmatpush.bf16.msra.mxu0 %v3215
          %3983 = vmatpush.bf16.msra.mxu0 %v3207
          %3984 = vmatpush.bf16.msra.mxu0 %v3199
          %3985 = vmatpush.bf16.msra.mxu0 %v3191
          %3986 = vmatpush.bf16.msra.mxu0 %v3183
          %3987 = vmatpush.bf16.msra.mxu0 %v3175
          %3988 = vmatpush.bf16.msra.mxu0 %v3167
          %3989 = vmatmul.bf16.gmra.mxu0 %v1189
          %v3990 = vpop.f32.mrf.mxu0
          %v3991 = vadd.f32 %v3962, %v3990
          %v3992 = vpop.f32.mrf.mxu0
          %v3993 = vadd.f32 %v3964, %v3992
          %3994 = vmatmul.bf16.gmra.mxu0 %v1197
          %v3995 = vpop.f32.mrf.mxu0
          %v3996 = vadd.f32 %v3967, %v3995
          %v3997 = vpop.f32.mrf.mxu0
          %v3998 = vadd.f32 %v3969, %v3997
          %3999 = vmatmul.bf16.gmra.mxu0 %v1205
          %v4000 = vpop.f32.mrf.mxu0
          %v4001 = vadd.f32 %v3972, %v4000
          %v4002 = vpop.f32.mrf.mxu0
          %v4003 = vadd.f32 %v3974, %v4002
          %4004 = vmatmul.bf16.gmra.mxu0 %v1213
          %v4005 = vpop.f32.mrf.mxu0
          %v4006 = vadd.f32 %v3977, %v4005
          %v4007 = vpop.f32.mrf.mxu0
          %v4008 = vadd.f32 %v3979, %v4007
          %4009 = vdwg.mxu0
          %4010 = vmatpush.bf16.msra.mxu0 %v3287
          %4011 = vmatpush.bf16.msra.mxu0 %v3279
          %4012 = vmatpush.bf16.msra.mxu0 %v3271
          %4013 = vmatpush.bf16.msra.mxu0 %v3263
          %4014 = vmatpush.bf16.msra.mxu0 %v3255
          %4015 = vmatpush.bf16.msra.mxu0 %v3247
          %4016 = vmatpush.bf16.msra.mxu0 %v3239
          %4017 = vmatpush.bf16.msra.mxu0 %v3231
          %4018 = vmatmul.bf16.gmra.mxu0 %v1190
          %v4019 = vpop.f32.mrf.mxu0
          %v4020 = vadd.f32 %v3991, %v4019
          %v4021 = vpop.f32.mrf.mxu0
          %v4022 = vadd.f32 %v3993, %v4021
          %4023 = vmatmul.bf16.gmra.mxu0 %v1198
          %v4024 = vpop.f32.mrf.mxu0
          %v4025 = vadd.f32 %v3996, %v4024
          %v4026 = vpop.f32.mrf.mxu0
          %v4027 = vadd.f32 %v3998, %v4026
          %4028 = vmatmul.bf16.gmra.mxu0 %v1206
          %v4029 = vpop.f32.mrf.mxu0
          %v4030 = vadd.f32 %v4001, %v4029
          %v4031 = vpop.f32.mrf.mxu0
          %v4032 = vadd.f32 %v4003, %v4031
          %4033 = vmatmul.bf16.gmra.mxu0 %v1214
          %v4034 = vpop.f32.mrf.mxu0
          %v4035 = vadd.f32 %v4006, %v4034
          %v4036 = vpop.f32.mrf.mxu0
          %v4037 = vadd.f32 %v4008, %v4036
          %4038 = vdwg.mxu0
          %4039 = vmatpush.bf16.msra.mxu0 %v2840
          %4040 = vmatpush.bf16.msra.mxu0 %v2832
          %4041 = vmatpush.bf16.msra.mxu0 %v2824
          %4042 = vmatpush.bf16.msra.mxu0 %v2816
          %4043 = vmatpush.bf16.msra.mxu0 %v2808
          %4044 = vmatpush.bf16.msra.mxu0 %v2800
          %4045 = vmatpush.bf16.msra.mxu0 %v2792
          %4046 = vmatpush.bf16.msra.mxu0 %v2784
          %4047 = vmatmul.bf16.gmra.mxu0 %v1183
          %v4048 = vpop.f32.mrf.mxu0
          %v4049 = vadd.f32 0.0, %v4048
          %v4050 = vpop.f32.mrf.mxu0
          %v4051 = vadd.f32 0.0, %v4050
          %4052 = vmatmul.bf16.gmra.mxu0 %v1191
          %v4053 = vpop.f32.mrf.mxu0
          %v4054 = vadd.f32 0.0, %v4053
          %v4055 = vpop.f32.mrf.mxu0
          %v4056 = vadd.f32 0.0, %v4055
          %4057 = vmatmul.bf16.gmra.mxu0 %v1199
          %v4058 = vpop.f32.mrf.mxu0
          %v4059 = vadd.f32 0.0, %v4058
          %v4060 = vpop.f32.mrf.mxu0
          %v4061 = vadd.f32 0.0, %v4060
          %4062 = vmatmul.bf16.gmra.mxu0 %v1207
          %v4063 = vpop.f32.mrf.mxu0
          %v4064 = vadd.f32 0.0, %v4063
          %v4065 = vpop.f32.mrf.mxu0
          %v4066 = vadd.f32 0.0, %v4065
          %4067 = vdwg.mxu0
          %4068 = vmatpush.bf16.msra.mxu0 %v2904
          %4069 = vmatpush.bf16.msra.mxu0 %v2896
          %4070 = vmatpush.bf16.msra.mxu0 %v2888
          %4071 = vmatpush.bf16.msra.mxu0 %v2880
          %4072 = vmatpush.bf16.msra.mxu0 %v2872
          %4073 = vmatpush.bf16.msra.mxu0 %v2864
          %4074 = vmatpush.bf16.msra.mxu0 %v2856
          %4075 = vmatpush.bf16.msra.mxu0 %v2848
          %4076 = vmatmul.bf16.gmra.mxu0 %v1184
          %v4077 = vpop.f32.mrf.mxu0
          %v4078 = vadd.f32 %v4049, %v4077
          %v4079 = vpop.f32.mrf.mxu0
          %v4080 = vadd.f32 %v4051, %v4079
          %4081 = vmatmul.bf16.gmra.mxu0 %v1192
          %v4082 = vpop.f32.mrf.mxu0
          %v4083 = vadd.f32 %v4054, %v4082
          %v4084 = vpop.f32.mrf.mxu0
          %v4085 = vadd.f32 %v4056, %v4084
          %4086 = vmatmul.bf16.gmra.mxu0 %v1200
          %v4087 = vpop.f32.mrf.mxu0
          %v4088 = vadd.f32 %v4059, %v4087
          %v4089 = vpop.f32.mrf.mxu0
          %v4090 = vadd.f32 %v4061, %v4089
          %4091 = vmatmul.bf16.gmra.mxu0 %v1208
          %v4092 = vpop.f32.mrf.mxu0
          %v4093 = vadd.f32 %v4064, %v4092
          %v4094 = vpop.f32.mrf.mxu0
          %v4095 = vadd.f32 %v4066, %v4094
          %4096 = vdwg.mxu0
          %4097 = vmatpush.bf16.msra.mxu0 %v2968
          %4098 = vmatpush.bf16.msra.mxu0 %v2960
          %4099 = vmatpush.bf16.msra.mxu0 %v2952
          %4100 = vmatpush.bf16.msra.mxu0 %v2944
          %4101 = vmatpush.bf16.msra.mxu0 %v2936
          %4102 = vmatpush.bf16.msra.mxu0 %v2928
          %4103 = vmatpush.bf16.msra.mxu0 %v2920
          %4104 = vmatpush.bf16.msra.mxu0 %v2912
          %4105 = vmatmul.bf16.gmra.mxu0 %v1185
          %v4106 = vpop.f32.mrf.mxu0
          %v4107 = vadd.f32 %v4078, %v4106
          %v4108 = vpop.f32.mrf.mxu0
          %v4109 = vadd.f32 %v4080, %v4108
          %4110 = vmatmul.bf16.gmra.mxu0 %v1193
          %v4111 = vpop.f32.mrf.mxu0
          %v4112 = vadd.f32 %v4083, %v4111
          %v4113 = vpop.f32.mrf.mxu0
          %v4114 = vadd.f32 %v4085, %v4113
          %4115 = vmatmul.bf16.gmra.mxu0 %v1201
          %v4116 = vpop.f32.mrf.mxu0
          %v4117 = vadd.f32 %v4088, %v4116
          %v4118 = vpop.f32.mrf.mxu0
          %v4119 = vadd.f32 %v4090, %v4118
          %4120 = vmatmul.bf16.gmra.mxu0 %v1209
          %v4121 = vpop.f32.mrf.mxu0
          %v4122 = vadd.f32 %v4093, %v4121
          %v4123 = vpop.f32.mrf.mxu0
          %v4124 = vadd.f32 %v4095, %v4123
          %4125 = vdwg.mxu0
          %4126 = vmatpush.bf16.msra.mxu0 %v3032
          %4127 = vmatpush.bf16.msra.mxu0 %v3024
          %4128 = vmatpush.bf16.msra.mxu0 %v3016
          %4129 = vmatpush.bf16.msra.mxu0 %v3008
          %4130 = vmatpush.bf16.msra.mxu0 %v3000
          %4131 = vmatpush.bf16.msra.mxu0 %v2992
          %4132 = vmatpush.bf16.msra.mxu0 %v2984
          %4133 = vmatpush.bf16.msra.mxu0 %v2976
          %4134 = vmatmul.bf16.gmra.mxu0 %v1186
          %v4135 = vpop.f32.mrf.mxu0
          %v4136 = vadd.f32 %v4107, %v4135
          %v4137 = vpop.f32.mrf.mxu0
          %v4138 = vadd.f32 %v4109, %v4137
          %4139 = vmatmul.bf16.gmra.mxu0 %v1194
          %v4140 = vpop.f32.mrf.mxu0
          %v4141 = vadd.f32 %v4112, %v4140
          %v4142 = vpop.f32.mrf.mxu0
          %v4143 = vadd.f32 %v4114, %v4142
          %4144 = vmatmul.bf16.gmra.mxu0 %v1202
          %v4145 = vpop.f32.mrf.mxu0
          %v4146 = vadd.f32 %v4117, %v4145
          %v4147 = vpop.f32.mrf.mxu0
          %v4148 = vadd.f32 %v4119, %v4147
          %4149 = vmatmul.bf16.gmra.mxu0 %v1210
          %v4150 = vpop.f32.mrf.mxu0
          %v4151 = vadd.f32 %v4122, %v4150
          %v4152 = vpop.f32.mrf.mxu0
          %v4153 = vadd.f32 %v4124, %v4152
          %4154 = vdwg.mxu0
          %4155 = vmatpush.bf16.msra.mxu0 %v3096
          %4156 = vmatpush.bf16.msra.mxu0 %v3088
          %4157 = vmatpush.bf16.msra.mxu0 %v3080
          %4158 = vmatpush.bf16.msra.mxu0 %v3072
          %4159 = vmatpush.bf16.msra.mxu0 %v3064
          %4160 = vmatpush.bf16.msra.mxu0 %v3056
          %4161 = vmatpush.bf16.msra.mxu0 %v3048
          %4162 = vmatpush.bf16.msra.mxu0 %v3040
          %4163 = vmatmul.bf16.gmra.mxu0 %v1187
          %v4164 = vpop.f32.mrf.mxu0
          %v4165 = vadd.f32 %v4136, %v4164
          %v4166 = vpop.f32.mrf.mxu0
          %v4167 = vadd.f32 %v4138, %v4166
          %4168 = vmatmul.bf16.gmra.mxu0 %v1195
          %v4169 = vpop.f32.mrf.mxu0
          %v4170 = vadd.f32 %v4141, %v4169
          %v4171 = vpop.f32.mrf.mxu0
          %v4172 = vadd.f32 %v4143, %v4171
          %4173 = vmatmul.bf16.gmra.mxu0 %v1203
          %v4174 = vpop.f32.mrf.mxu0
          %v4175 = vadd.f32 %v4146, %v4174
          %v4176 = vpop.f32.mrf.mxu0
          %v4177 = vadd.f32 %v4148, %v4176
          %4178 = vmatmul.bf16.gmra.mxu0 %v1211
          %v4179 = vpop.f32.mrf.mxu0
          %v4180 = vadd.f32 %v4151, %v4179
          %v4181 = vpop.f32.mrf.mxu0
          %v4182 = vadd.f32 %v4153, %v4181
          %4183 = vdwg.mxu0
          %4184 = vmatpush.bf16.msra.mxu0 %v3160
          %4185 = vmatpush.bf16.msra.mxu0 %v3152
          %4186 = vmatpush.bf16.msra.mxu0 %v3144
          %4187 = vmatpush.bf16.msra.mxu0 %v3136
          %4188 = vmatpush.bf16.msra.mxu0 %v3128
          %4189 = vmatpush.bf16.msra.mxu0 %v3120
          %4190 = vmatpush.bf16.msra.mxu0 %v3112
          %4191 = vmatpush.bf16.msra.mxu0 %v3104
          %4192 = vmatmul.bf16.gmra.mxu0 %v1188
          %v4193 = vpop.f32.mrf.mxu0
          %v4194 = vadd.f32 %v4165, %v4193
          %v4195 = vpop.f32.mrf.mxu0
          %v4196 = vadd.f32 %v4167, %v4195
          %4197 = vmatmul.bf16.gmra.mxu0 %v1196
          %v4198 = vpop.f32.mrf.mxu0
          %v4199 = vadd.f32 %v4170, %v4198
          %v4200 = vpop.f32.mrf.mxu0
          %v4201 = vadd.f32 %v4172, %v4200
          %4202 = vmatmul.bf16.gmra.mxu0 %v1204
          %v4203 = vpop.f32.mrf.mxu0
          %v4204 = vadd.f32 %v4175, %v4203
          %v4205 = vpop.f32.mrf.mxu0
          %v4206 = vadd.f32 %v4177, %v4205
          %4207 = vmatmul.bf16.gmra.mxu0 %v1212
          %v4208 = vpop.f32.mrf.mxu0
          %v4209 = vadd.f32 %v4180, %v4208
          %v4210 = vpop.f32.mrf.mxu0
          %v4211 = vadd.f32 %v4182, %v4210
          %4212 = vdwg.mxu0
          %4213 = vmatpush.bf16.msra.mxu0 %v3224
          %4214 = vmatpush.bf16.msra.mxu0 %v3216
          %4215 = vmatpush.bf16.msra.mxu0 %v3208
          %4216 = vmatpush.bf16.msra.mxu0 %v3200
          %4217 = vmatpush.bf16.msra.mxu0 %v3192
          %4218 = vmatpush.bf16.msra.mxu0 %v3184
          %4219 = vmatpush.bf16.msra.mxu0 %v3176
          %4220 = vmatpush.bf16.msra.mxu0 %v3168
          %4221 = vmatmul.bf16.gmra.mxu0 %v1189
          %v4222 = vpop.f32.mrf.mxu0
          %v4223 = vadd.f32 %v4194, %v4222
          %v4224 = vpop.f32.mrf.mxu0
          %v4225 = vadd.f32 %v4196, %v4224
          %4226 = vmatmul.bf16.gmra.mxu0 %v1197
          %v4227 = vpop.f32.mrf.mxu0
          %v4228 = vadd.f32 %v4199, %v4227
          %v4229 = vpop.f32.mrf.mxu0
          %v4230 = vadd.f32 %v4201, %v4229
          %4231 = vmatmul.bf16.gmra.mxu0 %v1205
          %v4232 = vpop.f32.mrf.mxu0
          %v4233 = vadd.f32 %v4204, %v4232
          %v4234 = vpop.f32.mrf.mxu0
          %v4235 = vadd.f32 %v4206, %v4234
          %4236 = vmatmul.bf16.gmra.mxu0 %v1213
          %v4237 = vpop.f32.mrf.mxu0
          %v4238 = vadd.f32 %v4209, %v4237
          %v4239 = vpop.f32.mrf.mxu0
          %v4240 = vadd.f32 %v4211, %v4239
          %4241 = vdwg.mxu0
          %4242 = vmatpush.bf16.msra.mxu0 %v3288
          %4243 = vmatpush.bf16.msra.mxu0 %v3280
          %4244 = vmatpush.bf16.msra.mxu0 %v3272
          %4245 = vmatpush.bf16.msra.mxu0 %v3264
          %4246 = vmatpush.bf16.msra.mxu0 %v3256
          %4247 = vmatpush.bf16.msra.mxu0 %v3248
          %4248 = vmatpush.bf16.msra.mxu0 %v3240
          %4249 = vmatpush.bf16.msra.mxu0 %v3232
          %4250 = vmatmul.bf16.gmra.mxu0 %v1190
          %v4251 = vpop.f32.mrf.mxu0
          %v4252 = vadd.f32 %v4223, %v4251
          %v4253 = vpop.f32.mrf.mxu0
          %v4254 = vadd.f32 %v4225, %v4253
          %4255 = vmatmul.bf16.gmra.mxu0 %v1198
          %v4256 = vpop.f32.mrf.mxu0
          %v4257 = vadd.f32 %v4228, %v4256
          %v4258 = vpop.f32.mrf.mxu0
          %v4259 = vadd.f32 %v4230, %v4258
          %4260 = vmatmul.bf16.gmra.mxu0 %v1206
          %v4261 = vpop.f32.mrf.mxu0
          %v4262 = vadd.f32 %v4233, %v4261
          %v4263 = vpop.f32.mrf.mxu0
          %v4264 = vadd.f32 %v4235, %v4263
          %4265 = vmatmul.bf16.gmra.mxu0 %v1214
          %v4266 = vpop.f32.mrf.mxu0
          %v4267 = vadd.f32 %v4238, %v4266
          %v4268 = vpop.f32.mrf.mxu0
          %v4269 = vadd.f32 %v4240, %v4268
          %4270 = vdwg.mxu0
          %4271 = vmatpush.bf16.msra.mxu0 %v2841
          %4272 = vmatpush.bf16.msra.mxu0 %v2833
          %4273 = vmatpush.bf16.msra.mxu0 %v2825
          %4274 = vmatpush.bf16.msra.mxu0 %v2817
          %4275 = vmatpush.bf16.msra.mxu0 %v2809
          %4276 = vmatpush.bf16.msra.mxu0 %v2801
          %4277 = vmatpush.bf16.msra.mxu0 %v2793
          %4278 = vmatpush.bf16.msra.mxu0 %v2785
          %4279 = vmatmul.bf16.gmra.mxu0 %v1183
          %v4280 = vpop.f32.mrf.mxu0
          %v4281 = vadd.f32 0.0, %v4280
          %v4282 = vpop.f32.mrf.mxu0
          %v4283 = vadd.f32 0.0, %v4282
          %4284 = vmatmul.bf16.gmra.mxu0 %v1191
          %v4285 = vpop.f32.mrf.mxu0
          %v4286 = vadd.f32 0.0, %v4285
          %v4287 = vpop.f32.mrf.mxu0
          %v4288 = vadd.f32 0.0, %v4287
          %4289 = vmatmul.bf16.gmra.mxu0 %v1199
          %v4290 = vpop.f32.mrf.mxu0
          %v4291 = vadd.f32 0.0, %v4290
          %v4292 = vpop.f32.mrf.mxu0
          %v4293 = vadd.f32 0.0, %v4292
          %4294 = vmatmul.bf16.gmra.mxu0 %v1207
          %v4295 = vpop.f32.mrf.mxu0
          %v4296 = vadd.f32 0.0, %v4295
          %v4297 = vpop.f32.mrf.mxu0
          %v4298 = vadd.f32 0.0, %v4297
          %4299 = vdwg.mxu0
          %4300 = vmatpush.bf16.msra.mxu0 %v2905
          %4301 = vmatpush.bf16.msra.mxu0 %v2897
          %4302 = vmatpush.bf16.msra.mxu0 %v2889
          %4303 = vmatpush.bf16.msra.mxu0 %v2881
          %4304 = vmatpush.bf16.msra.mxu0 %v2873
          %4305 = vmatpush.bf16.msra.mxu0 %v2865
          %4306 = vmatpush.bf16.msra.mxu0 %v2857
          %4307 = vmatpush.bf16.msra.mxu0 %v2849
          %4308 = vmatmul.bf16.gmra.mxu0 %v1184
          %v4309 = vpop.f32.mrf.mxu0
          %v4310 = vadd.f32 %v4281, %v4309
          %v4311 = vpop.f32.mrf.mxu0
          %v4312 = vadd.f32 %v4283, %v4311
          %4313 = vmatmul.bf16.gmra.mxu0 %v1192
          %v4314 = vpop.f32.mrf.mxu0
          %v4315 = vadd.f32 %v4286, %v4314
          %v4316 = vpop.f32.mrf.mxu0
          %v4317 = vadd.f32 %v4288, %v4316
          %4318 = vmatmul.bf16.gmra.mxu0 %v1200
          %v4319 = vpop.f32.mrf.mxu0
          %v4320 = vadd.f32 %v4291, %v4319
          %v4321 = vpop.f32.mrf.mxu0
          %v4322 = vadd.f32 %v4293, %v4321
          %4323 = vmatmul.bf16.gmra.mxu0 %v1208
          %v4324 = vpop.f32.mrf.mxu0
          %v4325 = vadd.f32 %v4296, %v4324
          %v4326 = vpop.f32.mrf.mxu0
          %v4327 = vadd.f32 %v4298, %v4326
          %4328 = vdwg.mxu0
          %4329 = vmatpush.bf16.msra.mxu0 %v2969
          %4330 = vmatpush.bf16.msra.mxu0 %v2961
          %4331 = vmatpush.bf16.msra.mxu0 %v2953
          %4332 = vmatpush.bf16.msra.mxu0 %v2945
          %4333 = vmatpush.bf16.msra.mxu0 %v2937
          %4334 = vmatpush.bf16.msra.mxu0 %v2929
          %4335 = vmatpush.bf16.msra.mxu0 %v2921
          %4336 = vmatpush.bf16.msra.mxu0 %v2913
          %4337 = vmatmul.bf16.gmra.mxu0 %v1185
          %v4338 = vpop.f32.mrf.mxu0
          %v4339 = vadd.f32 %v4310, %v4338
          %v4340 = vpop.f32.mrf.mxu0
          %v4341 = vadd.f32 %v4312, %v4340
          %4342 = vmatmul.bf16.gmra.mxu0 %v1193
          %v4343 = vpop.f32.mrf.mxu0
          %v4344 = vadd.f32 %v4315, %v4343
          %v4345 = vpop.f32.mrf.mxu0
          %v4346 = vadd.f32 %v4317, %v4345
          %4347 = vmatmul.bf16.gmra.mxu0 %v1201
          %v4348 = vpop.f32.mrf.mxu0
          %v4349 = vadd.f32 %v4320, %v4348
          %v4350 = vpop.f32.mrf.mxu0
          %v4351 = vadd.f32 %v4322, %v4350
          %4352 = vmatmul.bf16.gmra.mxu0 %v1209
          %v4353 = vpop.f32.mrf.mxu0
          %v4354 = vadd.f32 %v4325, %v4353
          %v4355 = vpop.f32.mrf.mxu0
          %v4356 = vadd.f32 %v4327, %v4355
          %4357 = vdwg.mxu0
          %4358 = vmatpush.bf16.msra.mxu0 %v3033
          %4359 = vmatpush.bf16.msra.mxu0 %v3025
          %4360 = vmatpush.bf16.msra.mxu0 %v3017
          %4361 = vmatpush.bf16.msra.mxu0 %v3009
          %4362 = vmatpush.bf16.msra.mxu0 %v3001
          %4363 = vmatpush.bf16.msra.mxu0 %v2993
          %4364 = vmatpush.bf16.msra.mxu0 %v2985
          %4365 = vmatpush.bf16.msra.mxu0 %v2977
          %4366 = vmatmul.bf16.gmra.mxu0 %v1186
          %v4367 = vpop.f32.mrf.mxu0
          %v4368 = vadd.f32 %v4339, %v4367
          %v4369 = vpop.f32.mrf.mxu0
          %v4370 = vadd.f32 %v4341, %v4369
          %4371 = vmatmul.bf16.gmra.mxu0 %v1194
          %v4372 = vpop.f32.mrf.mxu0
          %v4373 = vadd.f32 %v4344, %v4372
          %v4374 = vpop.f32.mrf.mxu0
          %v4375 = vadd.f32 %v4346, %v4374
          %4376 = vmatmul.bf16.gmra.mxu0 %v1202
          %v4377 = vpop.f32.mrf.mxu0
          %v4378 = vadd.f32 %v4349, %v4377
          %v4379 = vpop.f32.mrf.mxu0
          %v4380 = vadd.f32 %v4351, %v4379
          %4381 = vmatmul.bf16.gmra.mxu0 %v1210
          %v4382 = vpop.f32.mrf.mxu0
          %v4383 = vadd.f32 %v4354, %v4382
          %v4384 = vpop.f32.mrf.mxu0
          %v4385 = vadd.f32 %v4356, %v4384
          %4386 = vdwg.mxu0
          %4387 = vmatpush.bf16.msra.mxu0 %v3097
          %4388 = vmatpush.bf16.msra.mxu0 %v3089
          %4389 = vmatpush.bf16.msra.mxu0 %v3081
          %4390 = vmatpush.bf16.msra.mxu0 %v3073
          %4391 = vmatpush.bf16.msra.mxu0 %v3065
          %4392 = vmatpush.bf16.msra.mxu0 %v3057
          %4393 = vmatpush.bf16.msra.mxu0 %v3049
          %4394 = vmatpush.bf16.msra.mxu0 %v3041
          %4395 = vmatmul.bf16.gmra.mxu0 %v1187
          %v4396 = vpop.f32.mrf.mxu0
          %v4397 = vadd.f32 %v4368, %v4396
          %v4398 = vpop.f32.mrf.mxu0
          %v4399 = vadd.f32 %v4370, %v4398
          %4400 = vmatmul.bf16.gmra.mxu0 %v1195
          %v4401 = vpop.f32.mrf.mxu0
          %v4402 = vadd.f32 %v4373, %v4401
          %v4403 = vpop.f32.mrf.mxu0
          %v4404 = vadd.f32 %v4375, %v4403
          %4405 = vmatmul.bf16.gmra.mxu0 %v1203
          %v4406 = vpop.f32.mrf.mxu0
          %v4407 = vadd.f32 %v4378, %v4406
          %v4408 = vpop.f32.mrf.mxu0
          %v4409 = vadd.f32 %v4380, %v4408
          %4410 = vmatmul.bf16.gmra.mxu0 %v1211
          %v4411 = vpop.f32.mrf.mxu0
          %v4412 = vadd.f32 %v4383, %v4411
          %v4413 = vpop.f32.mrf.mxu0
          %v4414 = vadd.f32 %v4385, %v4413
          %4415 = vdwg.mxu0
          %4416 = vmatpush.bf16.msra.mxu0 %v3161
          %4417 = vmatpush.bf16.msra.mxu0 %v3153
          %4418 = vmatpush.bf16.msra.mxu0 %v3145
          %4419 = vmatpush.bf16.msra.mxu0 %v3137
          %4420 = vmatpush.bf16.msra.mxu0 %v3129
          %4421 = vmatpush.bf16.msra.mxu0 %v3121
          %4422 = vmatpush.bf16.msra.mxu0 %v3113
          %4423 = vmatpush.bf16.msra.mxu0 %v3105
          %4424 = vmatmul.bf16.gmra.mxu0 %v1188
          %v4425 = vpop.f32.mrf.mxu0
          %v4426 = vadd.f32 %v4397, %v4425
          %v4427 = vpop.f32.mrf.mxu0
          %v4428 = vadd.f32 %v4399, %v4427
          %4429 = vmatmul.bf16.gmra.mxu0 %v1196
          %v4430 = vpop.f32.mrf.mxu0
          %v4431 = vadd.f32 %v4402, %v4430
          %v4432 = vpop.f32.mrf.mxu0
          %v4433 = vadd.f32 %v4404, %v4432
          %4434 = vmatmul.bf16.gmra.mxu0 %v1204
          %v4435 = vpop.f32.mrf.mxu0
          %v4436 = vadd.f32 %v4407, %v4435
          %v4437 = vpop.f32.mrf.mxu0
          %v4438 = vadd.f32 %v4409, %v4437
          %4439 = vmatmul.bf16.gmra.mxu0 %v1212
          %v4440 = vpop.f32.mrf.mxu0
          %v4441 = vadd.f32 %v4412, %v4440
          %v4442 = vpop.f32.mrf.mxu0
          %v4443 = vadd.f32 %v4414, %v4442
          %4444 = vdwg.mxu0
          %4445 = vmatpush.bf16.msra.mxu0 %v3225
          %4446 = vmatpush.bf16.msra.mxu0 %v3217
          %4447 = vmatpush.bf16.msra.mxu0 %v3209
          %4448 = vmatpush.bf16.msra.mxu0 %v3201
          %4449 = vmatpush.bf16.msra.mxu0 %v3193
          %4450 = vmatpush.bf16.msra.mxu0 %v3185
          %4451 = vmatpush.bf16.msra.mxu0 %v3177
          %4452 = vmatpush.bf16.msra.mxu0 %v3169
          %4453 = vmatmul.bf16.gmra.mxu0 %v1189
          %v4454 = vpop.f32.mrf.mxu0
          %v4455 = vadd.f32 %v4426, %v4454
          %v4456 = vpop.f32.mrf.mxu0
          %v4457 = vadd.f32 %v4428, %v4456
          %4458 = vmatmul.bf16.gmra.mxu0 %v1197
          %v4459 = vpop.f32.mrf.mxu0
          %v4460 = vadd.f32 %v4431, %v4459
          %v4461 = vpop.f32.mrf.mxu0
          %v4462 = vadd.f32 %v4433, %v4461
          %4463 = vmatmul.bf16.gmra.mxu0 %v1205
          %v4464 = vpop.f32.mrf.mxu0
          %v4465 = vadd.f32 %v4436, %v4464
          %v4466 = vpop.f32.mrf.mxu0
          %v4467 = vadd.f32 %v4438, %v4466
          %4468 = vmatmul.bf16.gmra.mxu0 %v1213
          %v4469 = vpop.f32.mrf.mxu0
          %v4470 = vadd.f32 %v4441, %v4469
          %v4471 = vpop.f32.mrf.mxu0
          %v4472 = vadd.f32 %v4443, %v4471
          %4473 = vdwg.mxu0
          %4474 = vmatpush.bf16.msra.mxu0 %v3289
          %4475 = vmatpush.bf16.msra.mxu0 %v3281
          %4476 = vmatpush.bf16.msra.mxu0 %v3273
          %4477 = vmatpush.bf16.msra.mxu0 %v3265
          %4478 = vmatpush.bf16.msra.mxu0 %v3257
          %4479 = vmatpush.bf16.msra.mxu0 %v3249
          %4480 = vmatpush.bf16.msra.mxu0 %v3241
          %4481 = vmatpush.bf16.msra.mxu0 %v3233
          %4482 = vmatmul.bf16.gmra.mxu0 %v1190
          %v4483 = vpop.f32.mrf.mxu0
          %v4484 = vadd.f32 %v4455, %v4483
          %v4485 = vpop.f32.mrf.mxu0
          %v4486 = vadd.f32 %v4457, %v4485
          %4487 = vmatmul.bf16.gmra.mxu0 %v1198
          %v4488 = vpop.f32.mrf.mxu0
          %v4489 = vadd.f32 %v4460, %v4488
          %v4490 = vpop.f32.mrf.mxu0
          %v4491 = vadd.f32 %v4462, %v4490
          %4492 = vmatmul.bf16.gmra.mxu0 %v1206
          %v4493 = vpop.f32.mrf.mxu0
          %v4494 = vadd.f32 %v4465, %v4493
          %v4495 = vpop.f32.mrf.mxu0
          %v4496 = vadd.f32 %v4467, %v4495
          %4497 = vmatmul.bf16.gmra.mxu0 %v1214
          %v4498 = vpop.f32.mrf.mxu0
          %v4499 = vadd.f32 %v4470, %v4498
          %v4500 = vpop.f32.mrf.mxu0
          %v4501 = vadd.f32 %v4472, %v4500
          %4502 = vdwg.mxu0
          %4503 = vmatpush.bf16.msra.mxu0 %v2842
          %4504 = vmatpush.bf16.msra.mxu0 %v2834
          %4505 = vmatpush.bf16.msra.mxu0 %v2826
          %4506 = vmatpush.bf16.msra.mxu0 %v2818
          %4507 = vmatpush.bf16.msra.mxu0 %v2810
          %4508 = vmatpush.bf16.msra.mxu0 %v2802
          %4509 = vmatpush.bf16.msra.mxu0 %v2794
          %4510 = vmatpush.bf16.msra.mxu0 %v2786
          %4511 = vmatmul.bf16.gmra.mxu0 %v1183
          %v4512 = vpop.f32.mrf.mxu0
          %v4513 = vadd.f32 0.0, %v4512
          %v4514 = vpop.f32.mrf.mxu0
          %v4515 = vadd.f32 0.0, %v4514
          %4516 = vmatmul.bf16.gmra.mxu0 %v1191
          %v4517 = vpop.f32.mrf.mxu0
          %v4518 = vadd.f32 0.0, %v4517
          %v4519 = vpop.f32.mrf.mxu0
          %v4520 = vadd.f32 0.0, %v4519
          %4521 = vmatmul.bf16.gmra.mxu0 %v1199
          %v4522 = vpop.f32.mrf.mxu0
          %v4523 = vadd.f32 0.0, %v4522
          %v4524 = vpop.f32.mrf.mxu0
          %v4525 = vadd.f32 0.0, %v4524
          %4526 = vmatmul.bf16.gmra.mxu0 %v1207
          %v4527 = vpop.f32.mrf.mxu0
          %v4528 = vadd.f32 0.0, %v4527
          %v4529 = vpop.f32.mrf.mxu0
          %v4530 = vadd.f32 0.0, %v4529
          %4531 = vdwg.mxu0
          %4532 = vmatpush.bf16.msra.mxu0 %v2906
          %4533 = vmatpush.bf16.msra.mxu0 %v2898
          %4534 = vmatpush.bf16.msra.mxu0 %v2890
          %4535 = vmatpush.bf16.msra.mxu0 %v2882
          %4536 = vmatpush.bf16.msra.mxu0 %v2874
          %4537 = vmatpush.bf16.msra.mxu0 %v2866
          %4538 = vmatpush.bf16.msra.mxu0 %v2858
          %4539 = vmatpush.bf16.msra.mxu0 %v2850
          %4540 = vmatmul.bf16.gmra.mxu0 %v1184
          %v4541 = vpop.f32.mrf.mxu0
          %v4542 = vadd.f32 %v4513, %v4541
          %v4543 = vpop.f32.mrf.mxu0
          %v4544 = vadd.f32 %v4515, %v4543
          %4545 = vmatmul.bf16.gmra.mxu0 %v1192
          %v4546 = vpop.f32.mrf.mxu0
          %v4547 = vadd.f32 %v4518, %v4546
          %v4548 = vpop.f32.mrf.mxu0
          %v4549 = vadd.f32 %v4520, %v4548
          %4550 = vmatmul.bf16.gmra.mxu0 %v1200
          %v4551 = vpop.f32.mrf.mxu0
          %v4552 = vadd.f32 %v4523, %v4551
          %v4553 = vpop.f32.mrf.mxu0
          %v4554 = vadd.f32 %v4525, %v4553
          %4555 = vmatmul.bf16.gmra.mxu0 %v1208
          %v4556 = vpop.f32.mrf.mxu0
          %v4557 = vadd.f32 %v4528, %v4556
          %v4558 = vpop.f32.mrf.mxu0
          %v4559 = vadd.f32 %v4530, %v4558
          %4560 = vdwg.mxu0
          %4561 = vmatpush.bf16.msra.mxu0 %v2970
          %4562 = vmatpush.bf16.msra.mxu0 %v2962
          %4563 = vmatpush.bf16.msra.mxu0 %v2954
          %4564 = vmatpush.bf16.msra.mxu0 %v2946
          %4565 = vmatpush.bf16.msra.mxu0 %v2938
          %4566 = vmatpush.bf16.msra.mxu0 %v2930
          %4567 = vmatpush.bf16.msra.mxu0 %v2922
          %4568 = vmatpush.bf16.msra.mxu0 %v2914
          %4569 = vmatmul.bf16.gmra.mxu0 %v1185
          %v4570 = vpop.f32.mrf.mxu0
          %v4571 = vadd.f32 %v4542, %v4570
          %v4572 = vpop.f32.mrf.mxu0
          %v4573 = vadd.f32 %v4544, %v4572
          %4574 = vmatmul.bf16.gmra.mxu0 %v1193
          %v4575 = vpop.f32.mrf.mxu0
          %v4576 = vadd.f32 %v4547, %v4575
          %v4577 = vpop.f32.mrf.mxu0
          %v4578 = vadd.f32 %v4549, %v4577
          %4579 = vmatmul.bf16.gmra.mxu0 %v1201
          %v4580 = vpop.f32.mrf.mxu0
          %v4581 = vadd.f32 %v4552, %v4580
          %v4582 = vpop.f32.mrf.mxu0
          %v4583 = vadd.f32 %v4554, %v4582
          %4584 = vmatmul.bf16.gmra.mxu0 %v1209
          %v4585 = vpop.f32.mrf.mxu0
          %v4586 = vadd.f32 %v4557, %v4585
          %v4587 = vpop.f32.mrf.mxu0
          %v4588 = vadd.f32 %v4559, %v4587
          %4589 = vdwg.mxu0
          %4590 = vmatpush.bf16.msra.mxu0 %v3034
          %4591 = vmatpush.bf16.msra.mxu0 %v3026
          %4592 = vmatpush.bf16.msra.mxu0 %v3018
          %4593 = vmatpush.bf16.msra.mxu0 %v3010
          %4594 = vmatpush.bf16.msra.mxu0 %v3002
          %4595 = vmatpush.bf16.msra.mxu0 %v2994
          %4596 = vmatpush.bf16.msra.mxu0 %v2986
          %4597 = vmatpush.bf16.msra.mxu0 %v2978
          %4598 = vmatmul.bf16.gmra.mxu0 %v1186
          %v4599 = vpop.f32.mrf.mxu0
          %v4600 = vadd.f32 %v4571, %v4599
          %v4601 = vpop.f32.mrf.mxu0
          %v4602 = vadd.f32 %v4573, %v4601
          %4603 = vmatmul.bf16.gmra.mxu0 %v1194
          %v4604 = vpop.f32.mrf.mxu0
          %v4605 = vadd.f32 %v4576, %v4604
          %v4606 = vpop.f32.mrf.mxu0
          %v4607 = vadd.f32 %v4578, %v4606
          %4608 = vmatmul.bf16.gmra.mxu0 %v1202
          %v4609 = vpop.f32.mrf.mxu0
          %v4610 = vadd.f32 %v4581, %v4609
          %v4611 = vpop.f32.mrf.mxu0
          %v4612 = vadd.f32 %v4583, %v4611
          %4613 = vmatmul.bf16.gmra.mxu0 %v1210
          %v4614 = vpop.f32.mrf.mxu0
          %v4615 = vadd.f32 %v4586, %v4614
          %v4616 = vpop.f32.mrf.mxu0
          %v4617 = vadd.f32 %v4588, %v4616
          %4618 = vdwg.mxu0
          %4619 = vmatpush.bf16.msra.mxu0 %v3098
          %4620 = vmatpush.bf16.msra.mxu0 %v3090
          %4621 = vmatpush.bf16.msra.mxu0 %v3082
          %4622 = vmatpush.bf16.msra.mxu0 %v3074
          %4623 = vmatpush.bf16.msra.mxu0 %v3066
          %4624 = vmatpush.bf16.msra.mxu0 %v3058
          %4625 = vmatpush.bf16.msra.mxu0 %v3050
          %4626 = vmatpush.bf16.msra.mxu0 %v3042
          %4627 = vmatmul.bf16.gmra.mxu0 %v1187
          %v4628 = vpop.f32.mrf.mxu0
          %v4629 = vadd.f32 %v4600, %v4628
          %v4630 = vpop.f32.mrf.mxu0
          %v4631 = vadd.f32 %v4602, %v4630
          %4632 = vmatmul.bf16.gmra.mxu0 %v1195
          %v4633 = vpop.f32.mrf.mxu0
          %v4634 = vadd.f32 %v4605, %v4633
          %v4635 = vpop.f32.mrf.mxu0
          %v4636 = vadd.f32 %v4607, %v4635
          %4637 = vmatmul.bf16.gmra.mxu0 %v1203
          %v4638 = vpop.f32.mrf.mxu0
          %v4639 = vadd.f32 %v4610, %v4638
          %v4640 = vpop.f32.mrf.mxu0
          %v4641 = vadd.f32 %v4612, %v4640
          %4642 = vmatmul.bf16.gmra.mxu0 %v1211
          %v4643 = vpop.f32.mrf.mxu0
          %v4644 = vadd.f32 %v4615, %v4643
          %v4645 = vpop.f32.mrf.mxu0
          %v4646 = vadd.f32 %v4617, %v4645
          %4647 = vdwg.mxu0
          %4648 = vmatpush.bf16.msra.mxu0 %v3162
          %4649 = vmatpush.bf16.msra.mxu0 %v3154
          %4650 = vmatpush.bf16.msra.mxu0 %v3146
          %4651 = vmatpush.bf16.msra.mxu0 %v3138
          %4652 = vmatpush.bf16.msra.mxu0 %v3130
          %4653 = vmatpush.bf16.msra.mxu0 %v3122
          %4654 = vmatpush.bf16.msra.mxu0 %v3114
          %4655 = vmatpush.bf16.msra.mxu0 %v3106
          %4656 = vmatmul.bf16.gmra.mxu0 %v1188
          %v4657 = vpop.f32.mrf.mxu0
          %v4658 = vadd.f32 %v4629, %v4657
          %v4659 = vpop.f32.mrf.mxu0
          %v4660 = vadd.f32 %v4631, %v4659
          %4661 = vmatmul.bf16.gmra.mxu0 %v1196
          %v4662 = vpop.f32.mrf.mxu0
          %v4663 = vadd.f32 %v4634, %v4662
          %v4664 = vpop.f32.mrf.mxu0
          %v4665 = vadd.f32 %v4636, %v4664
          %4666 = vmatmul.bf16.gmra.mxu0 %v1204
          %v4667 = vpop.f32.mrf.mxu0
          %v4668 = vadd.f32 %v4639, %v4667
          %v4669 = vpop.f32.mrf.mxu0
          %v4670 = vadd.f32 %v4641, %v4669
          %4671 = vmatmul.bf16.gmra.mxu0 %v1212
          %v4672 = vpop.f32.mrf.mxu0
          %v4673 = vadd.f32 %v4644, %v4672
          %v4674 = vpop.f32.mrf.mxu0
          %v4675 = vadd.f32 %v4646, %v4674
          %4676 = vdwg.mxu0
          %4677 = vmatpush.bf16.msra.mxu0 %v3226
          %4678 = vmatpush.bf16.msra.mxu0 %v3218
          %4679 = vmatpush.bf16.msra.mxu0 %v3210
          %4680 = vmatpush.bf16.msra.mxu0 %v3202
          %4681 = vmatpush.bf16.msra.mxu0 %v3194
          %4682 = vmatpush.bf16.msra.mxu0 %v3186
          %4683 = vmatpush.bf16.msra.mxu0 %v3178
          %4684 = vmatpush.bf16.msra.mxu0 %v3170
          %4685 = vmatmul.bf16.gmra.mxu0 %v1189
          %v4686 = vpop.f32.mrf.mxu0
          %v4687 = vadd.f32 %v4658, %v4686
          %v4688 = vpop.f32.mrf.mxu0
          %v4689 = vadd.f32 %v4660, %v4688
          %4690 = vmatmul.bf16.gmra.mxu0 %v1197
          %v4691 = vpop.f32.mrf.mxu0
          %v4692 = vadd.f32 %v4663, %v4691
          %v4693 = vpop.f32.mrf.mxu0
          %v4694 = vadd.f32 %v4665, %v4693
          %4695 = vmatmul.bf16.gmra.mxu0 %v1205
          %v4696 = vpop.f32.mrf.mxu0
          %v4697 = vadd.f32 %v4668, %v4696
          %v4698 = vpop.f32.mrf.mxu0
          %v4699 = vadd.f32 %v4670, %v4698
          %4700 = vmatmul.bf16.gmra.mxu0 %v1213
          %v4701 = vpop.f32.mrf.mxu0
          %v4702 = vadd.f32 %v4673, %v4701
          %v4703 = vpop.f32.mrf.mxu0
          %v4704 = vadd.f32 %v4675, %v4703
          %4705 = vdwg.mxu0
          %4706 = vmatpush.bf16.msra.mxu0 %v3290
          %4707 = vmatpush.bf16.msra.mxu0 %v3282
          %4708 = vmatpush.bf16.msra.mxu0 %v3274
          %4709 = vmatpush.bf16.msra.mxu0 %v3266
          %4710 = vmatpush.bf16.msra.mxu0 %v3258
          %4711 = vmatpush.bf16.msra.mxu0 %v3250
          %4712 = vmatpush.bf16.msra.mxu0 %v3242
          %4713 = vmatpush.bf16.msra.mxu0 %v3234
          %4714 = vmatmul.bf16.gmra.mxu0 %v1190
          %v4715 = vpop.f32.mrf.mxu0
          %v4716 = vadd.f32 %v4687, %v4715
          %v4717 = vpop.f32.mrf.mxu0
          %v4718 = vadd.f32 %v4689, %v4717
          %4719 = vmatmul.bf16.gmra.mxu0 %v1198
          %v4720 = vpop.f32.mrf.mxu0
          %v4721 = vadd.f32 %v4692, %v4720
          %v4722 = vpop.f32.mrf.mxu0
          %v4723 = vadd.f32 %v4694, %v4722
          %4724 = vmatmul.bf16.gmra.mxu0 %v1206
          %v4725 = vpop.f32.mrf.mxu0
          %v4726 = vadd.f32 %v4697, %v4725
          %v4727 = vpop.f32.mrf.mxu0
          %v4728 = vadd.f32 %v4699, %v4727
          %4729 = vmatmul.bf16.gmra.mxu0 %v1214
          %v4730 = vpop.f32.mrf.mxu0
          %v4731 = vadd.f32 %v4702, %v4730
          %v4732 = vpop.f32.mrf.mxu0
          %v4733 = vadd.f32 %v4704, %v4732
          %4734 = vdwg.mxu0
          %4735 = vmatpush.bf16.msra.mxu0 %v2843
          %4736 = vmatpush.bf16.msra.mxu0 %v2835
          %4737 = vmatpush.bf16.msra.mxu0 %v2827
          %4738 = vmatpush.bf16.msra.mxu0 %v2819
          %4739 = vmatpush.bf16.msra.mxu0 %v2811
          %4740 = vmatpush.bf16.msra.mxu0 %v2803
          %4741 = vmatpush.bf16.msra.mxu0 %v2795
          %4742 = vmatpush.bf16.msra.mxu0 %v2787
          %4743 = vmatmul.bf16.gmra.mxu0 %v1183
          %v4744 = vpop.f32.mrf.mxu0
          %v4745 = vadd.f32 0.0, %v4744
          %v4746 = vpop.f32.mrf.mxu0
          %v4747 = vadd.f32 0.0, %v4746
          %4748 = vmatmul.bf16.gmra.mxu0 %v1191
          %v4749 = vpop.f32.mrf.mxu0
          %v4750 = vadd.f32 0.0, %v4749
          %v4751 = vpop.f32.mrf.mxu0
          %v4752 = vadd.f32 0.0, %v4751
          %4753 = vmatmul.bf16.gmra.mxu0 %v1199
          %v4754 = vpop.f32.mrf.mxu0
          %v4755 = vadd.f32 0.0, %v4754
          %v4756 = vpop.f32.mrf.mxu0
          %v4757 = vadd.f32 0.0, %v4756
          %4758 = vmatmul.bf16.gmra.mxu0 %v1207
          %v4759 = vpop.f32.mrf.mxu0
          %v4760 = vadd.f32 0.0, %v4759
          %v4761 = vpop.f32.mrf.mxu0
          %v4762 = vadd.f32 0.0, %v4761
          %4763 = vdwg.mxu0
          %4764 = vmatpush.bf16.msra.mxu0 %v2907
          %4765 = vmatpush.bf16.msra.mxu0 %v2899
          %4766 = vmatpush.bf16.msra.mxu0 %v2891
          %4767 = vmatpush.bf16.msra.mxu0 %v2883
          %4768 = vmatpush.bf16.msra.mxu0 %v2875
          %4769 = vmatpush.bf16.msra.mxu0 %v2867
          %4770 = vmatpush.bf16.msra.mxu0 %v2859
          %4771 = vmatpush.bf16.msra.mxu0 %v2851
          %4772 = vmatmul.bf16.gmra.mxu0 %v1184
          %v4773 = vpop.f32.mrf.mxu0
          %v4774 = vadd.f32 %v4745, %v4773
          %v4775 = vpop.f32.mrf.mxu0
          %v4776 = vadd.f32 %v4747, %v4775
          %4777 = vmatmul.bf16.gmra.mxu0 %v1192
          %v4778 = vpop.f32.mrf.mxu0
          %v4779 = vadd.f32 %v4750, %v4778
          %v4780 = vpop.f32.mrf.mxu0
          %v4781 = vadd.f32 %v4752, %v4780
          %4782 = vmatmul.bf16.gmra.mxu0 %v1200
          %v4783 = vpop.f32.mrf.mxu0
          %v4784 = vadd.f32 %v4755, %v4783
          %v4785 = vpop.f32.mrf.mxu0
          %v4786 = vadd.f32 %v4757, %v4785
          %4787 = vmatmul.bf16.gmra.mxu0 %v1208
          %v4788 = vpop.f32.mrf.mxu0
          %v4789 = vadd.f32 %v4760, %v4788
          %v4790 = vpop.f32.mrf.mxu0
          %v4791 = vadd.f32 %v4762, %v4790
          %4792 = vdwg.mxu0
          %4793 = vmatpush.bf16.msra.mxu0 %v2971
          %4794 = vmatpush.bf16.msra.mxu0 %v2963
          %4795 = vmatpush.bf16.msra.mxu0 %v2955
          %4796 = vmatpush.bf16.msra.mxu0 %v2947
          %4797 = vmatpush.bf16.msra.mxu0 %v2939
          %4798 = vmatpush.bf16.msra.mxu0 %v2931
          %4799 = vmatpush.bf16.msra.mxu0 %v2923
          %4800 = vmatpush.bf16.msra.mxu0 %v2915
          %4801 = vmatmul.bf16.gmra.mxu0 %v1185
          %v4802 = vpop.f32.mrf.mxu0
          %v4803 = vadd.f32 %v4774, %v4802
          %v4804 = vpop.f32.mrf.mxu0
          %v4805 = vadd.f32 %v4776, %v4804
          %4806 = vmatmul.bf16.gmra.mxu0 %v1193
          %v4807 = vpop.f32.mrf.mxu0
          %v4808 = vadd.f32 %v4779, %v4807
          %v4809 = vpop.f32.mrf.mxu0
          %v4810 = vadd.f32 %v4781, %v4809
          %4811 = vmatmul.bf16.gmra.mxu0 %v1201
          %v4812 = vpop.f32.mrf.mxu0
          %v4813 = vadd.f32 %v4784, %v4812
          %v4814 = vpop.f32.mrf.mxu0
          %v4815 = vadd.f32 %v4786, %v4814
          %4816 = vmatmul.bf16.gmra.mxu0 %v1209
          %v4817 = vpop.f32.mrf.mxu0
          %v4818 = vadd.f32 %v4789, %v4817
          %v4819 = vpop.f32.mrf.mxu0
          %v4820 = vadd.f32 %v4791, %v4819
          %4821 = vdwg.mxu0
          %4822 = vmatpush.bf16.msra.mxu0 %v3035
          %4823 = vmatpush.bf16.msra.mxu0 %v3027
          %4824 = vmatpush.bf16.msra.mxu0 %v3019
          %4825 = vmatpush.bf16.msra.mxu0 %v3011
          %4826 = vmatpush.bf16.msra.mxu0 %v3003
          %4827 = vmatpush.bf16.msra.mxu0 %v2995
          %4828 = vmatpush.bf16.msra.mxu0 %v2987
          %4829 = vmatpush.bf16.msra.mxu0 %v2979
          %4830 = vmatmul.bf16.gmra.mxu0 %v1186
          %v4831 = vpop.f32.mrf.mxu0
          %v4832 = vadd.f32 %v4803, %v4831
          %v4833 = vpop.f32.mrf.mxu0
          %v4834 = vadd.f32 %v4805, %v4833
          %4835 = vmatmul.bf16.gmra.mxu0 %v1194
          %v4836 = vpop.f32.mrf.mxu0
          %v4837 = vadd.f32 %v4808, %v4836
          %v4838 = vpop.f32.mrf.mxu0
          %v4839 = vadd.f32 %v4810, %v4838
          %4840 = vmatmul.bf16.gmra.mxu0 %v1202
          %v4841 = vpop.f32.mrf.mxu0
          %v4842 = vadd.f32 %v4813, %v4841
          %v4843 = vpop.f32.mrf.mxu0
          %v4844 = vadd.f32 %v4815, %v4843
          %4845 = vmatmul.bf16.gmra.mxu0 %v1210
          %v4846 = vpop.f32.mrf.mxu0
          %v4847 = vadd.f32 %v4818, %v4846
          %v4848 = vpop.f32.mrf.mxu0
          %v4849 = vadd.f32 %v4820, %v4848
          %4850 = vdwg.mxu0
          %4851 = vmatpush.bf16.msra.mxu0 %v3099
          %4852 = vmatpush.bf16.msra.mxu0 %v3091
          %4853 = vmatpush.bf16.msra.mxu0 %v3083
          %4854 = vmatpush.bf16.msra.mxu0 %v3075
          %4855 = vmatpush.bf16.msra.mxu0 %v3067
          %4856 = vmatpush.bf16.msra.mxu0 %v3059
          %4857 = vmatpush.bf16.msra.mxu0 %v3051
          %4858 = vmatpush.bf16.msra.mxu0 %v3043
          %4859 = vmatmul.bf16.gmra.mxu0 %v1187
          %v4860 = vpop.f32.mrf.mxu0
          %v4861 = vadd.f32 %v4832, %v4860
          %v4862 = vpop.f32.mrf.mxu0
          %v4863 = vadd.f32 %v4834, %v4862
          %4864 = vmatmul.bf16.gmra.mxu0 %v1195
          %v4865 = vpop.f32.mrf.mxu0
          %v4866 = vadd.f32 %v4837, %v4865
          %v4867 = vpop.f32.mrf.mxu0
          %v4868 = vadd.f32 %v4839, %v4867
          %4869 = vmatmul.bf16.gmra.mxu0 %v1203
          %v4870 = vpop.f32.mrf.mxu0
          %v4871 = vadd.f32 %v4842, %v4870
          %v4872 = vpop.f32.mrf.mxu0
          %v4873 = vadd.f32 %v4844, %v4872
          %4874 = vmatmul.bf16.gmra.mxu0 %v1211
          %v4875 = vpop.f32.mrf.mxu0
          %v4876 = vadd.f32 %v4847, %v4875
          %v4877 = vpop.f32.mrf.mxu0
          %v4878 = vadd.f32 %v4849, %v4877
          %4879 = vdwg.mxu0
          %4880 = vmatpush.bf16.msra.mxu0 %v3163
          %4881 = vmatpush.bf16.msra.mxu0 %v3155
          %4882 = vmatpush.bf16.msra.mxu0 %v3147
          %4883 = vmatpush.bf16.msra.mxu0 %v3139
          %4884 = vmatpush.bf16.msra.mxu0 %v3131
          %4885 = vmatpush.bf16.msra.mxu0 %v3123
          %4886 = vmatpush.bf16.msra.mxu0 %v3115
          %4887 = vmatpush.bf16.msra.mxu0 %v3107
          %4888 = vmatmul.bf16.gmra.mxu0 %v1188
          %v4889 = vpop.f32.mrf.mxu0
          %v4890 = vadd.f32 %v4861, %v4889
          %v4891 = vpop.f32.mrf.mxu0
          %v4892 = vadd.f32 %v4863, %v4891
          %4893 = vmatmul.bf16.gmra.mxu0 %v1196
          %v4894 = vpop.f32.mrf.mxu0
          %v4895 = vadd.f32 %v4866, %v4894
          %v4896 = vpop.f32.mrf.mxu0
          %v4897 = vadd.f32 %v4868, %v4896
          %4898 = vmatmul.bf16.gmra.mxu0 %v1204
          %v4899 = vpop.f32.mrf.mxu0
          %v4900 = vadd.f32 %v4871, %v4899
          %v4901 = vpop.f32.mrf.mxu0
          %v4902 = vadd.f32 %v4873, %v4901
          %4903 = vmatmul.bf16.gmra.mxu0 %v1212
          %v4904 = vpop.f32.mrf.mxu0
          %v4905 = vadd.f32 %v4876, %v4904
          %v4906 = vpop.f32.mrf.mxu0
          %v4907 = vadd.f32 %v4878, %v4906
          %4908 = vdwg.mxu0
          %4909 = vmatpush.bf16.msra.mxu0 %v3227
          %4910 = vmatpush.bf16.msra.mxu0 %v3219
          %4911 = vmatpush.bf16.msra.mxu0 %v3211
          %4912 = vmatpush.bf16.msra.mxu0 %v3203
          %4913 = vmatpush.bf16.msra.mxu0 %v3195
          %4914 = vmatpush.bf16.msra.mxu0 %v3187
          %4915 = vmatpush.bf16.msra.mxu0 %v3179
          %4916 = vmatpush.bf16.msra.mxu0 %v3171
          %4917 = vmatmul.bf16.gmra.mxu0 %v1189
          %v4918 = vpop.f32.mrf.mxu0
          %v4919 = vadd.f32 %v4890, %v4918
          %v4920 = vpop.f32.mrf.mxu0
          %v4921 = vadd.f32 %v4892, %v4920
          %4922 = vmatmul.bf16.gmra.mxu0 %v1197
          %v4923 = vpop.f32.mrf.mxu0
          %v4924 = vadd.f32 %v4895, %v4923
          %v4925 = vpop.f32.mrf.mxu0
          %v4926 = vadd.f32 %v4897, %v4925
          %4927 = vmatmul.bf16.gmra.mxu0 %v1205
          %v4928 = vpop.f32.mrf.mxu0
          %v4929 = vadd.f32 %v4900, %v4928
          %v4930 = vpop.f32.mrf.mxu0
          %v4931 = vadd.f32 %v4902, %v4930
          %4932 = vmatmul.bf16.gmra.mxu0 %v1213
          %v4933 = vpop.f32.mrf.mxu0
          %v4934 = vadd.f32 %v4905, %v4933
          %v4935 = vpop.f32.mrf.mxu0
          %v4936 = vadd.f32 %v4907, %v4935
          %4937 = vdwg.mxu0
          %4938 = vmatpush.bf16.msra.mxu0 %v3291
          %4939 = vmatpush.bf16.msra.mxu0 %v3283
          %4940 = vmatpush.bf16.msra.mxu0 %v3275
          %4941 = vmatpush.bf16.msra.mxu0 %v3267
          %4942 = vmatpush.bf16.msra.mxu0 %v3259
          %4943 = vmatpush.bf16.msra.mxu0 %v3251
          %4944 = vmatpush.bf16.msra.mxu0 %v3243
          %4945 = vmatpush.bf16.msra.mxu0 %v3235
          %4946 = vmatmul.bf16.gmra.mxu0 %v1190
          %v4947 = vpop.f32.mrf.mxu0
          %v4948 = vadd.f32 %v4919, %v4947
          %v4949 = vpop.f32.mrf.mxu0
          %v4950 = vadd.f32 %v4921, %v4949
          %4951 = vmatmul.bf16.gmra.mxu0 %v1198
          %v4952 = vpop.f32.mrf.mxu0
          %v4953 = vadd.f32 %v4924, %v4952
          %v4954 = vpop.f32.mrf.mxu0
          %v4955 = vadd.f32 %v4926, %v4954
          %4956 = vmatmul.bf16.gmra.mxu0 %v1206
          %v4957 = vpop.f32.mrf.mxu0
          %v4958 = vadd.f32 %v4929, %v4957
          %v4959 = vpop.f32.mrf.mxu0
          %v4960 = vadd.f32 %v4931, %v4959
          %4961 = vmatmul.bf16.gmra.mxu0 %v1214
          %v4962 = vpop.f32.mrf.mxu0
          %v4963 = vadd.f32 %v4934, %v4962
          %v4964 = vpop.f32.mrf.mxu0
          %v4965 = vadd.f32 %v4936, %v4964
          %4966 = vdwg.mxu0
          %4967 = vmatpush.bf16.msra.mxu0 %v2844
          %4968 = vmatpush.bf16.msra.mxu0 %v2836
          %4969 = vmatpush.bf16.msra.mxu0 %v2828
          %4970 = vmatpush.bf16.msra.mxu0 %v2820
          %4971 = vmatpush.bf16.msra.mxu0 %v2812
          %4972 = vmatpush.bf16.msra.mxu0 %v2804
          %4973 = vmatpush.bf16.msra.mxu0 %v2796
          %4974 = vmatpush.bf16.msra.mxu0 %v2788
          %4975 = vmatmul.bf16.gmra.mxu0 %v1183
          %v4976 = vpop.f32.mrf.mxu0
          %v4977 = vadd.f32 0.0, %v4976
          %v4978 = vpop.f32.mrf.mxu0
          %v4979 = vadd.f32 0.0, %v4978
          %4980 = vmatmul.bf16.gmra.mxu0 %v1191
          %v4981 = vpop.f32.mrf.mxu0
          %v4982 = vadd.f32 0.0, %v4981
          %v4983 = vpop.f32.mrf.mxu0
          %v4984 = vadd.f32 0.0, %v4983
          %4985 = vmatmul.bf16.gmra.mxu0 %v1199
          %v4986 = vpop.f32.mrf.mxu0
          %v4987 = vadd.f32 0.0, %v4986
          %v4988 = vpop.f32.mrf.mxu0
          %v4989 = vadd.f32 0.0, %v4988
          %4990 = vmatmul.bf16.gmra.mxu0 %v1207
          %v4991 = vpop.f32.mrf.mxu0
          %v4992 = vadd.f32 0.0, %v4991
          %v4993 = vpop.f32.mrf.mxu0
          %v4994 = vadd.f32 0.0, %v4993
          %4995 = vdwg.mxu0
          %4996 = vmatpush.bf16.msra.mxu0 %v2908
          %4997 = vmatpush.bf16.msra.mxu0 %v2900
          %4998 = vmatpush.bf16.msra.mxu0 %v2892
          %4999 = vmatpush.bf16.msra.mxu0 %v2884
          %5000 = vmatpush.bf16.msra.mxu0 %v2876
          %5001 = vmatpush.bf16.msra.mxu0 %v2868
          %5002 = vmatpush.bf16.msra.mxu0 %v2860
          %5003 = vmatpush.bf16.msra.mxu0 %v2852
          %5004 = vmatmul.bf16.gmra.mxu0 %v1184
          %v5005 = vpop.f32.mrf.mxu0
          %v5006 = vadd.f32 %v4977, %v5005
          %v5007 = vpop.f32.mrf.mxu0
          %v5008 = vadd.f32 %v4979, %v5007
          %5009 = vmatmul.bf16.gmra.mxu0 %v1192
          %v5010 = vpop.f32.mrf.mxu0
          %v5011 = vadd.f32 %v4982, %v5010
          %v5012 = vpop.f32.mrf.mxu0
          %v5013 = vadd.f32 %v4984, %v5012
          %5014 = vmatmul.bf16.gmra.mxu0 %v1200
          %v5015 = vpop.f32.mrf.mxu0
          %v5016 = vadd.f32 %v4987, %v5015
          %v5017 = vpop.f32.mrf.mxu0
          %v5018 = vadd.f32 %v4989, %v5017
          %5019 = vmatmul.bf16.gmra.mxu0 %v1208
          %v5020 = vpop.f32.mrf.mxu0
          %v5021 = vadd.f32 %v4992, %v5020
          %v5022 = vpop.f32.mrf.mxu0
          %v5023 = vadd.f32 %v4994, %v5022
          %5024 = vdwg.mxu0
          %5025 = vmatpush.bf16.msra.mxu0 %v2972
          %5026 = vmatpush.bf16.msra.mxu0 %v2964
          %5027 = vmatpush.bf16.msra.mxu0 %v2956
          %5028 = vmatpush.bf16.msra.mxu0 %v2948
          %5029 = vmatpush.bf16.msra.mxu0 %v2940
          %5030 = vmatpush.bf16.msra.mxu0 %v2932
          %5031 = vmatpush.bf16.msra.mxu0 %v2924
          %5032 = vmatpush.bf16.msra.mxu0 %v2916
          %5033 = vmatmul.bf16.gmra.mxu0 %v1185
          %v5034 = vpop.f32.mrf.mxu0
          %v5035 = vadd.f32 %v5006, %v5034
          %v5036 = vpop.f32.mrf.mxu0
          %v5037 = vadd.f32 %v5008, %v5036
          %5038 = vmatmul.bf16.gmra.mxu0 %v1193
          %v5039 = vpop.f32.mrf.mxu0
          %v5040 = vadd.f32 %v5011, %v5039
          %v5041 = vpop.f32.mrf.mxu0
          %v5042 = vadd.f32 %v5013, %v5041
          %5043 = vmatmul.bf16.gmra.mxu0 %v1201
          %v5044 = vpop.f32.mrf.mxu0
          %v5045 = vadd.f32 %v5016, %v5044
          %v5046 = vpop.f32.mrf.mxu0
          %v5047 = vadd.f32 %v5018, %v5046
          %5048 = vmatmul.bf16.gmra.mxu0 %v1209
          %v5049 = vpop.f32.mrf.mxu0
          %v5050 = vadd.f32 %v5021, %v5049
          %v5051 = vpop.f32.mrf.mxu0
          %v5052 = vadd.f32 %v5023, %v5051
          %5053 = vdwg.mxu0
          %5054 = vmatpush.bf16.msra.mxu0 %v3036
          %5055 = vmatpush.bf16.msra.mxu0 %v3028
          %5056 = vmatpush.bf16.msra.mxu0 %v3020
          %5057 = vmatpush.bf16.msra.mxu0 %v3012
          %5058 = vmatpush.bf16.msra.mxu0 %v3004
          %5059 = vmatpush.bf16.msra.mxu0 %v2996
          %5060 = vmatpush.bf16.msra.mxu0 %v2988
          %5061 = vmatpush.bf16.msra.mxu0 %v2980
          %5062 = vmatmul.bf16.gmra.mxu0 %v1186
          %v5063 = vpop.f32.mrf.mxu0
          %v5064 = vadd.f32 %v5035, %v5063
          %v5065 = vpop.f32.mrf.mxu0
          %v5066 = vadd.f32 %v5037, %v5065
          %5067 = vmatmul.bf16.gmra.mxu0 %v1194
          %v5068 = vpop.f32.mrf.mxu0
          %v5069 = vadd.f32 %v5040, %v5068
          %v5070 = vpop.f32.mrf.mxu0
          %v5071 = vadd.f32 %v5042, %v5070
          %5072 = vmatmul.bf16.gmra.mxu0 %v1202
          %v5073 = vpop.f32.mrf.mxu0
          %v5074 = vadd.f32 %v5045, %v5073
          %v5075 = vpop.f32.mrf.mxu0
          %v5076 = vadd.f32 %v5047, %v5075
          %5077 = vmatmul.bf16.gmra.mxu0 %v1210
          %v5078 = vpop.f32.mrf.mxu0
          %v5079 = vadd.f32 %v5050, %v5078
          %v5080 = vpop.f32.mrf.mxu0
          %v5081 = vadd.f32 %v5052, %v5080
          %5082 = vdwg.mxu0
          %5083 = vmatpush.bf16.msra.mxu0 %v3100
          %5084 = vmatpush.bf16.msra.mxu0 %v3092
          %5085 = vmatpush.bf16.msra.mxu0 %v3084
          %5086 = vmatpush.bf16.msra.mxu0 %v3076
          %5087 = vmatpush.bf16.msra.mxu0 %v3068
          %5088 = vmatpush.bf16.msra.mxu0 %v3060
          %5089 = vmatpush.bf16.msra.mxu0 %v3052
          %5090 = vmatpush.bf16.msra.mxu0 %v3044
          %5091 = vmatmul.bf16.gmra.mxu0 %v1187
          %v5092 = vpop.f32.mrf.mxu0
          %v5093 = vadd.f32 %v5064, %v5092
          %v5094 = vpop.f32.mrf.mxu0
          %v5095 = vadd.f32 %v5066, %v5094
          %5096 = vmatmul.bf16.gmra.mxu0 %v1195
          %v5097 = vpop.f32.mrf.mxu0
          %v5098 = vadd.f32 %v5069, %v5097
          %v5099 = vpop.f32.mrf.mxu0
          %v5100 = vadd.f32 %v5071, %v5099
          %5101 = vmatmul.bf16.gmra.mxu0 %v1203
          %v5102 = vpop.f32.mrf.mxu0
          %v5103 = vadd.f32 %v5074, %v5102
          %v5104 = vpop.f32.mrf.mxu0
          %v5105 = vadd.f32 %v5076, %v5104
          %5106 = vmatmul.bf16.gmra.mxu0 %v1211
          %v5107 = vpop.f32.mrf.mxu0
          %v5108 = vadd.f32 %v5079, %v5107
          %v5109 = vpop.f32.mrf.mxu0
          %v5110 = vadd.f32 %v5081, %v5109
          %5111 = vdwg.mxu0
          %5112 = vmatpush.bf16.msra.mxu0 %v3164
          %5113 = vmatpush.bf16.msra.mxu0 %v3156
          %5114 = vmatpush.bf16.msra.mxu0 %v3148
          %5115 = vmatpush.bf16.msra.mxu0 %v3140
          %5116 = vmatpush.bf16.msra.mxu0 %v3132
          %5117 = vmatpush.bf16.msra.mxu0 %v3124
          %5118 = vmatpush.bf16.msra.mxu0 %v3116
          %5119 = vmatpush.bf16.msra.mxu0 %v3108
          %5120 = vmatmul.bf16.gmra.mxu0 %v1188
          %v5121 = vpop.f32.mrf.mxu0
          %v5122 = vadd.f32 %v5093, %v5121
          %v5123 = vpop.f32.mrf.mxu0
          %v5124 = vadd.f32 %v5095, %v5123
          %5125 = vmatmul.bf16.gmra.mxu0 %v1196
          %v5126 = vpop.f32.mrf.mxu0
          %v5127 = vadd.f32 %v5098, %v5126
          %v5128 = vpop.f32.mrf.mxu0
          %v5129 = vadd.f32 %v5100, %v5128
          %5130 = vmatmul.bf16.gmra.mxu0 %v1204
          %v5131 = vpop.f32.mrf.mxu0
          %v5132 = vadd.f32 %v5103, %v5131
          %v5133 = vpop.f32.mrf.mxu0
          %v5134 = vadd.f32 %v5105, %v5133
          %5135 = vmatmul.bf16.gmra.mxu0 %v1212
          %v5136 = vpop.f32.mrf.mxu0
          %v5137 = vadd.f32 %v5108, %v5136
          %v5138 = vpop.f32.mrf.mxu0
          %v5139 = vadd.f32 %v5110, %v5138
          %5140 = vdwg.mxu0
          %5141 = vmatpush.bf16.msra.mxu0 %v3228
          %5142 = vmatpush.bf16.msra.mxu0 %v3220
          %5143 = vmatpush.bf16.msra.mxu0 %v3212
          %5144 = vmatpush.bf16.msra.mxu0 %v3204
          %5145 = vmatpush.bf16.msra.mxu0 %v3196
          %5146 = vmatpush.bf16.msra.mxu0 %v3188
          %5147 = vmatpush.bf16.msra.mxu0 %v3180
          %5148 = vmatpush.bf16.msra.mxu0 %v3172
          %5149 = vmatmul.bf16.gmra.mxu0 %v1189
          %v5150 = vpop.f32.mrf.mxu0
          %v5151 = vadd.f32 %v5122, %v5150
          %v5152 = vpop.f32.mrf.mxu0
          %v5153 = vadd.f32 %v5124, %v5152
          %5154 = vmatmul.bf16.gmra.mxu0 %v1197
          %v5155 = vpop.f32.mrf.mxu0
          %v5156 = vadd.f32 %v5127, %v5155
          %v5157 = vpop.f32.mrf.mxu0
          %v5158 = vadd.f32 %v5129, %v5157
          %5159 = vmatmul.bf16.gmra.mxu0 %v1205
          %v5160 = vpop.f32.mrf.mxu0
          %v5161 = vadd.f32 %v5132, %v5160
          %v5162 = vpop.f32.mrf.mxu0
          %v5163 = vadd.f32 %v5134, %v5162
          %5164 = vmatmul.bf16.gmra.mxu0 %v1213
          %v5165 = vpop.f32.mrf.mxu0
          %v5166 = vadd.f32 %v5137, %v5165
          %v5167 = vpop.f32.mrf.mxu0
          %v5168 = vadd.f32 %v5139, %v5167
          %5169 = vdwg.mxu0
          %5170 = vmatpush.bf16.msra.mxu0 %v3292
          %5171 = vmatpush.bf16.msra.mxu0 %v3284
          %5172 = vmatpush.bf16.msra.mxu0 %v3276
          %5173 = vmatpush.bf16.msra.mxu0 %v3268
          %5174 = vmatpush.bf16.msra.mxu0 %v3260
          %5175 = vmatpush.bf16.msra.mxu0 %v3252
          %5176 = vmatpush.bf16.msra.mxu0 %v3244
          %5177 = vmatpush.bf16.msra.mxu0 %v3236
          %5178 = vmatmul.bf16.gmra.mxu0 %v1190
          %v5179 = vpop.f32.mrf.mxu0
          %v5180 = vadd.f32 %v5151, %v5179
          %v5181 = vpop.f32.mrf.mxu0
          %v5182 = vadd.f32 %v5153, %v5181
          %5183 = vmatmul.bf16.gmra.mxu0 %v1198
          %v5184 = vpop.f32.mrf.mxu0
          %v5185 = vadd.f32 %v5156, %v5184
          %v5186 = vpop.f32.mrf.mxu0
          %v5187 = vadd.f32 %v5158, %v5186
          %5188 = vmatmul.bf16.gmra.mxu0 %v1206
          %v5189 = vpop.f32.mrf.mxu0
          %v5190 = vadd.f32 %v5161, %v5189
          %v5191 = vpop.f32.mrf.mxu0
          %v5192 = vadd.f32 %v5163, %v5191
          %5193 = vmatmul.bf16.gmra.mxu0 %v1214
          %v5194 = vpop.f32.mrf.mxu0
          %v5195 = vadd.f32 %v5166, %v5194
          %v5196 = vpop.f32.mrf.mxu0
          %v5197 = vadd.f32 %v5168, %v5196
          %5198 = vdwg.mxu0
          %5199 = vmatpush.bf16.msra.mxu0 %v2845
          %5200 = vmatpush.bf16.msra.mxu0 %v2837
          %5201 = vmatpush.bf16.msra.mxu0 %v2829
          %5202 = vmatpush.bf16.msra.mxu0 %v2821
          %5203 = vmatpush.bf16.msra.mxu0 %v2813
          %5204 = vmatpush.bf16.msra.mxu0 %v2805
          %5205 = vmatpush.bf16.msra.mxu0 %v2797
          %5206 = vmatpush.bf16.msra.mxu0 %v2789
          %5207 = vmatmul.bf16.gmra.mxu0 %v1183
          %v5208 = vpop.f32.mrf.mxu0
          %v5209 = vadd.f32 0.0, %v5208
          %v5210 = vpop.f32.mrf.mxu0
          %v5211 = vadd.f32 0.0, %v5210
          %5212 = vmatmul.bf16.gmra.mxu0 %v1191
          %v5213 = vpop.f32.mrf.mxu0
          %v5214 = vadd.f32 0.0, %v5213
          %v5215 = vpop.f32.mrf.mxu0
          %v5216 = vadd.f32 0.0, %v5215
          %5217 = vmatmul.bf16.gmra.mxu0 %v1199
          %v5218 = vpop.f32.mrf.mxu0
          %v5219 = vadd.f32 0.0, %v5218
          %v5220 = vpop.f32.mrf.mxu0
          %v5221 = vadd.f32 0.0, %v5220
          %5222 = vmatmul.bf16.gmra.mxu0 %v1207
          %v5223 = vpop.f32.mrf.mxu0
          %v5224 = vadd.f32 0.0, %v5223
          %v5225 = vpop.f32.mrf.mxu0
          %v5226 = vadd.f32 0.0, %v5225
          %5227 = vdwg.mxu0
          %5228 = vmatpush.bf16.msra.mxu0 %v2909
          %5229 = vmatpush.bf16.msra.mxu0 %v2901
          %5230 = vmatpush.bf16.msra.mxu0 %v2893
          %5231 = vmatpush.bf16.msra.mxu0 %v2885
          %5232 = vmatpush.bf16.msra.mxu0 %v2877
          %5233 = vmatpush.bf16.msra.mxu0 %v2869
          %5234 = vmatpush.bf16.msra.mxu0 %v2861
          %5235 = vmatpush.bf16.msra.mxu0 %v2853
          %5236 = vmatmul.bf16.gmra.mxu0 %v1184
          %v5237 = vpop.f32.mrf.mxu0
          %v5238 = vadd.f32 %v5209, %v5237
          %v5239 = vpop.f32.mrf.mxu0
          %v5240 = vadd.f32 %v5211, %v5239
          %5241 = vmatmul.bf16.gmra.mxu0 %v1192
          %v5242 = vpop.f32.mrf.mxu0
          %v5243 = vadd.f32 %v5214, %v5242
          %v5244 = vpop.f32.mrf.mxu0
          %v5245 = vadd.f32 %v5216, %v5244
          %5246 = vmatmul.bf16.gmra.mxu0 %v1200
          %v5247 = vpop.f32.mrf.mxu0
          %v5248 = vadd.f32 %v5219, %v5247
          %v5249 = vpop.f32.mrf.mxu0
          %v5250 = vadd.f32 %v5221, %v5249
          %5251 = vmatmul.bf16.gmra.mxu0 %v1208
          %v5252 = vpop.f32.mrf.mxu0
          %v5253 = vadd.f32 %v5224, %v5252
          %v5254 = vpop.f32.mrf.mxu0
          %v5255 = vadd.f32 %v5226, %v5254
          %5256 = vdwg.mxu0
          %5257 = vmatpush.bf16.msra.mxu0 %v2973
          %5258 = vmatpush.bf16.msra.mxu0 %v2965
          %5259 = vmatpush.bf16.msra.mxu0 %v2957
          %5260 = vmatpush.bf16.msra.mxu0 %v2949
          %5261 = vmatpush.bf16.msra.mxu0 %v2941
          %5262 = vmatpush.bf16.msra.mxu0 %v2933
          %5263 = vmatpush.bf16.msra.mxu0 %v2925
          %5264 = vmatpush.bf16.msra.mxu0 %v2917
          %5265 = vmatmul.bf16.gmra.mxu0 %v1185
          %v5266 = vpop.f32.mrf.mxu0
          %v5267 = vadd.f32 %v5238, %v5266
          %v5268 = vpop.f32.mrf.mxu0
          %v5269 = vadd.f32 %v5240, %v5268
          %5270 = vmatmul.bf16.gmra.mxu0 %v1193
          %v5271 = vpop.f32.mrf.mxu0
          %v5272 = vadd.f32 %v5243, %v5271
          %v5273 = vpop.f32.mrf.mxu0
          %v5274 = vadd.f32 %v5245, %v5273
          %5275 = vmatmul.bf16.gmra.mxu0 %v1201
          %v5276 = vpop.f32.mrf.mxu0
          %v5277 = vadd.f32 %v5248, %v5276
          %v5278 = vpop.f32.mrf.mxu0
          %v5279 = vadd.f32 %v5250, %v5278
          %5280 = vmatmul.bf16.gmra.mxu0 %v1209
          %v5281 = vpop.f32.mrf.mxu0
          %v5282 = vadd.f32 %v5253, %v5281
          %v5283 = vpop.f32.mrf.mxu0
          %v5284 = vadd.f32 %v5255, %v5283
          %5285 = vdwg.mxu0
          %5286 = vmatpush.bf16.msra.mxu0 %v3037
          %5287 = vmatpush.bf16.msra.mxu0 %v3029
          %5288 = vmatpush.bf16.msra.mxu0 %v3021
          %5289 = vmatpush.bf16.msra.mxu0 %v3013
          %5290 = vmatpush.bf16.msra.mxu0 %v3005
          %5291 = vmatpush.bf16.msra.mxu0 %v2997
          %5292 = vmatpush.bf16.msra.mxu0 %v2989
          %5293 = vmatpush.bf16.msra.mxu0 %v2981
          %5294 = vmatmul.bf16.gmra.mxu0 %v1186
          %v5295 = vpop.f32.mrf.mxu0
          %v5296 = vadd.f32 %v5267, %v5295
          %v5297 = vpop.f32.mrf.mxu0
          %v5298 = vadd.f32 %v5269, %v5297
          %5299 = vmatmul.bf16.gmra.mxu0 %v1194
          %v5300 = vpop.f32.mrf.mxu0
          %v5301 = vadd.f32 %v5272, %v5300
          %v5302 = vpop.f32.mrf.mxu0
          %v5303 = vadd.f32 %v5274, %v5302
          %5304 = vmatmul.bf16.gmra.mxu0 %v1202
          %v5305 = vpop.f32.mrf.mxu0
          %v5306 = vadd.f32 %v5277, %v5305
          %v5307 = vpop.f32.mrf.mxu0
          %v5308 = vadd.f32 %v5279, %v5307
          %5309 = vmatmul.bf16.gmra.mxu0 %v1210
          %v5310 = vpop.f32.mrf.mxu0
          %v5311 = vadd.f32 %v5282, %v5310
          %v5312 = vpop.f32.mrf.mxu0
          %v5313 = vadd.f32 %v5284, %v5312
          %5314 = vdwg.mxu0
          %5315 = vmatpush.bf16.msra.mxu0 %v3101
          %5316 = vmatpush.bf16.msra.mxu0 %v3093
          %5317 = vmatpush.bf16.msra.mxu0 %v3085
          %5318 = vmatpush.bf16.msra.mxu0 %v3077
          %5319 = vmatpush.bf16.msra.mxu0 %v3069
          %5320 = vmatpush.bf16.msra.mxu0 %v3061
          %5321 = vmatpush.bf16.msra.mxu0 %v3053
          %5322 = vmatpush.bf16.msra.mxu0 %v3045
          %5323 = vmatmul.bf16.gmra.mxu0 %v1187
          %v5324 = vpop.f32.mrf.mxu0
          %v5325 = vadd.f32 %v5296, %v5324
          %v5326 = vpop.f32.mrf.mxu0
          %v5327 = vadd.f32 %v5298, %v5326
          %5328 = vmatmul.bf16.gmra.mxu0 %v1195
          %v5329 = vpop.f32.mrf.mxu0
          %v5330 = vadd.f32 %v5301, %v5329
          %v5331 = vpop.f32.mrf.mxu0
          %v5332 = vadd.f32 %v5303, %v5331
          %5333 = vmatmul.bf16.gmra.mxu0 %v1203
          %v5334 = vpop.f32.mrf.mxu0
          %v5335 = vadd.f32 %v5306, %v5334
          %v5336 = vpop.f32.mrf.mxu0
          %v5337 = vadd.f32 %v5308, %v5336
          %5338 = vmatmul.bf16.gmra.mxu0 %v1211
          %v5339 = vpop.f32.mrf.mxu0
          %v5340 = vadd.f32 %v5311, %v5339
          %v5341 = vpop.f32.mrf.mxu0
          %v5342 = vadd.f32 %v5313, %v5341
          %5343 = vdwg.mxu0
          %5344 = vmatpush.bf16.msra.mxu0 %v3165
          %5345 = vmatpush.bf16.msra.mxu0 %v3157
          %5346 = vmatpush.bf16.msra.mxu0 %v3149
          %5347 = vmatpush.bf16.msra.mxu0 %v3141
          %5348 = vmatpush.bf16.msra.mxu0 %v3133
          %5349 = vmatpush.bf16.msra.mxu0 %v3125
          %5350 = vmatpush.bf16.msra.mxu0 %v3117
          %5351 = vmatpush.bf16.msra.mxu0 %v3109
          %5352 = vmatmul.bf16.gmra.mxu0 %v1188
          %v5353 = vpop.f32.mrf.mxu0
          %v5354 = vadd.f32 %v5325, %v5353
          %v5355 = vpop.f32.mrf.mxu0
          %v5356 = vadd.f32 %v5327, %v5355
          %5357 = vmatmul.bf16.gmra.mxu0 %v1196
          %v5358 = vpop.f32.mrf.mxu0
          %v5359 = vadd.f32 %v5330, %v5358
          %v5360 = vpop.f32.mrf.mxu0
          %v5361 = vadd.f32 %v5332, %v5360
          %5362 = vmatmul.bf16.gmra.mxu0 %v1204
          %v5363 = vpop.f32.mrf.mxu0
          %v5364 = vadd.f32 %v5335, %v5363
          %v5365 = vpop.f32.mrf.mxu0
          %v5366 = vadd.f32 %v5337, %v5365
          %5367 = vmatmul.bf16.gmra.mxu0 %v1212
          %v5368 = vpop.f32.mrf.mxu0
          %v5369 = vadd.f32 %v5340, %v5368
          %v5370 = vpop.f32.mrf.mxu0
          %v5371 = vadd.f32 %v5342, %v5370
          %5372 = vdwg.mxu0
          %5373 = vmatpush.bf16.msra.mxu0 %v3229
          %5374 = vmatpush.bf16.msra.mxu0 %v3221
          %5375 = vmatpush.bf16.msra.mxu0 %v3213
          %5376 = vmatpush.bf16.msra.mxu0 %v3205
          %5377 = vmatpush.bf16.msra.mxu0 %v3197
          %5378 = vmatpush.bf16.msra.mxu0 %v3189
          %5379 = vmatpush.bf16.msra.mxu0 %v3181
          %5380 = vmatpush.bf16.msra.mxu0 %v3173
          %5381 = vmatmul.bf16.gmra.mxu0 %v1189
          %v5382 = vpop.f32.mrf.mxu0
          %v5383 = vadd.f32 %v5354, %v5382
          %v5384 = vpop.f32.mrf.mxu0
          %v5385 = vadd.f32 %v5356, %v5384
          %5386 = vmatmul.bf16.gmra.mxu0 %v1197
          %v5387 = vpop.f32.mrf.mxu0
          %v5388 = vadd.f32 %v5359, %v5387
          %v5389 = vpop.f32.mrf.mxu0
          %v5390 = vadd.f32 %v5361, %v5389
          %5391 = vmatmul.bf16.gmra.mxu0 %v1205
          %v5392 = vpop.f32.mrf.mxu0
          %v5393 = vadd.f32 %v5364, %v5392
          %v5394 = vpop.f32.mrf.mxu0
          %v5395 = vadd.f32 %v5366, %v5394
          %5396 = vmatmul.bf16.gmra.mxu0 %v1213
          %v5397 = vpop.f32.mrf.mxu0
          %v5398 = vadd.f32 %v5369, %v5397
          %v5399 = vpop.f32.mrf.mxu0
          %v5400 = vadd.f32 %v5371, %v5399
          %5401 = vdwg.mxu0
          %5402 = vmatpush.bf16.msra.mxu0 %v3293
          %5403 = vmatpush.bf16.msra.mxu0 %v3285
          %5404 = vmatpush.bf16.msra.mxu0 %v3277
          %5405 = vmatpush.bf16.msra.mxu0 %v3269
          %5406 = vmatpush.bf16.msra.mxu0 %v3261
          %5407 = vmatpush.bf16.msra.mxu0 %v3253
          %5408 = vmatpush.bf16.msra.mxu0 %v3245
          %5409 = vmatpush.bf16.msra.mxu0 %v3237
          %5410 = vmatmul.bf16.gmra.mxu0 %v1190
          %v5411 = vpop.f32.mrf.mxu0
          %v5412 = vadd.f32 %v5383, %v5411
          %v5413 = vpop.f32.mrf.mxu0
          %v5414 = vadd.f32 %v5385, %v5413
          %5415 = vmatmul.bf16.gmra.mxu0 %v1198
          %v5416 = vpop.f32.mrf.mxu0
          %v5417 = vadd.f32 %v5388, %v5416
          %v5418 = vpop.f32.mrf.mxu0
          %v5419 = vadd.f32 %v5390, %v5418
          %5420 = vmatmul.bf16.gmra.mxu0 %v1206
          %v5421 = vpop.f32.mrf.mxu0
          %v5422 = vadd.f32 %v5393, %v5421
          %v5423 = vpop.f32.mrf.mxu0
          %v5424 = vadd.f32 %v5395, %v5423
          %5425 = vmatmul.bf16.gmra.mxu0 %v1214
          %v5426 = vpop.f32.mrf.mxu0
          %v5427 = vadd.f32 %v5398, %v5426
          %v5428 = vpop.f32.mrf.mxu0
          %v5429 = vadd.f32 %v5400, %v5428
          %5430 = vdwg.mxu0
          %5431 = vmatpush.bf16.msra.mxu0 %v2846
          %5432 = vmatpush.bf16.msra.mxu0 %v2838
          %5433 = vmatpush.bf16.msra.mxu0 %v2830
          %5434 = vmatpush.bf16.msra.mxu0 %v2822
          %5435 = vmatpush.bf16.msra.mxu0 %v2814
          %5436 = vmatpush.bf16.msra.mxu0 %v2806
          %5437 = vmatpush.bf16.msra.mxu0 %v2798
          %5438 = vmatpush.bf16.msra.mxu0 %v2790
          %5439 = vmatmul.bf16.gmra.mxu0 %v1183
          %v5440 = vpop.f32.mrf.mxu0
          %v5441 = vadd.f32 0.0, %v5440
          %v5442 = vpop.f32.mrf.mxu0
          %v5443 = vadd.f32 0.0, %v5442
          %5444 = vmatmul.bf16.gmra.mxu0 %v1191
          %v5445 = vpop.f32.mrf.mxu0
          %v5446 = vadd.f32 0.0, %v5445
          %v5447 = vpop.f32.mrf.mxu0
          %v5448 = vadd.f32 0.0, %v5447
          %5449 = vmatmul.bf16.gmra.mxu0 %v1199
          %v5450 = vpop.f32.mrf.mxu0
          %v5451 = vadd.f32 0.0, %v5450
          %v5452 = vpop.f32.mrf.mxu0
          %v5453 = vadd.f32 0.0, %v5452
          %5454 = vmatmul.bf16.gmra.mxu0 %v1207
          %v5455 = vpop.f32.mrf.mxu0
          %v5456 = vadd.f32 0.0, %v5455
          %v5457 = vpop.f32.mrf.mxu0
          %v5458 = vadd.f32 0.0, %v5457
          %5459 = vdwg.mxu0
          %5460 = vmatpush.bf16.msra.mxu0 %v2910
          %5461 = vmatpush.bf16.msra.mxu0 %v2902
          %5462 = vmatpush.bf16.msra.mxu0 %v2894
          %5463 = vmatpush.bf16.msra.mxu0 %v2886
          %5464 = vmatpush.bf16.msra.mxu0 %v2878
          %5465 = vmatpush.bf16.msra.mxu0 %v2870
          %5466 = vmatpush.bf16.msra.mxu0 %v2862
          %5467 = vmatpush.bf16.msra.mxu0 %v2854
          %5468 = vmatmul.bf16.gmra.mxu0 %v1184
          %v5469 = vpop.f32.mrf.mxu0
          %v5470 = vadd.f32 %v5441, %v5469
          %v5471 = vpop.f32.mrf.mxu0
          %v5472 = vadd.f32 %v5443, %v5471
          %5473 = vmatmul.bf16.gmra.mxu0 %v1192
          %v5474 = vpop.f32.mrf.mxu0
          %v5475 = vadd.f32 %v5446, %v5474
          %v5476 = vpop.f32.mrf.mxu0
          %v5477 = vadd.f32 %v5448, %v5476
          %5478 = vmatmul.bf16.gmra.mxu0 %v1200
          %v5479 = vpop.f32.mrf.mxu0
          %v5480 = vadd.f32 %v5451, %v5479
          %v5481 = vpop.f32.mrf.mxu0
          %v5482 = vadd.f32 %v5453, %v5481
          %5483 = vmatmul.bf16.gmra.mxu0 %v1208
          %v5484 = vpop.f32.mrf.mxu0
          %v5485 = vadd.f32 %v5456, %v5484
          %v5486 = vpop.f32.mrf.mxu0
          %v5487 = vadd.f32 %v5458, %v5486
          %5488 = vdwg.mxu0
          %5489 = vmatpush.bf16.msra.mxu0 %v2974
          %5490 = vmatpush.bf16.msra.mxu0 %v2966
          %5491 = vmatpush.bf16.msra.mxu0 %v2958
          %5492 = vmatpush.bf16.msra.mxu0 %v2950
          %5493 = vmatpush.bf16.msra.mxu0 %v2942
          %5494 = vmatpush.bf16.msra.mxu0 %v2934
          %5495 = vmatpush.bf16.msra.mxu0 %v2926
          %5496 = vmatpush.bf16.msra.mxu0 %v2918
          %5497 = vmatmul.bf16.gmra.mxu0 %v1185
          %v5498 = vpop.f32.mrf.mxu0
          %v5499 = vadd.f32 %v5470, %v5498
          %v5500 = vpop.f32.mrf.mxu0
          %v5501 = vadd.f32 %v5472, %v5500
          %5502 = vmatmul.bf16.gmra.mxu0 %v1193
          %v5503 = vpop.f32.mrf.mxu0
          %v5504 = vadd.f32 %v5475, %v5503
          %v5505 = vpop.f32.mrf.mxu0
          %v5506 = vadd.f32 %v5477, %v5505
          %5507 = vmatmul.bf16.gmra.mxu0 %v1201
          %v5508 = vpop.f32.mrf.mxu0
          %v5509 = vadd.f32 %v5480, %v5508
          %v5510 = vpop.f32.mrf.mxu0
          %v5511 = vadd.f32 %v5482, %v5510
          %5512 = vmatmul.bf16.gmra.mxu0 %v1209
          %v5513 = vpop.f32.mrf.mxu0
          %v5514 = vadd.f32 %v5485, %v5513
          %v5515 = vpop.f32.mrf.mxu0
          %v5516 = vadd.f32 %v5487, %v5515
          %5517 = vdwg.mxu0
          %5518 = vmatpush.bf16.msra.mxu0 %v3038
          %5519 = vmatpush.bf16.msra.mxu0 %v3030
          %5520 = vmatpush.bf16.msra.mxu0 %v3022
          %5521 = vmatpush.bf16.msra.mxu0 %v3014
          %5522 = vmatpush.bf16.msra.mxu0 %v3006
          %5523 = vmatpush.bf16.msra.mxu0 %v2998
          %5524 = vmatpush.bf16.msra.mxu0 %v2990
          %5525 = vmatpush.bf16.msra.mxu0 %v2982
          %5526 = vmatmul.bf16.gmra.mxu0 %v1186
          %v5527 = vpop.f32.mrf.mxu0
          %v5528 = vadd.f32 %v5499, %v5527
          %v5529 = vpop.f32.mrf.mxu0
          %v5530 = vadd.f32 %v5501, %v5529
          %5531 = vmatmul.bf16.gmra.mxu0 %v1194
          %v5532 = vpop.f32.mrf.mxu0
          %v5533 = vadd.f32 %v5504, %v5532
          %v5534 = vpop.f32.mrf.mxu0
          %v5535 = vadd.f32 %v5506, %v5534
          %5536 = vmatmul.bf16.gmra.mxu0 %v1202
          %v5537 = vpop.f32.mrf.mxu0
          %v5538 = vadd.f32 %v5509, %v5537
          %v5539 = vpop.f32.mrf.mxu0
          %v5540 = vadd.f32 %v5511, %v5539
          %5541 = vmatmul.bf16.gmra.mxu0 %v1210
          %v5542 = vpop.f32.mrf.mxu0
          %v5543 = vadd.f32 %v5514, %v5542
          %v5544 = vpop.f32.mrf.mxu0
          %v5545 = vadd.f32 %v5516, %v5544
          %5546 = vdwg.mxu0
          %5547 = vmatpush.bf16.msra.mxu0 %v3102
          %5548 = vmatpush.bf16.msra.mxu0 %v3094
          %5549 = vmatpush.bf16.msra.mxu0 %v3086
          %5550 = vmatpush.bf16.msra.mxu0 %v3078
          %5551 = vmatpush.bf16.msra.mxu0 %v3070
          %5552 = vmatpush.bf16.msra.mxu0 %v3062
          %5553 = vmatpush.bf16.msra.mxu0 %v3054
          %5554 = vmatpush.bf16.msra.mxu0 %v3046
          %5555 = vmatmul.bf16.gmra.mxu0 %v1187
          %v5556 = vpop.f32.mrf.mxu0
          %v5557 = vadd.f32 %v5528, %v5556
          %v5558 = vpop.f32.mrf.mxu0
          %v5559 = vadd.f32 %v5530, %v5558
          %5560 = vmatmul.bf16.gmra.mxu0 %v1195
          %v5561 = vpop.f32.mrf.mxu0
          %v5562 = vadd.f32 %v5533, %v5561
          %v5563 = vpop.f32.mrf.mxu0
          %v5564 = vadd.f32 %v5535, %v5563
          %5565 = vmatmul.bf16.gmra.mxu0 %v1203
          %v5566 = vpop.f32.mrf.mxu0
          %v5567 = vadd.f32 %v5538, %v5566
          %v5568 = vpop.f32.mrf.mxu0
          %v5569 = vadd.f32 %v5540, %v5568
          %5570 = vmatmul.bf16.gmra.mxu0 %v1211
          %v5571 = vpop.f32.mrf.mxu0
          %v5572 = vadd.f32 %v5543, %v5571
          %v5573 = vpop.f32.mrf.mxu0
          %v5574 = vadd.f32 %v5545, %v5573
          %5575 = vdwg.mxu0
          %5576 = vmatpush.bf16.msra.mxu0 %v3166
          %5577 = vmatpush.bf16.msra.mxu0 %v3158
          %5578 = vmatpush.bf16.msra.mxu0 %v3150
          %5579 = vmatpush.bf16.msra.mxu0 %v3142
          %5580 = vmatpush.bf16.msra.mxu0 %v3134
          %5581 = vmatpush.bf16.msra.mxu0 %v3126
          %5582 = vmatpush.bf16.msra.mxu0 %v3118
          %5583 = vmatpush.bf16.msra.mxu0 %v3110
          %5584 = vmatmul.bf16.gmra.mxu0 %v1188
          %v5585 = vpop.f32.mrf.mxu0
          %v5586 = vadd.f32 %v5557, %v5585
          %v5587 = vpop.f32.mrf.mxu0
          %v5588 = vadd.f32 %v5559, %v5587
          %5589 = vmatmul.bf16.gmra.mxu0 %v1196
          %v5590 = vpop.f32.mrf.mxu0
          %v5591 = vadd.f32 %v5562, %v5590
          %v5592 = vpop.f32.mrf.mxu0
          %v5593 = vadd.f32 %v5564, %v5592
          %5594 = vmatmul.bf16.gmra.mxu0 %v1204
          %v5595 = vpop.f32.mrf.mxu0
          %v5596 = vadd.f32 %v5567, %v5595
          %v5597 = vpop.f32.mrf.mxu0
          %v5598 = vadd.f32 %v5569, %v5597
          %5599 = vmatmul.bf16.gmra.mxu0 %v1212
          %v5600 = vpop.f32.mrf.mxu0
          %v5601 = vadd.f32 %v5572, %v5600
          %v5602 = vpop.f32.mrf.mxu0
          %v5603 = vadd.f32 %v5574, %v5602
          %5604 = vdwg.mxu0
          %5605 = vmatpush.bf16.msra.mxu0 %v3230
          %5606 = vmatpush.bf16.msra.mxu0 %v3222
          %5607 = vmatpush.bf16.msra.mxu0 %v3214
          %5608 = vmatpush.bf16.msra.mxu0 %v3206
          %5609 = vmatpush.bf16.msra.mxu0 %v3198
          %5610 = vmatpush.bf16.msra.mxu0 %v3190
          %5611 = vmatpush.bf16.msra.mxu0 %v3182
          %5612 = vmatpush.bf16.msra.mxu0 %v3174
          %5613 = vmatmul.bf16.gmra.mxu0 %v1189
          %v5614 = vpop.f32.mrf.mxu0
          %v5615 = vadd.f32 %v5586, %v5614
          %v5616 = vpop.f32.mrf.mxu0
          %v5617 = vadd.f32 %v5588, %v5616
          %5618 = vmatmul.bf16.gmra.mxu0 %v1197
          %v5619 = vpop.f32.mrf.mxu0
          %v5620 = vadd.f32 %v5591, %v5619
          %v5621 = vpop.f32.mrf.mxu0
          %v5622 = vadd.f32 %v5593, %v5621
          %5623 = vmatmul.bf16.gmra.mxu0 %v1205
          %v5624 = vpop.f32.mrf.mxu0
          %v5625 = vadd.f32 %v5596, %v5624
          %v5626 = vpop.f32.mrf.mxu0
          %v5627 = vadd.f32 %v5598, %v5626
          %5628 = vmatmul.bf16.gmra.mxu0 %v1213
          %v5629 = vpop.f32.mrf.mxu0
          %v5630 = vadd.f32 %v5601, %v5629
          %v5631 = vpop.f32.mrf.mxu0
          %v5632 = vadd.f32 %v5603, %v5631
          %5633 = vdwg.mxu0
          %5634 = vmatpush.bf16.msra.mxu0 %v3294
          %5635 = vmatpush.bf16.msra.mxu0 %v3286
          %5636 = vmatpush.bf16.msra.mxu0 %v3278
          %5637 = vmatpush.bf16.msra.mxu0 %v3270
          %5638 = vmatpush.bf16.msra.mxu0 %v3262
          %5639 = vmatpush.bf16.msra.mxu0 %v3254
          %5640 = vmatpush.bf16.msra.mxu0 %v3246
          %5641 = vmatpush.bf16.msra.mxu0 %v3238
          %5642 = vmatmul.bf16.gmra.mxu0 %v1190
          %v5643 = vpop.f32.mrf.mxu0
          %v5644 = vadd.f32 %v5615, %v5643
          %v5645 = vpop.f32.mrf.mxu0
          %v5646 = vadd.f32 %v5617, %v5645
          %5647 = vmatmul.bf16.gmra.mxu0 %v1198
          %v5648 = vpop.f32.mrf.mxu0
          %v5649 = vadd.f32 %v5620, %v5648
          %v5650 = vpop.f32.mrf.mxu0
          %v5651 = vadd.f32 %v5622, %v5650
          %5652 = vmatmul.bf16.gmra.mxu0 %v1206
          %v5653 = vpop.f32.mrf.mxu0
          %v5654 = vadd.f32 %v5625, %v5653
          %v5655 = vpop.f32.mrf.mxu0
          %v5656 = vadd.f32 %v5627, %v5655
          %5657 = vmatmul.bf16.gmra.mxu0 %v1214
          %v5658 = vpop.f32.mrf.mxu0
          %v5659 = vadd.f32 %v5630, %v5658
          %v5660 = vpop.f32.mrf.mxu0
          %v5661 = vadd.f32 %v5632, %v5660
          %5662 = vdwg.mxu0
          %v5663 = vmax.f32 %v4020, 0.0
          %v5664 = vmax.f32 %v4252, 0.0
          %v5665 = vmax.f32 %v4484, 0.0
          %v5666 = vmax.f32 %v4716, 0.0
          %v5667 = vmax.f32 %v4948, 0.0
          %v5668 = vmax.f32 %v5180, 0.0
          %v5669 = vmax.f32 %v5412, 0.0
          %v5670 = vmax.f32 %v5644, 0.0
          %v5671 = vmax.f32 %v4022, 0.0
          %v5672 = vmax.f32 %v4254, 0.0
          %v5673 = vmax.f32 %v4486, 0.0
          %v5674 = vmax.f32 %v4718, 0.0
          %v5675 = vmax.f32 %v4950, 0.0
          %v5676 = vmax.f32 %v5182, 0.0
          %v5677 = vmax.f32 %v5414, 0.0
          %v5678 = vmax.f32 %v5646, 0.0
          %v5679 = vmax.f32 %v4025, 0.0
          %v5680 = vmax.f32 %v4257, 0.0
          %v5681 = vmax.f32 %v4489, 0.0
          %v5682 = vmax.f32 %v4721, 0.0
          %v5683 = vmax.f32 %v4953, 0.0
          %v5684 = vmax.f32 %v5185, 0.0
          %v5685 = vmax.f32 %v5417, 0.0
          %v5686 = vmax.f32 %v5649, 0.0
          %v5687 = vmax.f32 %v4027, 0.0
          %v5688 = vmax.f32 %v4259, 0.0
          %v5689 = vmax.f32 %v4491, 0.0
          %v5690 = vmax.f32 %v4723, 0.0
          %v5691 = vmax.f32 %v4955, 0.0
          %v5692 = vmax.f32 %v5187, 0.0
          %v5693 = vmax.f32 %v5419, 0.0
          %v5694 = vmax.f32 %v5651, 0.0
          %v5695 = vmax.f32 %v4030, 0.0
          %v5696 = vmax.f32 %v4262, 0.0
          %v5697 = vmax.f32 %v4494, 0.0
          %v5698 = vmax.f32 %v4726, 0.0
          %v5699 = vmax.f32 %v4958, 0.0
          %v5700 = vmax.f32 %v5190, 0.0
          %v5701 = vmax.f32 %v5422, 0.0
          %v5702 = vmax.f32 %v5654, 0.0
          %v5703 = vmax.f32 %v4032, 0.0
          %v5704 = vmax.f32 %v4264, 0.0
          %v5705 = vmax.f32 %v4496, 0.0
          %v5706 = vmax.f32 %v4728, 0.0
          %v5707 = vmax.f32 %v4960, 0.0
          %v5708 = vmax.f32 %v5192, 0.0
          %v5709 = vmax.f32 %v5424, 0.0
          %v5710 = vmax.f32 %v5656, 0.0
          %v5711 = vmax.f32 %v4035, 0.0
          %v5712 = vmax.f32 %v4267, 0.0
          %v5713 = vmax.f32 %v4499, 0.0
          %v5714 = vmax.f32 %v4731, 0.0
          %v5715 = vmax.f32 %v4963, 0.0
          %v5716 = vmax.f32 %v5195, 0.0
          %v5717 = vmax.f32 %v5427, 0.0
          %v5718 = vmax.f32 %v5659, 0.0
          %v5719 = vmax.f32 %v4037, 0.0
          %v5720 = vmax.f32 %v4269, 0.0
          %v5721 = vmax.f32 %v4501, 0.0
          %v5722 = vmax.f32 %v4733, 0.0
          %v5723 = vmax.f32 %v4965, 0.0
          %v5724 = vmax.f32 %v5197, 0.0
          %v5725 = vmax.f32 %v5429, 0.0
          %v5726 = vmax.f32 %v5661, 0.0
          %v5727 = vpack.c.bf16 %v5664, %v5663
          %v5728 = vpack.c.bf16 %v5666, %v5665
          %v5729 = vpack.c.bf16 %v5668, %v5667
          %v5730 = vpack.c.bf16 %v5670, %v5669
          %v5731 = vpack.c.bf16 %v5672, %v5671
          %v5732 = vpack.c.bf16 %v5674, %v5673
          %v5733 = vpack.c.bf16 %v5676, %v5675
          %v5734 = vpack.c.bf16 %v5678, %v5677
          %v5735 = vpack.c.bf16 %v5680, %v5679
          %v5736 = vpack.c.bf16 %v5682, %v5681
          %v5737 = vpack.c.bf16 %v5684, %v5683
          %v5738 = vpack.c.bf16 %v5686, %v5685
          %v5739 = vpack.c.bf16 %v5688, %v5687
          %v5740 = vpack.c.bf16 %v5690, %v5689
          %v5741 = vpack.c.bf16 %v5692, %v5691
          %v5742 = vpack.c.bf16 %v5694, %v5693
          %v5743 = vpack.c.bf16 %v5696, %v5695
          %v5744 = vpack.c.bf16 %v5698, %v5697
          %v5745 = vpack.c.bf16 %v5700, %v5699
          %v5746 = vpack.c.bf16 %v5702, %v5701
          %v5747 = vpack.c.bf16 %v5704, %v5703
          %v5748 = vpack.c.bf16 %v5706, %v5705
          %v5749 = vpack.c.bf16 %v5708, %v5707
          %v5750 = vpack.c.bf16 %v5710, %v5709
          %v5751 = vpack.c.bf16 %v5712, %v5711
          %v5752 = vpack.c.bf16 %v5714, %v5713
          %v5753 = vpack.c.bf16 %v5716, %v5715
          %v5754 = vpack.c.bf16 %v5718, %v5717
          %v5755 = vpack.c.bf16 %v5720, %v5719
          %v5756 = vpack.c.bf16 %v5722, %v5721
          %v5757 = vpack.c.bf16 %v5724, %v5723
          %v5758 = vpack.c.bf16 %v5726, %v5725
          %5759 = vst [vmem:[#allocation2] sm:$0xff] %v5727
          %5760 = vst [vmem:[#allocation2 + $0x8] sm:$0xff] %v5728
          %5761 = vst [vmem:[#allocation2 + $0x10] sm:$0xff] %v5729
          %5762 = vst [vmem:[#allocation2 + $0x18] sm:$0xff] %v5730
          %5763 = vst [vmem:[#allocation2 + $0x20] sm:$0xff] %v5731
          %5764 = vst [vmem:[#allocation2 + $0x28] sm:$0xff] %v5732
          %5765 = vst [vmem:[#allocation2 + $0x30] sm:$0xff] %v5733
          %5766 = vst [vmem:[#allocation2 + $0x38] sm:$0xff] %v5734
          %5767 = vst [vmem:[#allocation2 + $0x40] sm:$0xff] %v5735
          %5768 = vst [vmem:[#allocation2 + $0x48] sm:$0xff] %v5736
          %5769 = vst [vmem:[#allocation2 + $0x50] sm:$0xff] %v5737
          %5770 = vst [vmem:[#allocation2 + $0x58] sm:$0xff] %v5738
          %5771 = vst [vmem:[#allocation2 + $0x60] sm:$0xff] %v5739
          %5772 = vst [vmem:[#allocation2 + $0x68] sm:$0xff] %v5740
          %5773 = vst [vmem:[#allocation2 + $0x70] sm:$0xff] %v5741
          %5774 = vst [vmem:[#allocation2 + $0x78] sm:$0xff] %v5742
          %5775 = vst [vmem:[#allocation2 + $0x80] sm:$0xff] %v5743
          %5776 = vst [vmem:[#allocation2 + $0x88] sm:$0xff] %v5744
          %5777 = vst [vmem:[#allocation2 + $0x90] sm:$0xff] %v5745
          %5778 = vst [vmem:[#allocation2 + $0x98] sm:$0xff] %v5746
          %5779 = vst [vmem:[#allocation2 + $0xa0] sm:$0xff] %v5747
          %5780 = vst [vmem:[#allocation2 + $0xa8] sm:$0xff] %v5748
          %5781 = vst [vmem:[#allocation2 + $0xb0] sm:$0xff] %v5749
          %5782 = vst [vmem:[#allocation2 + $0xb8] sm:$0xff] %v5750
          %5783 = vst [vmem:[#allocation2 + $0xc0] sm:$0xff] %v5751
          %5784 = vst [vmem:[#allocation2 + $0xc8] sm:$0xff] %v5752
          %5785 = vst [vmem:[#allocation2 + $0xd0] sm:$0xff] %v5753
          %5786 = vst [vmem:[#allocation2 + $0xd8] sm:$0xff] %v5754
          %5787 = vst [vmem:[#allocation2 + $0xe0] sm:$0xff] %v5755
          %5788 = vst [vmem:[#allocation2 + $0xe8] sm:$0xff] %v5756
          %5789 = vst [vmem:[#allocation2 + $0xf0] sm:$0xff] %v5757
          %5790 = vst [vmem:[#allocation2 + $0xf8] sm:$0xff] %v5758
          %v5791 = vld [vmem:[#allocation9] sm:$0x1]
          %v5793 = vperm.slane %v5791, 0
          %5795 = vst [vmem:[#allocation3] sm:$0xff] %v5793
          %5796 = vst [vmem:[#allocation3 + $0x8] sm:$0xff] %v5793
          %5797 = vst [vmem:[#allocation3 + $0x10] sm:$0xff] %v5793
          %5798 = vst [vmem:[#allocation3 + $0x18] sm:$0xff] %v5793
          %5799 = vst [vmem:[#allocation3 + $0x20] sm:$0xff] %v5793
          %5800 = vst [vmem:[#allocation3 + $0x28] sm:$0xff] %v5793
          %5801 = vst [vmem:[#allocation3 + $0x30] sm:$0xff] %v5793
          %5802 = vst [vmem:[#allocation3 + $0x38] sm:$0xff] %v5793
        $region104: #{ssgcn_pallas.1} parent=63 // pred_fallthru
          _
        %v5803 = vld [vmem:[#allocation2] sm:$0xff]
        %v5804 = vld [vmem:[#allocation2 + $0x8] sm:$0xff]
        %v5805 = vld [vmem:[#allocation2 + $0x10] sm:$0xff]
        %v5806 = vld [vmem:[#allocation2 + $0x18] sm:$0xff]
        %v5807 = vld [vmem:[#allocation2 + $0x20] sm:$0xff]
        %v5808 = vld [vmem:[#allocation2 + $0x28] sm:$0xff]
        %v5809 = vld [vmem:[#allocation2 + $0x30] sm:$0xff]
        %v5810 = vld [vmem:[#allocation2 + $0x38] sm:$0xff]
        %v5811 = vld [vmem:[#allocation2 + $0x40] sm:$0xff]
        %v5812 = vld [vmem:[#allocation2 + $0x48] sm:$0xff]
        %v5813 = vld [vmem:[#allocation2 + $0x50] sm:$0xff]
        %v5814 = vld [vmem:[#allocation2 + $0x58] sm:$0xff]
        %v5815 = vld [vmem:[#allocation2 + $0x60] sm:$0xff]
        %v5816 = vld [vmem:[#allocation2 + $0x68] sm:$0xff]
        %v5817 = vld [vmem:[#allocation2 + $0x70] sm:$0xff]
        %v5818 = vld [vmem:[#allocation2 + $0x78] sm:$0xff]
        %v5819 = vld [vmem:[#allocation2 + $0x80] sm:$0xff]
        %v5820 = vld [vmem:[#allocation2 + $0x88] sm:$0xff]
        %v5821 = vld [vmem:[#allocation2 + $0x90] sm:$0xff]
        %v5822 = vld [vmem:[#allocation2 + $0x98] sm:$0xff]
        %v5823 = vld [vmem:[#allocation2 + $0xa0] sm:$0xff]
        %v5824 = vld [vmem:[#allocation2 + $0xa8] sm:$0xff]
        %v5825 = vld [vmem:[#allocation2 + $0xb0] sm:$0xff]
        %v5826 = vld [vmem:[#allocation2 + $0xb8] sm:$0xff]
        %v5827 = vld [vmem:[#allocation2 + $0xc0] sm:$0xff]
        %v5828 = vld [vmem:[#allocation2 + $0xc8] sm:$0xff]
        %v5829 = vld [vmem:[#allocation2 + $0xd0] sm:$0xff]
        %v5830 = vld [vmem:[#allocation2 + $0xd8] sm:$0xff]
        %v5831 = vld [vmem:[#allocation2 + $0xe0] sm:$0xff]
        %v5832 = vld [vmem:[#allocation2 + $0xe8] sm:$0xff]
        %v5833 = vld [vmem:[#allocation2 + $0xf0] sm:$0xff]
        %v5834 = vld [vmem:[#allocation2 + $0xf8] sm:$0xff]
        %v5835 = vld [vmem:[%s457] sm:$0xff]
        %v5836 = vld [vmem:[%s457 + $0x8] sm:$0xff]
        %v5837 = vld [vmem:[%s457 + $0x10] sm:$0xff]
        %v5838 = vld [vmem:[%s457 + $0x18] sm:$0xff]
        %v5839 = vld [vmem:[%s457 + $0x20] sm:$0xff]
        %v5840 = vld [vmem:[%s457 + $0x28] sm:$0xff]
        %v5841 = vld [vmem:[%s457 + $0x30] sm:$0xff]
        %v5842 = vld [vmem:[%s457 + $0x38] sm:$0xff]
        %v5843 = vld [vmem:[%s457 + $0x40] sm:$0xff]
        %v5844 = vld [vmem:[%s457 + $0x48] sm:$0xff]
        %v5845 = vld [vmem:[%s457 + $0x50] sm:$0xff]
        %v5846 = vld [vmem:[%s457 + $0x58] sm:$0xff]
        %v5847 = vld [vmem:[%s457 + $0x60] sm:$0xff]
        %v5848 = vld [vmem:[%s457 + $0x68] sm:$0xff]
        %v5849 = vld [vmem:[%s457 + $0x70] sm:$0xff]
        %v5850 = vld [vmem:[%s457 + $0x78] sm:$0xff]
        %v5851 = vld [vmem:[%s457 + $0x80] sm:$0xff]
        %v5852 = vld [vmem:[%s457 + $0x88] sm:$0xff]
        %v5853 = vld [vmem:[%s457 + $0x90] sm:$0xff]
        %v5854 = vld [vmem:[%s457 + $0x98] sm:$0xff]
        %v5855 = vld [vmem:[%s457 + $0xa0] sm:$0xff]
        %v5856 = vld [vmem:[%s457 + $0xa8] sm:$0xff]
        %v5857 = vld [vmem:[%s457 + $0xb0] sm:$0xff]
        %v5858 = vld [vmem:[%s457 + $0xb8] sm:$0xff]
        %v5859 = vld [vmem:[%s457 + $0xc0] sm:$0xff]
        %v5860 = vld [vmem:[%s457 + $0xc8] sm:$0xff]
        %v5861 = vld [vmem:[%s457 + $0xd0] sm:$0xff]
        %v5862 = vld [vmem:[%s457 + $0xd8] sm:$0xff]
        %v5863 = vld [vmem:[%s457 + $0xe0] sm:$0xff]
        %v5864 = vld [vmem:[%s457 + $0xe8] sm:$0xff]
        %v5865 = vld [vmem:[%s457 + $0xf0] sm:$0xff]
        %v5866 = vld [vmem:[%s457 + $0xf8] sm:$0xff]
        %v5867 = vld [vmem:[%s457 + $0x100] sm:$0xff]
        %v5868 = vld [vmem:[%s457 + $0x108] sm:$0xff]
        %v5869 = vld [vmem:[%s457 + $0x110] sm:$0xff]
        %v5870 = vld [vmem:[%s457 + $0x118] sm:$0xff]
        %v5871 = vld [vmem:[%s457 + $0x120] sm:$0xff]
        %v5872 = vld [vmem:[%s457 + $0x128] sm:$0xff]
        %v5873 = vld [vmem:[%s457 + $0x130] sm:$0xff]
        %v5874 = vld [vmem:[%s457 + $0x138] sm:$0xff]
        %v5875 = vld [vmem:[%s457 + $0x140] sm:$0xff]
        %v5876 = vld [vmem:[%s457 + $0x148] sm:$0xff]
        %v5877 = vld [vmem:[%s457 + $0x150] sm:$0xff]
        %v5878 = vld [vmem:[%s457 + $0x158] sm:$0xff]
        %v5879 = vld [vmem:[%s457 + $0x160] sm:$0xff]
        %v5880 = vld [vmem:[%s457 + $0x168] sm:$0xff]
        %v5881 = vld [vmem:[%s457 + $0x170] sm:$0xff]
        %v5882 = vld [vmem:[%s457 + $0x178] sm:$0xff]
        %v5883 = vld [vmem:[%s457 + $0x180] sm:$0xff]
        %v5884 = vld [vmem:[%s457 + $0x188] sm:$0xff]
        %v5885 = vld [vmem:[%s457 + $0x190] sm:$0xff]
        %v5886 = vld [vmem:[%s457 + $0x198] sm:$0xff]
        %v5887 = vld [vmem:[%s457 + $0x1a0] sm:$0xff]
        %v5888 = vld [vmem:[%s457 + $0x1a8] sm:$0xff]
        %v5889 = vld [vmem:[%s457 + $0x1b0] sm:$0xff]
        %v5890 = vld [vmem:[%s457 + $0x1b8] sm:$0xff]
        %v5891 = vld [vmem:[%s457 + $0x1c0] sm:$0xff]
        %v5892 = vld [vmem:[%s457 + $0x1c8] sm:$0xff]
        %v5893 = vld [vmem:[%s457 + $0x1d0] sm:$0xff]
        %v5894 = vld [vmem:[%s457 + $0x1d8] sm:$0xff]
        %v5895 = vld [vmem:[%s457 + $0x1e0] sm:$0xff]
        %v5896 = vld [vmem:[%s457 + $0x1e8] sm:$0xff]
        %v5897 = vld [vmem:[%s457 + $0x1f0] sm:$0xff]
        %v5898 = vld [vmem:[%s457 + $0x1f8] sm:$0xff]
        %v5899 = vld [vmem:[%s457 + $0x200] sm:$0xff]
        %v5900 = vld [vmem:[%s457 + $0x208] sm:$0xff]
        %v5901 = vld [vmem:[%s457 + $0x210] sm:$0xff]
        %v5902 = vld [vmem:[%s457 + $0x218] sm:$0xff]
        %v5903 = vld [vmem:[%s457 + $0x220] sm:$0xff]
        %v5904 = vld [vmem:[%s457 + $0x228] sm:$0xff]
        %v5905 = vld [vmem:[%s457 + $0x230] sm:$0xff]
        %v5906 = vld [vmem:[%s457 + $0x238] sm:$0xff]
        %v5907 = vld [vmem:[%s457 + $0x240] sm:$0xff]
        %v5908 = vld [vmem:[%s457 + $0x248] sm:$0xff]
        %v5909 = vld [vmem:[%s457 + $0x250] sm:$0xff]
        %v5910 = vld [vmem:[%s457 + $0x258] sm:$0xff]
        %v5911 = vld [vmem:[%s457 + $0x260] sm:$0xff]
        %v5912 = vld [vmem:[%s457 + $0x268] sm:$0xff]
        %v5913 = vld [vmem:[%s457 + $0x270] sm:$0xff]
        %v5914 = vld [vmem:[%s457 + $0x278] sm:$0xff]
        %v5915 = vld [vmem:[%s457 + $0x280] sm:$0xff]
        %v5916 = vld [vmem:[%s457 + $0x288] sm:$0xff]
        %v5917 = vld [vmem:[%s457 + $0x290] sm:$0xff]
        %v5918 = vld [vmem:[%s457 + $0x298] sm:$0xff]
        %v5919 = vld [vmem:[%s457 + $0x2a0] sm:$0xff]
        %v5920 = vld [vmem:[%s457 + $0x2a8] sm:$0xff]
        %v5921 = vld [vmem:[%s457 + $0x2b0] sm:$0xff]
        %v5922 = vld [vmem:[%s457 + $0x2b8] sm:$0xff]
        %v5923 = vld [vmem:[%s457 + $0x2c0] sm:$0xff]
        %v5924 = vld [vmem:[%s457 + $0x2c8] sm:$0xff]
        %v5925 = vld [vmem:[%s457 + $0x2d0] sm:$0xff]
        %v5926 = vld [vmem:[%s457 + $0x2d8] sm:$0xff]
        %v5927 = vld [vmem:[%s457 + $0x2e0] sm:$0xff]
        %v5928 = vld [vmem:[%s457 + $0x2e8] sm:$0xff]
        %v5929 = vld [vmem:[%s457 + $0x2f0] sm:$0xff]
        %v5930 = vld [vmem:[%s457 + $0x2f8] sm:$0xff]
        %v5931 = vld [vmem:[%s457 + $0x300] sm:$0xff]
        %v5932 = vld [vmem:[%s457 + $0x308] sm:$0xff]
        %v5933 = vld [vmem:[%s457 + $0x310] sm:$0xff]
        %v5934 = vld [vmem:[%s457 + $0x318] sm:$0xff]
        %v5935 = vld [vmem:[%s457 + $0x320] sm:$0xff]
        %v5936 = vld [vmem:[%s457 + $0x328] sm:$0xff]
        %v5937 = vld [vmem:[%s457 + $0x330] sm:$0xff]
        %v5938 = vld [vmem:[%s457 + $0x338] sm:$0xff]
        %v5939 = vld [vmem:[%s457 + $0x340] sm:$0xff]
        %v5940 = vld [vmem:[%s457 + $0x348] sm:$0xff]
        %v5941 = vld [vmem:[%s457 + $0x350] sm:$0xff]
        %v5942 = vld [vmem:[%s457 + $0x358] sm:$0xff]
        %v5943 = vld [vmem:[%s457 + $0x360] sm:$0xff]
        %v5944 = vld [vmem:[%s457 + $0x368] sm:$0xff]
        %v5945 = vld [vmem:[%s457 + $0x370] sm:$0xff]
        %v5946 = vld [vmem:[%s457 + $0x378] sm:$0xff]
        %v5947 = vld [vmem:[%s457 + $0x380] sm:$0xff]
        %v5948 = vld [vmem:[%s457 + $0x388] sm:$0xff]
        %v5949 = vld [vmem:[%s457 + $0x390] sm:$0xff]
        %v5950 = vld [vmem:[%s457 + $0x398] sm:$0xff]
        %v5951 = vld [vmem:[%s457 + $0x3a0] sm:$0xff]
        %v5952 = vld [vmem:[%s457 + $0x3a8] sm:$0xff]
        %v5953 = vld [vmem:[%s457 + $0x3b0] sm:$0xff]
        %v5954 = vld [vmem:[%s457 + $0x3b8] sm:$0xff]
        %v5955 = vld [vmem:[%s457 + $0x3c0] sm:$0xff]
        %v5956 = vld [vmem:[%s457 + $0x3c8] sm:$0xff]
        %v5957 = vld [vmem:[%s457 + $0x3d0] sm:$0xff]
        %v5958 = vld [vmem:[%s457 + $0x3d8] sm:$0xff]
        %v5959 = vld [vmem:[%s457 + $0x3e0] sm:$0xff]
        %v5960 = vld [vmem:[%s457 + $0x3e8] sm:$0xff]
        %v5961 = vld [vmem:[%s457 + $0x3f0] sm:$0xff]
        %v5962 = vld [vmem:[%s457 + $0x3f8] sm:$0xff]
        %v5963 = vld [vmem:[%s457 + $0x400] sm:$0xff]
        %v5964 = vld [vmem:[%s457 + $0x408] sm:$0xff]
        %v5965 = vld [vmem:[%s457 + $0x410] sm:$0xff]
        %v5966 = vld [vmem:[%s457 + $0x418] sm:$0xff]
        %v5967 = vld [vmem:[%s457 + $0x420] sm:$0xff]
        %v5968 = vld [vmem:[%s457 + $0x428] sm:$0xff]
        %v5969 = vld [vmem:[%s457 + $0x430] sm:$0xff]
        %v5970 = vld [vmem:[%s457 + $0x438] sm:$0xff]
        %v5971 = vld [vmem:[%s457 + $0x440] sm:$0xff]
        %v5972 = vld [vmem:[%s457 + $0x448] sm:$0xff]
        %v5973 = vld [vmem:[%s457 + $0x450] sm:$0xff]
        %v5974 = vld [vmem:[%s457 + $0x458] sm:$0xff]
        %v5975 = vld [vmem:[%s457 + $0x460] sm:$0xff]
        %v5976 = vld [vmem:[%s457 + $0x468] sm:$0xff]
        %v5977 = vld [vmem:[%s457 + $0x470] sm:$0xff]
        %v5978 = vld [vmem:[%s457 + $0x478] sm:$0xff]
        %v5979 = vld [vmem:[%s457 + $0x480] sm:$0xff]
        %v5980 = vld [vmem:[%s457 + $0x488] sm:$0xff]
        %v5981 = vld [vmem:[%s457 + $0x490] sm:$0xff]
        %v5982 = vld [vmem:[%s457 + $0x498] sm:$0xff]
        %v5983 = vld [vmem:[%s457 + $0x4a0] sm:$0xff]
        %v5984 = vld [vmem:[%s457 + $0x4a8] sm:$0xff]
        %v5985 = vld [vmem:[%s457 + $0x4b0] sm:$0xff]
        %v5986 = vld [vmem:[%s457 + $0x4b8] sm:$0xff]
        %v5987 = vld [vmem:[%s457 + $0x4c0] sm:$0xff]
        %v5988 = vld [vmem:[%s457 + $0x4c8] sm:$0xff]
        %v5989 = vld [vmem:[%s457 + $0x4d0] sm:$0xff]
        %v5990 = vld [vmem:[%s457 + $0x4d8] sm:$0xff]
        %v5991 = vld [vmem:[%s457 + $0x4e0] sm:$0xff]
        %v5992 = vld [vmem:[%s457 + $0x4e8] sm:$0xff]
        %v5993 = vld [vmem:[%s457 + $0x4f0] sm:$0xff]
        %v5994 = vld [vmem:[%s457 + $0x4f8] sm:$0xff]
        %v5995 = vld [vmem:[%s457 + $0x500] sm:$0xff]
        %v5996 = vld [vmem:[%s457 + $0x508] sm:$0xff]
        %v5997 = vld [vmem:[%s457 + $0x510] sm:$0xff]
        %v5998 = vld [vmem:[%s457 + $0x518] sm:$0xff]
        %v5999 = vld [vmem:[%s457 + $0x520] sm:$0xff]
        %v6000 = vld [vmem:[%s457 + $0x528] sm:$0xff]
        %v6001 = vld [vmem:[%s457 + $0x530] sm:$0xff]
        %v6002 = vld [vmem:[%s457 + $0x538] sm:$0xff]
        %v6003 = vld [vmem:[%s457 + $0x540] sm:$0xff]
        %v6004 = vld [vmem:[%s457 + $0x548] sm:$0xff]
        %v6005 = vld [vmem:[%s457 + $0x550] sm:$0xff]
        %v6006 = vld [vmem:[%s457 + $0x558] sm:$0xff]
        %v6007 = vld [vmem:[%s457 + $0x560] sm:$0xff]
        %v6008 = vld [vmem:[%s457 + $0x568] sm:$0xff]
        %v6009 = vld [vmem:[%s457 + $0x570] sm:$0xff]
        %v6010 = vld [vmem:[%s457 + $0x578] sm:$0xff]
        %v6011 = vld [vmem:[%s457 + $0x580] sm:$0xff]
        %v6012 = vld [vmem:[%s457 + $0x588] sm:$0xff]
        %v6013 = vld [vmem:[%s457 + $0x590] sm:$0xff]
        %v6014 = vld [vmem:[%s457 + $0x598] sm:$0xff]
        %v6015 = vld [vmem:[%s457 + $0x5a0] sm:$0xff]
        %v6016 = vld [vmem:[%s457 + $0x5a8] sm:$0xff]
        %v6017 = vld [vmem:[%s457 + $0x5b0] sm:$0xff]
        %v6018 = vld [vmem:[%s457 + $0x5b8] sm:$0xff]
        %v6019 = vld [vmem:[%s457 + $0x5c0] sm:$0xff]
        %v6020 = vld [vmem:[%s457 + $0x5c8] sm:$0xff]
        %v6021 = vld [vmem:[%s457 + $0x5d0] sm:$0xff]
        %v6022 = vld [vmem:[%s457 + $0x5d8] sm:$0xff]
        %v6023 = vld [vmem:[%s457 + $0x5e0] sm:$0xff]
        %v6024 = vld [vmem:[%s457 + $0x5e8] sm:$0xff]
        %v6025 = vld [vmem:[%s457 + $0x5f0] sm:$0xff]
        %v6026 = vld [vmem:[%s457 + $0x5f8] sm:$0xff]
        %v6027 = vld [vmem:[%s457 + $0x600] sm:$0xff]
        %v6028 = vld [vmem:[%s457 + $0x608] sm:$0xff]
        %v6029 = vld [vmem:[%s457 + $0x610] sm:$0xff]
        %v6030 = vld [vmem:[%s457 + $0x618] sm:$0xff]
        %v6031 = vld [vmem:[%s457 + $0x620] sm:$0xff]
        %v6032 = vld [vmem:[%s457 + $0x628] sm:$0xff]
        %v6033 = vld [vmem:[%s457 + $0x630] sm:$0xff]
        %v6034 = vld [vmem:[%s457 + $0x638] sm:$0xff]
        %v6035 = vld [vmem:[%s457 + $0x640] sm:$0xff]
        %v6036 = vld [vmem:[%s457 + $0x648] sm:$0xff]
        %v6037 = vld [vmem:[%s457 + $0x650] sm:$0xff]
        %v6038 = vld [vmem:[%s457 + $0x658] sm:$0xff]
        %v6039 = vld [vmem:[%s457 + $0x660] sm:$0xff]
        %v6040 = vld [vmem:[%s457 + $0x668] sm:$0xff]
        %v6041 = vld [vmem:[%s457 + $0x670] sm:$0xff]
        %v6042 = vld [vmem:[%s457 + $0x678] sm:$0xff]
        %v6043 = vld [vmem:[%s457 + $0x680] sm:$0xff]
        %v6044 = vld [vmem:[%s457 + $0x688] sm:$0xff]
        %v6045 = vld [vmem:[%s457 + $0x690] sm:$0xff]
        %v6046 = vld [vmem:[%s457 + $0x698] sm:$0xff]
        %v6047 = vld [vmem:[%s457 + $0x6a0] sm:$0xff]
        %v6048 = vld [vmem:[%s457 + $0x6a8] sm:$0xff]
        %v6049 = vld [vmem:[%s457 + $0x6b0] sm:$0xff]
        %v6050 = vld [vmem:[%s457 + $0x6b8] sm:$0xff]
        %v6051 = vld [vmem:[%s457 + $0x6c0] sm:$0xff]
        %v6052 = vld [vmem:[%s457 + $0x6c8] sm:$0xff]
        %v6053 = vld [vmem:[%s457 + $0x6d0] sm:$0xff]
        %v6054 = vld [vmem:[%s457 + $0x6d8] sm:$0xff]
        %v6055 = vld [vmem:[%s457 + $0x6e0] sm:$0xff]
        %v6056 = vld [vmem:[%s457 + $0x6e8] sm:$0xff]
        %v6057 = vld [vmem:[%s457 + $0x6f0] sm:$0xff]
        %v6058 = vld [vmem:[%s457 + $0x6f8] sm:$0xff]
        %v6059 = vld [vmem:[%s457 + $0x700] sm:$0xff]
        %v6060 = vld [vmem:[%s457 + $0x708] sm:$0xff]
        %v6061 = vld [vmem:[%s457 + $0x710] sm:$0xff]
        %v6062 = vld [vmem:[%s457 + $0x718] sm:$0xff]
        %v6063 = vld [vmem:[%s457 + $0x720] sm:$0xff]
        %v6064 = vld [vmem:[%s457 + $0x728] sm:$0xff]
        %v6065 = vld [vmem:[%s457 + $0x730] sm:$0xff]
        %v6066 = vld [vmem:[%s457 + $0x738] sm:$0xff]
        %v6067 = vld [vmem:[%s457 + $0x740] sm:$0xff]
        %v6068 = vld [vmem:[%s457 + $0x748] sm:$0xff]
        %v6069 = vld [vmem:[%s457 + $0x750] sm:$0xff]
        %v6070 = vld [vmem:[%s457 + $0x758] sm:$0xff]
        %v6071 = vld [vmem:[%s457 + $0x760] sm:$0xff]
        %v6072 = vld [vmem:[%s457 + $0x768] sm:$0xff]
        %v6073 = vld [vmem:[%s457 + $0x770] sm:$0xff]
        %v6074 = vld [vmem:[%s457 + $0x778] sm:$0xff]
        %v6075 = vld [vmem:[%s457 + $0x780] sm:$0xff]
        %v6076 = vld [vmem:[%s457 + $0x788] sm:$0xff]
        %v6077 = vld [vmem:[%s457 + $0x790] sm:$0xff]
        %v6078 = vld [vmem:[%s457 + $0x798] sm:$0xff]
        %v6079 = vld [vmem:[%s457 + $0x7a0] sm:$0xff]
        %v6080 = vld [vmem:[%s457 + $0x7a8] sm:$0xff]
        %v6081 = vld [vmem:[%s457 + $0x7b0] sm:$0xff]
        %v6082 = vld [vmem:[%s457 + $0x7b8] sm:$0xff]
        %v6083 = vld [vmem:[%s457 + $0x7c0] sm:$0xff]
        %v6084 = vld [vmem:[%s457 + $0x7c8] sm:$0xff]
        %v6085 = vld [vmem:[%s457 + $0x7d0] sm:$0xff]
        %v6086 = vld [vmem:[%s457 + $0x7d8] sm:$0xff]
        %v6087 = vld [vmem:[%s457 + $0x7e0] sm:$0xff]
        %v6088 = vld [vmem:[%s457 + $0x7e8] sm:$0xff]
        %v6089 = vld [vmem:[%s457 + $0x7f0] sm:$0xff]
        %v6090 = vld [vmem:[%s457 + $0x7f8] sm:$0xff]
        %v6091 = vld [vmem:[%s457 + $0x800] sm:$0xff]
        %v6092 = vld [vmem:[%s457 + $0x808] sm:$0xff]
        %v6093 = vld [vmem:[%s457 + $0x810] sm:$0xff]
        %v6094 = vld [vmem:[%s457 + $0x818] sm:$0xff]
        %v6095 = vld [vmem:[%s457 + $0x820] sm:$0xff]
        %v6096 = vld [vmem:[%s457 + $0x828] sm:$0xff]
        %v6097 = vld [vmem:[%s457 + $0x830] sm:$0xff]
        %v6098 = vld [vmem:[%s457 + $0x838] sm:$0xff]
        %v6099 = vld [vmem:[%s457 + $0x840] sm:$0xff]
        %v6100 = vld [vmem:[%s457 + $0x848] sm:$0xff]
        %v6101 = vld [vmem:[%s457 + $0x850] sm:$0xff]
        %v6102 = vld [vmem:[%s457 + $0x858] sm:$0xff]
        %v6103 = vld [vmem:[%s457 + $0x860] sm:$0xff]
        %v6104 = vld [vmem:[%s457 + $0x868] sm:$0xff]
        %v6105 = vld [vmem:[%s457 + $0x870] sm:$0xff]
        %v6106 = vld [vmem:[%s457 + $0x878] sm:$0xff]
        %v6107 = vld [vmem:[%s457 + $0x880] sm:$0xff]
        %v6108 = vld [vmem:[%s457 + $0x888] sm:$0xff]
        %v6109 = vld [vmem:[%s457 + $0x890] sm:$0xff]
        %v6110 = vld [vmem:[%s457 + $0x898] sm:$0xff]
        %v6111 = vld [vmem:[%s457 + $0x8a0] sm:$0xff]
        %v6112 = vld [vmem:[%s457 + $0x8a8] sm:$0xff]
        %v6113 = vld [vmem:[%s457 + $0x8b0] sm:$0xff]
        %v6114 = vld [vmem:[%s457 + $0x8b8] sm:$0xff]
        %v6115 = vld [vmem:[%s457 + $0x8c0] sm:$0xff]
        %v6116 = vld [vmem:[%s457 + $0x8c8] sm:$0xff]
        %v6117 = vld [vmem:[%s457 + $0x8d0] sm:$0xff]
        %v6118 = vld [vmem:[%s457 + $0x8d8] sm:$0xff]
        %v6119 = vld [vmem:[%s457 + $0x8e0] sm:$0xff]
        %v6120 = vld [vmem:[%s457 + $0x8e8] sm:$0xff]
        %v6121 = vld [vmem:[%s457 + $0x8f0] sm:$0xff]
        %v6122 = vld [vmem:[%s457 + $0x8f8] sm:$0xff]
        %v6123 = vld [vmem:[%s457 + $0x900] sm:$0xff]
        %v6124 = vld [vmem:[%s457 + $0x908] sm:$0xff]
        %v6125 = vld [vmem:[%s457 + $0x910] sm:$0xff]
        %v6126 = vld [vmem:[%s457 + $0x918] sm:$0xff]
        %v6127 = vld [vmem:[%s457 + $0x920] sm:$0xff]
        %v6128 = vld [vmem:[%s457 + $0x928] sm:$0xff]
        %v6129 = vld [vmem:[%s457 + $0x930] sm:$0xff]
        %v6130 = vld [vmem:[%s457 + $0x938] sm:$0xff]
        %v6131 = vld [vmem:[%s457 + $0x940] sm:$0xff]
        %v6132 = vld [vmem:[%s457 + $0x948] sm:$0xff]
        %v6133 = vld [vmem:[%s457 + $0x950] sm:$0xff]
        %v6134 = vld [vmem:[%s457 + $0x958] sm:$0xff]
        %v6135 = vld [vmem:[%s457 + $0x960] sm:$0xff]
        %v6136 = vld [vmem:[%s457 + $0x968] sm:$0xff]
        %v6137 = vld [vmem:[%s457 + $0x970] sm:$0xff]
        %v6138 = vld [vmem:[%s457 + $0x978] sm:$0xff]
        %v6139 = vld [vmem:[%s457 + $0x980] sm:$0xff]
        %v6140 = vld [vmem:[%s457 + $0x988] sm:$0xff]
        %v6141 = vld [vmem:[%s457 + $0x990] sm:$0xff]
        %v6142 = vld [vmem:[%s457 + $0x998] sm:$0xff]
        %v6143 = vld [vmem:[%s457 + $0x9a0] sm:$0xff]
        %v6144 = vld [vmem:[%s457 + $0x9a8] sm:$0xff]
        %v6145 = vld [vmem:[%s457 + $0x9b0] sm:$0xff]
        %v6146 = vld [vmem:[%s457 + $0x9b8] sm:$0xff]
        %v6147 = vld [vmem:[%s457 + $0x9c0] sm:$0xff]
        %v6148 = vld [vmem:[%s457 + $0x9c8] sm:$0xff]
        %v6149 = vld [vmem:[%s457 + $0x9d0] sm:$0xff]
        %v6150 = vld [vmem:[%s457 + $0x9d8] sm:$0xff]
        %v6151 = vld [vmem:[%s457 + $0x9e0] sm:$0xff]
        %v6152 = vld [vmem:[%s457 + $0x9e8] sm:$0xff]
        %v6153 = vld [vmem:[%s457 + $0x9f0] sm:$0xff]
        %v6154 = vld [vmem:[%s457 + $0x9f8] sm:$0xff]
        %v6155 = vld [vmem:[%s457 + $0xa00] sm:$0xff]
        %v6156 = vld [vmem:[%s457 + $0xa08] sm:$0xff]
        %v6157 = vld [vmem:[%s457 + $0xa10] sm:$0xff]
        %v6158 = vld [vmem:[%s457 + $0xa18] sm:$0xff]
        %v6159 = vld [vmem:[%s457 + $0xa20] sm:$0xff]
        %v6160 = vld [vmem:[%s457 + $0xa28] sm:$0xff]
        %v6161 = vld [vmem:[%s457 + $0xa30] sm:$0xff]
        %v6162 = vld [vmem:[%s457 + $0xa38] sm:$0xff]
        %v6163 = vld [vmem:[%s457 + $0xa40] sm:$0xff]
        %v6164 = vld [vmem:[%s457 + $0xa48] sm:$0xff]
        %v6165 = vld [vmem:[%s457 + $0xa50] sm:$0xff]
        %v6166 = vld [vmem:[%s457 + $0xa58] sm:$0xff]
        %v6167 = vld [vmem:[%s457 + $0xa60] sm:$0xff]
        %v6168 = vld [vmem:[%s457 + $0xa68] sm:$0xff]
        %v6169 = vld [vmem:[%s457 + $0xa70] sm:$0xff]
        %v6170 = vld [vmem:[%s457 + $0xa78] sm:$0xff]
        %v6171 = vld [vmem:[%s457 + $0xa80] sm:$0xff]
        %v6172 = vld [vmem:[%s457 + $0xa88] sm:$0xff]
        %v6173 = vld [vmem:[%s457 + $0xa90] sm:$0xff]
        %v6174 = vld [vmem:[%s457 + $0xa98] sm:$0xff]
        %v6175 = vld [vmem:[%s457 + $0xaa0] sm:$0xff]
        %v6176 = vld [vmem:[%s457 + $0xaa8] sm:$0xff]
        %v6177 = vld [vmem:[%s457 + $0xab0] sm:$0xff]
        %v6178 = vld [vmem:[%s457 + $0xab8] sm:$0xff]
        %v6179 = vld [vmem:[%s457 + $0xac0] sm:$0xff]
        %v6180 = vld [vmem:[%s457 + $0xac8] sm:$0xff]
        %v6181 = vld [vmem:[%s457 + $0xad0] sm:$0xff]
        %v6182 = vld [vmem:[%s457 + $0xad8] sm:$0xff]
        %v6183 = vld [vmem:[%s457 + $0xae0] sm:$0xff]
        %v6184 = vld [vmem:[%s457 + $0xae8] sm:$0xff]
        %v6185 = vld [vmem:[%s457 + $0xaf0] sm:$0xff]
        %v6186 = vld [vmem:[%s457 + $0xaf8] sm:$0xff]
        %v6187 = vld [vmem:[%s457 + $0xb00] sm:$0xff]
        %v6188 = vld [vmem:[%s457 + $0xb08] sm:$0xff]
        %v6189 = vld [vmem:[%s457 + $0xb10] sm:$0xff]
        %v6190 = vld [vmem:[%s457 + $0xb18] sm:$0xff]
        %v6191 = vld [vmem:[%s457 + $0xb20] sm:$0xff]
        %v6192 = vld [vmem:[%s457 + $0xb28] sm:$0xff]
        %v6193 = vld [vmem:[%s457 + $0xb30] sm:$0xff]
        %v6194 = vld [vmem:[%s457 + $0xb38] sm:$0xff]
        %v6195 = vld [vmem:[%s457 + $0xb40] sm:$0xff]
        %v6196 = vld [vmem:[%s457 + $0xb48] sm:$0xff]
        %v6197 = vld [vmem:[%s457 + $0xb50] sm:$0xff]
        %v6198 = vld [vmem:[%s457 + $0xb58] sm:$0xff]
        %v6199 = vld [vmem:[%s457 + $0xb60] sm:$0xff]
        %v6200 = vld [vmem:[%s457 + $0xb68] sm:$0xff]
        %v6201 = vld [vmem:[%s457 + $0xb70] sm:$0xff]
        %v6202 = vld [vmem:[%s457 + $0xb78] sm:$0xff]
        %v6203 = vld [vmem:[%s457 + $0xb80] sm:$0xff]
        %v6204 = vld [vmem:[%s457 + $0xb88] sm:$0xff]
        %v6205 = vld [vmem:[%s457 + $0xb90] sm:$0xff]
        %v6206 = vld [vmem:[%s457 + $0xb98] sm:$0xff]
        %v6207 = vld [vmem:[%s457 + $0xba0] sm:$0xff]
        %v6208 = vld [vmem:[%s457 + $0xba8] sm:$0xff]
        %v6209 = vld [vmem:[%s457 + $0xbb0] sm:$0xff]
        %v6210 = vld [vmem:[%s457 + $0xbb8] sm:$0xff]
        %v6211 = vld [vmem:[%s457 + $0xbc0] sm:$0xff]
        %v6212 = vld [vmem:[%s457 + $0xbc8] sm:$0xff]
        %v6213 = vld [vmem:[%s457 + $0xbd0] sm:$0xff]
        %v6214 = vld [vmem:[%s457 + $0xbd8] sm:$0xff]
        %v6215 = vld [vmem:[%s457 + $0xbe0] sm:$0xff]
        %v6216 = vld [vmem:[%s457 + $0xbe8] sm:$0xff]
        %v6217 = vld [vmem:[%s457 + $0xbf0] sm:$0xff]
        %v6218 = vld [vmem:[%s457 + $0xbf8] sm:$0xff]
        %v6219 = vld [vmem:[%s457 + $0xc00] sm:$0xff]
        %v6220 = vld [vmem:[%s457 + $0xc08] sm:$0xff]
        %v6221 = vld [vmem:[%s457 + $0xc10] sm:$0xff]
        %v6222 = vld [vmem:[%s457 + $0xc18] sm:$0xff]
        %v6223 = vld [vmem:[%s457 + $0xc20] sm:$0xff]
        %v6224 = vld [vmem:[%s457 + $0xc28] sm:$0xff]
        %v6225 = vld [vmem:[%s457 + $0xc30] sm:$0xff]
        %v6226 = vld [vmem:[%s457 + $0xc38] sm:$0xff]
        %v6227 = vld [vmem:[%s457 + $0xc40] sm:$0xff]
        %v6228 = vld [vmem:[%s457 + $0xc48] sm:$0xff]
        %v6229 = vld [vmem:[%s457 + $0xc50] sm:$0xff]
        %v6230 = vld [vmem:[%s457 + $0xc58] sm:$0xff]
        %v6231 = vld [vmem:[%s457 + $0xc60] sm:$0xff]
        %v6232 = vld [vmem:[%s457 + $0xc68] sm:$0xff]
        %v6233 = vld [vmem:[%s457 + $0xc70] sm:$0xff]
        %v6234 = vld [vmem:[%s457 + $0xc78] sm:$0xff]
        %v6235 = vld [vmem:[%s457 + $0xc80] sm:$0xff]
        %v6236 = vld [vmem:[%s457 + $0xc88] sm:$0xff]
        %v6237 = vld [vmem:[%s457 + $0xc90] sm:$0xff]
        %v6238 = vld [vmem:[%s457 + $0xc98] sm:$0xff]
        %v6239 = vld [vmem:[%s457 + $0xca0] sm:$0xff]
        %v6240 = vld [vmem:[%s457 + $0xca8] sm:$0xff]
        %v6241 = vld [vmem:[%s457 + $0xcb0] sm:$0xff]
        %v6242 = vld [vmem:[%s457 + $0xcb8] sm:$0xff]
        %v6243 = vld [vmem:[%s457 + $0xcc0] sm:$0xff]
        %v6244 = vld [vmem:[%s457 + $0xcc8] sm:$0xff]
        %v6245 = vld [vmem:[%s457 + $0xcd0] sm:$0xff]
        %v6246 = vld [vmem:[%s457 + $0xcd8] sm:$0xff]
        %v6247 = vld [vmem:[%s457 + $0xce0] sm:$0xff]
        %v6248 = vld [vmem:[%s457 + $0xce8] sm:$0xff]
        %v6249 = vld [vmem:[%s457 + $0xcf0] sm:$0xff]
        %v6250 = vld [vmem:[%s457 + $0xcf8] sm:$0xff]
        %v6251 = vld [vmem:[%s457 + $0xd00] sm:$0xff]
        %v6252 = vld [vmem:[%s457 + $0xd08] sm:$0xff]
        %v6253 = vld [vmem:[%s457 + $0xd10] sm:$0xff]
        %v6254 = vld [vmem:[%s457 + $0xd18] sm:$0xff]
        %v6255 = vld [vmem:[%s457 + $0xd20] sm:$0xff]
        %v6256 = vld [vmem:[%s457 + $0xd28] sm:$0xff]
        %v6257 = vld [vmem:[%s457 + $0xd30] sm:$0xff]
        %v6258 = vld [vmem:[%s457 + $0xd38] sm:$0xff]
        %v6259 = vld [vmem:[%s457 + $0xd40] sm:$0xff]
        %v6260 = vld [vmem:[%s457 + $0xd48] sm:$0xff]
        %v6261 = vld [vmem:[%s457 + $0xd50] sm:$0xff]
        %v6262 = vld [vmem:[%s457 + $0xd58] sm:$0xff]
        %v6263 = vld [vmem:[%s457 + $0xd60] sm:$0xff]
        %v6264 = vld [vmem:[%s457 + $0xd68] sm:$0xff]
        %v6265 = vld [vmem:[%s457 + $0xd70] sm:$0xff]
        %v6266 = vld [vmem:[%s457 + $0xd78] sm:$0xff]
        %v6267 = vld [vmem:[%s457 + $0xd80] sm:$0xff]
        %v6268 = vld [vmem:[%s457 + $0xd88] sm:$0xff]
        %v6269 = vld [vmem:[%s457 + $0xd90] sm:$0xff]
        %v6270 = vld [vmem:[%s457 + $0xd98] sm:$0xff]
        %v6271 = vld [vmem:[%s457 + $0xda0] sm:$0xff]
        %v6272 = vld [vmem:[%s457 + $0xda8] sm:$0xff]
        %v6273 = vld [vmem:[%s457 + $0xdb0] sm:$0xff]
        %v6274 = vld [vmem:[%s457 + $0xdb8] sm:$0xff]
        %v6275 = vld [vmem:[%s457 + $0xdc0] sm:$0xff]
        %v6276 = vld [vmem:[%s457 + $0xdc8] sm:$0xff]
        %v6277 = vld [vmem:[%s457 + $0xdd0] sm:$0xff]
        %v6278 = vld [vmem:[%s457 + $0xdd8] sm:$0xff]
        %v6279 = vld [vmem:[%s457 + $0xde0] sm:$0xff]
        %v6280 = vld [vmem:[%s457 + $0xde8] sm:$0xff]
        %v6281 = vld [vmem:[%s457 + $0xdf0] sm:$0xff]
        %v6282 = vld [vmem:[%s457 + $0xdf8] sm:$0xff]
        %v6283 = vld [vmem:[%s457 + $0xe00] sm:$0xff]
        %v6284 = vld [vmem:[%s457 + $0xe08] sm:$0xff]
        %v6285 = vld [vmem:[%s457 + $0xe10] sm:$0xff]
        %v6286 = vld [vmem:[%s457 + $0xe18] sm:$0xff]
        %v6287 = vld [vmem:[%s457 + $0xe20] sm:$0xff]
        %v6288 = vld [vmem:[%s457 + $0xe28] sm:$0xff]
        %v6289 = vld [vmem:[%s457 + $0xe30] sm:$0xff]
        %v6290 = vld [vmem:[%s457 + $0xe38] sm:$0xff]
        %v6291 = vld [vmem:[%s457 + $0xe40] sm:$0xff]
        %v6292 = vld [vmem:[%s457 + $0xe48] sm:$0xff]
        %v6293 = vld [vmem:[%s457 + $0xe50] sm:$0xff]
        %v6294 = vld [vmem:[%s457 + $0xe58] sm:$0xff]
        %v6295 = vld [vmem:[%s457 + $0xe60] sm:$0xff]
        %v6296 = vld [vmem:[%s457 + $0xe68] sm:$0xff]
        %v6297 = vld [vmem:[%s457 + $0xe70] sm:$0xff]
        %v6298 = vld [vmem:[%s457 + $0xe78] sm:$0xff]
        %v6299 = vld [vmem:[%s457 + $0xe80] sm:$0xff]
        %v6300 = vld [vmem:[%s457 + $0xe88] sm:$0xff]
        %v6301 = vld [vmem:[%s457 + $0xe90] sm:$0xff]
        %v6302 = vld [vmem:[%s457 + $0xe98] sm:$0xff]
        %v6303 = vld [vmem:[%s457 + $0xea0] sm:$0xff]
        %v6304 = vld [vmem:[%s457 + $0xea8] sm:$0xff]
        %v6305 = vld [vmem:[%s457 + $0xeb0] sm:$0xff]
        %v6306 = vld [vmem:[%s457 + $0xeb8] sm:$0xff]
        %v6307 = vld [vmem:[%s457 + $0xec0] sm:$0xff]
        %v6308 = vld [vmem:[%s457 + $0xec8] sm:$0xff]
        %v6309 = vld [vmem:[%s457 + $0xed0] sm:$0xff]
        %v6310 = vld [vmem:[%s457 + $0xed8] sm:$0xff]
        %v6311 = vld [vmem:[%s457 + $0xee0] sm:$0xff]
        %v6312 = vld [vmem:[%s457 + $0xee8] sm:$0xff]
        %v6313 = vld [vmem:[%s457 + $0xef0] sm:$0xff]
        %v6314 = vld [vmem:[%s457 + $0xef8] sm:$0xff]
        %v6315 = vld [vmem:[%s457 + $0xf00] sm:$0xff]
        %v6316 = vld [vmem:[%s457 + $0xf08] sm:$0xff]
        %v6317 = vld [vmem:[%s457 + $0xf10] sm:$0xff]
        %v6318 = vld [vmem:[%s457 + $0xf18] sm:$0xff]
        %v6319 = vld [vmem:[%s457 + $0xf20] sm:$0xff]
        %v6320 = vld [vmem:[%s457 + $0xf28] sm:$0xff]
        %v6321 = vld [vmem:[%s457 + $0xf30] sm:$0xff]
        %v6322 = vld [vmem:[%s457 + $0xf38] sm:$0xff]
        %v6323 = vld [vmem:[%s457 + $0xf40] sm:$0xff]
        %v6324 = vld [vmem:[%s457 + $0xf48] sm:$0xff]
        %v6325 = vld [vmem:[%s457 + $0xf50] sm:$0xff]
        %v6326 = vld [vmem:[%s457 + $0xf58] sm:$0xff]
        %v6327 = vld [vmem:[%s457 + $0xf60] sm:$0xff]
        %v6328 = vld [vmem:[%s457 + $0xf68] sm:$0xff]
        %v6329 = vld [vmem:[%s457 + $0xf70] sm:$0xff]
        %v6330 = vld [vmem:[%s457 + $0xf78] sm:$0xff]
        %v6331 = vld [vmem:[%s457 + $0xf80] sm:$0xff]
        %v6332 = vld [vmem:[%s457 + $0xf88] sm:$0xff]
        %v6333 = vld [vmem:[%s457 + $0xf90] sm:$0xff]
        %v6334 = vld [vmem:[%s457 + $0xf98] sm:$0xff]
        %v6335 = vld [vmem:[%s457 + $0xfa0] sm:$0xff]
        %v6336 = vld [vmem:[%s457 + $0xfa8] sm:$0xff]
        %v6337 = vld [vmem:[%s457 + $0xfb0] sm:$0xff]
        %v6338 = vld [vmem:[%s457 + $0xfb8] sm:$0xff]
        %v6339 = vld [vmem:[%s457 + $0xfc0] sm:$0xff]
        %v6340 = vld [vmem:[%s457 + $0xfc8] sm:$0xff]
        %v6341 = vld [vmem:[%s457 + $0xfd0] sm:$0xff]
        %v6342 = vld [vmem:[%s457 + $0xfd8] sm:$0xff]
        %v6343 = vld [vmem:[%s457 + $0xfe0] sm:$0xff]
        %v6344 = vld [vmem:[%s457 + $0xfe8] sm:$0xff]
        %v6345 = vld [vmem:[%s457 + $0xff0] sm:$0xff]
        %v6346 = vld [vmem:[%s457 + $0xff8] sm:$0xff]
        %v6379 = vunpack.c.l.b16 %v5803
        %v6380 = vunpack.c.h.b16 %v5803
        %v6381 = vunpack.c.l.b16 %v5804
        %v6382 = vunpack.c.h.b16 %v5804
        %v6383 = vunpack.c.l.b16 %v5805
        %v6384 = vunpack.c.h.b16 %v5805
        %v6385 = vunpack.c.l.b16 %v5806
        %v6386 = vunpack.c.h.b16 %v5806
        %v6387 = vunpack.c.l.b16 %v5807
        %v6388 = vunpack.c.h.b16 %v5807
        %v6389 = vunpack.c.l.b16 %v5808
        %v6390 = vunpack.c.h.b16 %v5808
        %v6391 = vunpack.c.l.b16 %v5809
        %v6392 = vunpack.c.h.b16 %v5809
        %v6393 = vunpack.c.l.b16 %v5810
        %v6394 = vunpack.c.h.b16 %v5810
        %v6395 = vunpack.c.l.b16 %v5811
        %v6396 = vunpack.c.h.b16 %v5811
        %v6397 = vunpack.c.l.b16 %v5812
        %v6398 = vunpack.c.h.b16 %v5812
        %v6399 = vunpack.c.l.b16 %v5813
        %v6400 = vunpack.c.h.b16 %v5813
        %v6401 = vunpack.c.l.b16 %v5814
        %v6402 = vunpack.c.h.b16 %v5814
        %v6403 = vunpack.c.l.b16 %v5815
        %v6404 = vunpack.c.h.b16 %v5815
        %v6405 = vunpack.c.l.b16 %v5816
        %v6406 = vunpack.c.h.b16 %v5816
        %v6407 = vunpack.c.l.b16 %v5817
        %v6408 = vunpack.c.h.b16 %v5817
        %v6409 = vunpack.c.l.b16 %v5818
        %v6410 = vunpack.c.h.b16 %v5818
        %v6411 = vunpack.c.l.b16 %v5819
        %v6412 = vunpack.c.h.b16 %v5819
        %v6413 = vunpack.c.l.b16 %v5820
        %v6414 = vunpack.c.h.b16 %v5820
        %v6415 = vunpack.c.l.b16 %v5821
        %v6416 = vunpack.c.h.b16 %v5821
        %v6417 = vunpack.c.l.b16 %v5822
        %v6418 = vunpack.c.h.b16 %v5822
        %v6419 = vunpack.c.l.b16 %v5823
        %v6420 = vunpack.c.h.b16 %v5823
        %v6421 = vunpack.c.l.b16 %v5824
        %v6422 = vunpack.c.h.b16 %v5824
        %v6423 = vunpack.c.l.b16 %v5825
        %v6424 = vunpack.c.h.b16 %v5825
        %v6425 = vunpack.c.l.b16 %v5826
        %v6426 = vunpack.c.h.b16 %v5826
        %v6427 = vunpack.c.l.b16 %v5827
        %v6428 = vunpack.c.h.b16 %v5827
        %v6429 = vunpack.c.l.b16 %v5828
        %v6430 = vunpack.c.h.b16 %v5828
        %v6431 = vunpack.c.l.b16 %v5829
        %v6432 = vunpack.c.h.b16 %v5829
        %v6433 = vunpack.c.l.b16 %v5830
        %v6434 = vunpack.c.h.b16 %v5830
        %v6435 = vunpack.c.l.b16 %v5831
        %v6436 = vunpack.c.h.b16 %v5831
        %v6437 = vunpack.c.l.b16 %v5832
        %v6438 = vunpack.c.h.b16 %v5832
        %v6439 = vunpack.c.l.b16 %v5833
        %v6440 = vunpack.c.h.b16 %v5833
        %v6441 = vunpack.c.l.b16 %v5834
        %v6442 = vunpack.c.h.b16 %v5834
        %v6443 = vpack.c.b16 %v6387, %v6379
        %v6444 = vpack.c.b16 %v6388, %v6380
        %v6445 = vpack.c.b16 %v6389, %v6381
        %v6446 = vpack.c.b16 %v6390, %v6382
        %v6447 = vpack.c.b16 %v6391, %v6383
        %v6448 = vpack.c.b16 %v6392, %v6384
        %v6449 = vpack.c.b16 %v6393, %v6385
        %v6450 = vpack.c.b16 %v6394, %v6386
        %v6451 = vpack.c.b16 %v6403, %v6395
        %v6452 = vpack.c.b16 %v6404, %v6396
        %v6453 = vpack.c.b16 %v6405, %v6397
        %v6454 = vpack.c.b16 %v6406, %v6398
        %v6455 = vpack.c.b16 %v6407, %v6399
        %v6456 = vpack.c.b16 %v6408, %v6400
        %v6457 = vpack.c.b16 %v6409, %v6401
        %v6458 = vpack.c.b16 %v6410, %v6402
        %v6459 = vpack.c.b16 %v6419, %v6411
        %v6460 = vpack.c.b16 %v6420, %v6412
        %v6461 = vpack.c.b16 %v6421, %v6413
        %v6462 = vpack.c.b16 %v6422, %v6414
        %v6463 = vpack.c.b16 %v6423, %v6415
        %v6464 = vpack.c.b16 %v6424, %v6416
        %v6465 = vpack.c.b16 %v6425, %v6417
        %v6466 = vpack.c.b16 %v6426, %v6418
        %v6467 = vpack.c.b16 %v6435, %v6427
        %v6468 = vpack.c.b16 %v6436, %v6428
        %v6469 = vpack.c.b16 %v6437, %v6429
        %v6470 = vpack.c.b16 %v6438, %v6430
        %v6471 = vpack.c.b16 %v6439, %v6431
        %v6472 = vpack.c.b16 %v6440, %v6432
        %v6473 = vpack.c.b16 %v6441, %v6433
        %v6474 = vpack.c.b16 %v6442, %v6434
        %v7019 = vunpack.c.l.b16 %v5835
        %v7020 = vunpack.c.h.b16 %v5835
        %v7021 = vunpack.c.l.b16 %v5836
        %v7022 = vunpack.c.h.b16 %v5836
        %v7023 = vunpack.c.l.b16 %v5837
        %v7024 = vunpack.c.h.b16 %v5837
        %v7025 = vunpack.c.l.b16 %v5838
        %v7026 = vunpack.c.h.b16 %v5838
        %v7027 = vunpack.c.l.b16 %v5839
        %v7028 = vunpack.c.h.b16 %v5839
        %v7029 = vunpack.c.l.b16 %v5840
        %v7030 = vunpack.c.h.b16 %v5840
        %v7031 = vunpack.c.l.b16 %v5841
        %v7032 = vunpack.c.h.b16 %v5841
        %v7033 = vunpack.c.l.b16 %v5842
        %v7034 = vunpack.c.h.b16 %v5842
        %v7035 = vunpack.c.l.b16 %v5843
        %v7036 = vunpack.c.h.b16 %v5843
        %v7037 = vunpack.c.l.b16 %v5844
        %v7038 = vunpack.c.h.b16 %v5844
        %v7039 = vunpack.c.l.b16 %v5845
        %v7040 = vunpack.c.h.b16 %v5845
        %v7041 = vunpack.c.l.b16 %v5846
        %v7042 = vunpack.c.h.b16 %v5846
        %v7043 = vunpack.c.l.b16 %v5847
        %v7044 = vunpack.c.h.b16 %v5847
        %v7045 = vunpack.c.l.b16 %v5848
        %v7046 = vunpack.c.h.b16 %v5848
        %v7047 = vunpack.c.l.b16 %v5849
        %v7048 = vunpack.c.h.b16 %v5849
        %v7049 = vunpack.c.l.b16 %v5850
        %v7050 = vunpack.c.h.b16 %v5850
        %v7051 = vunpack.c.l.b16 %v5851
        %v7052 = vunpack.c.h.b16 %v5851
        %v7053 = vunpack.c.l.b16 %v5852
        %v7054 = vunpack.c.h.b16 %v5852
        %v7055 = vunpack.c.l.b16 %v5853
        %v7056 = vunpack.c.h.b16 %v5853
        %v7057 = vunpack.c.l.b16 %v5854
        %v7058 = vunpack.c.h.b16 %v5854
        %v7059 = vunpack.c.l.b16 %v5855
        %v7060 = vunpack.c.h.b16 %v5855
        %v7061 = vunpack.c.l.b16 %v5856
        %v7062 = vunpack.c.h.b16 %v5856
        %v7063 = vunpack.c.l.b16 %v5857
        %v7064 = vunpack.c.h.b16 %v5857
        %v7065 = vunpack.c.l.b16 %v5858
        %v7066 = vunpack.c.h.b16 %v5858
        %v7067 = vunpack.c.l.b16 %v5859
        %v7068 = vunpack.c.h.b16 %v5859
        %v7069 = vunpack.c.l.b16 %v5860
        %v7070 = vunpack.c.h.b16 %v5860
        %v7071 = vunpack.c.l.b16 %v5861
        %v7072 = vunpack.c.h.b16 %v5861
        %v7073 = vunpack.c.l.b16 %v5862
        %v7074 = vunpack.c.h.b16 %v5862
        %v7075 = vunpack.c.l.b16 %v5863
        %v7076 = vunpack.c.h.b16 %v5863
        %v7077 = vunpack.c.l.b16 %v5864
        %v7078 = vunpack.c.h.b16 %v5864
        %v7079 = vunpack.c.l.b16 %v5865
        %v7080 = vunpack.c.h.b16 %v5865
        %v7081 = vunpack.c.l.b16 %v5866
        %v7082 = vunpack.c.h.b16 %v5866
        %v7083 = vunpack.c.l.b16 %v5867
        %v7084 = vunpack.c.h.b16 %v5867
        %v7085 = vunpack.c.l.b16 %v5868
        %v7086 = vunpack.c.h.b16 %v5868
        %v7087 = vunpack.c.l.b16 %v5869
        %v7088 = vunpack.c.h.b16 %v5869
        %v7089 = vunpack.c.l.b16 %v5870
        %v7090 = vunpack.c.h.b16 %v5870
        %v7091 = vunpack.c.l.b16 %v5871
        %v7092 = vunpack.c.h.b16 %v5871
        %v7093 = vunpack.c.l.b16 %v5872
        %v7094 = vunpack.c.h.b16 %v5872
        %v7095 = vunpack.c.l.b16 %v5873
        %v7096 = vunpack.c.h.b16 %v5873
        %v7097 = vunpack.c.l.b16 %v5874
        %v7098 = vunpack.c.h.b16 %v5874
        %v7099 = vunpack.c.l.b16 %v5875
        %v7100 = vunpack.c.h.b16 %v5875
        %v7101 = vunpack.c.l.b16 %v5876
        %v7102 = vunpack.c.h.b16 %v5876
        %v7103 = vunpack.c.l.b16 %v5877
        %v7104 = vunpack.c.h.b16 %v5877
        %v7105 = vunpack.c.l.b16 %v5878
        %v7106 = vunpack.c.h.b16 %v5878
        %v7107 = vunpack.c.l.b16 %v5879
        %v7108 = vunpack.c.h.b16 %v5879
        %v7109 = vunpack.c.l.b16 %v5880
        %v7110 = vunpack.c.h.b16 %v5880
        %v7111 = vunpack.c.l.b16 %v5881
        %v7112 = vunpack.c.h.b16 %v5881
        %v7113 = vunpack.c.l.b16 %v5882
        %v7114 = vunpack.c.h.b16 %v5882
        %v7115 = vunpack.c.l.b16 %v5883
        %v7116 = vunpack.c.h.b16 %v5883
        %v7117 = vunpack.c.l.b16 %v5884
        %v7118 = vunpack.c.h.b16 %v5884
        %v7119 = vunpack.c.l.b16 %v5885
        %v7120 = vunpack.c.h.b16 %v5885
        %v7121 = vunpack.c.l.b16 %v5886
        %v7122 = vunpack.c.h.b16 %v5886
        %v7123 = vunpack.c.l.b16 %v5887
        %v7124 = vunpack.c.h.b16 %v5887
        %v7125 = vunpack.c.l.b16 %v5888
        %v7126 = vunpack.c.h.b16 %v5888
        %v7127 = vunpack.c.l.b16 %v5889
        %v7128 = vunpack.c.h.b16 %v5889
        %v7129 = vunpack.c.l.b16 %v5890
        %v7130 = vunpack.c.h.b16 %v5890
        %v7131 = vunpack.c.l.b16 %v5891
        %v7132 = vunpack.c.h.b16 %v5891
        %v7133 = vunpack.c.l.b16 %v5892
        %v7134 = vunpack.c.h.b16 %v5892
        %v7135 = vunpack.c.l.b16 %v5893
        %v7136 = vunpack.c.h.b16 %v5893
        %v7137 = vunpack.c.l.b16 %v5894
        %v7138 = vunpack.c.h.b16 %v5894
        %v7139 = vunpack.c.l.b16 %v5895
        %v7140 = vunpack.c.h.b16 %v5895
        %v7141 = vunpack.c.l.b16 %v5896
        %v7142 = vunpack.c.h.b16 %v5896
        %v7143 = vunpack.c.l.b16 %v5897
        %v7144 = vunpack.c.h.b16 %v5897
        %v7145 = vunpack.c.l.b16 %v5898
        %v7146 = vunpack.c.h.b16 %v5898
        %v7147 = vunpack.c.l.b16 %v5899
        %v7148 = vunpack.c.h.b16 %v5899
        %v7149 = vunpack.c.l.b16 %v5900
        %v7150 = vunpack.c.h.b16 %v5900
        %v7151 = vunpack.c.l.b16 %v5901
        %v7152 = vunpack.c.h.b16 %v5901
        %v7153 = vunpack.c.l.b16 %v5902
        %v7154 = vunpack.c.h.b16 %v5902
        %v7155 = vunpack.c.l.b16 %v5903
        %v7156 = vunpack.c.h.b16 %v5903
        %v7157 = vunpack.c.l.b16 %v5904
        %v7158 = vunpack.c.h.b16 %v5904
        %v7159 = vunpack.c.l.b16 %v5905
        %v7160 = vunpack.c.h.b16 %v5905
        %v7161 = vunpack.c.l.b16 %v5906
        %v7162 = vunpack.c.h.b16 %v5906
        %v7163 = vunpack.c.l.b16 %v5907
        %v7164 = vunpack.c.h.b16 %v5907
        %v7165 = vunpack.c.l.b16 %v5908
        %v7166 = vunpack.c.h.b16 %v5908
        %v7167 = vunpack.c.l.b16 %v5909
        %v7168 = vunpack.c.h.b16 %v5909
        %v7169 = vunpack.c.l.b16 %v5910
        %v7170 = vunpack.c.h.b16 %v5910
        %v7171 = vunpack.c.l.b16 %v5911
        %v7172 = vunpack.c.h.b16 %v5911
        %v7173 = vunpack.c.l.b16 %v5912
        %v7174 = vunpack.c.h.b16 %v5912
        %v7175 = vunpack.c.l.b16 %v5913
        %v7176 = vunpack.c.h.b16 %v5913
        %v7177 = vunpack.c.l.b16 %v5914
        %v7178 = vunpack.c.h.b16 %v5914
        %v7179 = vunpack.c.l.b16 %v5915
        %v7180 = vunpack.c.h.b16 %v5915
        %v7181 = vunpack.c.l.b16 %v5916
        %v7182 = vunpack.c.h.b16 %v5916
        %v7183 = vunpack.c.l.b16 %v5917
        %v7184 = vunpack.c.h.b16 %v5917
        %v7185 = vunpack.c.l.b16 %v5918
        %v7186 = vunpack.c.h.b16 %v5918
        %v7187 = vunpack.c.l.b16 %v5919
        %v7188 = vunpack.c.h.b16 %v5919
        %v7189 = vunpack.c.l.b16 %v5920
        %v7190 = vunpack.c.h.b16 %v5920
        %v7191 = vunpack.c.l.b16 %v5921
        %v7192 = vunpack.c.h.b16 %v5921
        %v7193 = vunpack.c.l.b16 %v5922
        %v7194 = vunpack.c.h.b16 %v5922
        %v7195 = vunpack.c.l.b16 %v5923
        %v7196 = vunpack.c.h.b16 %v5923
        %v7197 = vunpack.c.l.b16 %v5924
        %v7198 = vunpack.c.h.b16 %v5924
        %v7199 = vunpack.c.l.b16 %v5925
        %v7200 = vunpack.c.h.b16 %v5925
        %v7201 = vunpack.c.l.b16 %v5926
        %v7202 = vunpack.c.h.b16 %v5926
        %v7203 = vunpack.c.l.b16 %v5927
        %v7204 = vunpack.c.h.b16 %v5927
        %v7205 = vunpack.c.l.b16 %v5928
        %v7206 = vunpack.c.h.b16 %v5928
        %v7207 = vunpack.c.l.b16 %v5929
        %v7208 = vunpack.c.h.b16 %v5929
        %v7209 = vunpack.c.l.b16 %v5930
        %v7210 = vunpack.c.h.b16 %v5930
        %v7211 = vunpack.c.l.b16 %v5931
        %v7212 = vunpack.c.h.b16 %v5931
        %v7213 = vunpack.c.l.b16 %v5932
        %v7214 = vunpack.c.h.b16 %v5932
        %v7215 = vunpack.c.l.b16 %v5933
        %v7216 = vunpack.c.h.b16 %v5933
        %v7217 = vunpack.c.l.b16 %v5934
        %v7218 = vunpack.c.h.b16 %v5934
        %v7219 = vunpack.c.l.b16 %v5935
        %v7220 = vunpack.c.h.b16 %v5935
        %v7221 = vunpack.c.l.b16 %v5936
        %v7222 = vunpack.c.h.b16 %v5936
        %v7223 = vunpack.c.l.b16 %v5937
        %v7224 = vunpack.c.h.b16 %v5937
        %v7225 = vunpack.c.l.b16 %v5938
        %v7226 = vunpack.c.h.b16 %v5938
        %v7227 = vunpack.c.l.b16 %v5939
        %v7228 = vunpack.c.h.b16 %v5939
        %v7229 = vunpack.c.l.b16 %v5940
        %v7230 = vunpack.c.h.b16 %v5940
        %v7231 = vunpack.c.l.b16 %v5941
        %v7232 = vunpack.c.h.b16 %v5941
        %v7233 = vunpack.c.l.b16 %v5942
        %v7234 = vunpack.c.h.b16 %v5942
        %v7235 = vunpack.c.l.b16 %v5943
        %v7236 = vunpack.c.h.b16 %v5943
        %v7237 = vunpack.c.l.b16 %v5944
        %v7238 = vunpack.c.h.b16 %v5944
        %v7239 = vunpack.c.l.b16 %v5945
        %v7240 = vunpack.c.h.b16 %v5945
        %v7241 = vunpack.c.l.b16 %v5946
        %v7242 = vunpack.c.h.b16 %v5946
        %v7243 = vunpack.c.l.b16 %v5947
        %v7244 = vunpack.c.h.b16 %v5947
        %v7245 = vunpack.c.l.b16 %v5948
        %v7246 = vunpack.c.h.b16 %v5948
        %v7247 = vunpack.c.l.b16 %v5949
        %v7248 = vunpack.c.h.b16 %v5949
        %v7249 = vunpack.c.l.b16 %v5950
        %v7250 = vunpack.c.h.b16 %v5950
        %v7251 = vunpack.c.l.b16 %v5951
        %v7252 = vunpack.c.h.b16 %v5951
        %v7253 = vunpack.c.l.b16 %v5952
        %v7254 = vunpack.c.h.b16 %v5952
        %v7255 = vunpack.c.l.b16 %v5953
        %v7256 = vunpack.c.h.b16 %v5953
        %v7257 = vunpack.c.l.b16 %v5954
        %v7258 = vunpack.c.h.b16 %v5954
        %v7259 = vunpack.c.l.b16 %v5955
        %v7260 = vunpack.c.h.b16 %v5955
        %v7261 = vunpack.c.l.b16 %v5956
        %v7262 = vunpack.c.h.b16 %v5956
        %v7263 = vunpack.c.l.b16 %v5957
        %v7264 = vunpack.c.h.b16 %v5957
        %v7265 = vunpack.c.l.b16 %v5958
        %v7266 = vunpack.c.h.b16 %v5958
        %v7267 = vunpack.c.l.b16 %v5959
        %v7268 = vunpack.c.h.b16 %v5959
        %v7269 = vunpack.c.l.b16 %v5960
        %v7270 = vunpack.c.h.b16 %v5960
        %v7271 = vunpack.c.l.b16 %v5961
        %v7272 = vunpack.c.h.b16 %v5961
        %v7273 = vunpack.c.l.b16 %v5962
        %v7274 = vunpack.c.h.b16 %v5962
        %v7275 = vunpack.c.l.b16 %v5963
        %v7276 = vunpack.c.h.b16 %v5963
        %v7277 = vunpack.c.l.b16 %v5964
        %v7278 = vunpack.c.h.b16 %v5964
        %v7279 = vunpack.c.l.b16 %v5965
        %v7280 = vunpack.c.h.b16 %v5965
        %v7281 = vunpack.c.l.b16 %v5966
        %v7282 = vunpack.c.h.b16 %v5966
        %v7283 = vunpack.c.l.b16 %v5967
        %v7284 = vunpack.c.h.b16 %v5967
        %v7285 = vunpack.c.l.b16 %v5968
        %v7286 = vunpack.c.h.b16 %v5968
        %v7287 = vunpack.c.l.b16 %v5969
        %v7288 = vunpack.c.h.b16 %v5969
        %v7289 = vunpack.c.l.b16 %v5970
        %v7290 = vunpack.c.h.b16 %v5970
        %v7291 = vunpack.c.l.b16 %v5971
        %v7292 = vunpack.c.h.b16 %v5971
        %v7293 = vunpack.c.l.b16 %v5972
        %v7294 = vunpack.c.h.b16 %v5972
        %v7295 = vunpack.c.l.b16 %v5973
        %v7296 = vunpack.c.h.b16 %v5973
        %v7297 = vunpack.c.l.b16 %v5974
        %v7298 = vunpack.c.h.b16 %v5974
        %v7299 = vunpack.c.l.b16 %v5975
        %v7300 = vunpack.c.h.b16 %v5975
        %v7301 = vunpack.c.l.b16 %v5976
        %v7302 = vunpack.c.h.b16 %v5976
        %v7303 = vunpack.c.l.b16 %v5977
        %v7304 = vunpack.c.h.b16 %v5977
        %v7305 = vunpack.c.l.b16 %v5978
        %v7306 = vunpack.c.h.b16 %v5978
        %v7307 = vunpack.c.l.b16 %v5979
        %v7308 = vunpack.c.h.b16 %v5979
        %v7309 = vunpack.c.l.b16 %v5980
        %v7310 = vunpack.c.h.b16 %v5980
        %v7311 = vunpack.c.l.b16 %v5981
        %v7312 = vunpack.c.h.b16 %v5981
        %v7313 = vunpack.c.l.b16 %v5982
        %v7314 = vunpack.c.h.b16 %v5982
        %v7315 = vunpack.c.l.b16 %v5983
        %v7316 = vunpack.c.h.b16 %v5983
        %v7317 = vunpack.c.l.b16 %v5984
        %v7318 = vunpack.c.h.b16 %v5984
        %v7319 = vunpack.c.l.b16 %v5985
        %v7320 = vunpack.c.h.b16 %v5985
        %v7321 = vunpack.c.l.b16 %v5986
        %v7322 = vunpack.c.h.b16 %v5986
        %v7323 = vunpack.c.l.b16 %v5987
        %v7324 = vunpack.c.h.b16 %v5987
        %v7325 = vunpack.c.l.b16 %v5988
        %v7326 = vunpack.c.h.b16 %v5988
        %v7327 = vunpack.c.l.b16 %v5989
        %v7328 = vunpack.c.h.b16 %v5989
        %v7329 = vunpack.c.l.b16 %v5990
        %v7330 = vunpack.c.h.b16 %v5990
        %v7331 = vunpack.c.l.b16 %v5991
        %v7332 = vunpack.c.h.b16 %v5991
        %v7333 = vunpack.c.l.b16 %v5992
        %v7334 = vunpack.c.h.b16 %v5992
        %v7335 = vunpack.c.l.b16 %v5993
        %v7336 = vunpack.c.h.b16 %v5993
        %v7337 = vunpack.c.l.b16 %v5994
        %v7338 = vunpack.c.h.b16 %v5994
        %v7339 = vunpack.c.l.b16 %v5995
        %v7340 = vunpack.c.h.b16 %v5995
        %v7341 = vunpack.c.l.b16 %v5996
        %v7342 = vunpack.c.h.b16 %v5996
        %v7343 = vunpack.c.l.b16 %v5997
        %v7344 = vunpack.c.h.b16 %v5997
        %v7345 = vunpack.c.l.b16 %v5998
        %v7346 = vunpack.c.h.b16 %v5998
        %v7347 = vunpack.c.l.b16 %v5999
        %v7348 = vunpack.c.h.b16 %v5999
        %v7349 = vunpack.c.l.b16 %v6000
        %v7350 = vunpack.c.h.b16 %v6000
        %v7351 = vunpack.c.l.b16 %v6001
        %v7352 = vunpack.c.h.b16 %v6001
        %v7353 = vunpack.c.l.b16 %v6002
        %v7354 = vunpack.c.h.b16 %v6002
        %v7355 = vunpack.c.l.b16 %v6003
        %v7356 = vunpack.c.h.b16 %v6003
        %v7357 = vunpack.c.l.b16 %v6004
        %v7358 = vunpack.c.h.b16 %v6004
        %v7359 = vunpack.c.l.b16 %v6005
        %v7360 = vunpack.c.h.b16 %v6005
        %v7361 = vunpack.c.l.b16 %v6006
        %v7362 = vunpack.c.h.b16 %v6006
        %v7363 = vunpack.c.l.b16 %v6007
        %v7364 = vunpack.c.h.b16 %v6007
        %v7365 = vunpack.c.l.b16 %v6008
        %v7366 = vunpack.c.h.b16 %v6008
        %v7367 = vunpack.c.l.b16 %v6009
        %v7368 = vunpack.c.h.b16 %v6009
        %v7369 = vunpack.c.l.b16 %v6010
        %v7370 = vunpack.c.h.b16 %v6010
        %v7371 = vunpack.c.l.b16 %v6011
        %v7372 = vunpack.c.h.b16 %v6011
        %v7373 = vunpack.c.l.b16 %v6012
        %v7374 = vunpack.c.h.b16 %v6012
        %v7375 = vunpack.c.l.b16 %v6013
        %v7376 = vunpack.c.h.b16 %v6013
        %v7377 = vunpack.c.l.b16 %v6014
        %v7378 = vunpack.c.h.b16 %v6014
        %v7379 = vunpack.c.l.b16 %v6015
        %v7380 = vunpack.c.h.b16 %v6015
        %v7381 = vunpack.c.l.b16 %v6016
        %v7382 = vunpack.c.h.b16 %v6016
        %v7383 = vunpack.c.l.b16 %v6017
        %v7384 = vunpack.c.h.b16 %v6017
        %v7385 = vunpack.c.l.b16 %v6018
        %v7386 = vunpack.c.h.b16 %v6018
        %v7387 = vunpack.c.l.b16 %v6019
        %v7388 = vunpack.c.h.b16 %v6019
        %v7389 = vunpack.c.l.b16 %v6020
        %v7390 = vunpack.c.h.b16 %v6020
        %v7391 = vunpack.c.l.b16 %v6021
        %v7392 = vunpack.c.h.b16 %v6021
        %v7393 = vunpack.c.l.b16 %v6022
        %v7394 = vunpack.c.h.b16 %v6022
        %v7395 = vunpack.c.l.b16 %v6023
        %v7396 = vunpack.c.h.b16 %v6023
        %v7397 = vunpack.c.l.b16 %v6024
        %v7398 = vunpack.c.h.b16 %v6024
        %v7399 = vunpack.c.l.b16 %v6025
        %v7400 = vunpack.c.h.b16 %v6025
        %v7401 = vunpack.c.l.b16 %v6026
        %v7402 = vunpack.c.h.b16 %v6026
        %v7403 = vunpack.c.l.b16 %v6027
        %v7404 = vunpack.c.h.b16 %v6027
        %v7405 = vunpack.c.l.b16 %v6028
        %v7406 = vunpack.c.h.b16 %v6028
        %v7407 = vunpack.c.l.b16 %v6029
        %v7408 = vunpack.c.h.b16 %v6029
        %v7409 = vunpack.c.l.b16 %v6030
        %v7410 = vunpack.c.h.b16 %v6030
        %v7411 = vunpack.c.l.b16 %v6031
        %v7412 = vunpack.c.h.b16 %v6031
        %v7413 = vunpack.c.l.b16 %v6032
        %v7414 = vunpack.c.h.b16 %v6032
        %v7415 = vunpack.c.l.b16 %v6033
        %v7416 = vunpack.c.h.b16 %v6033
        %v7417 = vunpack.c.l.b16 %v6034
        %v7418 = vunpack.c.h.b16 %v6034
        %v7419 = vunpack.c.l.b16 %v6035
        %v7420 = vunpack.c.h.b16 %v6035
        %v7421 = vunpack.c.l.b16 %v6036
        %v7422 = vunpack.c.h.b16 %v6036
        %v7423 = vunpack.c.l.b16 %v6037
        %v7424 = vunpack.c.h.b16 %v6037
        %v7425 = vunpack.c.l.b16 %v6038
        %v7426 = vunpack.c.h.b16 %v6038
        %v7427 = vunpack.c.l.b16 %v6039
        %v7428 = vunpack.c.h.b16 %v6039
        %v7429 = vunpack.c.l.b16 %v6040
        %v7430 = vunpack.c.h.b16 %v6040
        %v7431 = vunpack.c.l.b16 %v6041
        %v7432 = vunpack.c.h.b16 %v6041
        %v7433 = vunpack.c.l.b16 %v6042
        %v7434 = vunpack.c.h.b16 %v6042
        %v7435 = vunpack.c.l.b16 %v6043
        %v7436 = vunpack.c.h.b16 %v6043
        %v7437 = vunpack.c.l.b16 %v6044
        %v7438 = vunpack.c.h.b16 %v6044
        %v7439 = vunpack.c.l.b16 %v6045
        %v7440 = vunpack.c.h.b16 %v6045
        %v7441 = vunpack.c.l.b16 %v6046
        %v7442 = vunpack.c.h.b16 %v6046
        %v7443 = vunpack.c.l.b16 %v6047
        %v7444 = vunpack.c.h.b16 %v6047
        %v7445 = vunpack.c.l.b16 %v6048
        %v7446 = vunpack.c.h.b16 %v6048
        %v7447 = vunpack.c.l.b16 %v6049
        %v7448 = vunpack.c.h.b16 %v6049
        %v7449 = vunpack.c.l.b16 %v6050
        %v7450 = vunpack.c.h.b16 %v6050
        %v7451 = vunpack.c.l.b16 %v6051
        %v7452 = vunpack.c.h.b16 %v6051
        %v7453 = vunpack.c.l.b16 %v6052
        %v7454 = vunpack.c.h.b16 %v6052
        %v7455 = vunpack.c.l.b16 %v6053
        %v7456 = vunpack.c.h.b16 %v6053
        %v7457 = vunpack.c.l.b16 %v6054
        %v7458 = vunpack.c.h.b16 %v6054
        %v7459 = vunpack.c.l.b16 %v6055
        %v7460 = vunpack.c.h.b16 %v6055
        %v7461 = vunpack.c.l.b16 %v6056
        %v7462 = vunpack.c.h.b16 %v6056
        %v7463 = vunpack.c.l.b16 %v6057
        %v7464 = vunpack.c.h.b16 %v6057
        %v7465 = vunpack.c.l.b16 %v6058
        %v7466 = vunpack.c.h.b16 %v6058
        %v7467 = vunpack.c.l.b16 %v6059
        %v7468 = vunpack.c.h.b16 %v6059
        %v7469 = vunpack.c.l.b16 %v6060
        %v7470 = vunpack.c.h.b16 %v6060
        %v7471 = vunpack.c.l.b16 %v6061
        %v7472 = vunpack.c.h.b16 %v6061
        %v7473 = vunpack.c.l.b16 %v6062
        %v7474 = vunpack.c.h.b16 %v6062
        %v7475 = vunpack.c.l.b16 %v6063
        %v7476 = vunpack.c.h.b16 %v6063
        %v7477 = vunpack.c.l.b16 %v6064
        %v7478 = vunpack.c.h.b16 %v6064
        %v7479 = vunpack.c.l.b16 %v6065
        %v7480 = vunpack.c.h.b16 %v6065
        %v7481 = vunpack.c.l.b16 %v6066
        %v7482 = vunpack.c.h.b16 %v6066
        %v7483 = vunpack.c.l.b16 %v6067
        %v7484 = vunpack.c.h.b16 %v6067
        %v7485 = vunpack.c.l.b16 %v6068
        %v7486 = vunpack.c.h.b16 %v6068
        %v7487 = vunpack.c.l.b16 %v6069
        %v7488 = vunpack.c.h.b16 %v6069
        %v7489 = vunpack.c.l.b16 %v6070
        %v7490 = vunpack.c.h.b16 %v6070
        %v7491 = vunpack.c.l.b16 %v6071
        %v7492 = vunpack.c.h.b16 %v6071
        %v7493 = vunpack.c.l.b16 %v6072
        %v7494 = vunpack.c.h.b16 %v6072
        %v7495 = vunpack.c.l.b16 %v6073
        %v7496 = vunpack.c.h.b16 %v6073
        %v7497 = vunpack.c.l.b16 %v6074
        %v7498 = vunpack.c.h.b16 %v6074
        %v7499 = vunpack.c.l.b16 %v6075
        %v7500 = vunpack.c.h.b16 %v6075
        %v7501 = vunpack.c.l.b16 %v6076
        %v7502 = vunpack.c.h.b16 %v6076
        %v7503 = vunpack.c.l.b16 %v6077
        %v7504 = vunpack.c.h.b16 %v6077
        %v7505 = vunpack.c.l.b16 %v6078
        %v7506 = vunpack.c.h.b16 %v6078
        %v7507 = vunpack.c.l.b16 %v6079
        %v7508 = vunpack.c.h.b16 %v6079
        %v7509 = vunpack.c.l.b16 %v6080
        %v7510 = vunpack.c.h.b16 %v6080
        %v7511 = vunpack.c.l.b16 %v6081
        %v7512 = vunpack.c.h.b16 %v6081
        %v7513 = vunpack.c.l.b16 %v6082
        %v7514 = vunpack.c.h.b16 %v6082
        %v7515 = vunpack.c.l.b16 %v6083
        %v7516 = vunpack.c.h.b16 %v6083
        %v7517 = vunpack.c.l.b16 %v6084
        %v7518 = vunpack.c.h.b16 %v6084
        %v7519 = vunpack.c.l.b16 %v6085
        %v7520 = vunpack.c.h.b16 %v6085
        %v7521 = vunpack.c.l.b16 %v6086
        %v7522 = vunpack.c.h.b16 %v6086
        %v7523 = vunpack.c.l.b16 %v6087
        %v7524 = vunpack.c.h.b16 %v6087
        %v7525 = vunpack.c.l.b16 %v6088
        %v7526 = vunpack.c.h.b16 %v6088
        %v7527 = vunpack.c.l.b16 %v6089
        %v7528 = vunpack.c.h.b16 %v6089
        %v7529 = vunpack.c.l.b16 %v6090
        %v7530 = vunpack.c.h.b16 %v6090
        %v7531 = vunpack.c.l.b16 %v6091
        %v7532 = vunpack.c.h.b16 %v6091
        %v7533 = vunpack.c.l.b16 %v6092
        %v7534 = vunpack.c.h.b16 %v6092
        %v7535 = vunpack.c.l.b16 %v6093
        %v7536 = vunpack.c.h.b16 %v6093
        %v7537 = vunpack.c.l.b16 %v6094
        %v7538 = vunpack.c.h.b16 %v6094
        %v7539 = vunpack.c.l.b16 %v6095
        %v7540 = vunpack.c.h.b16 %v6095
        %v7541 = vunpack.c.l.b16 %v6096
        %v7542 = vunpack.c.h.b16 %v6096
        %v7543 = vunpack.c.l.b16 %v6097
        %v7544 = vunpack.c.h.b16 %v6097
        %v7545 = vunpack.c.l.b16 %v6098
        %v7546 = vunpack.c.h.b16 %v6098
        %v7547 = vunpack.c.l.b16 %v6099
        %v7548 = vunpack.c.h.b16 %v6099
        %v7549 = vunpack.c.l.b16 %v6100
        %v7550 = vunpack.c.h.b16 %v6100
        %v7551 = vunpack.c.l.b16 %v6101
        %v7552 = vunpack.c.h.b16 %v6101
        %v7553 = vunpack.c.l.b16 %v6102
        %v7554 = vunpack.c.h.b16 %v6102
        %v7555 = vunpack.c.l.b16 %v6103
        %v7556 = vunpack.c.h.b16 %v6103
        %v7557 = vunpack.c.l.b16 %v6104
        %v7558 = vunpack.c.h.b16 %v6104
        %v7559 = vunpack.c.l.b16 %v6105
        %v7560 = vunpack.c.h.b16 %v6105
        %v7561 = vunpack.c.l.b16 %v6106
        %v7562 = vunpack.c.h.b16 %v6106
        %v7563 = vunpack.c.l.b16 %v6107
        %v7564 = vunpack.c.h.b16 %v6107
        %v7565 = vunpack.c.l.b16 %v6108
        %v7566 = vunpack.c.h.b16 %v6108
        %v7567 = vunpack.c.l.b16 %v6109
        %v7568 = vunpack.c.h.b16 %v6109
        %v7569 = vunpack.c.l.b16 %v6110
        %v7570 = vunpack.c.h.b16 %v6110
        %v7571 = vunpack.c.l.b16 %v6111
        %v7572 = vunpack.c.h.b16 %v6111
        %v7573 = vunpack.c.l.b16 %v6112
        %v7574 = vunpack.c.h.b16 %v6112
        %v7575 = vunpack.c.l.b16 %v6113
        %v7576 = vunpack.c.h.b16 %v6113
        %v7577 = vunpack.c.l.b16 %v6114
        %v7578 = vunpack.c.h.b16 %v6114
        %v7579 = vunpack.c.l.b16 %v6115
        %v7580 = vunpack.c.h.b16 %v6115
        %v7581 = vunpack.c.l.b16 %v6116
        %v7582 = vunpack.c.h.b16 %v6116
        %v7583 = vunpack.c.l.b16 %v6117
        %v7584 = vunpack.c.h.b16 %v6117
        %v7585 = vunpack.c.l.b16 %v6118
        %v7586 = vunpack.c.h.b16 %v6118
        %v7587 = vunpack.c.l.b16 %v6119
        %v7588 = vunpack.c.h.b16 %v6119
        %v7589 = vunpack.c.l.b16 %v6120
        %v7590 = vunpack.c.h.b16 %v6120
        %v7591 = vunpack.c.l.b16 %v6121
        %v7592 = vunpack.c.h.b16 %v6121
        %v7593 = vunpack.c.l.b16 %v6122
        %v7594 = vunpack.c.h.b16 %v6122
        %v7595 = vunpack.c.l.b16 %v6123
        %v7596 = vunpack.c.h.b16 %v6123
        %v7597 = vunpack.c.l.b16 %v6124
        %v7598 = vunpack.c.h.b16 %v6124
        %v7599 = vunpack.c.l.b16 %v6125
        %v7600 = vunpack.c.h.b16 %v6125
        %v7601 = vunpack.c.l.b16 %v6126
        %v7602 = vunpack.c.h.b16 %v6126
        %v7603 = vunpack.c.l.b16 %v6127
        %v7604 = vunpack.c.h.b16 %v6127
        %v7605 = vunpack.c.l.b16 %v6128
        %v7606 = vunpack.c.h.b16 %v6128
        %v7607 = vunpack.c.l.b16 %v6129
        %v7608 = vunpack.c.h.b16 %v6129
        %v7609 = vunpack.c.l.b16 %v6130
        %v7610 = vunpack.c.h.b16 %v6130
        %v7611 = vunpack.c.l.b16 %v6131
        %v7612 = vunpack.c.h.b16 %v6131
        %v7613 = vunpack.c.l.b16 %v6132
        %v7614 = vunpack.c.h.b16 %v6132
        %v7615 = vunpack.c.l.b16 %v6133
        %v7616 = vunpack.c.h.b16 %v6133
        %v7617 = vunpack.c.l.b16 %v6134
        %v7618 = vunpack.c.h.b16 %v6134
        %v7619 = vunpack.c.l.b16 %v6135
        %v7620 = vunpack.c.h.b16 %v6135
        %v7621 = vunpack.c.l.b16 %v6136
        %v7622 = vunpack.c.h.b16 %v6136
        %v7623 = vunpack.c.l.b16 %v6137
        %v7624 = vunpack.c.h.b16 %v6137
        %v7625 = vunpack.c.l.b16 %v6138
        %v7626 = vunpack.c.h.b16 %v6138
        %v7627 = vunpack.c.l.b16 %v6139
        %v7628 = vunpack.c.h.b16 %v6139
        %v7629 = vunpack.c.l.b16 %v6140
        %v7630 = vunpack.c.h.b16 %v6140
        %v7631 = vunpack.c.l.b16 %v6141
        %v7632 = vunpack.c.h.b16 %v6141
        %v7633 = vunpack.c.l.b16 %v6142
        %v7634 = vunpack.c.h.b16 %v6142
        %v7635 = vunpack.c.l.b16 %v6143
        %v7636 = vunpack.c.h.b16 %v6143
        %v7637 = vunpack.c.l.b16 %v6144
        %v7638 = vunpack.c.h.b16 %v6144
        %v7639 = vunpack.c.l.b16 %v6145
        %v7640 = vunpack.c.h.b16 %v6145
        %v7641 = vunpack.c.l.b16 %v6146
        %v7642 = vunpack.c.h.b16 %v6146
        %v7643 = vunpack.c.l.b16 %v6147
        %v7644 = vunpack.c.h.b16 %v6147
        %v7645 = vunpack.c.l.b16 %v6148
        %v7646 = vunpack.c.h.b16 %v6148
        %v7647 = vunpack.c.l.b16 %v6149
        %v7648 = vunpack.c.h.b16 %v6149
        %v7649 = vunpack.c.l.b16 %v6150
        %v7650 = vunpack.c.h.b16 %v6150
        %v7651 = vunpack.c.l.b16 %v6151
        %v7652 = vunpack.c.h.b16 %v6151
        %v7653 = vunpack.c.l.b16 %v6152
        %v7654 = vunpack.c.h.b16 %v6152
        %v7655 = vunpack.c.l.b16 %v6153
        %v7656 = vunpack.c.h.b16 %v6153
        %v7657 = vunpack.c.l.b16 %v6154
        %v7658 = vunpack.c.h.b16 %v6154
        %v7659 = vunpack.c.l.b16 %v6155
        %v7660 = vunpack.c.h.b16 %v6155
        %v7661 = vunpack.c.l.b16 %v6156
        %v7662 = vunpack.c.h.b16 %v6156
        %v7663 = vunpack.c.l.b16 %v6157
        %v7664 = vunpack.c.h.b16 %v6157
        %v7665 = vunpack.c.l.b16 %v6158
        %v7666 = vunpack.c.h.b16 %v6158
        %v7667 = vunpack.c.l.b16 %v6159
        %v7668 = vunpack.c.h.b16 %v6159
        %v7669 = vunpack.c.l.b16 %v6160
        %v7670 = vunpack.c.h.b16 %v6160
        %v7671 = vunpack.c.l.b16 %v6161
        %v7672 = vunpack.c.h.b16 %v6161
        %v7673 = vunpack.c.l.b16 %v6162
        %v7674 = vunpack.c.h.b16 %v6162
        %v7675 = vunpack.c.l.b16 %v6163
        %v7676 = vunpack.c.h.b16 %v6163
        %v7677 = vunpack.c.l.b16 %v6164
        %v7678 = vunpack.c.h.b16 %v6164
        %v7679 = vunpack.c.l.b16 %v6165
        %v7680 = vunpack.c.h.b16 %v6165
        %v7681 = vunpack.c.l.b16 %v6166
        %v7682 = vunpack.c.h.b16 %v6166
        %v7683 = vunpack.c.l.b16 %v6167
        %v7684 = vunpack.c.h.b16 %v6167
        %v7685 = vunpack.c.l.b16 %v6168
        %v7686 = vunpack.c.h.b16 %v6168
        %v7687 = vunpack.c.l.b16 %v6169
        %v7688 = vunpack.c.h.b16 %v6169
        %v7689 = vunpack.c.l.b16 %v6170
        %v7690 = vunpack.c.h.b16 %v6170
        %v7691 = vunpack.c.l.b16 %v6171
        %v7692 = vunpack.c.h.b16 %v6171
        %v7693 = vunpack.c.l.b16 %v6172
        %v7694 = vunpack.c.h.b16 %v6172
        %v7695 = vunpack.c.l.b16 %v6173
        %v7696 = vunpack.c.h.b16 %v6173
        %v7697 = vunpack.c.l.b16 %v6174
        %v7698 = vunpack.c.h.b16 %v6174
        %v7699 = vunpack.c.l.b16 %v6175
        %v7700 = vunpack.c.h.b16 %v6175
        %v7701 = vunpack.c.l.b16 %v6176
        %v7702 = vunpack.c.h.b16 %v6176
        %v7703 = vunpack.c.l.b16 %v6177
        %v7704 = vunpack.c.h.b16 %v6177
        %v7705 = vunpack.c.l.b16 %v6178
        %v7706 = vunpack.c.h.b16 %v6178
        %v7707 = vunpack.c.l.b16 %v6179
        %v7708 = vunpack.c.h.b16 %v6179
        %v7709 = vunpack.c.l.b16 %v6180
        %v7710 = vunpack.c.h.b16 %v6180
        %v7711 = vunpack.c.l.b16 %v6181
        %v7712 = vunpack.c.h.b16 %v6181
        %v7713 = vunpack.c.l.b16 %v6182
        %v7714 = vunpack.c.h.b16 %v6182
        %v7715 = vunpack.c.l.b16 %v6183
        %v7716 = vunpack.c.h.b16 %v6183
        %v7717 = vunpack.c.l.b16 %v6184
        %v7718 = vunpack.c.h.b16 %v6184
        %v7719 = vunpack.c.l.b16 %v6185
        %v7720 = vunpack.c.h.b16 %v6185
        %v7721 = vunpack.c.l.b16 %v6186
        %v7722 = vunpack.c.h.b16 %v6186
        %v7723 = vunpack.c.l.b16 %v6187
        %v7724 = vunpack.c.h.b16 %v6187
        %v7725 = vunpack.c.l.b16 %v6188
        %v7726 = vunpack.c.h.b16 %v6188
        %v7727 = vunpack.c.l.b16 %v6189
        %v7728 = vunpack.c.h.b16 %v6189
        %v7729 = vunpack.c.l.b16 %v6190
        %v7730 = vunpack.c.h.b16 %v6190
        %v7731 = vunpack.c.l.b16 %v6191
        %v7732 = vunpack.c.h.b16 %v6191
        %v7733 = vunpack.c.l.b16 %v6192
        %v7734 = vunpack.c.h.b16 %v6192
        %v7735 = vunpack.c.l.b16 %v6193
        %v7736 = vunpack.c.h.b16 %v6193
        %v7737 = vunpack.c.l.b16 %v6194
        %v7738 = vunpack.c.h.b16 %v6194
        %v7739 = vunpack.c.l.b16 %v6195
        %v7740 = vunpack.c.h.b16 %v6195
        %v7741 = vunpack.c.l.b16 %v6196
        %v7742 = vunpack.c.h.b16 %v6196
        %v7743 = vunpack.c.l.b16 %v6197
        %v7744 = vunpack.c.h.b16 %v6197
        %v7745 = vunpack.c.l.b16 %v6198
        %v7746 = vunpack.c.h.b16 %v6198
        %v7747 = vunpack.c.l.b16 %v6199
        %v7748 = vunpack.c.h.b16 %v6199
        %v7749 = vunpack.c.l.b16 %v6200
        %v7750 = vunpack.c.h.b16 %v6200
        %v7751 = vunpack.c.l.b16 %v6201
        %v7752 = vunpack.c.h.b16 %v6201
        %v7753 = vunpack.c.l.b16 %v6202
        %v7754 = vunpack.c.h.b16 %v6202
        %v7755 = vunpack.c.l.b16 %v6203
        %v7756 = vunpack.c.h.b16 %v6203
        %v7757 = vunpack.c.l.b16 %v6204
        %v7758 = vunpack.c.h.b16 %v6204
        %v7759 = vunpack.c.l.b16 %v6205
        %v7760 = vunpack.c.h.b16 %v6205
        %v7761 = vunpack.c.l.b16 %v6206
        %v7762 = vunpack.c.h.b16 %v6206
        %v7763 = vunpack.c.l.b16 %v6207
        %v7764 = vunpack.c.h.b16 %v6207
        %v7765 = vunpack.c.l.b16 %v6208
        %v7766 = vunpack.c.h.b16 %v6208
        %v7767 = vunpack.c.l.b16 %v6209
        %v7768 = vunpack.c.h.b16 %v6209
        %v7769 = vunpack.c.l.b16 %v6210
        %v7770 = vunpack.c.h.b16 %v6210
        %v7771 = vunpack.c.l.b16 %v6211
        %v7772 = vunpack.c.h.b16 %v6211
        %v7773 = vunpack.c.l.b16 %v6212
        %v7774 = vunpack.c.h.b16 %v6212
        %v7775 = vunpack.c.l.b16 %v6213
        %v7776 = vunpack.c.h.b16 %v6213
        %v7777 = vunpack.c.l.b16 %v6214
        %v7778 = vunpack.c.h.b16 %v6214
        %v7779 = vunpack.c.l.b16 %v6215
        %v7780 = vunpack.c.h.b16 %v6215
        %v7781 = vunpack.c.l.b16 %v6216
        %v7782 = vunpack.c.h.b16 %v6216
        %v7783 = vunpack.c.l.b16 %v6217
        %v7784 = vunpack.c.h.b16 %v6217
        %v7785 = vunpack.c.l.b16 %v6218
        %v7786 = vunpack.c.h.b16 %v6218
        %v7787 = vunpack.c.l.b16 %v6219
        %v7788 = vunpack.c.h.b16 %v6219
        %v7789 = vunpack.c.l.b16 %v6220
        %v7790 = vunpack.c.h.b16 %v6220
        %v7791 = vunpack.c.l.b16 %v6221
        %v7792 = vunpack.c.h.b16 %v6221
        %v7793 = vunpack.c.l.b16 %v6222
        %v7794 = vunpack.c.h.b16 %v6222
        %v7795 = vunpack.c.l.b16 %v6223
        %v7796 = vunpack.c.h.b16 %v6223
        %v7797 = vunpack.c.l.b16 %v6224
        %v7798 = vunpack.c.h.b16 %v6224
        %v7799 = vunpack.c.l.b16 %v6225
        %v7800 = vunpack.c.h.b16 %v6225
        %v7801 = vunpack.c.l.b16 %v6226
        %v7802 = vunpack.c.h.b16 %v6226
        %v7803 = vunpack.c.l.b16 %v6227
        %v7804 = vunpack.c.h.b16 %v6227
        %v7805 = vunpack.c.l.b16 %v6228
        %v7806 = vunpack.c.h.b16 %v6228
        %v7807 = vunpack.c.l.b16 %v6229
        %v7808 = vunpack.c.h.b16 %v6229
        %v7809 = vunpack.c.l.b16 %v6230
        %v7810 = vunpack.c.h.b16 %v6230
        %v7811 = vunpack.c.l.b16 %v6231
        %v7812 = vunpack.c.h.b16 %v6231
        %v7813 = vunpack.c.l.b16 %v6232
        %v7814 = vunpack.c.h.b16 %v6232
        %v7815 = vunpack.c.l.b16 %v6233
        %v7816 = vunpack.c.h.b16 %v6233
        %v7817 = vunpack.c.l.b16 %v6234
        %v7818 = vunpack.c.h.b16 %v6234
        %v7819 = vunpack.c.l.b16 %v6235
        %v7820 = vunpack.c.h.b16 %v6235
        %v7821 = vunpack.c.l.b16 %v6236
        %v7822 = vunpack.c.h.b16 %v6236
        %v7823 = vunpack.c.l.b16 %v6237
        %v7824 = vunpack.c.h.b16 %v6237
        %v7825 = vunpack.c.l.b16 %v6238
        %v7826 = vunpack.c.h.b16 %v6238
        %v7827 = vunpack.c.l.b16 %v6239
        %v7828 = vunpack.c.h.b16 %v6239
        %v7829 = vunpack.c.l.b16 %v6240
        %v7830 = vunpack.c.h.b16 %v6240
        %v7831 = vunpack.c.l.b16 %v6241
        %v7832 = vunpack.c.h.b16 %v6241
        %v7833 = vunpack.c.l.b16 %v6242
        %v7834 = vunpack.c.h.b16 %v6242
        %v7835 = vunpack.c.l.b16 %v6243
        %v7836 = vunpack.c.h.b16 %v6243
        %v7837 = vunpack.c.l.b16 %v6244
        %v7838 = vunpack.c.h.b16 %v6244
        %v7839 = vunpack.c.l.b16 %v6245
        %v7840 = vunpack.c.h.b16 %v6245
        %v7841 = vunpack.c.l.b16 %v6246
        %v7842 = vunpack.c.h.b16 %v6246
        %v7843 = vunpack.c.l.b16 %v6247
        %v7844 = vunpack.c.h.b16 %v6247
        %v7845 = vunpack.c.l.b16 %v6248
        %v7846 = vunpack.c.h.b16 %v6248
        %v7847 = vunpack.c.l.b16 %v6249
        %v7848 = vunpack.c.h.b16 %v6249
        %v7849 = vunpack.c.l.b16 %v6250
        %v7850 = vunpack.c.h.b16 %v6250
        %v7851 = vunpack.c.l.b16 %v6251
        %v7852 = vunpack.c.h.b16 %v6251
        %v7853 = vunpack.c.l.b16 %v6252
        %v7854 = vunpack.c.h.b16 %v6252
        %v7855 = vunpack.c.l.b16 %v6253
        %v7856 = vunpack.c.h.b16 %v6253
        %v7857 = vunpack.c.l.b16 %v6254
        %v7858 = vunpack.c.h.b16 %v6254
        %v7859 = vunpack.c.l.b16 %v6255
        %v7860 = vunpack.c.h.b16 %v6255
        %v7861 = vunpack.c.l.b16 %v6256
        %v7862 = vunpack.c.h.b16 %v6256
        %v7863 = vunpack.c.l.b16 %v6257
        %v7864 = vunpack.c.h.b16 %v6257
        %v7865 = vunpack.c.l.b16 %v6258
        %v7866 = vunpack.c.h.b16 %v6258
        %v7867 = vunpack.c.l.b16 %v6259
        %v7868 = vunpack.c.h.b16 %v6259
        %v7869 = vunpack.c.l.b16 %v6260
        %v7870 = vunpack.c.h.b16 %v6260
        %v7871 = vunpack.c.l.b16 %v6261
        %v7872 = vunpack.c.h.b16 %v6261
        %v7873 = vunpack.c.l.b16 %v6262
        %v7874 = vunpack.c.h.b16 %v6262
        %v7875 = vunpack.c.l.b16 %v6263
        %v7876 = vunpack.c.h.b16 %v6263
        %v7877 = vunpack.c.l.b16 %v6264
        %v7878 = vunpack.c.h.b16 %v6264
        %v7879 = vunpack.c.l.b16 %v6265
        %v7880 = vunpack.c.h.b16 %v6265
        %v7881 = vunpack.c.l.b16 %v6266
        %v7882 = vunpack.c.h.b16 %v6266
        %v7883 = vunpack.c.l.b16 %v6267
        %v7884 = vunpack.c.h.b16 %v6267
        %v7885 = vunpack.c.l.b16 %v6268
        %v7886 = vunpack.c.h.b16 %v6268
        %v7887 = vunpack.c.l.b16 %v6269
        %v7888 = vunpack.c.h.b16 %v6269
        %v7889 = vunpack.c.l.b16 %v6270
        %v7890 = vunpack.c.h.b16 %v6270
        %v7891 = vunpack.c.l.b16 %v6271
        %v7892 = vunpack.c.h.b16 %v6271
        %v7893 = vunpack.c.l.b16 %v6272
        %v7894 = vunpack.c.h.b16 %v6272
        %v7895 = vunpack.c.l.b16 %v6273
        %v7896 = vunpack.c.h.b16 %v6273
        %v7897 = vunpack.c.l.b16 %v6274
        %v7898 = vunpack.c.h.b16 %v6274
        %v7899 = vunpack.c.l.b16 %v6275
        %v7900 = vunpack.c.h.b16 %v6275
        %v7901 = vunpack.c.l.b16 %v6276
        %v7902 = vunpack.c.h.b16 %v6276
        %v7903 = vunpack.c.l.b16 %v6277
        %v7904 = vunpack.c.h.b16 %v6277
        %v7905 = vunpack.c.l.b16 %v6278
        %v7906 = vunpack.c.h.b16 %v6278
        %v7907 = vunpack.c.l.b16 %v6279
        %v7908 = vunpack.c.h.b16 %v6279
        %v7909 = vunpack.c.l.b16 %v6280
        %v7910 = vunpack.c.h.b16 %v6280
        %v7911 = vunpack.c.l.b16 %v6281
        %v7912 = vunpack.c.h.b16 %v6281
        %v7913 = vunpack.c.l.b16 %v6282
        %v7914 = vunpack.c.h.b16 %v6282
        %v7915 = vunpack.c.l.b16 %v6283
        %v7916 = vunpack.c.h.b16 %v6283
        %v7917 = vunpack.c.l.b16 %v6284
        %v7918 = vunpack.c.h.b16 %v6284
        %v7919 = vunpack.c.l.b16 %v6285
        %v7920 = vunpack.c.h.b16 %v6285
        %v7921 = vunpack.c.l.b16 %v6286
        %v7922 = vunpack.c.h.b16 %v6286
        %v7923 = vunpack.c.l.b16 %v6287
        %v7924 = vunpack.c.h.b16 %v6287
        %v7925 = vunpack.c.l.b16 %v6288
        %v7926 = vunpack.c.h.b16 %v6288
        %v7927 = vunpack.c.l.b16 %v6289
        %v7928 = vunpack.c.h.b16 %v6289
        %v7929 = vunpack.c.l.b16 %v6290
        %v7930 = vunpack.c.h.b16 %v6290
        %v7931 = vunpack.c.l.b16 %v6291
        %v7932 = vunpack.c.h.b16 %v6291
        %v7933 = vunpack.c.l.b16 %v6292
        %v7934 = vunpack.c.h.b16 %v6292
        %v7935 = vunpack.c.l.b16 %v6293
        %v7936 = vunpack.c.h.b16 %v6293
        %v7937 = vunpack.c.l.b16 %v6294
        %v7938 = vunpack.c.h.b16 %v6294
        %v7939 = vunpack.c.l.b16 %v6295
        %v7940 = vunpack.c.h.b16 %v6295
        %v7941 = vunpack.c.l.b16 %v6296
        %v7942 = vunpack.c.h.b16 %v6296
        %v7943 = vunpack.c.l.b16 %v6297
        %v7944 = vunpack.c.h.b16 %v6297
        %v7945 = vunpack.c.l.b16 %v6298
        %v7946 = vunpack.c.h.b16 %v6298
        %v7947 = vunpack.c.l.b16 %v6299
        %v7948 = vunpack.c.h.b16 %v6299
        %v7949 = vunpack.c.l.b16 %v6300
        %v7950 = vunpack.c.h.b16 %v6300
        %v7951 = vunpack.c.l.b16 %v6301
        %v7952 = vunpack.c.h.b16 %v6301
        %v7953 = vunpack.c.l.b16 %v6302
        %v7954 = vunpack.c.h.b16 %v6302
        %v7955 = vunpack.c.l.b16 %v6303
        %v7956 = vunpack.c.h.b16 %v6303
        %v7957 = vunpack.c.l.b16 %v6304
        %v7958 = vunpack.c.h.b16 %v6304
        %v7959 = vunpack.c.l.b16 %v6305
        %v7960 = vunpack.c.h.b16 %v6305
        %v7961 = vunpack.c.l.b16 %v6306
        %v7962 = vunpack.c.h.b16 %v6306
        %v7963 = vunpack.c.l.b16 %v6307
        %v7964 = vunpack.c.h.b16 %v6307
        %v7965 = vunpack.c.l.b16 %v6308
        %v7966 = vunpack.c.h.b16 %v6308
        %v7967 = vunpack.c.l.b16 %v6309
        %v7968 = vunpack.c.h.b16 %v6309
        %v7969 = vunpack.c.l.b16 %v6310
        %v7970 = vunpack.c.h.b16 %v6310
        %v7971 = vunpack.c.l.b16 %v6311
        %v7972 = vunpack.c.h.b16 %v6311
        %v7973 = vunpack.c.l.b16 %v6312
        %v7974 = vunpack.c.h.b16 %v6312
        %v7975 = vunpack.c.l.b16 %v6313
        %v7976 = vunpack.c.h.b16 %v6313
        %v7977 = vunpack.c.l.b16 %v6314
        %v7978 = vunpack.c.h.b16 %v6314
        %v7979 = vunpack.c.l.b16 %v6315
        %v7980 = vunpack.c.h.b16 %v6315
        %v7981 = vunpack.c.l.b16 %v6316
        %v7982 = vunpack.c.h.b16 %v6316
        %v7983 = vunpack.c.l.b16 %v6317
        %v7984 = vunpack.c.h.b16 %v6317
        %v7985 = vunpack.c.l.b16 %v6318
        %v7986 = vunpack.c.h.b16 %v6318
        %v7987 = vunpack.c.l.b16 %v6319
        %v7988 = vunpack.c.h.b16 %v6319
        %v7989 = vunpack.c.l.b16 %v6320
        %v7990 = vunpack.c.h.b16 %v6320
        %v7991 = vunpack.c.l.b16 %v6321
        %v7992 = vunpack.c.h.b16 %v6321
        %v7993 = vunpack.c.l.b16 %v6322
        %v7994 = vunpack.c.h.b16 %v6322
        %v7995 = vunpack.c.l.b16 %v6323
        %v7996 = vunpack.c.h.b16 %v6323
        %v7997 = vunpack.c.l.b16 %v6324
        %v7998 = vunpack.c.h.b16 %v6324
        %v7999 = vunpack.c.l.b16 %v6325
        %v8000 = vunpack.c.h.b16 %v6325
        %v8001 = vunpack.c.l.b16 %v6326
        %v8002 = vunpack.c.h.b16 %v6326
        %v8003 = vunpack.c.l.b16 %v6327
        %v8004 = vunpack.c.h.b16 %v6327
        %v8005 = vunpack.c.l.b16 %v6328
        %v8006 = vunpack.c.h.b16 %v6328
        %v8007 = vunpack.c.l.b16 %v6329
        %v8008 = vunpack.c.h.b16 %v6329
        %v8009 = vunpack.c.l.b16 %v6330
        %v8010 = vunpack.c.h.b16 %v6330
        %v8011 = vunpack.c.l.b16 %v6331
        %v8012 = vunpack.c.h.b16 %v6331
        %v8013 = vunpack.c.l.b16 %v6332
        %v8014 = vunpack.c.h.b16 %v6332
        %v8015 = vunpack.c.l.b16 %v6333
        %v8016 = vunpack.c.h.b16 %v6333
        %v8017 = vunpack.c.l.b16 %v6334
        %v8018 = vunpack.c.h.b16 %v6334
        %v8019 = vunpack.c.l.b16 %v6335
        %v8020 = vunpack.c.h.b16 %v6335
        %v8021 = vunpack.c.l.b16 %v6336
        %v8022 = vunpack.c.h.b16 %v6336
        %v8023 = vunpack.c.l.b16 %v6337
        %v8024 = vunpack.c.h.b16 %v6337
        %v8025 = vunpack.c.l.b16 %v6338
        %v8026 = vunpack.c.h.b16 %v6338
        %v8027 = vunpack.c.l.b16 %v6339
        %v8028 = vunpack.c.h.b16 %v6339
        %v8029 = vunpack.c.l.b16 %v6340
        %v8030 = vunpack.c.h.b16 %v6340
        %v8031 = vunpack.c.l.b16 %v6341
        %v8032 = vunpack.c.h.b16 %v6341
        %v8033 = vunpack.c.l.b16 %v6342
        %v8034 = vunpack.c.h.b16 %v6342
        %v8035 = vunpack.c.l.b16 %v6343
        %v8036 = vunpack.c.h.b16 %v6343
        %v8037 = vunpack.c.l.b16 %v6344
        %v8038 = vunpack.c.h.b16 %v6344
        %v8039 = vunpack.c.l.b16 %v6345
        %v8040 = vunpack.c.h.b16 %v6345
        %v8041 = vunpack.c.l.b16 %v6346
        %v8042 = vunpack.c.h.b16 %v6346
        %v8043 = vpack.c.b16 %v7027, %v7019
        %v8044 = vpack.c.b16 %v7028, %v7020
        %v8045 = vpack.c.b16 %v7029, %v7021
        %v8046 = vpack.c.b16 %v7030, %v7022
        %v8047 = vpack.c.b16 %v7031, %v7023
        %v8048 = vpack.c.b16 %v7032, %v7024
        %v8049 = vpack.c.b16 %v7033, %v7025
        %v8050 = vpack.c.b16 %v7034, %v7026
        %v8051 = vpack.c.b16 %v7043, %v7035
        %v8052 = vpack.c.b16 %v7044, %v7036
        %v8053 = vpack.c.b16 %v7045, %v7037
        %v8054 = vpack.c.b16 %v7046, %v7038
        %v8055 = vpack.c.b16 %v7047, %v7039
        %v8056 = vpack.c.b16 %v7048, %v7040
        %v8057 = vpack.c.b16 %v7049, %v7041
        %v8058 = vpack.c.b16 %v7050, %v7042
        %v8059 = vpack.c.b16 %v7059, %v7051
        %v8060 = vpack.c.b16 %v7060, %v7052
        %v8061 = vpack.c.b16 %v7061, %v7053
        %v8062 = vpack.c.b16 %v7062, %v7054
        %v8063 = vpack.c.b16 %v7063, %v7055
        %v8064 = vpack.c.b16 %v7064, %v7056
        %v8065 = vpack.c.b16 %v7065, %v7057
        %v8066 = vpack.c.b16 %v7066, %v7058
        %v8067 = vpack.c.b16 %v7075, %v7067
        %v8068 = vpack.c.b16 %v7076, %v7068
        %v8069 = vpack.c.b16 %v7077, %v7069
        %v8070 = vpack.c.b16 %v7078, %v7070
        %v8071 = vpack.c.b16 %v7079, %v7071
        %v8072 = vpack.c.b16 %v7080, %v7072
        %v8073 = vpack.c.b16 %v7081, %v7073
        %v8074 = vpack.c.b16 %v7082, %v7074
        %v8075 = vpack.c.b16 %v7091, %v7083
        %v8076 = vpack.c.b16 %v7092, %v7084
        %v8077 = vpack.c.b16 %v7093, %v7085
        %v8078 = vpack.c.b16 %v7094, %v7086
        %v8079 = vpack.c.b16 %v7095, %v7087
        %v8080 = vpack.c.b16 %v7096, %v7088
        %v8081 = vpack.c.b16 %v7097, %v7089
        %v8082 = vpack.c.b16 %v7098, %v7090
        %v8083 = vpack.c.b16 %v7107, %v7099
        %v8084 = vpack.c.b16 %v7108, %v7100
        %v8085 = vpack.c.b16 %v7109, %v7101
        %v8086 = vpack.c.b16 %v7110, %v7102
        %v8087 = vpack.c.b16 %v7111, %v7103
        %v8088 = vpack.c.b16 %v7112, %v7104
        %v8089 = vpack.c.b16 %v7113, %v7105
        %v8090 = vpack.c.b16 %v7114, %v7106
        %v8091 = vpack.c.b16 %v7123, %v7115
        %v8092 = vpack.c.b16 %v7124, %v7116
        %v8093 = vpack.c.b16 %v7125, %v7117
        %v8094 = vpack.c.b16 %v7126, %v7118
        %v8095 = vpack.c.b16 %v7127, %v7119
        %v8096 = vpack.c.b16 %v7128, %v7120
        %v8097 = vpack.c.b16 %v7129, %v7121
        %v8098 = vpack.c.b16 %v7130, %v7122
        %v8099 = vpack.c.b16 %v7139, %v7131
        %v8100 = vpack.c.b16 %v7140, %v7132
        %v8101 = vpack.c.b16 %v7141, %v7133
        %v8102 = vpack.c.b16 %v7142, %v7134
        %v8103 = vpack.c.b16 %v7143, %v7135
        %v8104 = vpack.c.b16 %v7144, %v7136
        %v8105 = vpack.c.b16 %v7145, %v7137
        %v8106 = vpack.c.b16 %v7146, %v7138
        %v8107 = vpack.c.b16 %v7155, %v7147
        %v8108 = vpack.c.b16 %v7156, %v7148
        %v8109 = vpack.c.b16 %v7157, %v7149
        %v8110 = vpack.c.b16 %v7158, %v7150
        %v8111 = vpack.c.b16 %v7159, %v7151
        %v8112 = vpack.c.b16 %v7160, %v7152
        %v8113 = vpack.c.b16 %v7161, %v7153
        %v8114 = vpack.c.b16 %v7162, %v7154
        %v8115 = vpack.c.b16 %v7171, %v7163
        %v8116 = vpack.c.b16 %v7172, %v7164
        %v8117 = vpack.c.b16 %v7173, %v7165
        %v8118 = vpack.c.b16 %v7174, %v7166
        %v8119 = vpack.c.b16 %v7175, %v7167
        %v8120 = vpack.c.b16 %v7176, %v7168
        %v8121 = vpack.c.b16 %v7177, %v7169
        %v8122 = vpack.c.b16 %v7178, %v7170
        %v8123 = vpack.c.b16 %v7187, %v7179
        %v8124 = vpack.c.b16 %v7188, %v7180
        %v8125 = vpack.c.b16 %v7189, %v7181
        %v8126 = vpack.c.b16 %v7190, %v7182
        %v8127 = vpack.c.b16 %v7191, %v7183
        %v8128 = vpack.c.b16 %v7192, %v7184
        %v8129 = vpack.c.b16 %v7193, %v7185
        %v8130 = vpack.c.b16 %v7194, %v7186
        %v8131 = vpack.c.b16 %v7203, %v7195
        %v8132 = vpack.c.b16 %v7204, %v7196
        %v8133 = vpack.c.b16 %v7205, %v7197
        %v8134 = vpack.c.b16 %v7206, %v7198
        %v8135 = vpack.c.b16 %v7207, %v7199
        %v8136 = vpack.c.b16 %v7208, %v7200
        %v8137 = vpack.c.b16 %v7209, %v7201
        %v8138 = vpack.c.b16 %v7210, %v7202
        %v8139 = vpack.c.b16 %v7219, %v7211
        %v8140 = vpack.c.b16 %v7220, %v7212
        %v8141 = vpack.c.b16 %v7221, %v7213
        %v8142 = vpack.c.b16 %v7222, %v7214
        %v8143 = vpack.c.b16 %v7223, %v7215
        %v8144 = vpack.c.b16 %v7224, %v7216
        %v8145 = vpack.c.b16 %v7225, %v7217
        %v8146 = vpack.c.b16 %v7226, %v7218
        %v8147 = vpack.c.b16 %v7235, %v7227
        %v8148 = vpack.c.b16 %v7236, %v7228
        %v8149 = vpack.c.b16 %v7237, %v7229
        %v8150 = vpack.c.b16 %v7238, %v7230
        %v8151 = vpack.c.b16 %v7239, %v7231
        %v8152 = vpack.c.b16 %v7240, %v7232
        %v8153 = vpack.c.b16 %v7241, %v7233
        %v8154 = vpack.c.b16 %v7242, %v7234
        %v8155 = vpack.c.b16 %v7251, %v7243
        %v8156 = vpack.c.b16 %v7252, %v7244
        %v8157 = vpack.c.b16 %v7253, %v7245
        %v8158 = vpack.c.b16 %v7254, %v7246
        %v8159 = vpack.c.b16 %v7255, %v7247
        %v8160 = vpack.c.b16 %v7256, %v7248
        %v8161 = vpack.c.b16 %v7257, %v7249
        %v8162 = vpack.c.b16 %v7258, %v7250
        %v8163 = vpack.c.b16 %v7267, %v7259
        %v8164 = vpack.c.b16 %v7268, %v7260
        %v8165 = vpack.c.b16 %v7269, %v7261
        %v8166 = vpack.c.b16 %v7270, %v7262
        %v8167 = vpack.c.b16 %v7271, %v7263
        %v8168 = vpack.c.b16 %v7272, %v7264
        %v8169 = vpack.c.b16 %v7273, %v7265
        %v8170 = vpack.c.b16 %v7274, %v7266
        %v8171 = vpack.c.b16 %v7283, %v7275
        %v8172 = vpack.c.b16 %v7284, %v7276
        %v8173 = vpack.c.b16 %v7285, %v7277
        %v8174 = vpack.c.b16 %v7286, %v7278
        %v8175 = vpack.c.b16 %v7287, %v7279
        %v8176 = vpack.c.b16 %v7288, %v7280
        %v8177 = vpack.c.b16 %v7289, %v7281
        %v8178 = vpack.c.b16 %v7290, %v7282
        %v8179 = vpack.c.b16 %v7299, %v7291
        %v8180 = vpack.c.b16 %v7300, %v7292
        %v8181 = vpack.c.b16 %v7301, %v7293
        %v8182 = vpack.c.b16 %v7302, %v7294
        %v8183 = vpack.c.b16 %v7303, %v7295
        %v8184 = vpack.c.b16 %v7304, %v7296
        %v8185 = vpack.c.b16 %v7305, %v7297
        %v8186 = vpack.c.b16 %v7306, %v7298
        %v8187 = vpack.c.b16 %v7315, %v7307
        %v8188 = vpack.c.b16 %v7316, %v7308
        %v8189 = vpack.c.b16 %v7317, %v7309
        %v8190 = vpack.c.b16 %v7318, %v7310
        %v8191 = vpack.c.b16 %v7319, %v7311
        %v8192 = vpack.c.b16 %v7320, %v7312
        %v8193 = vpack.c.b16 %v7321, %v7313
        %v8194 = vpack.c.b16 %v7322, %v7314
        %v8195 = vpack.c.b16 %v7331, %v7323
        %v8196 = vpack.c.b16 %v7332, %v7324
        %v8197 = vpack.c.b16 %v7333, %v7325
        %v8198 = vpack.c.b16 %v7334, %v7326
        %v8199 = vpack.c.b16 %v7335, %v7327
        %v8200 = vpack.c.b16 %v7336, %v7328
        %v8201 = vpack.c.b16 %v7337, %v7329
        %v8202 = vpack.c.b16 %v7338, %v7330
        %v8203 = vpack.c.b16 %v7347, %v7339
        %v8204 = vpack.c.b16 %v7348, %v7340
        %v8205 = vpack.c.b16 %v7349, %v7341
        %v8206 = vpack.c.b16 %v7350, %v7342
        %v8207 = vpack.c.b16 %v7351, %v7343
        %v8208 = vpack.c.b16 %v7352, %v7344
        %v8209 = vpack.c.b16 %v7353, %v7345
        %v8210 = vpack.c.b16 %v7354, %v7346
        %v8211 = vpack.c.b16 %v7363, %v7355
        %v8212 = vpack.c.b16 %v7364, %v7356
        %v8213 = vpack.c.b16 %v7365, %v7357
        %v8214 = vpack.c.b16 %v7366, %v7358
        %v8215 = vpack.c.b16 %v7367, %v7359
        %v8216 = vpack.c.b16 %v7368, %v7360
        %v8217 = vpack.c.b16 %v7369, %v7361
        %v8218 = vpack.c.b16 %v7370, %v7362
        %v8219 = vpack.c.b16 %v7379, %v7371
        %v8220 = vpack.c.b16 %v7380, %v7372
        %v8221 = vpack.c.b16 %v7381, %v7373
        %v8222 = vpack.c.b16 %v7382, %v7374
        %v8223 = vpack.c.b16 %v7383, %v7375
        %v8224 = vpack.c.b16 %v7384, %v7376
        %v8225 = vpack.c.b16 %v7385, %v7377
        %v8226 = vpack.c.b16 %v7386, %v7378
        %v8227 = vpack.c.b16 %v7395, %v7387
        %v8228 = vpack.c.b16 %v7396, %v7388
        %v8229 = vpack.c.b16 %v7397, %v7389
        %v8230 = vpack.c.b16 %v7398, %v7390
        %v8231 = vpack.c.b16 %v7399, %v7391
        %v8232 = vpack.c.b16 %v7400, %v7392
        %v8233 = vpack.c.b16 %v7401, %v7393
        %v8234 = vpack.c.b16 %v7402, %v7394
        %v8235 = vpack.c.b16 %v7411, %v7403
        %v8236 = vpack.c.b16 %v7412, %v7404
        %v8237 = vpack.c.b16 %v7413, %v7405
        %v8238 = vpack.c.b16 %v7414, %v7406
        %v8239 = vpack.c.b16 %v7415, %v7407
        %v8240 = vpack.c.b16 %v7416, %v7408
        %v8241 = vpack.c.b16 %v7417, %v7409
        %v8242 = vpack.c.b16 %v7418, %v7410
        %v8243 = vpack.c.b16 %v7427, %v7419
        %v8244 = vpack.c.b16 %v7428, %v7420
        %v8245 = vpack.c.b16 %v7429, %v7421
        %v8246 = vpack.c.b16 %v7430, %v7422
        %v8247 = vpack.c.b16 %v7431, %v7423
        %v8248 = vpack.c.b16 %v7432, %v7424
        %v8249 = vpack.c.b16 %v7433, %v7425
        %v8250 = vpack.c.b16 %v7434, %v7426
        %v8251 = vpack.c.b16 %v7443, %v7435
        %v8252 = vpack.c.b16 %v7444, %v7436
        %v8253 = vpack.c.b16 %v7445, %v7437
        %v8254 = vpack.c.b16 %v7446, %v7438
        %v8255 = vpack.c.b16 %v7447, %v7439
        %v8256 = vpack.c.b16 %v7448, %v7440
        %v8257 = vpack.c.b16 %v7449, %v7441
        %v8258 = vpack.c.b16 %v7450, %v7442
        %v8259 = vpack.c.b16 %v7459, %v7451
        %v8260 = vpack.c.b16 %v7460, %v7452
        %v8261 = vpack.c.b16 %v7461, %v7453
        %v8262 = vpack.c.b16 %v7462, %v7454
        %v8263 = vpack.c.b16 %v7463, %v7455
        %v8264 = vpack.c.b16 %v7464, %v7456
        %v8265 = vpack.c.b16 %v7465, %v7457
        %v8266 = vpack.c.b16 %v7466, %v7458
        %v8267 = vpack.c.b16 %v7475, %v7467
        %v8268 = vpack.c.b16 %v7476, %v7468
        %v8269 = vpack.c.b16 %v7477, %v7469
        %v8270 = vpack.c.b16 %v7478, %v7470
        %v8271 = vpack.c.b16 %v7479, %v7471
        %v8272 = vpack.c.b16 %v7480, %v7472
        %v8273 = vpack.c.b16 %v7481, %v7473
        %v8274 = vpack.c.b16 %v7482, %v7474
        %v8275 = vpack.c.b16 %v7491, %v7483
        %v8276 = vpack.c.b16 %v7492, %v7484
        %v8277 = vpack.c.b16 %v7493, %v7485
        %v8278 = vpack.c.b16 %v7494, %v7486
        %v8279 = vpack.c.b16 %v7495, %v7487
        %v8280 = vpack.c.b16 %v7496, %v7488
        %v8281 = vpack.c.b16 %v7497, %v7489
        %v8282 = vpack.c.b16 %v7498, %v7490
        %v8283 = vpack.c.b16 %v7507, %v7499
        %v8284 = vpack.c.b16 %v7508, %v7500
        %v8285 = vpack.c.b16 %v7509, %v7501
        %v8286 = vpack.c.b16 %v7510, %v7502
        %v8287 = vpack.c.b16 %v7511, %v7503
        %v8288 = vpack.c.b16 %v7512, %v7504
        %v8289 = vpack.c.b16 %v7513, %v7505
        %v8290 = vpack.c.b16 %v7514, %v7506
        %v8291 = vpack.c.b16 %v7523, %v7515
        %v8292 = vpack.c.b16 %v7524, %v7516
        %v8293 = vpack.c.b16 %v7525, %v7517
        %v8294 = vpack.c.b16 %v7526, %v7518
        %v8295 = vpack.c.b16 %v7527, %v7519
        %v8296 = vpack.c.b16 %v7528, %v7520
        %v8297 = vpack.c.b16 %v7529, %v7521
        %v8298 = vpack.c.b16 %v7530, %v7522
        %v8299 = vpack.c.b16 %v7539, %v7531
        %v8300 = vpack.c.b16 %v7540, %v7532
        %v8301 = vpack.c.b16 %v7541, %v7533
        %v8302 = vpack.c.b16 %v7542, %v7534
        %v8303 = vpack.c.b16 %v7543, %v7535
        %v8304 = vpack.c.b16 %v7544, %v7536
        %v8305 = vpack.c.b16 %v7545, %v7537
        %v8306 = vpack.c.b16 %v7546, %v7538
        %v8307 = vpack.c.b16 %v7555, %v7547
        %v8308 = vpack.c.b16 %v7556, %v7548
        %v8309 = vpack.c.b16 %v7557, %v7549
        %v8310 = vpack.c.b16 %v7558, %v7550
        %v8311 = vpack.c.b16 %v7559, %v7551
        %v8312 = vpack.c.b16 %v7560, %v7552
        %v8313 = vpack.c.b16 %v7561, %v7553
        %v8314 = vpack.c.b16 %v7562, %v7554
        %v8315 = vpack.c.b16 %v7571, %v7563
        %v8316 = vpack.c.b16 %v7572, %v7564
        %v8317 = vpack.c.b16 %v7573, %v7565
        %v8318 = vpack.c.b16 %v7574, %v7566
        %v8319 = vpack.c.b16 %v7575, %v7567
        %v8320 = vpack.c.b16 %v7576, %v7568
        %v8321 = vpack.c.b16 %v7577, %v7569
        %v8322 = vpack.c.b16 %v7578, %v7570
        %v8323 = vpack.c.b16 %v7587, %v7579
        %v8324 = vpack.c.b16 %v7588, %v7580
        %v8325 = vpack.c.b16 %v7589, %v7581
        %v8326 = vpack.c.b16 %v7590, %v7582
        %v8327 = vpack.c.b16 %v7591, %v7583
        %v8328 = vpack.c.b16 %v7592, %v7584
        %v8329 = vpack.c.b16 %v7593, %v7585
        %v8330 = vpack.c.b16 %v7594, %v7586
        %v8331 = vpack.c.b16 %v7603, %v7595
        %v8332 = vpack.c.b16 %v7604, %v7596
        %v8333 = vpack.c.b16 %v7605, %v7597
        %v8334 = vpack.c.b16 %v7606, %v7598
        %v8335 = vpack.c.b16 %v7607, %v7599
        %v8336 = vpack.c.b16 %v7608, %v7600
        %v8337 = vpack.c.b16 %v7609, %v7601
        %v8338 = vpack.c.b16 %v7610, %v7602
        %v8339 = vpack.c.b16 %v7619, %v7611
        %v8340 = vpack.c.b16 %v7620, %v7612
        %v8341 = vpack.c.b16 %v7621, %v7613
        %v8342 = vpack.c.b16 %v7622, %v7614
        %v8343 = vpack.c.b16 %v7623, %v7615
        %v8344 = vpack.c.b16 %v7624, %v7616
        %v8345 = vpack.c.b16 %v7625, %v7617
        %v8346 = vpack.c.b16 %v7626, %v7618
        %v8347 = vpack.c.b16 %v7635, %v7627
        %v8348 = vpack.c.b16 %v7636, %v7628
        %v8349 = vpack.c.b16 %v7637, %v7629
        %v8350 = vpack.c.b16 %v7638, %v7630
        %v8351 = vpack.c.b16 %v7639, %v7631
        %v8352 = vpack.c.b16 %v7640, %v7632
        %v8353 = vpack.c.b16 %v7641, %v7633
        %v8354 = vpack.c.b16 %v7642, %v7634
        %v8355 = vpack.c.b16 %v7651, %v7643
        %v8356 = vpack.c.b16 %v7652, %v7644
        %v8357 = vpack.c.b16 %v7653, %v7645
        %v8358 = vpack.c.b16 %v7654, %v7646
        %v8359 = vpack.c.b16 %v7655, %v7647
        %v8360 = vpack.c.b16 %v7656, %v7648
        %v8361 = vpack.c.b16 %v7657, %v7649
        %v8362 = vpack.c.b16 %v7658, %v7650
        %v8363 = vpack.c.b16 %v7667, %v7659
        %v8364 = vpack.c.b16 %v7668, %v7660
        %v8365 = vpack.c.b16 %v7669, %v7661
        %v8366 = vpack.c.b16 %v7670, %v7662
        %v8367 = vpack.c.b16 %v7671, %v7663
        %v8368 = vpack.c.b16 %v7672, %v7664
        %v8369 = vpack.c.b16 %v7673, %v7665
        %v8370 = vpack.c.b16 %v7674, %v7666
        %v8371 = vpack.c.b16 %v7683, %v7675
        %v8372 = vpack.c.b16 %v7684, %v7676
        %v8373 = vpack.c.b16 %v7685, %v7677
        %v8374 = vpack.c.b16 %v7686, %v7678
        %v8375 = vpack.c.b16 %v7687, %v7679
        %v8376 = vpack.c.b16 %v7688, %v7680
        %v8377 = vpack.c.b16 %v7689, %v7681
        %v8378 = vpack.c.b16 %v7690, %v7682
        %v8379 = vpack.c.b16 %v7699, %v7691
        %v8380 = vpack.c.b16 %v7700, %v7692
        %v8381 = vpack.c.b16 %v7701, %v7693
        %v8382 = vpack.c.b16 %v7702, %v7694
        %v8383 = vpack.c.b16 %v7703, %v7695
        %v8384 = vpack.c.b16 %v7704, %v7696
        %v8385 = vpack.c.b16 %v7705, %v7697
        %v8386 = vpack.c.b16 %v7706, %v7698
        %v8387 = vpack.c.b16 %v7715, %v7707
        %v8388 = vpack.c.b16 %v7716, %v7708
        %v8389 = vpack.c.b16 %v7717, %v7709
        %v8390 = vpack.c.b16 %v7718, %v7710
        %v8391 = vpack.c.b16 %v7719, %v7711
        %v8392 = vpack.c.b16 %v7720, %v7712
        %v8393 = vpack.c.b16 %v7721, %v7713
        %v8394 = vpack.c.b16 %v7722, %v7714
        %v8395 = vpack.c.b16 %v7731, %v7723
        %v8396 = vpack.c.b16 %v7732, %v7724
        %v8397 = vpack.c.b16 %v7733, %v7725
        %v8398 = vpack.c.b16 %v7734, %v7726
        %v8399 = vpack.c.b16 %v7735, %v7727
        %v8400 = vpack.c.b16 %v7736, %v7728
        %v8401 = vpack.c.b16 %v7737, %v7729
        %v8402 = vpack.c.b16 %v7738, %v7730
        %v8403 = vpack.c.b16 %v7747, %v7739
        %v8404 = vpack.c.b16 %v7748, %v7740
        %v8405 = vpack.c.b16 %v7749, %v7741
        %v8406 = vpack.c.b16 %v7750, %v7742
        %v8407 = vpack.c.b16 %v7751, %v7743
        %v8408 = vpack.c.b16 %v7752, %v7744
        %v8409 = vpack.c.b16 %v7753, %v7745
        %v8410 = vpack.c.b16 %v7754, %v7746
        %v8411 = vpack.c.b16 %v7763, %v7755
        %v8412 = vpack.c.b16 %v7764, %v7756
        %v8413 = vpack.c.b16 %v7765, %v7757
        %v8414 = vpack.c.b16 %v7766, %v7758
        %v8415 = vpack.c.b16 %v7767, %v7759
        %v8416 = vpack.c.b16 %v7768, %v7760
        %v8417 = vpack.c.b16 %v7769, %v7761
        %v8418 = vpack.c.b16 %v7770, %v7762
        %v8419 = vpack.c.b16 %v7779, %v7771
        %v8420 = vpack.c.b16 %v7780, %v7772
        %v8421 = vpack.c.b16 %v7781, %v7773
        %v8422 = vpack.c.b16 %v7782, %v7774
        %v8423 = vpack.c.b16 %v7783, %v7775
        %v8424 = vpack.c.b16 %v7784, %v7776
        %v8425 = vpack.c.b16 %v7785, %v7777
        %v8426 = vpack.c.b16 %v7786, %v7778
        %v8427 = vpack.c.b16 %v7795, %v7787
        %v8428 = vpack.c.b16 %v7796, %v7788
        %v8429 = vpack.c.b16 %v7797, %v7789
        %v8430 = vpack.c.b16 %v7798, %v7790
        %v8431 = vpack.c.b16 %v7799, %v7791
        %v8432 = vpack.c.b16 %v7800, %v7792
        %v8433 = vpack.c.b16 %v7801, %v7793
        %v8434 = vpack.c.b16 %v7802, %v7794
        %v8435 = vpack.c.b16 %v7811, %v7803
        %v8436 = vpack.c.b16 %v7812, %v7804
        %v8437 = vpack.c.b16 %v7813, %v7805
        %v8438 = vpack.c.b16 %v7814, %v7806
        %v8439 = vpack.c.b16 %v7815, %v7807
        %v8440 = vpack.c.b16 %v7816, %v7808
        %v8441 = vpack.c.b16 %v7817, %v7809
        %v8442 = vpack.c.b16 %v7818, %v7810
        %v8443 = vpack.c.b16 %v7827, %v7819
        %v8444 = vpack.c.b16 %v7828, %v7820
        %v8445 = vpack.c.b16 %v7829, %v7821
        %v8446 = vpack.c.b16 %v7830, %v7822
        %v8447 = vpack.c.b16 %v7831, %v7823
        %v8448 = vpack.c.b16 %v7832, %v7824
        %v8449 = vpack.c.b16 %v7833, %v7825
        %v8450 = vpack.c.b16 %v7834, %v7826
        %v8451 = vpack.c.b16 %v7843, %v7835
        %v8452 = vpack.c.b16 %v7844, %v7836
        %v8453 = vpack.c.b16 %v7845, %v7837
        %v8454 = vpack.c.b16 %v7846, %v7838
        %v8455 = vpack.c.b16 %v7847, %v7839
        %v8456 = vpack.c.b16 %v7848, %v7840
        %v8457 = vpack.c.b16 %v7849, %v7841
        %v8458 = vpack.c.b16 %v7850, %v7842
        %v8459 = vpack.c.b16 %v7859, %v7851
        %v8460 = vpack.c.b16 %v7860, %v7852
        %v8461 = vpack.c.b16 %v7861, %v7853
        %v8462 = vpack.c.b16 %v7862, %v7854
        %v8463 = vpack.c.b16 %v7863, %v7855
        %v8464 = vpack.c.b16 %v7864, %v7856
        %v8465 = vpack.c.b16 %v7865, %v7857
        %v8466 = vpack.c.b16 %v7866, %v7858
        %v8467 = vpack.c.b16 %v7875, %v7867
        %v8468 = vpack.c.b16 %v7876, %v7868
        %v8469 = vpack.c.b16 %v7877, %v7869
        %v8470 = vpack.c.b16 %v7878, %v7870
        %v8471 = vpack.c.b16 %v7879, %v7871
        %v8472 = vpack.c.b16 %v7880, %v7872
        %v8473 = vpack.c.b16 %v7881, %v7873
        %v8474 = vpack.c.b16 %v7882, %v7874
        %v8475 = vpack.c.b16 %v7891, %v7883
        %v8476 = vpack.c.b16 %v7892, %v7884
        %v8477 = vpack.c.b16 %v7893, %v7885
        %v8478 = vpack.c.b16 %v7894, %v7886
        %v8479 = vpack.c.b16 %v7895, %v7887
        %v8480 = vpack.c.b16 %v7896, %v7888
        %v8481 = vpack.c.b16 %v7897, %v7889
        %v8482 = vpack.c.b16 %v7898, %v7890
        %v8483 = vpack.c.b16 %v7907, %v7899
        %v8484 = vpack.c.b16 %v7908, %v7900
        %v8485 = vpack.c.b16 %v7909, %v7901
        %v8486 = vpack.c.b16 %v7910, %v7902
        %v8487 = vpack.c.b16 %v7911, %v7903
        %v8488 = vpack.c.b16 %v7912, %v7904
        %v8489 = vpack.c.b16 %v7913, %v7905
        %v8490 = vpack.c.b16 %v7914, %v7906
        %v8491 = vpack.c.b16 %v7923, %v7915
        %v8492 = vpack.c.b16 %v7924, %v7916
        %v8493 = vpack.c.b16 %v7925, %v7917
        %v8494 = vpack.c.b16 %v7926, %v7918
        %v8495 = vpack.c.b16 %v7927, %v7919
        %v8496 = vpack.c.b16 %v7928, %v7920
        %v8497 = vpack.c.b16 %v7929, %v7921
        %v8498 = vpack.c.b16 %v7930, %v7922
        %v8499 = vpack.c.b16 %v7939, %v7931
        %v8500 = vpack.c.b16 %v7940, %v7932
        %v8501 = vpack.c.b16 %v7941, %v7933
        %v8502 = vpack.c.b16 %v7942, %v7934
        %v8503 = vpack.c.b16 %v7943, %v7935
        %v8504 = vpack.c.b16 %v7944, %v7936
        %v8505 = vpack.c.b16 %v7945, %v7937
        %v8506 = vpack.c.b16 %v7946, %v7938
        %v8507 = vpack.c.b16 %v7955, %v7947
        %v8508 = vpack.c.b16 %v7956, %v7948
        %v8509 = vpack.c.b16 %v7957, %v7949
        %v8510 = vpack.c.b16 %v7958, %v7950
        %v8511 = vpack.c.b16 %v7959, %v7951
        %v8512 = vpack.c.b16 %v7960, %v7952
        %v8513 = vpack.c.b16 %v7961, %v7953
        %v8514 = vpack.c.b16 %v7962, %v7954
        %v8515 = vpack.c.b16 %v7971, %v7963
        %v8516 = vpack.c.b16 %v7972, %v7964
        %v8517 = vpack.c.b16 %v7973, %v7965
        %v8518 = vpack.c.b16 %v7974, %v7966
        %v8519 = vpack.c.b16 %v7975, %v7967
        %v8520 = vpack.c.b16 %v7976, %v7968
        %v8521 = vpack.c.b16 %v7977, %v7969
        %v8522 = vpack.c.b16 %v7978, %v7970
        %v8523 = vpack.c.b16 %v7987, %v7979
        %v8524 = vpack.c.b16 %v7988, %v7980
        %v8525 = vpack.c.b16 %v7989, %v7981
        %v8526 = vpack.c.b16 %v7990, %v7982
        %v8527 = vpack.c.b16 %v7991, %v7983
        %v8528 = vpack.c.b16 %v7992, %v7984
        %v8529 = vpack.c.b16 %v7993, %v7985
        %v8530 = vpack.c.b16 %v7994, %v7986
        %v8531 = vpack.c.b16 %v8003, %v7995
        %v8532 = vpack.c.b16 %v8004, %v7996
        %v8533 = vpack.c.b16 %v8005, %v7997
        %v8534 = vpack.c.b16 %v8006, %v7998
        %v8535 = vpack.c.b16 %v8007, %v7999
        %v8536 = vpack.c.b16 %v8008, %v8000
        %v8537 = vpack.c.b16 %v8009, %v8001
        %v8538 = vpack.c.b16 %v8010, %v8002
        %v8539 = vpack.c.b16 %v8019, %v8011
        %v8540 = vpack.c.b16 %v8020, %v8012
        %v8541 = vpack.c.b16 %v8021, %v8013
        %v8542 = vpack.c.b16 %v8022, %v8014
        %v8543 = vpack.c.b16 %v8023, %v8015
        %v8544 = vpack.c.b16 %v8024, %v8016
        %v8545 = vpack.c.b16 %v8025, %v8017
        %v8546 = vpack.c.b16 %v8026, %v8018
        %v8547 = vpack.c.b16 %v8035, %v8027
        %v8548 = vpack.c.b16 %v8036, %v8028
        %v8549 = vpack.c.b16 %v8037, %v8029
        %v8550 = vpack.c.b16 %v8038, %v8030
        %v8551 = vpack.c.b16 %v8039, %v8031
        %v8552 = vpack.c.b16 %v8040, %v8032
        %v8553 = vpack.c.b16 %v8041, %v8033
        %v8554 = vpack.c.b16 %v8042, %v8034
        %9067 = vmatpush.bf16.msra.mxu0 %v8099
        %9068 = vmatpush.bf16.msra.mxu0 %v8091
        %9069 = vmatpush.bf16.msra.mxu0 %v8083
        %9070 = vmatpush.bf16.msra.mxu0 %v8075
        %9071 = vmatpush.bf16.msra.mxu0 %v8067
        %9072 = vmatpush.bf16.msra.mxu0 %v8059
        %9073 = vmatpush.bf16.msra.mxu0 %v8051
        %9074 = vmatpush.bf16.msra.mxu0 %v8043
        %9075 = vmatmul.bf16.gmra.mxu0 %v6443
        %v9076 = vpop.f32.mrf.mxu0
        %v9077 = vadd.f32 0.0, %v9076
        %v9078 = vpop.f32.mrf.mxu0
        %v9079 = vadd.f32 0.0, %v9078
        %9080 = vmatmul.bf16.gmra.mxu0 %v6451
        %v9081 = vpop.f32.mrf.mxu0
        %v9082 = vadd.f32 0.0, %v9081
        %v9083 = vpop.f32.mrf.mxu0
        %v9084 = vadd.f32 0.0, %v9083
        %9085 = vmatmul.bf16.gmra.mxu0 %v6459
        %v9086 = vpop.f32.mrf.mxu0
        %v9087 = vadd.f32 0.0, %v9086
        %v9088 = vpop.f32.mrf.mxu0
        %v9089 = vadd.f32 0.0, %v9088
        %9090 = vmatmul.bf16.gmra.mxu0 %v6467
        %v9091 = vpop.f32.mrf.mxu0
        %v9092 = vadd.f32 0.0, %v9091
        %v9093 = vpop.f32.mrf.mxu0
        %v9094 = vadd.f32 0.0, %v9093
        %9095 = vdwg.mxu0
        %9096 = vmatpush.bf16.msra.mxu0 %v8163
        %9097 = vmatpush.bf16.msra.mxu0 %v8155
        %9098 = vmatpush.bf16.msra.mxu0 %v8147
        %9099 = vmatpush.bf16.msra.mxu0 %v8139
        %9100 = vmatpush.bf16.msra.mxu0 %v8131
        %9101 = vmatpush.bf16.msra.mxu0 %v8123
        %9102 = vmatpush.bf16.msra.mxu0 %v8115
        %9103 = vmatpush.bf16.msra.mxu0 %v8107
        %9104 = vmatmul.bf16.gmra.mxu0 %v6444
        %v9105 = vpop.f32.mrf.mxu0
        %v9106 = vadd.f32 %v9077, %v9105
        %v9107 = vpop.f32.mrf.mxu0
        %v9108 = vadd.f32 %v9079, %v9107
        %9109 = vmatmul.bf16.gmra.mxu0 %v6452
        %v9110 = vpop.f32.mrf.mxu0
        %v9111 = vadd.f32 %v9082, %v9110
        %v9112 = vpop.f32.mrf.mxu0
        %v9113 = vadd.f32 %v9084, %v9112
        %9114 = vmatmul.bf16.gmra.mxu0 %v6460
        %v9115 = vpop.f32.mrf.mxu0
        %v9116 = vadd.f32 %v9087, %v9115
        %v9117 = vpop.f32.mrf.mxu0
        %v9118 = vadd.f32 %v9089, %v9117
        %9119 = vmatmul.bf16.gmra.mxu0 %v6468
        %v9120 = vpop.f32.mrf.mxu0
        %v9121 = vadd.f32 %v9092, %v9120
        %v9122 = vpop.f32.mrf.mxu0
        %v9123 = vadd.f32 %v9094, %v9122
        %9124 = vdwg.mxu0
        %9125 = vmatpush.bf16.msra.mxu0 %v8227
        %9126 = vmatpush.bf16.msra.mxu0 %v8219
        %9127 = vmatpush.bf16.msra.mxu0 %v8211
        %9128 = vmatpush.bf16.msra.mxu0 %v8203
        %9129 = vmatpush.bf16.msra.mxu0 %v8195
        %9130 = vmatpush.bf16.msra.mxu0 %v8187
        %9131 = vmatpush.bf16.msra.mxu0 %v8179
        %9132 = vmatpush.bf16.msra.mxu0 %v8171
        %9133 = vmatmul.bf16.gmra.mxu0 %v6445
        %v9134 = vpop.f32.mrf.mxu0
        %v9135 = vadd.f32 %v9106, %v9134
        %v9136 = vpop.f32.mrf.mxu0
        %v9137 = vadd.f32 %v9108, %v9136
        %9138 = vmatmul.bf16.gmra.mxu0 %v6453
        %v9139 = vpop.f32.mrf.mxu0
        %v9140 = vadd.f32 %v9111, %v9139
        %v9141 = vpop.f32.mrf.mxu0
        %v9142 = vadd.f32 %v9113, %v9141
        %9143 = vmatmul.bf16.gmra.mxu0 %v6461
        %v9144 = vpop.f32.mrf.mxu0
        %v9145 = vadd.f32 %v9116, %v9144
        %v9146 = vpop.f32.mrf.mxu0
        %v9147 = vadd.f32 %v9118, %v9146
        %9148 = vmatmul.bf16.gmra.mxu0 %v6469
        %v9149 = vpop.f32.mrf.mxu0
        %v9150 = vadd.f32 %v9121, %v9149
        %v9151 = vpop.f32.mrf.mxu0
        %v9152 = vadd.f32 %v9123, %v9151
        %9153 = vdwg.mxu0
        %9154 = vmatpush.bf16.msra.mxu0 %v8291
        %9155 = vmatpush.bf16.msra.mxu0 %v8283
        %9156 = vmatpush.bf16.msra.mxu0 %v8275
        %9157 = vmatpush.bf16.msra.mxu0 %v8267
        %9158 = vmatpush.bf16.msra.mxu0 %v8259
        %9159 = vmatpush.bf16.msra.mxu0 %v8251
        %9160 = vmatpush.bf16.msra.mxu0 %v8243
        %9161 = vmatpush.bf16.msra.mxu0 %v8235
        %9162 = vmatmul.bf16.gmra.mxu0 %v6446
        %v9163 = vpop.f32.mrf.mxu0
        %v9164 = vadd.f32 %v9135, %v9163
        %v9165 = vpop.f32.mrf.mxu0
        %v9166 = vadd.f32 %v9137, %v9165
        %9167 = vmatmul.bf16.gmra.mxu0 %v6454
        %v9168 = vpop.f32.mrf.mxu0
        %v9169 = vadd.f32 %v9140, %v9168
        %v9170 = vpop.f32.mrf.mxu0
        %v9171 = vadd.f32 %v9142, %v9170
        %9172 = vmatmul.bf16.gmra.mxu0 %v6462
        %v9173 = vpop.f32.mrf.mxu0
        %v9174 = vadd.f32 %v9145, %v9173
        %v9175 = vpop.f32.mrf.mxu0
        %v9176 = vadd.f32 %v9147, %v9175
        %9177 = vmatmul.bf16.gmra.mxu0 %v6470
        %v9178 = vpop.f32.mrf.mxu0
        %v9179 = vadd.f32 %v9150, %v9178
        %v9180 = vpop.f32.mrf.mxu0
        %v9181 = vadd.f32 %v9152, %v9180
        %9182 = vdwg.mxu0
        %9183 = vmatpush.bf16.msra.mxu0 %v8355
        %9184 = vmatpush.bf16.msra.mxu0 %v8347
        %9185 = vmatpush.bf16.msra.mxu0 %v8339
        %9186 = vmatpush.bf16.msra.mxu0 %v8331
        %9187 = vmatpush.bf16.msra.mxu0 %v8323
        %9188 = vmatpush.bf16.msra.mxu0 %v8315
        %9189 = vmatpush.bf16.msra.mxu0 %v8307
        %9190 = vmatpush.bf16.msra.mxu0 %v8299
        %9191 = vmatmul.bf16.gmra.mxu0 %v6447
        %v9192 = vpop.f32.mrf.mxu0
        %v9193 = vadd.f32 %v9164, %v9192
        %v9194 = vpop.f32.mrf.mxu0
        %v9195 = vadd.f32 %v9166, %v9194
        %9196 = vmatmul.bf16.gmra.mxu0 %v6455
        %v9197 = vpop.f32.mrf.mxu0
        %v9198 = vadd.f32 %v9169, %v9197
        %v9199 = vpop.f32.mrf.mxu0
        %v9200 = vadd.f32 %v9171, %v9199
        %9201 = vmatmul.bf16.gmra.mxu0 %v6463
        %v9202 = vpop.f32.mrf.mxu0
        %v9203 = vadd.f32 %v9174, %v9202
        %v9204 = vpop.f32.mrf.mxu0
        %v9205 = vadd.f32 %v9176, %v9204
        %9206 = vmatmul.bf16.gmra.mxu0 %v6471
        %v9207 = vpop.f32.mrf.mxu0
        %v9208 = vadd.f32 %v9179, %v9207
        %v9209 = vpop.f32.mrf.mxu0
        %v9210 = vadd.f32 %v9181, %v9209
        %9211 = vdwg.mxu0
        %9212 = vmatpush.bf16.msra.mxu0 %v8419
        %9213 = vmatpush.bf16.msra.mxu0 %v8411
        %9214 = vmatpush.bf16.msra.mxu0 %v8403
        %9215 = vmatpush.bf16.msra.mxu0 %v8395
        %9216 = vmatpush.bf16.msra.mxu0 %v8387
        %9217 = vmatpush.bf16.msra.mxu0 %v8379
        %9218 = vmatpush.bf16.msra.mxu0 %v8371
        %9219 = vmatpush.bf16.msra.mxu0 %v8363
        %9220 = vmatmul.bf16.gmra.mxu0 %v6448
        %v9221 = vpop.f32.mrf.mxu0
        %v9222 = vadd.f32 %v9193, %v9221
        %v9223 = vpop.f32.mrf.mxu0
        %v9224 = vadd.f32 %v9195, %v9223
        %9225 = vmatmul.bf16.gmra.mxu0 %v6456
        %v9226 = vpop.f32.mrf.mxu0
        %v9227 = vadd.f32 %v9198, %v9226
        %v9228 = vpop.f32.mrf.mxu0
        %v9229 = vadd.f32 %v9200, %v9228
        %9230 = vmatmul.bf16.gmra.mxu0 %v6464
        %v9231 = vpop.f32.mrf.mxu0
        %v9232 = vadd.f32 %v9203, %v9231
        %v9233 = vpop.f32.mrf.mxu0
        %v9234 = vadd.f32 %v9205, %v9233
        %9235 = vmatmul.bf16.gmra.mxu0 %v6472
        %v9236 = vpop.f32.mrf.mxu0
        %v9237 = vadd.f32 %v9208, %v9236
        %v9238 = vpop.f32.mrf.mxu0
        %v9239 = vadd.f32 %v9210, %v9238
        %9240 = vdwg.mxu0
        %9241 = vmatpush.bf16.msra.mxu0 %v8483
        %9242 = vmatpush.bf16.msra.mxu0 %v8475
        %9243 = vmatpush.bf16.msra.mxu0 %v8467
        %9244 = vmatpush.bf16.msra.mxu0 %v8459
        %9245 = vmatpush.bf16.msra.mxu0 %v8451
        %9246 = vmatpush.bf16.msra.mxu0 %v8443
        %9247 = vmatpush.bf16.msra.mxu0 %v8435
        %9248 = vmatpush.bf16.msra.mxu0 %v8427
        %9249 = vmatmul.bf16.gmra.mxu0 %v6449
        %v9250 = vpop.f32.mrf.mxu0
        %v9251 = vadd.f32 %v9222, %v9250
        %v9252 = vpop.f32.mrf.mxu0
        %v9253 = vadd.f32 %v9224, %v9252
        %9254 = vmatmul.bf16.gmra.mxu0 %v6457
        %v9255 = vpop.f32.mrf.mxu0
        %v9256 = vadd.f32 %v9227, %v9255
        %v9257 = vpop.f32.mrf.mxu0
        %v9258 = vadd.f32 %v9229, %v9257
        %9259 = vmatmul.bf16.gmra.mxu0 %v6465
        %v9260 = vpop.f32.mrf.mxu0
        %v9261 = vadd.f32 %v9232, %v9260
        %v9262 = vpop.f32.mrf.mxu0
        %v9263 = vadd.f32 %v9234, %v9262
        %9264 = vmatmul.bf16.gmra.mxu0 %v6473
        %v9265 = vpop.f32.mrf.mxu0
        %v9266 = vadd.f32 %v9237, %v9265
        %v9267 = vpop.f32.mrf.mxu0
        %v9268 = vadd.f32 %v9239, %v9267
        %9269 = vdwg.mxu0
        %9270 = vmatpush.bf16.msra.mxu0 %v8547
        %9271 = vmatpush.bf16.msra.mxu0 %v8539
        %9272 = vmatpush.bf16.msra.mxu0 %v8531
        %9273 = vmatpush.bf16.msra.mxu0 %v8523
        %9274 = vmatpush.bf16.msra.mxu0 %v8515
        %9275 = vmatpush.bf16.msra.mxu0 %v8507
        %9276 = vmatpush.bf16.msra.mxu0 %v8499
        %9277 = vmatpush.bf16.msra.mxu0 %v8491
        %9278 = vmatmul.bf16.gmra.mxu0 %v6450
        %v9279 = vpop.f32.mrf.mxu0
        %v9280 = vadd.f32 %v9251, %v9279
        %v9281 = vpop.f32.mrf.mxu0
        %v9282 = vadd.f32 %v9253, %v9281
        %9283 = vmatmul.bf16.gmra.mxu0 %v6458
        %v9284 = vpop.f32.mrf.mxu0
        %v9285 = vadd.f32 %v9256, %v9284
        %v9286 = vpop.f32.mrf.mxu0
        %v9287 = vadd.f32 %v9258, %v9286
        %9288 = vmatmul.bf16.gmra.mxu0 %v6466
        %v9289 = vpop.f32.mrf.mxu0
        %v9290 = vadd.f32 %v9261, %v9289
        %v9291 = vpop.f32.mrf.mxu0
        %v9292 = vadd.f32 %v9263, %v9291
        %9293 = vmatmul.bf16.gmra.mxu0 %v6474
        %v9294 = vpop.f32.mrf.mxu0
        %v9295 = vadd.f32 %v9266, %v9294
        %v9296 = vpop.f32.mrf.mxu0
        %v9297 = vadd.f32 %v9268, %v9296
        %9298 = vdwg.mxu0
        %9299 = vmatpush.bf16.msra.mxu0 %v8100
        %9300 = vmatpush.bf16.msra.mxu0 %v8092
        %9301 = vmatpush.bf16.msra.mxu0 %v8084
        %9302 = vmatpush.bf16.msra.mxu0 %v8076
        %9303 = vmatpush.bf16.msra.mxu0 %v8068
        %9304 = vmatpush.bf16.msra.mxu0 %v8060
        %9305 = vmatpush.bf16.msra.mxu0 %v8052
        %9306 = vmatpush.bf16.msra.mxu0 %v8044
        %9307 = vmatmul.bf16.gmra.mxu0 %v6443
        %v9308 = vpop.f32.mrf.mxu0
        %v9309 = vadd.f32 0.0, %v9308
        %v9310 = vpop.f32.mrf.mxu0
        %v9311 = vadd.f32 0.0, %v9310
        %9312 = vmatmul.bf16.gmra.mxu0 %v6451
        %v9313 = vpop.f32.mrf.mxu0
        %v9314 = vadd.f32 0.0, %v9313
        %v9315 = vpop.f32.mrf.mxu0
        %v9316 = vadd.f32 0.0, %v9315
        %9317 = vmatmul.bf16.gmra.mxu0 %v6459
        %v9318 = vpop.f32.mrf.mxu0
        %v9319 = vadd.f32 0.0, %v9318
        %v9320 = vpop.f32.mrf.mxu0
        %v9321 = vadd.f32 0.0, %v9320
        %9322 = vmatmul.bf16.gmra.mxu0 %v6467
        %v9323 = vpop.f32.mrf.mxu0
        %v9324 = vadd.f32 0.0, %v9323
        %v9325 = vpop.f32.mrf.mxu0
        %v9326 = vadd.f32 0.0, %v9325
        %9327 = vdwg.mxu0
        %9328 = vmatpush.bf16.msra.mxu0 %v8164
        %9329 = vmatpush.bf16.msra.mxu0 %v8156
        %9330 = vmatpush.bf16.msra.mxu0 %v8148
        %9331 = vmatpush.bf16.msra.mxu0 %v8140
        %9332 = vmatpush.bf16.msra.mxu0 %v8132
        %9333 = vmatpush.bf16.msra.mxu0 %v8124
        %9334 = vmatpush.bf16.msra.mxu0 %v8116
        %9335 = vmatpush.bf16.msra.mxu0 %v8108
        %9336 = vmatmul.bf16.gmra.mxu0 %v6444
        %v9337 = vpop.f32.mrf.mxu0
        %v9338 = vadd.f32 %v9309, %v9337
        %v9339 = vpop.f32.mrf.mxu0
        %v9340 = vadd.f32 %v9311, %v9339
        %9341 = vmatmul.bf16.gmra.mxu0 %v6452
        %v9342 = vpop.f32.mrf.mxu0
        %v9343 = vadd.f32 %v9314, %v9342
        %v9344 = vpop.f32.mrf.mxu0
        %v9345 = vadd.f32 %v9316, %v9344
        %9346 = vmatmul.bf16.gmra.mxu0 %v6460
        %v9347 = vpop.f32.mrf.mxu0
        %v9348 = vadd.f32 %v9319, %v9347
        %v9349 = vpop.f32.mrf.mxu0
        %v9350 = vadd.f32 %v9321, %v9349
        %9351 = vmatmul.bf16.gmra.mxu0 %v6468
        %v9352 = vpop.f32.mrf.mxu0
        %v9353 = vadd.f32 %v9324, %v9352
        %v9354 = vpop.f32.mrf.mxu0
        %v9355 = vadd.f32 %v9326, %v9354
        %9356 = vdwg.mxu0
        %9357 = vmatpush.bf16.msra.mxu0 %v8228
        %9358 = vmatpush.bf16.msra.mxu0 %v8220
        %9359 = vmatpush.bf16.msra.mxu0 %v8212
        %9360 = vmatpush.bf16.msra.mxu0 %v8204
        %9361 = vmatpush.bf16.msra.mxu0 %v8196
        %9362 = vmatpush.bf16.msra.mxu0 %v8188
        %9363 = vmatpush.bf16.msra.mxu0 %v8180
        %9364 = vmatpush.bf16.msra.mxu0 %v8172
        %9365 = vmatmul.bf16.gmra.mxu0 %v6445
        %v9366 = vpop.f32.mrf.mxu0
        %v9367 = vadd.f32 %v9338, %v9366
        %v9368 = vpop.f32.mrf.mxu0
        %v9369 = vadd.f32 %v9340, %v9368
        %9370 = vmatmul.bf16.gmra.mxu0 %v6453
        %v9371 = vpop.f32.mrf.mxu0
        %v9372 = vadd.f32 %v9343, %v9371
        %v9373 = vpop.f32.mrf.mxu0
        %v9374 = vadd.f32 %v9345, %v9373
        %9375 = vmatmul.bf16.gmra.mxu0 %v6461
        %v9376 = vpop.f32.mrf.mxu0
        %v9377 = vadd.f32 %v9348, %v9376
        %v9378 = vpop.f32.mrf.mxu0
        %v9379 = vadd.f32 %v9350, %v9378
        %9380 = vmatmul.bf16.gmra.mxu0 %v6469
        %v9381 = vpop.f32.mrf.mxu0
        %v9382 = vadd.f32 %v9353, %v9381
        %v9383 = vpop.f32.mrf.mxu0
        %v9384 = vadd.f32 %v9355, %v9383
        %9385 = vdwg.mxu0
        %9386 = vmatpush.bf16.msra.mxu0 %v8292
        %9387 = vmatpush.bf16.msra.mxu0 %v8284
        %9388 = vmatpush.bf16.msra.mxu0 %v8276
        %9389 = vmatpush.bf16.msra.mxu0 %v8268
        %9390 = vmatpush.bf16.msra.mxu0 %v8260
        %9391 = vmatpush.bf16.msra.mxu0 %v8252
        %9392 = vmatpush.bf16.msra.mxu0 %v8244
        %9393 = vmatpush.bf16.msra.mxu0 %v8236
        %9394 = vmatmul.bf16.gmra.mxu0 %v6446
        %v9395 = vpop.f32.mrf.mxu0
        %v9396 = vadd.f32 %v9367, %v9395
        %v9397 = vpop.f32.mrf.mxu0
        %v9398 = vadd.f32 %v9369, %v9397
        %9399 = vmatmul.bf16.gmra.mxu0 %v6454
        %v9400 = vpop.f32.mrf.mxu0
        %v9401 = vadd.f32 %v9372, %v9400
        %v9402 = vpop.f32.mrf.mxu0
        %v9403 = vadd.f32 %v9374, %v9402
        %9404 = vmatmul.bf16.gmra.mxu0 %v6462
        %v9405 = vpop.f32.mrf.mxu0
        %v9406 = vadd.f32 %v9377, %v9405
        %v9407 = vpop.f32.mrf.mxu0
        %v9408 = vadd.f32 %v9379, %v9407
        %9409 = vmatmul.bf16.gmra.mxu0 %v6470
        %v9410 = vpop.f32.mrf.mxu0
        %v9411 = vadd.f32 %v9382, %v9410
        %v9412 = vpop.f32.mrf.mxu0
        %v9413 = vadd.f32 %v9384, %v9412
        %9414 = vdwg.mxu0
        %9415 = vmatpush.bf16.msra.mxu0 %v8356
        %9416 = vmatpush.bf16.msra.mxu0 %v8348
        %9417 = vmatpush.bf16.msra.mxu0 %v8340
        %9418 = vmatpush.bf16.msra.mxu0 %v8332
        %9419 = vmatpush.bf16.msra.mxu0 %v8324
        %9420 = vmatpush.bf16.msra.mxu0 %v8316
        %9421 = vmatpush.bf16.msra.mxu0 %v8308
        %9422 = vmatpush.bf16.msra.mxu0 %v8300
        %9423 = vmatmul.bf16.gmra.mxu0 %v6447
        %v9424 = vpop.f32.mrf.mxu0
        %v9425 = vadd.f32 %v9396, %v9424
        %v9426 = vpop.f32.mrf.mxu0
        %v9427 = vadd.f32 %v9398, %v9426
        %9428 = vmatmul.bf16.gmra.mxu0 %v6455
        %v9429 = vpop.f32.mrf.mxu0
        %v9430 = vadd.f32 %v9401, %v9429
        %v9431 = vpop.f32.mrf.mxu0
        %v9432 = vadd.f32 %v9403, %v9431
        %9433 = vmatmul.bf16.gmra.mxu0 %v6463
        %v9434 = vpop.f32.mrf.mxu0
        %v9435 = vadd.f32 %v9406, %v9434
        %v9436 = vpop.f32.mrf.mxu0
        %v9437 = vadd.f32 %v9408, %v9436
        %9438 = vmatmul.bf16.gmra.mxu0 %v6471
        %v9439 = vpop.f32.mrf.mxu0
        %v9440 = vadd.f32 %v9411, %v9439
        %v9441 = vpop.f32.mrf.mxu0
        %v9442 = vadd.f32 %v9413, %v9441
        %9443 = vdwg.mxu0
        %9444 = vmatpush.bf16.msra.mxu0 %v8420
        %9445 = vmatpush.bf16.msra.mxu0 %v8412
        %9446 = vmatpush.bf16.msra.mxu0 %v8404
        %9447 = vmatpush.bf16.msra.mxu0 %v8396
        %9448 = vmatpush.bf16.msra.mxu0 %v8388
        %9449 = vmatpush.bf16.msra.mxu0 %v8380
        %9450 = vmatpush.bf16.msra.mxu0 %v8372
        %9451 = vmatpush.bf16.msra.mxu0 %v8364
        %9452 = vmatmul.bf16.gmra.mxu0 %v6448
        %v9453 = vpop.f32.mrf.mxu0
        %v9454 = vadd.f32 %v9425, %v9453
        %v9455 = vpop.f32.mrf.mxu0
        %v9456 = vadd.f32 %v9427, %v9455
        %9457 = vmatmul.bf16.gmra.mxu0 %v6456
        %v9458 = vpop.f32.mrf.mxu0
        %v9459 = vadd.f32 %v9430, %v9458
        %v9460 = vpop.f32.mrf.mxu0
        %v9461 = vadd.f32 %v9432, %v9460
        %9462 = vmatmul.bf16.gmra.mxu0 %v6464
        %v9463 = vpop.f32.mrf.mxu0
        %v9464 = vadd.f32 %v9435, %v9463
        %v9465 = vpop.f32.mrf.mxu0
        %v9466 = vadd.f32 %v9437, %v9465
        %9467 = vmatmul.bf16.gmra.mxu0 %v6472
        %v9468 = vpop.f32.mrf.mxu0
        %v9469 = vadd.f32 %v9440, %v9468
        %v9470 = vpop.f32.mrf.mxu0
        %v9471 = vadd.f32 %v9442, %v9470
        %9472 = vdwg.mxu0
        %9473 = vmatpush.bf16.msra.mxu0 %v8484
        %9474 = vmatpush.bf16.msra.mxu0 %v8476
        %9475 = vmatpush.bf16.msra.mxu0 %v8468
        %9476 = vmatpush.bf16.msra.mxu0 %v8460
        %9477 = vmatpush.bf16.msra.mxu0 %v8452
        %9478 = vmatpush.bf16.msra.mxu0 %v8444
        %9479 = vmatpush.bf16.msra.mxu0 %v8436
        %9480 = vmatpush.bf16.msra.mxu0 %v8428
        %9481 = vmatmul.bf16.gmra.mxu0 %v6449
        %v9482 = vpop.f32.mrf.mxu0
        %v9483 = vadd.f32 %v9454, %v9482
        %v9484 = vpop.f32.mrf.mxu0
        %v9485 = vadd.f32 %v9456, %v9484
        %9486 = vmatmul.bf16.gmra.mxu0 %v6457
        %v9487 = vpop.f32.mrf.mxu0
        %v9488 = vadd.f32 %v9459, %v9487
        %v9489 = vpop.f32.mrf.mxu0
        %v9490 = vadd.f32 %v9461, %v9489
        %9491 = vmatmul.bf16.gmra.mxu0 %v6465
        %v9492 = vpop.f32.mrf.mxu0
        %v9493 = vadd.f32 %v9464, %v9492
        %v9494 = vpop.f32.mrf.mxu0
        %v9495 = vadd.f32 %v9466, %v9494
        %9496 = vmatmul.bf16.gmra.mxu0 %v6473
        %v9497 = vpop.f32.mrf.mxu0
        %v9498 = vadd.f32 %v9469, %v9497
        %v9499 = vpop.f32.mrf.mxu0
        %v9500 = vadd.f32 %v9471, %v9499
        %9501 = vdwg.mxu0
        %9502 = vmatpush.bf16.msra.mxu0 %v8548
        %9503 = vmatpush.bf16.msra.mxu0 %v8540
        %9504 = vmatpush.bf16.msra.mxu0 %v8532
        %9505 = vmatpush.bf16.msra.mxu0 %v8524
        %9506 = vmatpush.bf16.msra.mxu0 %v8516
        %9507 = vmatpush.bf16.msra.mxu0 %v8508
        %9508 = vmatpush.bf16.msra.mxu0 %v8500
        %9509 = vmatpush.bf16.msra.mxu0 %v8492
        %9510 = vmatmul.bf16.gmra.mxu0 %v6450
        %v9511 = vpop.f32.mrf.mxu0
        %v9512 = vadd.f32 %v9483, %v9511
        %v9513 = vpop.f32.mrf.mxu0
        %v9514 = vadd.f32 %v9485, %v9513
        %9515 = vmatmul.bf16.gmra.mxu0 %v6458
        %v9516 = vpop.f32.mrf.mxu0
        %v9517 = vadd.f32 %v9488, %v9516
        %v9518 = vpop.f32.mrf.mxu0
        %v9519 = vadd.f32 %v9490, %v9518
        %9520 = vmatmul.bf16.gmra.mxu0 %v6466
        %v9521 = vpop.f32.mrf.mxu0
        %v9522 = vadd.f32 %v9493, %v9521
        %v9523 = vpop.f32.mrf.mxu0
        %v9524 = vadd.f32 %v9495, %v9523
        %9525 = vmatmul.bf16.gmra.mxu0 %v6474
        %v9526 = vpop.f32.mrf.mxu0
        %v9527 = vadd.f32 %v9498, %v9526
        %v9528 = vpop.f32.mrf.mxu0
        %v9529 = vadd.f32 %v9500, %v9528
        %9530 = vdwg.mxu0
        %9531 = vmatpush.bf16.msra.mxu0 %v8101
        %9532 = vmatpush.bf16.msra.mxu0 %v8093
        %9533 = vmatpush.bf16.msra.mxu0 %v8085
        %9534 = vmatpush.bf16.msra.mxu0 %v8077
        %9535 = vmatpush.bf16.msra.mxu0 %v8069
        %9536 = vmatpush.bf16.msra.mxu0 %v8061
        %9537 = vmatpush.bf16.msra.mxu0 %v8053
        %9538 = vmatpush.bf16.msra.mxu0 %v8045
        %9539 = vmatmul.bf16.gmra.mxu0 %v6443
        %v9540 = vpop.f32.mrf.mxu0
        %v9541 = vadd.f32 0.0, %v9540
        %v9542 = vpop.f32.mrf.mxu0
        %v9543 = vadd.f32 0.0, %v9542
        %9544 = vmatmul.bf16.gmra.mxu0 %v6451
        %v9545 = vpop.f32.mrf.mxu0
        %v9546 = vadd.f32 0.0, %v9545
        %v9547 = vpop.f32.mrf.mxu0
        %v9548 = vadd.f32 0.0, %v9547
        %9549 = vmatmul.bf16.gmra.mxu0 %v6459
        %v9550 = vpop.f32.mrf.mxu0
        %v9551 = vadd.f32 0.0, %v9550
        %v9552 = vpop.f32.mrf.mxu0
        %v9553 = vadd.f32 0.0, %v9552
        %9554 = vmatmul.bf16.gmra.mxu0 %v6467
        %v9555 = vpop.f32.mrf.mxu0
        %v9556 = vadd.f32 0.0, %v9555
        %v9557 = vpop.f32.mrf.mxu0
        %v9558 = vadd.f32 0.0, %v9557
        %9559 = vdwg.mxu0
        %9560 = vmatpush.bf16.msra.mxu0 %v8165
        %9561 = vmatpush.bf16.msra.mxu0 %v8157
        %9562 = vmatpush.bf16.msra.mxu0 %v8149
        %9563 = vmatpush.bf16.msra.mxu0 %v8141
        %9564 = vmatpush.bf16.msra.mxu0 %v8133
        %9565 = vmatpush.bf16.msra.mxu0 %v8125
        %9566 = vmatpush.bf16.msra.mxu0 %v8117
        %9567 = vmatpush.bf16.msra.mxu0 %v8109
        %9568 = vmatmul.bf16.gmra.mxu0 %v6444
        %v9569 = vpop.f32.mrf.mxu0
        %v9570 = vadd.f32 %v9541, %v9569
        %v9571 = vpop.f32.mrf.mxu0
        %v9572 = vadd.f32 %v9543, %v9571
        %9573 = vmatmul.bf16.gmra.mxu0 %v6452
        %v9574 = vpop.f32.mrf.mxu0
        %v9575 = vadd.f32 %v9546, %v9574
        %v9576 = vpop.f32.mrf.mxu0
        %v9577 = vadd.f32 %v9548, %v9576
        %9578 = vmatmul.bf16.gmra.mxu0 %v6460
        %v9579 = vpop.f32.mrf.mxu0
        %v9580 = vadd.f32 %v9551, %v9579
        %v9581 = vpop.f32.mrf.mxu0
        %v9582 = vadd.f32 %v9553, %v9581
        %9583 = vmatmul.bf16.gmra.mxu0 %v6468
        %v9584 = vpop.f32.mrf.mxu0
        %v9585 = vadd.f32 %v9556, %v9584
        %v9586 = vpop.f32.mrf.mxu0
        %v9587 = vadd.f32 %v9558, %v9586
        %9588 = vdwg.mxu0
        %9589 = vmatpush.bf16.msra.mxu0 %v8229
        %9590 = vmatpush.bf16.msra.mxu0 %v8221
        %9591 = vmatpush.bf16.msra.mxu0 %v8213
        %9592 = vmatpush.bf16.msra.mxu0 %v8205
        %9593 = vmatpush.bf16.msra.mxu0 %v8197
        %9594 = vmatpush.bf16.msra.mxu0 %v8189
        %9595 = vmatpush.bf16.msra.mxu0 %v8181
        %9596 = vmatpush.bf16.msra.mxu0 %v8173
        %9597 = vmatmul.bf16.gmra.mxu0 %v6445
        %v9598 = vpop.f32.mrf.mxu0
        %v9599 = vadd.f32 %v9570, %v9598
        %v9600 = vpop.f32.mrf.mxu0
        %v9601 = vadd.f32 %v9572, %v9600
        %9602 = vmatmul.bf16.gmra.mxu0 %v6453
        %v9603 = vpop.f32.mrf.mxu0
        %v9604 = vadd.f32 %v9575, %v9603
        %v9605 = vpop.f32.mrf.mxu0
        %v9606 = vadd.f32 %v9577, %v9605
        %9607 = vmatmul.bf16.gmra.mxu0 %v6461
        %v9608 = vpop.f32.mrf.mxu0
        %v9609 = vadd.f32 %v9580, %v9608
        %v9610 = vpop.f32.mrf.mxu0
        %v9611 = vadd.f32 %v9582, %v9610
        %9612 = vmatmul.bf16.gmra.mxu0 %v6469
        %v9613 = vpop.f32.mrf.mxu0
        %v9614 = vadd.f32 %v9585, %v9613
        %v9615 = vpop.f32.mrf.mxu0
        %v9616 = vadd.f32 %v9587, %v9615
        %9617 = vdwg.mxu0
        %9618 = vmatpush.bf16.msra.mxu0 %v8293
        %9619 = vmatpush.bf16.msra.mxu0 %v8285
        %9620 = vmatpush.bf16.msra.mxu0 %v8277
        %9621 = vmatpush.bf16.msra.mxu0 %v8269
        %9622 = vmatpush.bf16.msra.mxu0 %v8261
        %9623 = vmatpush.bf16.msra.mxu0 %v8253
        %9624 = vmatpush.bf16.msra.mxu0 %v8245
        %9625 = vmatpush.bf16.msra.mxu0 %v8237
        %9626 = vmatmul.bf16.gmra.mxu0 %v6446
        %v9627 = vpop.f32.mrf.mxu0
        %v9628 = vadd.f32 %v9599, %v9627
        %v9629 = vpop.f32.mrf.mxu0
        %v9630 = vadd.f32 %v9601, %v9629
        %9631 = vmatmul.bf16.gmra.mxu0 %v6454
        %v9632 = vpop.f32.mrf.mxu0
        %v9633 = vadd.f32 %v9604, %v9632
        %v9634 = vpop.f32.mrf.mxu0
        %v9635 = vadd.f32 %v9606, %v9634
        %9636 = vmatmul.bf16.gmra.mxu0 %v6462
        %v9637 = vpop.f32.mrf.mxu0
        %v9638 = vadd.f32 %v9609, %v9637
        %v9639 = vpop.f32.mrf.mxu0
        %v9640 = vadd.f32 %v9611, %v9639
        %9641 = vmatmul.bf16.gmra.mxu0 %v6470
        %v9642 = vpop.f32.mrf.mxu0
        %v9643 = vadd.f32 %v9614, %v9642
        %v9644 = vpop.f32.mrf.mxu0
        %v9645 = vadd.f32 %v9616, %v9644
        %9646 = vdwg.mxu0
        %9647 = vmatpush.bf16.msra.mxu0 %v8357
        %9648 = vmatpush.bf16.msra.mxu0 %v8349
        %9649 = vmatpush.bf16.msra.mxu0 %v8341
        %9650 = vmatpush.bf16.msra.mxu0 %v8333
        %9651 = vmatpush.bf16.msra.mxu0 %v8325
        %9652 = vmatpush.bf16.msra.mxu0 %v8317
        %9653 = vmatpush.bf16.msra.mxu0 %v8309
        %9654 = vmatpush.bf16.msra.mxu0 %v8301
        %9655 = vmatmul.bf16.gmra.mxu0 %v6447
        %v9656 = vpop.f32.mrf.mxu0
        %v9657 = vadd.f32 %v9628, %v9656
        %v9658 = vpop.f32.mrf.mxu0
        %v9659 = vadd.f32 %v9630, %v9658
        %9660 = vmatmul.bf16.gmra.mxu0 %v6455
        %v9661 = vpop.f32.mrf.mxu0
        %v9662 = vadd.f32 %v9633, %v9661
        %v9663 = vpop.f32.mrf.mxu0
        %v9664 = vadd.f32 %v9635, %v9663
        %9665 = vmatmul.bf16.gmra.mxu0 %v6463
        %v9666 = vpop.f32.mrf.mxu0
        %v9667 = vadd.f32 %v9638, %v9666
        %v9668 = vpop.f32.mrf.mxu0
        %v9669 = vadd.f32 %v9640, %v9668
        %9670 = vmatmul.bf16.gmra.mxu0 %v6471
        %v9671 = vpop.f32.mrf.mxu0
        %v9672 = vadd.f32 %v9643, %v9671
        %v9673 = vpop.f32.mrf.mxu0
        %v9674 = vadd.f32 %v9645, %v9673
        %9675 = vdwg.mxu0
        %9676 = vmatpush.bf16.msra.mxu0 %v8421
        %9677 = vmatpush.bf16.msra.mxu0 %v8413
        %9678 = vmatpush.bf16.msra.mxu0 %v8405
        %9679 = vmatpush.bf16.msra.mxu0 %v8397
        %9680 = vmatpush.bf16.msra.mxu0 %v8389
        %9681 = vmatpush.bf16.msra.mxu0 %v8381
        %9682 = vmatpush.bf16.msra.mxu0 %v8373
        %9683 = vmatpush.bf16.msra.mxu0 %v8365
        %9684 = vmatmul.bf16.gmra.mxu0 %v6448
        %v9685 = vpop.f32.mrf.mxu0
        %v9686 = vadd.f32 %v9657, %v9685
        %v9687 = vpop.f32.mrf.mxu0
        %v9688 = vadd.f32 %v9659, %v9687
        %9689 = vmatmul.bf16.gmra.mxu0 %v6456
        %v9690 = vpop.f32.mrf.mxu0
        %v9691 = vadd.f32 %v9662, %v9690
        %v9692 = vpop.f32.mrf.mxu0
        %v9693 = vadd.f32 %v9664, %v9692
        %9694 = vmatmul.bf16.gmra.mxu0 %v6464
        %v9695 = vpop.f32.mrf.mxu0
        %v9696 = vadd.f32 %v9667, %v9695
        %v9697 = vpop.f32.mrf.mxu0
        %v9698 = vadd.f32 %v9669, %v9697
        %9699 = vmatmul.bf16.gmra.mxu0 %v6472
        %v9700 = vpop.f32.mrf.mxu0
        %v9701 = vadd.f32 %v9672, %v9700
        %v9702 = vpop.f32.mrf.mxu0
        %v9703 = vadd.f32 %v9674, %v9702
        %9704 = vdwg.mxu0
        %9705 = vmatpush.bf16.msra.mxu0 %v8485
        %9706 = vmatpush.bf16.msra.mxu0 %v8477
        %9707 = vmatpush.bf16.msra.mxu0 %v8469
        %9708 = vmatpush.bf16.msra.mxu0 %v8461
        %9709 = vmatpush.bf16.msra.mxu0 %v8453
        %9710 = vmatpush.bf16.msra.mxu0 %v8445
        %9711 = vmatpush.bf16.msra.mxu0 %v8437
        %9712 = vmatpush.bf16.msra.mxu0 %v8429
        %9713 = vmatmul.bf16.gmra.mxu0 %v6449
        %v9714 = vpop.f32.mrf.mxu0
        %v9715 = vadd.f32 %v9686, %v9714
        %v9716 = vpop.f32.mrf.mxu0
        %v9717 = vadd.f32 %v9688, %v9716
        %9718 = vmatmul.bf16.gmra.mxu0 %v6457
        %v9719 = vpop.f32.mrf.mxu0
        %v9720 = vadd.f32 %v9691, %v9719
        %v9721 = vpop.f32.mrf.mxu0
        %v9722 = vadd.f32 %v9693, %v9721
        %9723 = vmatmul.bf16.gmra.mxu0 %v6465
        %v9724 = vpop.f32.mrf.mxu0
        %v9725 = vadd.f32 %v9696, %v9724
        %v9726 = vpop.f32.mrf.mxu0
        %v9727 = vadd.f32 %v9698, %v9726
        %9728 = vmatmul.bf16.gmra.mxu0 %v6473
        %v9729 = vpop.f32.mrf.mxu0
        %v9730 = vadd.f32 %v9701, %v9729
        %v9731 = vpop.f32.mrf.mxu0
        %v9732 = vadd.f32 %v9703, %v9731
        %9733 = vdwg.mxu0
        %9734 = vmatpush.bf16.msra.mxu0 %v8549
        %9735 = vmatpush.bf16.msra.mxu0 %v8541
        %9736 = vmatpush.bf16.msra.mxu0 %v8533
        %9737 = vmatpush.bf16.msra.mxu0 %v8525
        %9738 = vmatpush.bf16.msra.mxu0 %v8517
        %9739 = vmatpush.bf16.msra.mxu0 %v8509
        %9740 = vmatpush.bf16.msra.mxu0 %v8501
        %9741 = vmatpush.bf16.msra.mxu0 %v8493
        %9742 = vmatmul.bf16.gmra.mxu0 %v6450
        %v9743 = vpop.f32.mrf.mxu0
        %v9744 = vadd.f32 %v9715, %v9743
        %v9745 = vpop.f32.mrf.mxu0
        %v9746 = vadd.f32 %v9717, %v9745
        %9747 = vmatmul.bf16.gmra.mxu0 %v6458
        %v9748 = vpop.f32.mrf.mxu0
        %v9749 = vadd.f32 %v9720, %v9748
        %v9750 = vpop.f32.mrf.mxu0
        %v9751 = vadd.f32 %v9722, %v9750
        %9752 = vmatmul.bf16.gmra.mxu0 %v6466
        %v9753 = vpop.f32.mrf.mxu0
        %v9754 = vadd.f32 %v9725, %v9753
        %v9755 = vpop.f32.mrf.mxu0
        %v9756 = vadd.f32 %v9727, %v9755
        %9757 = vmatmul.bf16.gmra.mxu0 %v6474
        %v9758 = vpop.f32.mrf.mxu0
        %v9759 = vadd.f32 %v9730, %v9758
        %v9760 = vpop.f32.mrf.mxu0
        %v9761 = vadd.f32 %v9732, %v9760
        %9762 = vdwg.mxu0
        %9763 = vmatpush.bf16.msra.mxu0 %v8102
        %9764 = vmatpush.bf16.msra.mxu0 %v8094
        %9765 = vmatpush.bf16.msra.mxu0 %v8086
        %9766 = vmatpush.bf16.msra.mxu0 %v8078
        %9767 = vmatpush.bf16.msra.mxu0 %v8070
        %9768 = vmatpush.bf16.msra.mxu0 %v8062
        %9769 = vmatpush.bf16.msra.mxu0 %v8054
        %9770 = vmatpush.bf16.msra.mxu0 %v8046
        %9771 = vmatmul.bf16.gmra.mxu0 %v6443
        %v9772 = vpop.f32.mrf.mxu0
        %v9773 = vadd.f32 0.0, %v9772
        %v9774 = vpop.f32.mrf.mxu0
        %v9775 = vadd.f32 0.0, %v9774
        %9776 = vmatmul.bf16.gmra.mxu0 %v6451
        %v9777 = vpop.f32.mrf.mxu0
        %v9778 = vadd.f32 0.0, %v9777
        %v9779 = vpop.f32.mrf.mxu0
        %v9780 = vadd.f32 0.0, %v9779
        %9781 = vmatmul.bf16.gmra.mxu0 %v6459
        %v9782 = vpop.f32.mrf.mxu0
        %v9783 = vadd.f32 0.0, %v9782
        %v9784 = vpop.f32.mrf.mxu0
        %v9785 = vadd.f32 0.0, %v9784
        %9786 = vmatmul.bf16.gmra.mxu0 %v6467
        %v9787 = vpop.f32.mrf.mxu0
        %v9788 = vadd.f32 0.0, %v9787
        %v9789 = vpop.f32.mrf.mxu0
        %v9790 = vadd.f32 0.0, %v9789
        %9791 = vdwg.mxu0
        %9792 = vmatpush.bf16.msra.mxu0 %v8166
        %9793 = vmatpush.bf16.msra.mxu0 %v8158
        %9794 = vmatpush.bf16.msra.mxu0 %v8150
        %9795 = vmatpush.bf16.msra.mxu0 %v8142
        %9796 = vmatpush.bf16.msra.mxu0 %v8134
        %9797 = vmatpush.bf16.msra.mxu0 %v8126
        %9798 = vmatpush.bf16.msra.mxu0 %v8118
        %9799 = vmatpush.bf16.msra.mxu0 %v8110
        %9800 = vmatmul.bf16.gmra.mxu0 %v6444
        %v9801 = vpop.f32.mrf.mxu0
        %v9802 = vadd.f32 %v9773, %v9801
        %v9803 = vpop.f32.mrf.mxu0
        %v9804 = vadd.f32 %v9775, %v9803
        %9805 = vmatmul.bf16.gmra.mxu0 %v6452
        %v9806 = vpop.f32.mrf.mxu0
        %v9807 = vadd.f32 %v9778, %v9806
        %v9808 = vpop.f32.mrf.mxu0
        %v9809 = vadd.f32 %v9780, %v9808
        %9810 = vmatmul.bf16.gmra.mxu0 %v6460
        %v9811 = vpop.f32.mrf.mxu0
        %v9812 = vadd.f32 %v9783, %v9811
        %v9813 = vpop.f32.mrf.mxu0
        %v9814 = vadd.f32 %v9785, %v9813
        %9815 = vmatmul.bf16.gmra.mxu0 %v6468
        %v9816 = vpop.f32.mrf.mxu0
        %v9817 = vadd.f32 %v9788, %v9816
        %v9818 = vpop.f32.mrf.mxu0
        %v9819 = vadd.f32 %v9790, %v9818
        %9820 = vdwg.mxu0
        %9821 = vmatpush.bf16.msra.mxu0 %v8230
        %9822 = vmatpush.bf16.msra.mxu0 %v8222
        %9823 = vmatpush.bf16.msra.mxu0 %v8214
        %9824 = vmatpush.bf16.msra.mxu0 %v8206
        %9825 = vmatpush.bf16.msra.mxu0 %v8198
        %9826 = vmatpush.bf16.msra.mxu0 %v8190
        %9827 = vmatpush.bf16.msra.mxu0 %v8182
        %9828 = vmatpush.bf16.msra.mxu0 %v8174
        %9829 = vmatmul.bf16.gmra.mxu0 %v6445
        %v9830 = vpop.f32.mrf.mxu0
        %v9831 = vadd.f32 %v9802, %v9830
        %v9832 = vpop.f32.mrf.mxu0
        %v9833 = vadd.f32 %v9804, %v9832
        %9834 = vmatmul.bf16.gmra.mxu0 %v6453
        %v9835 = vpop.f32.mrf.mxu0
        %v9836 = vadd.f32 %v9807, %v9835
        %v9837 = vpop.f32.mrf.mxu0
        %v9838 = vadd.f32 %v9809, %v9837
        %9839 = vmatmul.bf16.gmra.mxu0 %v6461
        %v9840 = vpop.f32.mrf.mxu0
        %v9841 = vadd.f32 %v9812, %v9840
        %v9842 = vpop.f32.mrf.mxu0
        %v9843 = vadd.f32 %v9814, %v9842
        %9844 = vmatmul.bf16.gmra.mxu0 %v6469
        %v9845 = vpop.f32.mrf.mxu0
        %v9846 = vadd.f32 %v9817, %v9845
        %v9847 = vpop.f32.mrf.mxu0
        %v9848 = vadd.f32 %v9819, %v9847
        %9849 = vdwg.mxu0
        %9850 = vmatpush.bf16.msra.mxu0 %v8294
        %9851 = vmatpush.bf16.msra.mxu0 %v8286
        %9852 = vmatpush.bf16.msra.mxu0 %v8278
        %9853 = vmatpush.bf16.msra.mxu0 %v8270
        %9854 = vmatpush.bf16.msra.mxu0 %v8262
        %9855 = vmatpush.bf16.msra.mxu0 %v8254
        %9856 = vmatpush.bf16.msra.mxu0 %v8246
        %9857 = vmatpush.bf16.msra.mxu0 %v8238
        %9858 = vmatmul.bf16.gmra.mxu0 %v6446
        %v9859 = vpop.f32.mrf.mxu0
        %v9860 = vadd.f32 %v9831, %v9859
        %v9861 = vpop.f32.mrf.mxu0
        %v9862 = vadd.f32 %v9833, %v9861
        %9863 = vmatmul.bf16.gmra.mxu0 %v6454
        %v9864 = vpop.f32.mrf.mxu0
        %v9865 = vadd.f32 %v9836, %v9864
        %v9866 = vpop.f32.mrf.mxu0
        %v9867 = vadd.f32 %v9838, %v9866
        %9868 = vmatmul.bf16.gmra.mxu0 %v6462
        %v9869 = vpop.f32.mrf.mxu0
        %v9870 = vadd.f32 %v9841, %v9869
        %v9871 = vpop.f32.mrf.mxu0
        %v9872 = vadd.f32 %v9843, %v9871
        %9873 = vmatmul.bf16.gmra.mxu0 %v6470
        %v9874 = vpop.f32.mrf.mxu0
        %v9875 = vadd.f32 %v9846, %v9874
        %v9876 = vpop.f32.mrf.mxu0
        %v9877 = vadd.f32 %v9848, %v9876
        %9878 = vdwg.mxu0
        %9879 = vmatpush.bf16.msra.mxu0 %v8358
        %9880 = vmatpush.bf16.msra.mxu0 %v8350
        %9881 = vmatpush.bf16.msra.mxu0 %v8342
        %9882 = vmatpush.bf16.msra.mxu0 %v8334
        %9883 = vmatpush.bf16.msra.mxu0 %v8326
        %9884 = vmatpush.bf16.msra.mxu0 %v8318
        %9885 = vmatpush.bf16.msra.mxu0 %v8310
        %9886 = vmatpush.bf16.msra.mxu0 %v8302
        %9887 = vmatmul.bf16.gmra.mxu0 %v6447
        %v9888 = vpop.f32.mrf.mxu0
        %v9889 = vadd.f32 %v9860, %v9888
        %v9890 = vpop.f32.mrf.mxu0
        %v9891 = vadd.f32 %v9862, %v9890
        %9892 = vmatmul.bf16.gmra.mxu0 %v6455
        %v9893 = vpop.f32.mrf.mxu0
        %v9894 = vadd.f32 %v9865, %v9893
        %v9895 = vpop.f32.mrf.mxu0
        %v9896 = vadd.f32 %v9867, %v9895
        %9897 = vmatmul.bf16.gmra.mxu0 %v6463
        %v9898 = vpop.f32.mrf.mxu0
        %v9899 = vadd.f32 %v9870, %v9898
        %v9900 = vpop.f32.mrf.mxu0
        %v9901 = vadd.f32 %v9872, %v9900
        %9902 = vmatmul.bf16.gmra.mxu0 %v6471
        %v9903 = vpop.f32.mrf.mxu0
        %v9904 = vadd.f32 %v9875, %v9903
        %v9905 = vpop.f32.mrf.mxu0
        %v9906 = vadd.f32 %v9877, %v9905
        %9907 = vdwg.mxu0
        %9908 = vmatpush.bf16.msra.mxu0 %v8422
        %9909 = vmatpush.bf16.msra.mxu0 %v8414
        %9910 = vmatpush.bf16.msra.mxu0 %v8406
        %9911 = vmatpush.bf16.msra.mxu0 %v8398
        %9912 = vmatpush.bf16.msra.mxu0 %v8390
        %9913 = vmatpush.bf16.msra.mxu0 %v8382
        %9914 = vmatpush.bf16.msra.mxu0 %v8374
        %9915 = vmatpush.bf16.msra.mxu0 %v8366
        %9916 = vmatmul.bf16.gmra.mxu0 %v6448
        %v9917 = vpop.f32.mrf.mxu0
        %v9918 = vadd.f32 %v9889, %v9917
        %v9919 = vpop.f32.mrf.mxu0
        %v9920 = vadd.f32 %v9891, %v9919
        %9921 = vmatmul.bf16.gmra.mxu0 %v6456
        %v9922 = vpop.f32.mrf.mxu0
        %v9923 = vadd.f32 %v9894, %v9922
        %v9924 = vpop.f32.mrf.mxu0
        %v9925 = vadd.f32 %v9896, %v9924
        %9926 = vmatmul.bf16.gmra.mxu0 %v6464
        %v9927 = vpop.f32.mrf.mxu0
        %v9928 = vadd.f32 %v9899, %v9927
        %v9929 = vpop.f32.mrf.mxu0
        %v9930 = vadd.f32 %v9901, %v9929
        %9931 = vmatmul.bf16.gmra.mxu0 %v6472
        %v9932 = vpop.f32.mrf.mxu0
        %v9933 = vadd.f32 %v9904, %v9932
        %v9934 = vpop.f32.mrf.mxu0
        %v9935 = vadd.f32 %v9906, %v9934
        %9936 = vdwg.mxu0
        %9937 = vmatpush.bf16.msra.mxu0 %v8486
        %9938 = vmatpush.bf16.msra.mxu0 %v8478
        %9939 = vmatpush.bf16.msra.mxu0 %v8470
        %9940 = vmatpush.bf16.msra.mxu0 %v8462
        %9941 = vmatpush.bf16.msra.mxu0 %v8454
        %9942 = vmatpush.bf16.msra.mxu0 %v8446
        %9943 = vmatpush.bf16.msra.mxu0 %v8438
        %9944 = vmatpush.bf16.msra.mxu0 %v8430
        %9945 = vmatmul.bf16.gmra.mxu0 %v6449
        %v9946 = vpop.f32.mrf.mxu0
        %v9947 = vadd.f32 %v9918, %v9946
        %v9948 = vpop.f32.mrf.mxu0
        %v9949 = vadd.f32 %v9920, %v9948
        %9950 = vmatmul.bf16.gmra.mxu0 %v6457
        %v9951 = vpop.f32.mrf.mxu0
        %v9952 = vadd.f32 %v9923, %v9951
        %v9953 = vpop.f32.mrf.mxu0
        %v9954 = vadd.f32 %v9925, %v9953
        %9955 = vmatmul.bf16.gmra.mxu0 %v6465
        %v9956 = vpop.f32.mrf.mxu0
        %v9957 = vadd.f32 %v9928, %v9956
        %v9958 = vpop.f32.mrf.mxu0
        %v9959 = vadd.f32 %v9930, %v9958
        %9960 = vmatmul.bf16.gmra.mxu0 %v6473
        %v9961 = vpop.f32.mrf.mxu0
        %v9962 = vadd.f32 %v9933, %v9961
        %v9963 = vpop.f32.mrf.mxu0
        %v9964 = vadd.f32 %v9935, %v9963
        %9965 = vdwg.mxu0
        %9966 = vmatpush.bf16.msra.mxu0 %v8550
        %9967 = vmatpush.bf16.msra.mxu0 %v8542
        %9968 = vmatpush.bf16.msra.mxu0 %v8534
        %9969 = vmatpush.bf16.msra.mxu0 %v8526
        %9970 = vmatpush.bf16.msra.mxu0 %v8518
        %9971 = vmatpush.bf16.msra.mxu0 %v8510
        %9972 = vmatpush.bf16.msra.mxu0 %v8502
        %9973 = vmatpush.bf16.msra.mxu0 %v8494
        %9974 = vmatmul.bf16.gmra.mxu0 %v6450
        %v9975 = vpop.f32.mrf.mxu0
        %v9976 = vadd.f32 %v9947, %v9975
        %v9977 = vpop.f32.mrf.mxu0
        %v9978 = vadd.f32 %v9949, %v9977
        %9979 = vmatmul.bf16.gmra.mxu0 %v6458
        %v9980 = vpop.f32.mrf.mxu0
        %v9981 = vadd.f32 %v9952, %v9980
        %v9982 = vpop.f32.mrf.mxu0
        %v9983 = vadd.f32 %v9954, %v9982
        %9984 = vmatmul.bf16.gmra.mxu0 %v6466
        %v9985 = vpop.f32.mrf.mxu0
        %v9986 = vadd.f32 %v9957, %v9985
        %v9987 = vpop.f32.mrf.mxu0
        %v9988 = vadd.f32 %v9959, %v9987
        %9989 = vmatmul.bf16.gmra.mxu0 %v6474
        %v9990 = vpop.f32.mrf.mxu0
        %v9991 = vadd.f32 %v9962, %v9990
        %v9992 = vpop.f32.mrf.mxu0
        %v9993 = vadd.f32 %v9964, %v9992
        %9994 = vdwg.mxu0
        %9995 = vmatpush.bf16.msra.mxu0 %v8103
        %9996 = vmatpush.bf16.msra.mxu0 %v8095
        %9997 = vmatpush.bf16.msra.mxu0 %v8087
        %9998 = vmatpush.bf16.msra.mxu0 %v8079
        %9999 = vmatpush.bf16.msra.mxu0 %v8071
        %10000 = vmatpush.bf16.msra.mxu0 %v8063
        %10001 = vmatpush.bf16.msra.mxu0 %v8055
        %10002 = vmatpush.bf16.msra.mxu0 %v8047
        %10003 = vmatmul.bf16.gmra.mxu0 %v6443
        %v10004 = vpop.f32.mrf.mxu0
        %v10005 = vadd.f32 0.0, %v10004
        %v10006 = vpop.f32.mrf.mxu0
        %v10007 = vadd.f32 0.0, %v10006
        %10008 = vmatmul.bf16.gmra.mxu0 %v6451
        %v10009 = vpop.f32.mrf.mxu0
        %v10010 = vadd.f32 0.0, %v10009
        %v10011 = vpop.f32.mrf.mxu0
        %v10012 = vadd.f32 0.0, %v10011
        %10013 = vmatmul.bf16.gmra.mxu0 %v6459
        %v10014 = vpop.f32.mrf.mxu0
        %v10015 = vadd.f32 0.0, %v10014
        %v10016 = vpop.f32.mrf.mxu0
        %v10017 = vadd.f32 0.0, %v10016
        %10018 = vmatmul.bf16.gmra.mxu0 %v6467
        %v10019 = vpop.f32.mrf.mxu0
        %v10020 = vadd.f32 0.0, %v10019
        %v10021 = vpop.f32.mrf.mxu0
        %v10022 = vadd.f32 0.0, %v10021
        %10023 = vdwg.mxu0
        %10024 = vmatpush.bf16.msra.mxu0 %v8167
        %10025 = vmatpush.bf16.msra.mxu0 %v8159
        %10026 = vmatpush.bf16.msra.mxu0 %v8151
        %10027 = vmatpush.bf16.msra.mxu0 %v8143
        %10028 = vmatpush.bf16.msra.mxu0 %v8135
        %10029 = vmatpush.bf16.msra.mxu0 %v8127
        %10030 = vmatpush.bf16.msra.mxu0 %v8119
        %10031 = vmatpush.bf16.msra.mxu0 %v8111
        %10032 = vmatmul.bf16.gmra.mxu0 %v6444
        %v10033 = vpop.f32.mrf.mxu0
        %v10034 = vadd.f32 %v10005, %v10033
        %v10035 = vpop.f32.mrf.mxu0
        %v10036 = vadd.f32 %v10007, %v10035
        %10037 = vmatmul.bf16.gmra.mxu0 %v6452
        %v10038 = vpop.f32.mrf.mxu0
        %v10039 = vadd.f32 %v10010, %v10038
        %v10040 = vpop.f32.mrf.mxu0
        %v10041 = vadd.f32 %v10012, %v10040
        %10042 = vmatmul.bf16.gmra.mxu0 %v6460
        %v10043 = vpop.f32.mrf.mxu0
        %v10044 = vadd.f32 %v10015, %v10043
        %v10045 = vpop.f32.mrf.mxu0
        %v10046 = vadd.f32 %v10017, %v10045
        %10047 = vmatmul.bf16.gmra.mxu0 %v6468
        %v10048 = vpop.f32.mrf.mxu0
        %v10049 = vadd.f32 %v10020, %v10048
        %v10050 = vpop.f32.mrf.mxu0
        %v10051 = vadd.f32 %v10022, %v10050
        %10052 = vdwg.mxu0
        %10053 = vmatpush.bf16.msra.mxu0 %v8231
        %10054 = vmatpush.bf16.msra.mxu0 %v8223
        %10055 = vmatpush.bf16.msra.mxu0 %v8215
        %10056 = vmatpush.bf16.msra.mxu0 %v8207
        %10057 = vmatpush.bf16.msra.mxu0 %v8199
        %10058 = vmatpush.bf16.msra.mxu0 %v8191
        %10059 = vmatpush.bf16.msra.mxu0 %v8183
        %10060 = vmatpush.bf16.msra.mxu0 %v8175
        %10061 = vmatmul.bf16.gmra.mxu0 %v6445
        %v10062 = vpop.f32.mrf.mxu0
        %v10063 = vadd.f32 %v10034, %v10062
        %v10064 = vpop.f32.mrf.mxu0
        %v10065 = vadd.f32 %v10036, %v10064
        %10066 = vmatmul.bf16.gmra.mxu0 %v6453
        %v10067 = vpop.f32.mrf.mxu0
        %v10068 = vadd.f32 %v10039, %v10067
        %v10069 = vpop.f32.mrf.mxu0
        %v10070 = vadd.f32 %v10041, %v10069
        %10071 = vmatmul.bf16.gmra.mxu0 %v6461
        %v10072 = vpop.f32.mrf.mxu0
        %v10073 = vadd.f32 %v10044, %v10072
        %v10074 = vpop.f32.mrf.mxu0
        %v10075 = vadd.f32 %v10046, %v10074
        %10076 = vmatmul.bf16.gmra.mxu0 %v6469
        %v10077 = vpop.f32.mrf.mxu0
        %v10078 = vadd.f32 %v10049, %v10077
        %v10079 = vpop.f32.mrf.mxu0
        %v10080 = vadd.f32 %v10051, %v10079
        %10081 = vdwg.mxu0
        %10082 = vmatpush.bf16.msra.mxu0 %v8295
        %10083 = vmatpush.bf16.msra.mxu0 %v8287
        %10084 = vmatpush.bf16.msra.mxu0 %v8279
        %10085 = vmatpush.bf16.msra.mxu0 %v8271
        %10086 = vmatpush.bf16.msra.mxu0 %v8263
        %10087 = vmatpush.bf16.msra.mxu0 %v8255
        %10088 = vmatpush.bf16.msra.mxu0 %v8247
        %10089 = vmatpush.bf16.msra.mxu0 %v8239
        %10090 = vmatmul.bf16.gmra.mxu0 %v6446
        %v10091 = vpop.f32.mrf.mxu0
        %v10092 = vadd.f32 %v10063, %v10091
        %v10093 = vpop.f32.mrf.mxu0
        %v10094 = vadd.f32 %v10065, %v10093
        %10095 = vmatmul.bf16.gmra.mxu0 %v6454
        %v10096 = vpop.f32.mrf.mxu0
        %v10097 = vadd.f32 %v10068, %v10096
        %v10098 = vpop.f32.mrf.mxu0
        %v10099 = vadd.f32 %v10070, %v10098
        %10100 = vmatmul.bf16.gmra.mxu0 %v6462
        %v10101 = vpop.f32.mrf.mxu0
        %v10102 = vadd.f32 %v10073, %v10101
        %v10103 = vpop.f32.mrf.mxu0
        %v10104 = vadd.f32 %v10075, %v10103
        %10105 = vmatmul.bf16.gmra.mxu0 %v6470
        %v10106 = vpop.f32.mrf.mxu0
        %v10107 = vadd.f32 %v10078, %v10106
        %v10108 = vpop.f32.mrf.mxu0
        %v10109 = vadd.f32 %v10080, %v10108
        %10110 = vdwg.mxu0
        %10111 = vmatpush.bf16.msra.mxu0 %v8359
        %10112 = vmatpush.bf16.msra.mxu0 %v8351
        %10113 = vmatpush.bf16.msra.mxu0 %v8343
        %10114 = vmatpush.bf16.msra.mxu0 %v8335
        %10115 = vmatpush.bf16.msra.mxu0 %v8327
        %10116 = vmatpush.bf16.msra.mxu0 %v8319
        %10117 = vmatpush.bf16.msra.mxu0 %v8311
        %10118 = vmatpush.bf16.msra.mxu0 %v8303
        %10119 = vmatmul.bf16.gmra.mxu0 %v6447
        %v10120 = vpop.f32.mrf.mxu0
        %v10121 = vadd.f32 %v10092, %v10120
        %v10122 = vpop.f32.mrf.mxu0
        %v10123 = vadd.f32 %v10094, %v10122
        %10124 = vmatmul.bf16.gmra.mxu0 %v6455
        %v10125 = vpop.f32.mrf.mxu0
        %v10126 = vadd.f32 %v10097, %v10125
        %v10127 = vpop.f32.mrf.mxu0
        %v10128 = vadd.f32 %v10099, %v10127
        %10129 = vmatmul.bf16.gmra.mxu0 %v6463
        %v10130 = vpop.f32.mrf.mxu0
        %v10131 = vadd.f32 %v10102, %v10130
        %v10132 = vpop.f32.mrf.mxu0
        %v10133 = vadd.f32 %v10104, %v10132
        %10134 = vmatmul.bf16.gmra.mxu0 %v6471
        %v10135 = vpop.f32.mrf.mxu0
        %v10136 = vadd.f32 %v10107, %v10135
        %v10137 = vpop.f32.mrf.mxu0
        %v10138 = vadd.f32 %v10109, %v10137
        %10139 = vdwg.mxu0
        %10140 = vmatpush.bf16.msra.mxu0 %v8423
        %10141 = vmatpush.bf16.msra.mxu0 %v8415
        %10142 = vmatpush.bf16.msra.mxu0 %v8407
        %10143 = vmatpush.bf16.msra.mxu0 %v8399
        %10144 = vmatpush.bf16.msra.mxu0 %v8391
        %10145 = vmatpush.bf16.msra.mxu0 %v8383
        %10146 = vmatpush.bf16.msra.mxu0 %v8375
        %10147 = vmatpush.bf16.msra.mxu0 %v8367
        %10148 = vmatmul.bf16.gmra.mxu0 %v6448
        %v10149 = vpop.f32.mrf.mxu0
        %v10150 = vadd.f32 %v10121, %v10149
        %v10151 = vpop.f32.mrf.mxu0
        %v10152 = vadd.f32 %v10123, %v10151
        %10153 = vmatmul.bf16.gmra.mxu0 %v6456
        %v10154 = vpop.f32.mrf.mxu0
        %v10155 = vadd.f32 %v10126, %v10154
        %v10156 = vpop.f32.mrf.mxu0
        %v10157 = vadd.f32 %v10128, %v10156
        %10158 = vmatmul.bf16.gmra.mxu0 %v6464
        %v10159 = vpop.f32.mrf.mxu0
        %v10160 = vadd.f32 %v10131, %v10159
        %v10161 = vpop.f32.mrf.mxu0
        %v10162 = vadd.f32 %v10133, %v10161
        %10163 = vmatmul.bf16.gmra.mxu0 %v6472
        %v10164 = vpop.f32.mrf.mxu0
        %v10165 = vadd.f32 %v10136, %v10164
        %v10166 = vpop.f32.mrf.mxu0
        %v10167 = vadd.f32 %v10138, %v10166
        %10168 = vdwg.mxu0
        %10169 = vmatpush.bf16.msra.mxu0 %v8487
        %10170 = vmatpush.bf16.msra.mxu0 %v8479
        %10171 = vmatpush.bf16.msra.mxu0 %v8471
        %10172 = vmatpush.bf16.msra.mxu0 %v8463
        %10173 = vmatpush.bf16.msra.mxu0 %v8455
        %10174 = vmatpush.bf16.msra.mxu0 %v8447
        %10175 = vmatpush.bf16.msra.mxu0 %v8439
        %10176 = vmatpush.bf16.msra.mxu0 %v8431
        %10177 = vmatmul.bf16.gmra.mxu0 %v6449
        %v10178 = vpop.f32.mrf.mxu0
        %v10179 = vadd.f32 %v10150, %v10178
        %v10180 = vpop.f32.mrf.mxu0
        %v10181 = vadd.f32 %v10152, %v10180
        %10182 = vmatmul.bf16.gmra.mxu0 %v6457
        %v10183 = vpop.f32.mrf.mxu0
        %v10184 = vadd.f32 %v10155, %v10183
        %v10185 = vpop.f32.mrf.mxu0
        %v10186 = vadd.f32 %v10157, %v10185
        %10187 = vmatmul.bf16.gmra.mxu0 %v6465
        %v10188 = vpop.f32.mrf.mxu0
        %v10189 = vadd.f32 %v10160, %v10188
        %v10190 = vpop.f32.mrf.mxu0
        %v10191 = vadd.f32 %v10162, %v10190
        %10192 = vmatmul.bf16.gmra.mxu0 %v6473
        %v10193 = vpop.f32.mrf.mxu0
        %v10194 = vadd.f32 %v10165, %v10193
        %v10195 = vpop.f32.mrf.mxu0
        %v10196 = vadd.f32 %v10167, %v10195
        %10197 = vdwg.mxu0
        %10198 = vmatpush.bf16.msra.mxu0 %v8551
        %10199 = vmatpush.bf16.msra.mxu0 %v8543
        %10200 = vmatpush.bf16.msra.mxu0 %v8535
        %10201 = vmatpush.bf16.msra.mxu0 %v8527
        %10202 = vmatpush.bf16.msra.mxu0 %v8519
        %10203 = vmatpush.bf16.msra.mxu0 %v8511
        %10204 = vmatpush.bf16.msra.mxu0 %v8503
        %10205 = vmatpush.bf16.msra.mxu0 %v8495
        %10206 = vmatmul.bf16.gmra.mxu0 %v6450
        %v10207 = vpop.f32.mrf.mxu0
        %v10208 = vadd.f32 %v10179, %v10207
        %v10209 = vpop.f32.mrf.mxu0
        %v10210 = vadd.f32 %v10181, %v10209
        %10211 = vmatmul.bf16.gmra.mxu0 %v6458
        %v10212 = vpop.f32.mrf.mxu0
        %v10213 = vadd.f32 %v10184, %v10212
        %v10214 = vpop.f32.mrf.mxu0
        %v10215 = vadd.f32 %v10186, %v10214
        %10216 = vmatmul.bf16.gmra.mxu0 %v6466
        %v10217 = vpop.f32.mrf.mxu0
        %v10218 = vadd.f32 %v10189, %v10217
        %v10219 = vpop.f32.mrf.mxu0
        %v10220 = vadd.f32 %v10191, %v10219
        %10221 = vmatmul.bf16.gmra.mxu0 %v6474
        %v10222 = vpop.f32.mrf.mxu0
        %v10223 = vadd.f32 %v10194, %v10222
        %v10224 = vpop.f32.mrf.mxu0
        %v10225 = vadd.f32 %v10196, %v10224
        %10226 = vdwg.mxu0
        %10227 = vmatpush.bf16.msra.mxu0 %v8104
        %10228 = vmatpush.bf16.msra.mxu0 %v8096
        %10229 = vmatpush.bf16.msra.mxu0 %v8088
        %10230 = vmatpush.bf16.msra.mxu0 %v8080
        %10231 = vmatpush.bf16.msra.mxu0 %v8072
        %10232 = vmatpush.bf16.msra.mxu0 %v8064
        %10233 = vmatpush.bf16.msra.mxu0 %v8056
        %10234 = vmatpush.bf16.msra.mxu0 %v8048
        %10235 = vmatmul.bf16.gmra.mxu0 %v6443
        %v10236 = vpop.f32.mrf.mxu0
        %v10237 = vadd.f32 0.0, %v10236
        %v10238 = vpop.f32.mrf.mxu0
        %v10239 = vadd.f32 0.0, %v10238
        %10240 = vmatmul.bf16.gmra.mxu0 %v6451
        %v10241 = vpop.f32.mrf.mxu0
        %v10242 = vadd.f32 0.0, %v10241
        %v10243 = vpop.f32.mrf.mxu0
        %v10244 = vadd.f32 0.0, %v10243
        %10245 = vmatmul.bf16.gmra.mxu0 %v6459
        %v10246 = vpop.f32.mrf.mxu0
        %v10247 = vadd.f32 0.0, %v10246
        %v10248 = vpop.f32.mrf.mxu0
        %v10249 = vadd.f32 0.0, %v10248
        %10250 = vmatmul.bf16.gmra.mxu0 %v6467
        %v10251 = vpop.f32.mrf.mxu0
        %v10252 = vadd.f32 0.0, %v10251
        %v10253 = vpop.f32.mrf.mxu0
        %v10254 = vadd.f32 0.0, %v10253
        %10255 = vdwg.mxu0
        %10256 = vmatpush.bf16.msra.mxu0 %v8168
        %10257 = vmatpush.bf16.msra.mxu0 %v8160
        %10258 = vmatpush.bf16.msra.mxu0 %v8152
        %10259 = vmatpush.bf16.msra.mxu0 %v8144
        %10260 = vmatpush.bf16.msra.mxu0 %v8136
        %10261 = vmatpush.bf16.msra.mxu0 %v8128
        %10262 = vmatpush.bf16.msra.mxu0 %v8120
        %10263 = vmatpush.bf16.msra.mxu0 %v8112
        %10264 = vmatmul.bf16.gmra.mxu0 %v6444
        %v10265 = vpop.f32.mrf.mxu0
        %v10266 = vadd.f32 %v10237, %v10265
        %v10267 = vpop.f32.mrf.mxu0
        %v10268 = vadd.f32 %v10239, %v10267
        %10269 = vmatmul.bf16.gmra.mxu0 %v6452
        %v10270 = vpop.f32.mrf.mxu0
        %v10271 = vadd.f32 %v10242, %v10270
        %v10272 = vpop.f32.mrf.mxu0
        %v10273 = vadd.f32 %v10244, %v10272
        %10274 = vmatmul.bf16.gmra.mxu0 %v6460
        %v10275 = vpop.f32.mrf.mxu0
        %v10276 = vadd.f32 %v10247, %v10275
        %v10277 = vpop.f32.mrf.mxu0
        %v10278 = vadd.f32 %v10249, %v10277
        %10279 = vmatmul.bf16.gmra.mxu0 %v6468
        %v10280 = vpop.f32.mrf.mxu0
        %v10281 = vadd.f32 %v10252, %v10280
        %v10282 = vpop.f32.mrf.mxu0
        %v10283 = vadd.f32 %v10254, %v10282
        %10284 = vdwg.mxu0
        %10285 = vmatpush.bf16.msra.mxu0 %v8232
        %10286 = vmatpush.bf16.msra.mxu0 %v8224
        %10287 = vmatpush.bf16.msra.mxu0 %v8216
        %10288 = vmatpush.bf16.msra.mxu0 %v8208
        %10289 = vmatpush.bf16.msra.mxu0 %v8200
        %10290 = vmatpush.bf16.msra.mxu0 %v8192
        %10291 = vmatpush.bf16.msra.mxu0 %v8184
        %10292 = vmatpush.bf16.msra.mxu0 %v8176
        %10293 = vmatmul.bf16.gmra.mxu0 %v6445
        %v10294 = vpop.f32.mrf.mxu0
        %v10295 = vadd.f32 %v10266, %v10294
        %v10296 = vpop.f32.mrf.mxu0
        %v10297 = vadd.f32 %v10268, %v10296
        %10298 = vmatmul.bf16.gmra.mxu0 %v6453
        %v10299 = vpop.f32.mrf.mxu0
        %v10300 = vadd.f32 %v10271, %v10299
        %v10301 = vpop.f32.mrf.mxu0
        %v10302 = vadd.f32 %v10273, %v10301
        %10303 = vmatmul.bf16.gmra.mxu0 %v6461
        %v10304 = vpop.f32.mrf.mxu0
        %v10305 = vadd.f32 %v10276, %v10304
        %v10306 = vpop.f32.mrf.mxu0
        %v10307 = vadd.f32 %v10278, %v10306
        %10308 = vmatmul.bf16.gmra.mxu0 %v6469
        %v10309 = vpop.f32.mrf.mxu0
        %v10310 = vadd.f32 %v10281, %v10309
        %v10311 = vpop.f32.mrf.mxu0
        %v10312 = vadd.f32 %v10283, %v10311
        %10313 = vdwg.mxu0
        %10314 = vmatpush.bf16.msra.mxu0 %v8296
        %10315 = vmatpush.bf16.msra.mxu0 %v8288
        %10316 = vmatpush.bf16.msra.mxu0 %v8280
        %10317 = vmatpush.bf16.msra.mxu0 %v8272
        %10318 = vmatpush.bf16.msra.mxu0 %v8264
        %10319 = vmatpush.bf16.msra.mxu0 %v8256
        %10320 = vmatpush.bf16.msra.mxu0 %v8248
        %10321 = vmatpush.bf16.msra.mxu0 %v8240
        %10322 = vmatmul.bf16.gmra.mxu0 %v6446
        %v10323 = vpop.f32.mrf.mxu0
        %v10324 = vadd.f32 %v10295, %v10323
        %v10325 = vpop.f32.mrf.mxu0
        %v10326 = vadd.f32 %v10297, %v10325
        %10327 = vmatmul.bf16.gmra.mxu0 %v6454
        %v10328 = vpop.f32.mrf.mxu0
        %v10329 = vadd.f32 %v10300, %v10328
        %v10330 = vpop.f32.mrf.mxu0
        %v10331 = vadd.f32 %v10302, %v10330
        %10332 = vmatmul.bf16.gmra.mxu0 %v6462
        %v10333 = vpop.f32.mrf.mxu0
        %v10334 = vadd.f32 %v10305, %v10333
        %v10335 = vpop.f32.mrf.mxu0
        %v10336 = vadd.f32 %v10307, %v10335
        %10337 = vmatmul.bf16.gmra.mxu0 %v6470
        %v10338 = vpop.f32.mrf.mxu0
        %v10339 = vadd.f32 %v10310, %v10338
        %v10340 = vpop.f32.mrf.mxu0
        %v10341 = vadd.f32 %v10312, %v10340
        %10342 = vdwg.mxu0
        %10343 = vmatpush.bf16.msra.mxu0 %v8360
        %10344 = vmatpush.bf16.msra.mxu0 %v8352
        %10345 = vmatpush.bf16.msra.mxu0 %v8344
        %10346 = vmatpush.bf16.msra.mxu0 %v8336
        %10347 = vmatpush.bf16.msra.mxu0 %v8328
        %10348 = vmatpush.bf16.msra.mxu0 %v8320
        %10349 = vmatpush.bf16.msra.mxu0 %v8312
        %10350 = vmatpush.bf16.msra.mxu0 %v8304
        %10351 = vmatmul.bf16.gmra.mxu0 %v6447
        %v10352 = vpop.f32.mrf.mxu0
        %v10353 = vadd.f32 %v10324, %v10352
        %v10354 = vpop.f32.mrf.mxu0
        %v10355 = vadd.f32 %v10326, %v10354
        %10356 = vmatmul.bf16.gmra.mxu0 %v6455
        %v10357 = vpop.f32.mrf.mxu0
        %v10358 = vadd.f32 %v10329, %v10357
        %v10359 = vpop.f32.mrf.mxu0
        %v10360 = vadd.f32 %v10331, %v10359
        %10361 = vmatmul.bf16.gmra.mxu0 %v6463
        %v10362 = vpop.f32.mrf.mxu0
        %v10363 = vadd.f32 %v10334, %v10362
        %v10364 = vpop.f32.mrf.mxu0
        %v10365 = vadd.f32 %v10336, %v10364
        %10366 = vmatmul.bf16.gmra.mxu0 %v6471
        %v10367 = vpop.f32.mrf.mxu0
        %v10368 = vadd.f32 %v10339, %v10367
        %v10369 = vpop.f32.mrf.mxu0
        %v10370 = vadd.f32 %v10341, %v10369
        %10371 = vdwg.mxu0
        %10372 = vmatpush.bf16.msra.mxu0 %v8424
        %10373 = vmatpush.bf16.msra.mxu0 %v8416
        %10374 = vmatpush.bf16.msra.mxu0 %v8408
        %10375 = vmatpush.bf16.msra.mxu0 %v8400
        %10376 = vmatpush.bf16.msra.mxu0 %v8392
        %10377 = vmatpush.bf16.msra.mxu0 %v8384
        %10378 = vmatpush.bf16.msra.mxu0 %v8376
        %10379 = vmatpush.bf16.msra.mxu0 %v8368
        %10380 = vmatmul.bf16.gmra.mxu0 %v6448
        %v10381 = vpop.f32.mrf.mxu0
        %v10382 = vadd.f32 %v10353, %v10381
        %v10383 = vpop.f32.mrf.mxu0
        %v10384 = vadd.f32 %v10355, %v10383
        %10385 = vmatmul.bf16.gmra.mxu0 %v6456
        %v10386 = vpop.f32.mrf.mxu0
        %v10387 = vadd.f32 %v10358, %v10386
        %v10388 = vpop.f32.mrf.mxu0
        %v10389 = vadd.f32 %v10360, %v10388
        %10390 = vmatmul.bf16.gmra.mxu0 %v6464
        %v10391 = vpop.f32.mrf.mxu0
        %v10392 = vadd.f32 %v10363, %v10391
        %v10393 = vpop.f32.mrf.mxu0
        %v10394 = vadd.f32 %v10365, %v10393
        %10395 = vmatmul.bf16.gmra.mxu0 %v6472
        %v10396 = vpop.f32.mrf.mxu0
        %v10397 = vadd.f32 %v10368, %v10396
        %v10398 = vpop.f32.mrf.mxu0
        %v10399 = vadd.f32 %v10370, %v10398
        %10400 = vdwg.mxu0
        %10401 = vmatpush.bf16.msra.mxu0 %v8488
        %10402 = vmatpush.bf16.msra.mxu0 %v8480
        %10403 = vmatpush.bf16.msra.mxu0 %v8472
        %10404 = vmatpush.bf16.msra.mxu0 %v8464
        %10405 = vmatpush.bf16.msra.mxu0 %v8456
        %10406 = vmatpush.bf16.msra.mxu0 %v8448
        %10407 = vmatpush.bf16.msra.mxu0 %v8440
        %10408 = vmatpush.bf16.msra.mxu0 %v8432
        %10409 = vmatmul.bf16.gmra.mxu0 %v6449
        %v10410 = vpop.f32.mrf.mxu0
        %v10411 = vadd.f32 %v10382, %v10410
        %v10412 = vpop.f32.mrf.mxu0
        %v10413 = vadd.f32 %v10384, %v10412
        %10414 = vmatmul.bf16.gmra.mxu0 %v6457
        %v10415 = vpop.f32.mrf.mxu0
        %v10416 = vadd.f32 %v10387, %v10415
        %v10417 = vpop.f32.mrf.mxu0
        %v10418 = vadd.f32 %v10389, %v10417
        %10419 = vmatmul.bf16.gmra.mxu0 %v6465
        %v10420 = vpop.f32.mrf.mxu0
        %v10421 = vadd.f32 %v10392, %v10420
        %v10422 = vpop.f32.mrf.mxu0
        %v10423 = vadd.f32 %v10394, %v10422
        %10424 = vmatmul.bf16.gmra.mxu0 %v6473
        %v10425 = vpop.f32.mrf.mxu0
        %v10426 = vadd.f32 %v10397, %v10425
        %v10427 = vpop.f32.mrf.mxu0
        %v10428 = vadd.f32 %v10399, %v10427
        %10429 = vdwg.mxu0
        %10430 = vmatpush.bf16.msra.mxu0 %v8552
        %10431 = vmatpush.bf16.msra.mxu0 %v8544
        %10432 = vmatpush.bf16.msra.mxu0 %v8536
        %10433 = vmatpush.bf16.msra.mxu0 %v8528
        %10434 = vmatpush.bf16.msra.mxu0 %v8520
        %10435 = vmatpush.bf16.msra.mxu0 %v8512
        %10436 = vmatpush.bf16.msra.mxu0 %v8504
        %10437 = vmatpush.bf16.msra.mxu0 %v8496
        %10438 = vmatmul.bf16.gmra.mxu0 %v6450
        %v10439 = vpop.f32.mrf.mxu0
        %v10440 = vadd.f32 %v10411, %v10439
        %v10441 = vpop.f32.mrf.mxu0
        %v10442 = vadd.f32 %v10413, %v10441
        %10443 = vmatmul.bf16.gmra.mxu0 %v6458
        %v10444 = vpop.f32.mrf.mxu0
        %v10445 = vadd.f32 %v10416, %v10444
        %v10446 = vpop.f32.mrf.mxu0
        %v10447 = vadd.f32 %v10418, %v10446
        %10448 = vmatmul.bf16.gmra.mxu0 %v6466
        %v10449 = vpop.f32.mrf.mxu0
        %v10450 = vadd.f32 %v10421, %v10449
        %v10451 = vpop.f32.mrf.mxu0
        %v10452 = vadd.f32 %v10423, %v10451
        %10453 = vmatmul.bf16.gmra.mxu0 %v6474
        %v10454 = vpop.f32.mrf.mxu0
        %v10455 = vadd.f32 %v10426, %v10454
        %v10456 = vpop.f32.mrf.mxu0
        %v10457 = vadd.f32 %v10428, %v10456
        %10458 = vdwg.mxu0
        %10459 = vmatpush.bf16.msra.mxu0 %v8105
        %10460 = vmatpush.bf16.msra.mxu0 %v8097
        %10461 = vmatpush.bf16.msra.mxu0 %v8089
        %10462 = vmatpush.bf16.msra.mxu0 %v8081
        %10463 = vmatpush.bf16.msra.mxu0 %v8073
        %10464 = vmatpush.bf16.msra.mxu0 %v8065
        %10465 = vmatpush.bf16.msra.mxu0 %v8057
        %10466 = vmatpush.bf16.msra.mxu0 %v8049
        %10467 = vmatmul.bf16.gmra.mxu0 %v6443
        %v10468 = vpop.f32.mrf.mxu0
        %v10469 = vadd.f32 0.0, %v10468
        %v10470 = vpop.f32.mrf.mxu0
        %v10471 = vadd.f32 0.0, %v10470
        %10472 = vmatmul.bf16.gmra.mxu0 %v6451
        %v10473 = vpop.f32.mrf.mxu0
        %v10474 = vadd.f32 0.0, %v10473
        %v10475 = vpop.f32.mrf.mxu0
        %v10476 = vadd.f32 0.0, %v10475
        %10477 = vmatmul.bf16.gmra.mxu0 %v6459
        %v10478 = vpop.f32.mrf.mxu0
        %v10479 = vadd.f32 0.0, %v10478
        %v10480 = vpop.f32.mrf.mxu0
        %v10481 = vadd.f32 0.0, %v10480
        %10482 = vmatmul.bf16.gmra.mxu0 %v6467
        %v10483 = vpop.f32.mrf.mxu0
        %v10484 = vadd.f32 0.0, %v10483
        %v10485 = vpop.f32.mrf.mxu0
        %v10486 = vadd.f32 0.0, %v10485
        %10487 = vdwg.mxu0
        %10488 = vmatpush.bf16.msra.mxu0 %v8169
        %10489 = vmatpush.bf16.msra.mxu0 %v8161
        %10490 = vmatpush.bf16.msra.mxu0 %v8153
        %10491 = vmatpush.bf16.msra.mxu0 %v8145
        %10492 = vmatpush.bf16.msra.mxu0 %v8137
        %10493 = vmatpush.bf16.msra.mxu0 %v8129
        %10494 = vmatpush.bf16.msra.mxu0 %v8121
        %10495 = vmatpush.bf16.msra.mxu0 %v8113
        %10496 = vmatmul.bf16.gmra.mxu0 %v6444
        %v10497 = vpop.f32.mrf.mxu0
        %v10498 = vadd.f32 %v10469, %v10497
        %v10499 = vpop.f32.mrf.mxu0
        %v10500 = vadd.f32 %v10471, %v10499
        %10501 = vmatmul.bf16.gmra.mxu0 %v6452
        %v10502 = vpop.f32.mrf.mxu0
        %v10503 = vadd.f32 %v10474, %v10502
        %v10504 = vpop.f32.mrf.mxu0
        %v10505 = vadd.f32 %v10476, %v10504
        %10506 = vmatmul.bf16.gmra.mxu0 %v6460
        %v10507 = vpop.f32.mrf.mxu0
        %v10508 = vadd.f32 %v10479, %v10507
        %v10509 = vpop.f32.mrf.mxu0
        %v10510 = vadd.f32 %v10481, %v10509
        %10511 = vmatmul.bf16.gmra.mxu0 %v6468
        %v10512 = vpop.f32.mrf.mxu0
        %v10513 = vadd.f32 %v10484, %v10512
        %v10514 = vpop.f32.mrf.mxu0
        %v10515 = vadd.f32 %v10486, %v10514
        %10516 = vdwg.mxu0
        %10517 = vmatpush.bf16.msra.mxu0 %v8233
        %10518 = vmatpush.bf16.msra.mxu0 %v8225
        %10519 = vmatpush.bf16.msra.mxu0 %v8217
        %10520 = vmatpush.bf16.msra.mxu0 %v8209
        %10521 = vmatpush.bf16.msra.mxu0 %v8201
        %10522 = vmatpush.bf16.msra.mxu0 %v8193
        %10523 = vmatpush.bf16.msra.mxu0 %v8185
        %10524 = vmatpush.bf16.msra.mxu0 %v8177
        %10525 = vmatmul.bf16.gmra.mxu0 %v6445
        %v10526 = vpop.f32.mrf.mxu0
        %v10527 = vadd.f32 %v10498, %v10526
        %v10528 = vpop.f32.mrf.mxu0
        %v10529 = vadd.f32 %v10500, %v10528
        %10530 = vmatmul.bf16.gmra.mxu0 %v6453
        %v10531 = vpop.f32.mrf.mxu0
        %v10532 = vadd.f32 %v10503, %v10531
        %v10533 = vpop.f32.mrf.mxu0
        %v10534 = vadd.f32 %v10505, %v10533
        %10535 = vmatmul.bf16.gmra.mxu0 %v6461
        %v10536 = vpop.f32.mrf.mxu0
        %v10537 = vadd.f32 %v10508, %v10536
        %v10538 = vpop.f32.mrf.mxu0
        %v10539 = vadd.f32 %v10510, %v10538
        %10540 = vmatmul.bf16.gmra.mxu0 %v6469
        %v10541 = vpop.f32.mrf.mxu0
        %v10542 = vadd.f32 %v10513, %v10541
        %v10543 = vpop.f32.mrf.mxu0
        %v10544 = vadd.f32 %v10515, %v10543
        %10545 = vdwg.mxu0
        %10546 = vmatpush.bf16.msra.mxu0 %v8297
        %10547 = vmatpush.bf16.msra.mxu0 %v8289
        %10548 = vmatpush.bf16.msra.mxu0 %v8281
        %10549 = vmatpush.bf16.msra.mxu0 %v8273
        %10550 = vmatpush.bf16.msra.mxu0 %v8265
        %10551 = vmatpush.bf16.msra.mxu0 %v8257
        %10552 = vmatpush.bf16.msra.mxu0 %v8249
        %10553 = vmatpush.bf16.msra.mxu0 %v8241
        %10554 = vmatmul.bf16.gmra.mxu0 %v6446
        %v10555 = vpop.f32.mrf.mxu0
        %v10556 = vadd.f32 %v10527, %v10555
        %v10557 = vpop.f32.mrf.mxu0
        %v10558 = vadd.f32 %v10529, %v10557
        %10559 = vmatmul.bf16.gmra.mxu0 %v6454
        %v10560 = vpop.f32.mrf.mxu0
        %v10561 = vadd.f32 %v10532, %v10560
        %v10562 = vpop.f32.mrf.mxu0
        %v10563 = vadd.f32 %v10534, %v10562
        %10564 = vmatmul.bf16.gmra.mxu0 %v6462
        %v10565 = vpop.f32.mrf.mxu0
        %v10566 = vadd.f32 %v10537, %v10565
        %v10567 = vpop.f32.mrf.mxu0
        %v10568 = vadd.f32 %v10539, %v10567
        %10569 = vmatmul.bf16.gmra.mxu0 %v6470
        %v10570 = vpop.f32.mrf.mxu0
        %v10571 = vadd.f32 %v10542, %v10570
        %v10572 = vpop.f32.mrf.mxu0
        %v10573 = vadd.f32 %v10544, %v10572
        %10574 = vdwg.mxu0
        %10575 = vmatpush.bf16.msra.mxu0 %v8361
        %10576 = vmatpush.bf16.msra.mxu0 %v8353
        %10577 = vmatpush.bf16.msra.mxu0 %v8345
        %10578 = vmatpush.bf16.msra.mxu0 %v8337
        %10579 = vmatpush.bf16.msra.mxu0 %v8329
        %10580 = vmatpush.bf16.msra.mxu0 %v8321
        %10581 = vmatpush.bf16.msra.mxu0 %v8313
        %10582 = vmatpush.bf16.msra.mxu0 %v8305
        %10583 = vmatmul.bf16.gmra.mxu0 %v6447
        %v10584 = vpop.f32.mrf.mxu0
        %v10585 = vadd.f32 %v10556, %v10584
        %v10586 = vpop.f32.mrf.mxu0
        %v10587 = vadd.f32 %v10558, %v10586
        %10588 = vmatmul.bf16.gmra.mxu0 %v6455
        %v10589 = vpop.f32.mrf.mxu0
        %v10590 = vadd.f32 %v10561, %v10589
        %v10591 = vpop.f32.mrf.mxu0
        %v10592 = vadd.f32 %v10563, %v10591
        %10593 = vmatmul.bf16.gmra.mxu0 %v6463
        %v10594 = vpop.f32.mrf.mxu0
        %v10595 = vadd.f32 %v10566, %v10594
        %v10596 = vpop.f32.mrf.mxu0
        %v10597 = vadd.f32 %v10568, %v10596
        %10598 = vmatmul.bf16.gmra.mxu0 %v6471
        %v10599 = vpop.f32.mrf.mxu0
        %v10600 = vadd.f32 %v10571, %v10599
        %v10601 = vpop.f32.mrf.mxu0
        %v10602 = vadd.f32 %v10573, %v10601
        %10603 = vdwg.mxu0
        %10604 = vmatpush.bf16.msra.mxu0 %v8425
        %10605 = vmatpush.bf16.msra.mxu0 %v8417
        %10606 = vmatpush.bf16.msra.mxu0 %v8409
        %10607 = vmatpush.bf16.msra.mxu0 %v8401
        %10608 = vmatpush.bf16.msra.mxu0 %v8393
        %10609 = vmatpush.bf16.msra.mxu0 %v8385
        %10610 = vmatpush.bf16.msra.mxu0 %v8377
        %10611 = vmatpush.bf16.msra.mxu0 %v8369
        %10612 = vmatmul.bf16.gmra.mxu0 %v6448
        %v10613 = vpop.f32.mrf.mxu0
        %v10614 = vadd.f32 %v10585, %v10613
        %v10615 = vpop.f32.mrf.mxu0
        %v10616 = vadd.f32 %v10587, %v10615
        %10617 = vmatmul.bf16.gmra.mxu0 %v6456
        %v10618 = vpop.f32.mrf.mxu0
        %v10619 = vadd.f32 %v10590, %v10618
        %v10620 = vpop.f32.mrf.mxu0
        %v10621 = vadd.f32 %v10592, %v10620
        %10622 = vmatmul.bf16.gmra.mxu0 %v6464
        %v10623 = vpop.f32.mrf.mxu0
        %v10624 = vadd.f32 %v10595, %v10623
        %v10625 = vpop.f32.mrf.mxu0
        %v10626 = vadd.f32 %v10597, %v10625
        %10627 = vmatmul.bf16.gmra.mxu0 %v6472
        %v10628 = vpop.f32.mrf.mxu0
        %v10629 = vadd.f32 %v10600, %v10628
        %v10630 = vpop.f32.mrf.mxu0
        %v10631 = vadd.f32 %v10602, %v10630
        %10632 = vdwg.mxu0
        %10633 = vmatpush.bf16.msra.mxu0 %v8489
        %10634 = vmatpush.bf16.msra.mxu0 %v8481
        %10635 = vmatpush.bf16.msra.mxu0 %v8473
        %10636 = vmatpush.bf16.msra.mxu0 %v8465
        %10637 = vmatpush.bf16.msra.mxu0 %v8457
        %10638 = vmatpush.bf16.msra.mxu0 %v8449
        %10639 = vmatpush.bf16.msra.mxu0 %v8441
        %10640 = vmatpush.bf16.msra.mxu0 %v8433
        %10641 = vmatmul.bf16.gmra.mxu0 %v6449
        %v10642 = vpop.f32.mrf.mxu0
        %v10643 = vadd.f32 %v10614, %v10642
        %v10644 = vpop.f32.mrf.mxu0
        %v10645 = vadd.f32 %v10616, %v10644
        %10646 = vmatmul.bf16.gmra.mxu0 %v6457
        %v10647 = vpop.f32.mrf.mxu0
        %v10648 = vadd.f32 %v10619, %v10647
        %v10649 = vpop.f32.mrf.mxu0
        %v10650 = vadd.f32 %v10621, %v10649
        %10651 = vmatmul.bf16.gmra.mxu0 %v6465
        %v10652 = vpop.f32.mrf.mxu0
        %v10653 = vadd.f32 %v10624, %v10652
        %v10654 = vpop.f32.mrf.mxu0
        %v10655 = vadd.f32 %v10626, %v10654
        %10656 = vmatmul.bf16.gmra.mxu0 %v6473
        %v10657 = vpop.f32.mrf.mxu0
        %v10658 = vadd.f32 %v10629, %v10657
        %v10659 = vpop.f32.mrf.mxu0
        %v10660 = vadd.f32 %v10631, %v10659
        %10661 = vdwg.mxu0
        %10662 = vmatpush.bf16.msra.mxu0 %v8553
        %10663 = vmatpush.bf16.msra.mxu0 %v8545
        %10664 = vmatpush.bf16.msra.mxu0 %v8537
        %10665 = vmatpush.bf16.msra.mxu0 %v8529
        %10666 = vmatpush.bf16.msra.mxu0 %v8521
        %10667 = vmatpush.bf16.msra.mxu0 %v8513
        %10668 = vmatpush.bf16.msra.mxu0 %v8505
        %10669 = vmatpush.bf16.msra.mxu0 %v8497
        %10670 = vmatmul.bf16.gmra.mxu0 %v6450
        %v10671 = vpop.f32.mrf.mxu0
        %v10672 = vadd.f32 %v10643, %v10671
        %v10673 = vpop.f32.mrf.mxu0
        %v10674 = vadd.f32 %v10645, %v10673
        %10675 = vmatmul.bf16.gmra.mxu0 %v6458
        %v10676 = vpop.f32.mrf.mxu0
        %v10677 = vadd.f32 %v10648, %v10676
        %v10678 = vpop.f32.mrf.mxu0
        %v10679 = vadd.f32 %v10650, %v10678
        %10680 = vmatmul.bf16.gmra.mxu0 %v6466
        %v10681 = vpop.f32.mrf.mxu0
        %v10682 = vadd.f32 %v10653, %v10681
        %v10683 = vpop.f32.mrf.mxu0
        %v10684 = vadd.f32 %v10655, %v10683
        %10685 = vmatmul.bf16.gmra.mxu0 %v6474
        %v10686 = vpop.f32.mrf.mxu0
        %v10687 = vadd.f32 %v10658, %v10686
        %v10688 = vpop.f32.mrf.mxu0
        %v10689 = vadd.f32 %v10660, %v10688
        %10690 = vdwg.mxu0
        %10691 = vmatpush.bf16.msra.mxu0 %v8106
        %10692 = vmatpush.bf16.msra.mxu0 %v8098
        %10693 = vmatpush.bf16.msra.mxu0 %v8090
        %10694 = vmatpush.bf16.msra.mxu0 %v8082
        %10695 = vmatpush.bf16.msra.mxu0 %v8074
        %10696 = vmatpush.bf16.msra.mxu0 %v8066
        %10697 = vmatpush.bf16.msra.mxu0 %v8058
        %10698 = vmatpush.bf16.msra.mxu0 %v8050
        %10699 = vmatmul.bf16.gmra.mxu0 %v6443
        %v10700 = vpop.f32.mrf.mxu0
        %v10701 = vadd.f32 0.0, %v10700
        %v10702 = vpop.f32.mrf.mxu0
        %v10703 = vadd.f32 0.0, %v10702
        %10704 = vmatmul.bf16.gmra.mxu0 %v6451
        %v10705 = vpop.f32.mrf.mxu0
        %v10706 = vadd.f32 0.0, %v10705
        %v10707 = vpop.f32.mrf.mxu0
        %v10708 = vadd.f32 0.0, %v10707
        %10709 = vmatmul.bf16.gmra.mxu0 %v6459
        %v10710 = vpop.f32.mrf.mxu0
        %v10711 = vadd.f32 0.0, %v10710
        %v10712 = vpop.f32.mrf.mxu0
        %v10713 = vadd.f32 0.0, %v10712
        %10714 = vmatmul.bf16.gmra.mxu0 %v6467
        %v10715 = vpop.f32.mrf.mxu0
        %v10716 = vadd.f32 0.0, %v10715
        %v10717 = vpop.f32.mrf.mxu0
        %v10718 = vadd.f32 0.0, %v10717
        %10719 = vdwg.mxu0
        %10720 = vmatpush.bf16.msra.mxu0 %v8170
        %10721 = vmatpush.bf16.msra.mxu0 %v8162
        %10722 = vmatpush.bf16.msra.mxu0 %v8154
        %10723 = vmatpush.bf16.msra.mxu0 %v8146
        %10724 = vmatpush.bf16.msra.mxu0 %v8138
        %10725 = vmatpush.bf16.msra.mxu0 %v8130
        %10726 = vmatpush.bf16.msra.mxu0 %v8122
        %10727 = vmatpush.bf16.msra.mxu0 %v8114
        %10728 = vmatmul.bf16.gmra.mxu0 %v6444
        %v10729 = vpop.f32.mrf.mxu0
        %v10730 = vadd.f32 %v10701, %v10729
        %v10731 = vpop.f32.mrf.mxu0
        %v10732 = vadd.f32 %v10703, %v10731
        %10733 = vmatmul.bf16.gmra.mxu0 %v6452
        %v10734 = vpop.f32.mrf.mxu0
        %v10735 = vadd.f32 %v10706, %v10734
        %v10736 = vpop.f32.mrf.mxu0
        %v10737 = vadd.f32 %v10708, %v10736
        %10738 = vmatmul.bf16.gmra.mxu0 %v6460
        %v10739 = vpop.f32.mrf.mxu0
        %v10740 = vadd.f32 %v10711, %v10739
        %v10741 = vpop.f32.mrf.mxu0
        %v10742 = vadd.f32 %v10713, %v10741
        %10743 = vmatmul.bf16.gmra.mxu0 %v6468
        %v10744 = vpop.f32.mrf.mxu0
        %v10745 = vadd.f32 %v10716, %v10744
        %v10746 = vpop.f32.mrf.mxu0
        %v10747 = vadd.f32 %v10718, %v10746
        %10748 = vdwg.mxu0
        %10749 = vmatpush.bf16.msra.mxu0 %v8234
        %10750 = vmatpush.bf16.msra.mxu0 %v8226
        %10751 = vmatpush.bf16.msra.mxu0 %v8218
        %10752 = vmatpush.bf16.msra.mxu0 %v8210
        %10753 = vmatpush.bf16.msra.mxu0 %v8202
        %10754 = vmatpush.bf16.msra.mxu0 %v8194
        %10755 = vmatpush.bf16.msra.mxu0 %v8186
        %10756 = vmatpush.bf16.msra.mxu0 %v8178
        %10757 = vmatmul.bf16.gmra.mxu0 %v6445
        %v10758 = vpop.f32.mrf.mxu0
        %v10759 = vadd.f32 %v10730, %v10758
        %v10760 = vpop.f32.mrf.mxu0
        %v10761 = vadd.f32 %v10732, %v10760
        %10762 = vmatmul.bf16.gmra.mxu0 %v6453
        %v10763 = vpop.f32.mrf.mxu0
        %v10764 = vadd.f32 %v10735, %v10763
        %v10765 = vpop.f32.mrf.mxu0
        %v10766 = vadd.f32 %v10737, %v10765
        %10767 = vmatmul.bf16.gmra.mxu0 %v6461
        %v10768 = vpop.f32.mrf.mxu0
        %v10769 = vadd.f32 %v10740, %v10768
        %v10770 = vpop.f32.mrf.mxu0
        %v10771 = vadd.f32 %v10742, %v10770
        %10772 = vmatmul.bf16.gmra.mxu0 %v6469
        %v10773 = vpop.f32.mrf.mxu0
        %v10774 = vadd.f32 %v10745, %v10773
        %v10775 = vpop.f32.mrf.mxu0
        %v10776 = vadd.f32 %v10747, %v10775
        %10777 = vdwg.mxu0
        %10778 = vmatpush.bf16.msra.mxu0 %v8298
        %10779 = vmatpush.bf16.msra.mxu0 %v8290
        %10780 = vmatpush.bf16.msra.mxu0 %v8282
        %10781 = vmatpush.bf16.msra.mxu0 %v8274
        %10782 = vmatpush.bf16.msra.mxu0 %v8266
        %10783 = vmatpush.bf16.msra.mxu0 %v8258
        %10784 = vmatpush.bf16.msra.mxu0 %v8250
        %10785 = vmatpush.bf16.msra.mxu0 %v8242
        %10786 = vmatmul.bf16.gmra.mxu0 %v6446
        %v10787 = vpop.f32.mrf.mxu0
        %v10788 = vadd.f32 %v10759, %v10787
        %v10789 = vpop.f32.mrf.mxu0
        %v10790 = vadd.f32 %v10761, %v10789
        %10791 = vmatmul.bf16.gmra.mxu0 %v6454
        %v10792 = vpop.f32.mrf.mxu0
        %v10793 = vadd.f32 %v10764, %v10792
        %v10794 = vpop.f32.mrf.mxu0
        %v10795 = vadd.f32 %v10766, %v10794
        %10796 = vmatmul.bf16.gmra.mxu0 %v6462
        %v10797 = vpop.f32.mrf.mxu0
        %v10798 = vadd.f32 %v10769, %v10797
        %v10799 = vpop.f32.mrf.mxu0
        %v10800 = vadd.f32 %v10771, %v10799
        %10801 = vmatmul.bf16.gmra.mxu0 %v6470
        %v10802 = vpop.f32.mrf.mxu0
        %v10803 = vadd.f32 %v10774, %v10802
        %v10804 = vpop.f32.mrf.mxu0
        %v10805 = vadd.f32 %v10776, %v10804
        %10806 = vdwg.mxu0
        %10807 = vmatpush.bf16.msra.mxu0 %v8362
        %10808 = vmatpush.bf16.msra.mxu0 %v8354
        %10809 = vmatpush.bf16.msra.mxu0 %v8346
        %10810 = vmatpush.bf16.msra.mxu0 %v8338
        %10811 = vmatpush.bf16.msra.mxu0 %v8330
        %10812 = vmatpush.bf16.msra.mxu0 %v8322
        %10813 = vmatpush.bf16.msra.mxu0 %v8314
        %10814 = vmatpush.bf16.msra.mxu0 %v8306
        %10815 = vmatmul.bf16.gmra.mxu0 %v6447
        %v10816 = vpop.f32.mrf.mxu0
        %v10817 = vadd.f32 %v10788, %v10816
        %v10818 = vpop.f32.mrf.mxu0
        %v10819 = vadd.f32 %v10790, %v10818
        %10820 = vmatmul.bf16.gmra.mxu0 %v6455
        %v10821 = vpop.f32.mrf.mxu0
        %v10822 = vadd.f32 %v10793, %v10821
        %v10823 = vpop.f32.mrf.mxu0
        %v10824 = vadd.f32 %v10795, %v10823
        %10825 = vmatmul.bf16.gmra.mxu0 %v6463
        %v10826 = vpop.f32.mrf.mxu0
        %v10827 = vadd.f32 %v10798, %v10826
        %v10828 = vpop.f32.mrf.mxu0
        %v10829 = vadd.f32 %v10800, %v10828
        %10830 = vmatmul.bf16.gmra.mxu0 %v6471
        %v10831 = vpop.f32.mrf.mxu0
        %v10832 = vadd.f32 %v10803, %v10831
        %v10833 = vpop.f32.mrf.mxu0
        %v10834 = vadd.f32 %v10805, %v10833
        %10835 = vdwg.mxu0
        %10836 = vmatpush.bf16.msra.mxu0 %v8426
        %10837 = vmatpush.bf16.msra.mxu0 %v8418
        %10838 = vmatpush.bf16.msra.mxu0 %v8410
        %10839 = vmatpush.bf16.msra.mxu0 %v8402
        %10840 = vmatpush.bf16.msra.mxu0 %v8394
        %10841 = vmatpush.bf16.msra.mxu0 %v8386
        %10842 = vmatpush.bf16.msra.mxu0 %v8378
        %10843 = vmatpush.bf16.msra.mxu0 %v8370
        %10844 = vmatmul.bf16.gmra.mxu0 %v6448
        %v10845 = vpop.f32.mrf.mxu0
        %v10846 = vadd.f32 %v10817, %v10845
        %v10847 = vpop.f32.mrf.mxu0
        %v10848 = vadd.f32 %v10819, %v10847
        %10849 = vmatmul.bf16.gmra.mxu0 %v6456
        %v10850 = vpop.f32.mrf.mxu0
        %v10851 = vadd.f32 %v10822, %v10850
        %v10852 = vpop.f32.mrf.mxu0
        %v10853 = vadd.f32 %v10824, %v10852
        %10854 = vmatmul.bf16.gmra.mxu0 %v6464
        %v10855 = vpop.f32.mrf.mxu0
        %v10856 = vadd.f32 %v10827, %v10855
        %v10857 = vpop.f32.mrf.mxu0
        %v10858 = vadd.f32 %v10829, %v10857
        %10859 = vmatmul.bf16.gmra.mxu0 %v6472
        %v10860 = vpop.f32.mrf.mxu0
        %v10861 = vadd.f32 %v10832, %v10860
        %v10862 = vpop.f32.mrf.mxu0
        %v10863 = vadd.f32 %v10834, %v10862
        %10864 = vdwg.mxu0
        %10865 = vmatpush.bf16.msra.mxu0 %v8490
        %10866 = vmatpush.bf16.msra.mxu0 %v8482
        %10867 = vmatpush.bf16.msra.mxu0 %v8474
        %10868 = vmatpush.bf16.msra.mxu0 %v8466
        %10869 = vmatpush.bf16.msra.mxu0 %v8458
        %10870 = vmatpush.bf16.msra.mxu0 %v8450
        %10871 = vmatpush.bf16.msra.mxu0 %v8442
        %10872 = vmatpush.bf16.msra.mxu0 %v8434
        %10873 = vmatmul.bf16.gmra.mxu0 %v6449
        %v10874 = vpop.f32.mrf.mxu0
        %v10875 = vadd.f32 %v10846, %v10874
        %v10876 = vpop.f32.mrf.mxu0
        %v10877 = vadd.f32 %v10848, %v10876
        %10878 = vmatmul.bf16.gmra.mxu0 %v6457
        %v10879 = vpop.f32.mrf.mxu0
        %v10880 = vadd.f32 %v10851, %v10879
        %v10881 = vpop.f32.mrf.mxu0
        %v10882 = vadd.f32 %v10853, %v10881
        %10883 = vmatmul.bf16.gmra.mxu0 %v6465
        %v10884 = vpop.f32.mrf.mxu0
        %v10885 = vadd.f32 %v10856, %v10884
        %v10886 = vpop.f32.mrf.mxu0
        %v10887 = vadd.f32 %v10858, %v10886
        %10888 = vmatmul.bf16.gmra.mxu0 %v6473
        %v10889 = vpop.f32.mrf.mxu0
        %v10890 = vadd.f32 %v10861, %v10889
        %v10891 = vpop.f32.mrf.mxu0
        %v10892 = vadd.f32 %v10863, %v10891
        %10893 = vdwg.mxu0
        %10894 = vmatpush.bf16.msra.mxu0 %v8554
        %10895 = vmatpush.bf16.msra.mxu0 %v8546
        %10896 = vmatpush.bf16.msra.mxu0 %v8538
        %10897 = vmatpush.bf16.msra.mxu0 %v8530
        %10898 = vmatpush.bf16.msra.mxu0 %v8522
        %10899 = vmatpush.bf16.msra.mxu0 %v8514
        %10900 = vmatpush.bf16.msra.mxu0 %v8506
        %10901 = vmatpush.bf16.msra.mxu0 %v8498
        %10902 = vmatmul.bf16.gmra.mxu0 %v6450
        %v10903 = vpop.f32.mrf.mxu0
        %v10904 = vadd.f32 %v10875, %v10903
        %v10905 = vpop.f32.mrf.mxu0
        %v10906 = vadd.f32 %v10877, %v10905
        %10907 = vmatmul.bf16.gmra.mxu0 %v6458
        %v10908 = vpop.f32.mrf.mxu0
        %v10909 = vadd.f32 %v10880, %v10908
        %v10910 = vpop.f32.mrf.mxu0
        %v10911 = vadd.f32 %v10882, %v10910
        %10912 = vmatmul.bf16.gmra.mxu0 %v6466
        %v10913 = vpop.f32.mrf.mxu0
        %v10914 = vadd.f32 %v10885, %v10913
        %v10915 = vpop.f32.mrf.mxu0
        %v10916 = vadd.f32 %v10887, %v10915
        %10917 = vmatmul.bf16.gmra.mxu0 %v6474
        %v10918 = vpop.f32.mrf.mxu0
        %v10919 = vadd.f32 %v10890, %v10918
        %v10920 = vpop.f32.mrf.mxu0
        %v10921 = vadd.f32 %v10892, %v10920
        %10922 = vdwg.mxu0
        %v10923 = vmax.f32 %v9280, 0.0
        %v10924 = vmax.f32 %v9512, 0.0
        %v10925 = vmax.f32 %v9744, 0.0
        %v10926 = vmax.f32 %v9976, 0.0
        %v10927 = vmax.f32 %v10208, 0.0
        %v10928 = vmax.f32 %v10440, 0.0
        %v10929 = vmax.f32 %v10672, 0.0
        %v10930 = vmax.f32 %v10904, 0.0
        %v10931 = vmax.f32 %v9282, 0.0
        %v10932 = vmax.f32 %v9514, 0.0
        %v10933 = vmax.f32 %v9746, 0.0
        %v10934 = vmax.f32 %v9978, 0.0
        %v10935 = vmax.f32 %v10210, 0.0
        %v10936 = vmax.f32 %v10442, 0.0
        %v10937 = vmax.f32 %v10674, 0.0
        %v10938 = vmax.f32 %v10906, 0.0
        %v10939 = vmax.f32 %v9285, 0.0
        %v10940 = vmax.f32 %v9517, 0.0
        %v10941 = vmax.f32 %v9749, 0.0
        %v10942 = vmax.f32 %v9981, 0.0
        %v10943 = vmax.f32 %v10213, 0.0
        %v10944 = vmax.f32 %v10445, 0.0
        %v10945 = vmax.f32 %v10677, 0.0
        %v10946 = vmax.f32 %v10909, 0.0
        %v10947 = vmax.f32 %v9287, 0.0
        %v10948 = vmax.f32 %v9519, 0.0
        %v10949 = vmax.f32 %v9751, 0.0
        %v10950 = vmax.f32 %v9983, 0.0
        %v10951 = vmax.f32 %v10215, 0.0
        %v10952 = vmax.f32 %v10447, 0.0
        %v10953 = vmax.f32 %v10679, 0.0
        %v10954 = vmax.f32 %v10911, 0.0
        %v10955 = vmax.f32 %v9290, 0.0
        %v10956 = vmax.f32 %v9522, 0.0
        %v10957 = vmax.f32 %v9754, 0.0
        %v10958 = vmax.f32 %v9986, 0.0
        %v10959 = vmax.f32 %v10218, 0.0
        %v10960 = vmax.f32 %v10450, 0.0
        %v10961 = vmax.f32 %v10682, 0.0
        %v10962 = vmax.f32 %v10914, 0.0
        %v10963 = vmax.f32 %v9292, 0.0
        %v10964 = vmax.f32 %v9524, 0.0
        %v10965 = vmax.f32 %v9756, 0.0
        %v10966 = vmax.f32 %v9988, 0.0
        %v10967 = vmax.f32 %v10220, 0.0
        %v10968 = vmax.f32 %v10452, 0.0
        %v10969 = vmax.f32 %v10684, 0.0
        %v10970 = vmax.f32 %v10916, 0.0
        %v10971 = vmax.f32 %v9295, 0.0
        %v10972 = vmax.f32 %v9527, 0.0
        %v10973 = vmax.f32 %v9759, 0.0
        %v10974 = vmax.f32 %v9991, 0.0
        %v10975 = vmax.f32 %v10223, 0.0
        %v10976 = vmax.f32 %v10455, 0.0
        %v10977 = vmax.f32 %v10687, 0.0
        %v10978 = vmax.f32 %v10919, 0.0
        %v10979 = vmax.f32 %v9297, 0.0
        %v10980 = vmax.f32 %v9529, 0.0
        %v10981 = vmax.f32 %v9761, 0.0
        %v10982 = vmax.f32 %v9993, 0.0
        %v10983 = vmax.f32 %v10225, 0.0
        %v10984 = vmax.f32 %v10457, 0.0
        %v10985 = vmax.f32 %v10689, 0.0
        %v10986 = vmax.f32 %v10921, 0.0
        %v10987 = vpack.c.bf16 %v10931, %v10923
        %v10988 = vpack.c.bf16 %v10932, %v10924
        %v10989 = vpack.c.bf16 %v10933, %v10925
        %v10990 = vpack.c.bf16 %v10934, %v10926
        %v10991 = vpack.c.bf16 %v10935, %v10927
        %v10992 = vpack.c.bf16 %v10936, %v10928
        %v10993 = vpack.c.bf16 %v10937, %v10929
        %v10994 = vpack.c.bf16 %v10938, %v10930
        %v10995 = vpack.c.bf16 %v10947, %v10939
        %v10996 = vpack.c.bf16 %v10948, %v10940
        %v10997 = vpack.c.bf16 %v10949, %v10941
        %v10998 = vpack.c.bf16 %v10950, %v10942
        %v10999 = vpack.c.bf16 %v10951, %v10943
        %v11000 = vpack.c.bf16 %v10952, %v10944
        %v11001 = vpack.c.bf16 %v10953, %v10945
        %v11002 = vpack.c.bf16 %v10954, %v10946
        %v11003 = vpack.c.bf16 %v10963, %v10955
        %v11004 = vpack.c.bf16 %v10964, %v10956
        %v11005 = vpack.c.bf16 %v10965, %v10957
        %v11006 = vpack.c.bf16 %v10966, %v10958
        %v11007 = vpack.c.bf16 %v10967, %v10959
        %v11008 = vpack.c.bf16 %v10968, %v10960
        %v11009 = vpack.c.bf16 %v10969, %v10961
        %v11010 = vpack.c.bf16 %v10970, %v10962
        %v11011 = vpack.c.bf16 %v10979, %v10971
        %v11012 = vpack.c.bf16 %v10980, %v10972
        %v11013 = vpack.c.bf16 %v10981, %v10973
        %v11014 = vpack.c.bf16 %v10982, %v10974
        %v11015 = vpack.c.bf16 %v10983, %v10975
        %v11016 = vpack.c.bf16 %v10984, %v10976
        %v11017 = vpack.c.bf16 %v10985, %v10977
        %v11018 = vpack.c.bf16 %v10986, %v10978
        %v11019 = vld [vmem:[#allocation3] sm:$0xff]
        %v11020 = vld [vmem:[#allocation3 + $0x8] sm:$0xff]
        %v11021 = vld [vmem:[#allocation3 + $0x10] sm:$0xff]
        %v11022 = vld [vmem:[#allocation3 + $0x18] sm:$0xff]
        %v11023 = vld [vmem:[#allocation3 + $0x20] sm:$0xff]
        %v11024 = vld [vmem:[#allocation3 + $0x28] sm:$0xff]
        %v11025 = vld [vmem:[#allocation3 + $0x30] sm:$0xff]
        %v11026 = vld [vmem:[#allocation3 + $0x38] sm:$0xff]
        %v11027 = vld [vmem:[%s467] sm:$0xf]
        %v11028 = vld [vmem:[%s467 + $0x4] sm:$0xf]
        %v11029 = vld [vmem:[%s467 + $0x8] sm:$0xf]
        %v11030 = vld [vmem:[%s467 + $0xc] sm:$0xf]
        %v11031 = vld [vmem:[%s467 + $0x10] sm:$0xf]
        %v11032 = vld [vmem:[%s467 + $0x14] sm:$0xf]
        %v11033 = vld [vmem:[%s467 + $0x18] sm:$0xf]
        %v11034 = vld [vmem:[%s467 + $0x1c] sm:$0xf]
        %v11035 = vld [vmem:[%s467 + $0x20] sm:$0xf]
        %v11036 = vld [vmem:[%s467 + $0x24] sm:$0xf]
        %v11037 = vld [vmem:[%s467 + $0x28] sm:$0xf]
        %v11038 = vld [vmem:[%s467 + $0x2c] sm:$0xf]
        %v11039 = vld [vmem:[%s467 + $0x30] sm:$0xf]
        %v11040 = vld [vmem:[%s467 + $0x34] sm:$0xf]
        %v11041 = vld [vmem:[%s467 + $0x38] sm:$0xf]
        %v11042 = vld [vmem:[%s467 + $0x3c] sm:$0xf]
        %v11043 = vld [vmem:[%s467 + $0x40] sm:$0xf]
        %v11044 = vld [vmem:[%s467 + $0x44] sm:$0xf]
        %v11045 = vld [vmem:[%s467 + $0x48] sm:$0xf]
        %v11046 = vld [vmem:[%s467 + $0x4c] sm:$0xf]
        %v11047 = vld [vmem:[%s467 + $0x50] sm:$0xf]
        %v11048 = vld [vmem:[%s467 + $0x54] sm:$0xf]
        %v11049 = vld [vmem:[%s467 + $0x58] sm:$0xf]
        %v11050 = vld [vmem:[%s467 + $0x5c] sm:$0xf]
        %v11051 = vld [vmem:[%s467 + $0x60] sm:$0xf]
        %v11052 = vld [vmem:[%s467 + $0x64] sm:$0xf]
        %v11053 = vld [vmem:[%s467 + $0x68] sm:$0xf]
        %v11054 = vld [vmem:[%s467 + $0x6c] sm:$0xf]
        %v11055 = vld [vmem:[%s467 + $0x70] sm:$0xf]
        %v11056 = vld [vmem:[%s467 + $0x74] sm:$0xf]
        %v11057 = vld [vmem:[%s467 + $0x78] sm:$0xf]
        %v11058 = vld [vmem:[%s467 + $0x7c] sm:$0xf]
        %v11059 = vld [vmem:[%s467 + $0x80] sm:$0xf]
        %v11060 = vld [vmem:[%s467 + $0x84] sm:$0xf]
        %v11061 = vld [vmem:[%s467 + $0x88] sm:$0xf]
        %v11062 = vld [vmem:[%s467 + $0x8c] sm:$0xf]
        %v11063 = vld [vmem:[%s467 + $0x90] sm:$0xf]
        %v11064 = vld [vmem:[%s467 + $0x94] sm:$0xf]
        %v11065 = vld [vmem:[%s467 + $0x98] sm:$0xf]
        %v11066 = vld [vmem:[%s467 + $0x9c] sm:$0xf]
        %v11067 = vld [vmem:[%s467 + $0xa0] sm:$0xf]
        %v11068 = vld [vmem:[%s467 + $0xa4] sm:$0xf]
        %v11069 = vld [vmem:[%s467 + $0xa8] sm:$0xf]
        %v11070 = vld [vmem:[%s467 + $0xac] sm:$0xf]
        %v11071 = vld [vmem:[%s467 + $0xb0] sm:$0xf]
        %v11072 = vld [vmem:[%s467 + $0xb4] sm:$0xf]
        %v11073 = vld [vmem:[%s467 + $0xb8] sm:$0xf]
        %v11074 = vld [vmem:[%s467 + $0xbc] sm:$0xf]
        %v11075 = vld [vmem:[%s467 + $0xc0] sm:$0xf]
        %v11076 = vld [vmem:[%s467 + $0xc4] sm:$0xf]
        %v11077 = vld [vmem:[%s467 + $0xc8] sm:$0xf]
        %v11078 = vld [vmem:[%s467 + $0xcc] sm:$0xf]
        %v11079 = vld [vmem:[%s467 + $0xd0] sm:$0xf]
        %v11080 = vld [vmem:[%s467 + $0xd4] sm:$0xf]
        %v11081 = vld [vmem:[%s467 + $0xd8] sm:$0xf]
        %v11082 = vld [vmem:[%s467 + $0xdc] sm:$0xf]
        %v11083 = vld [vmem:[%s467 + $0xe0] sm:$0xf]
        %v11084 = vld [vmem:[%s467 + $0xe4] sm:$0xf]
        %v11085 = vld [vmem:[%s467 + $0xe8] sm:$0xf]
        %v11086 = vld [vmem:[%s467 + $0xec] sm:$0xf]
        %v11087 = vld [vmem:[%s467 + $0xf0] sm:$0xf]
        %v11088 = vld [vmem:[%s467 + $0xf4] sm:$0xf]
        %v11089 = vld [vmem:[%s467 + $0xf8] sm:$0xf]
        %v11090 = vld [vmem:[%s467 + $0xfc] sm:$0xf]
        %v11091 = vld [vmem:[%s467 + $0x100] sm:$0xf]
        %v11092 = vld [vmem:[%s467 + $0x104] sm:$0xf]
        %v11093 = vld [vmem:[%s467 + $0x108] sm:$0xf]
        %v11094 = vld [vmem:[%s467 + $0x10c] sm:$0xf]
        %v11095 = vld [vmem:[%s467 + $0x110] sm:$0xf]
        %v11096 = vld [vmem:[%s467 + $0x114] sm:$0xf]
        %v11097 = vld [vmem:[%s467 + $0x118] sm:$0xf]
        %v11098 = vld [vmem:[%s467 + $0x11c] sm:$0xf]
        %v11099 = vld [vmem:[%s467 + $0x120] sm:$0xf]
        %v11100 = vld [vmem:[%s467 + $0x124] sm:$0xf]
        %v11101 = vld [vmem:[%s467 + $0x128] sm:$0xf]
        %v11102 = vld [vmem:[%s467 + $0x12c] sm:$0xf]
        %v11103 = vld [vmem:[%s467 + $0x130] sm:$0xf]
        %v11104 = vld [vmem:[%s467 + $0x134] sm:$0xf]
        %v11105 = vld [vmem:[%s467 + $0x138] sm:$0xf]
        %v11106 = vld [vmem:[%s467 + $0x13c] sm:$0xf]
        %v11107 = vld [vmem:[%s467 + $0x140] sm:$0xf]
        %v11108 = vld [vmem:[%s467 + $0x144] sm:$0xf]
        %v11109 = vld [vmem:[%s467 + $0x148] sm:$0xf]
        %v11110 = vld [vmem:[%s467 + $0x14c] sm:$0xf]
        %v11111 = vld [vmem:[%s467 + $0x150] sm:$0xf]
        %v11112 = vld [vmem:[%s467 + $0x154] sm:$0xf]
        %v11113 = vld [vmem:[%s467 + $0x158] sm:$0xf]
        %v11114 = vld [vmem:[%s467 + $0x15c] sm:$0xf]
        %v11115 = vld [vmem:[%s467 + $0x160] sm:$0xf]
        %v11116 = vld [vmem:[%s467 + $0x164] sm:$0xf]
        %v11117 = vld [vmem:[%s467 + $0x168] sm:$0xf]
        %v11118 = vld [vmem:[%s467 + $0x16c] sm:$0xf]
        %v11119 = vld [vmem:[%s467 + $0x170] sm:$0xf]
        %v11120 = vld [vmem:[%s467 + $0x174] sm:$0xf]
        %v11121 = vld [vmem:[%s467 + $0x178] sm:$0xf]
        %v11122 = vld [vmem:[%s467 + $0x17c] sm:$0xf]
        %v11123 = vld [vmem:[%s467 + $0x180] sm:$0xf]
        %v11124 = vld [vmem:[%s467 + $0x184] sm:$0xf]
        %v11125 = vld [vmem:[%s467 + $0x188] sm:$0xf]
        %v11126 = vld [vmem:[%s467 + $0x18c] sm:$0xf]
        %v11127 = vld [vmem:[%s467 + $0x190] sm:$0xf]
        %v11128 = vld [vmem:[%s467 + $0x194] sm:$0xf]
        %v11129 = vld [vmem:[%s467 + $0x198] sm:$0xf]
        %v11130 = vld [vmem:[%s467 + $0x19c] sm:$0xf]
        %v11131 = vld [vmem:[%s467 + $0x1a0] sm:$0xf]
        %v11132 = vld [vmem:[%s467 + $0x1a4] sm:$0xf]
        %v11133 = vld [vmem:[%s467 + $0x1a8] sm:$0xf]
        %v11134 = vld [vmem:[%s467 + $0x1ac] sm:$0xf]
        %v11135 = vld [vmem:[%s467 + $0x1b0] sm:$0xf]
        %v11136 = vld [vmem:[%s467 + $0x1b4] sm:$0xf]
        %v11137 = vld [vmem:[%s467 + $0x1b8] sm:$0xf]
        %v11138 = vld [vmem:[%s467 + $0x1bc] sm:$0xf]
        %v11139 = vld [vmem:[%s467 + $0x1c0] sm:$0xf]
        %v11140 = vld [vmem:[%s467 + $0x1c4] sm:$0xf]
        %v11141 = vld [vmem:[%s467 + $0x1c8] sm:$0xf]
        %v11142 = vld [vmem:[%s467 + $0x1cc] sm:$0xf]
        %v11143 = vld [vmem:[%s467 + $0x1d0] sm:$0xf]
        %v11144 = vld [vmem:[%s467 + $0x1d4] sm:$0xf]
        %v11145 = vld [vmem:[%s467 + $0x1d8] sm:$0xf]
        %v11146 = vld [vmem:[%s467 + $0x1dc] sm:$0xf]
        %v11147 = vld [vmem:[%s467 + $0x1e0] sm:$0xf]
        %v11148 = vld [vmem:[%s467 + $0x1e4] sm:$0xf]
        %v11149 = vld [vmem:[%s467 + $0x1e8] sm:$0xf]
        %v11150 = vld [vmem:[%s467 + $0x1ec] sm:$0xf]
        %v11151 = vld [vmem:[%s467 + $0x1f0] sm:$0xf]
        %v11152 = vld [vmem:[%s467 + $0x1f4] sm:$0xf]
        %v11153 = vld [vmem:[%s467 + $0x1f8] sm:$0xf]
        %v11154 = vld [vmem:[%s467 + $0x1fc] sm:$0xf]
        %v11283 = vunpack.c.l.b16 %v11027
        %v11284 = vunpack.c.l.b16 %v11028
        %v11285 = vunpack.c.l.b16 %v11029
        %v11286 = vunpack.c.l.b16 %v11030
        %v11287 = vunpack.c.l.b16 %v11031
        %v11288 = vunpack.c.l.b16 %v11032
        %v11289 = vunpack.c.l.b16 %v11033
        %v11290 = vunpack.c.l.b16 %v11034
        %v11291 = vunpack.c.l.b16 %v11035
        %v11292 = vunpack.c.l.b16 %v11036
        %v11293 = vunpack.c.l.b16 %v11037
        %v11294 = vunpack.c.l.b16 %v11038
        %v11295 = vunpack.c.l.b16 %v11039
        %v11296 = vunpack.c.l.b16 %v11040
        %v11297 = vunpack.c.l.b16 %v11041
        %v11298 = vunpack.c.l.b16 %v11042
        %v11299 = vunpack.c.l.b16 %v11043
        %v11300 = vunpack.c.l.b16 %v11044
        %v11301 = vunpack.c.l.b16 %v11045
        %v11302 = vunpack.c.l.b16 %v11046
        %v11303 = vunpack.c.l.b16 %v11047
        %v11304 = vunpack.c.l.b16 %v11048
        %v11305 = vunpack.c.l.b16 %v11049
        %v11306 = vunpack.c.l.b16 %v11050
        %v11307 = vunpack.c.l.b16 %v11051
        %v11308 = vunpack.c.l.b16 %v11052
        %v11309 = vunpack.c.l.b16 %v11053
        %v11310 = vunpack.c.l.b16 %v11054
        %v11311 = vunpack.c.l.b16 %v11055
        %v11312 = vunpack.c.l.b16 %v11056
        %v11313 = vunpack.c.l.b16 %v11057
        %v11314 = vunpack.c.l.b16 %v11058
        %v11315 = vunpack.c.l.b16 %v11059
        %v11316 = vunpack.c.l.b16 %v11060
        %v11317 = vunpack.c.l.b16 %v11061
        %v11318 = vunpack.c.l.b16 %v11062
        %v11319 = vunpack.c.l.b16 %v11063
        %v11320 = vunpack.c.l.b16 %v11064
        %v11321 = vunpack.c.l.b16 %v11065
        %v11322 = vunpack.c.l.b16 %v11066
        %v11323 = vunpack.c.l.b16 %v11067
        %v11324 = vunpack.c.l.b16 %v11068
        %v11325 = vunpack.c.l.b16 %v11069
        %v11326 = vunpack.c.l.b16 %v11070
        %v11327 = vunpack.c.l.b16 %v11071
        %v11328 = vunpack.c.l.b16 %v11072
        %v11329 = vunpack.c.l.b16 %v11073
        %v11330 = vunpack.c.l.b16 %v11074
        %v11331 = vunpack.c.l.b16 %v11075
        %v11332 = vunpack.c.l.b16 %v11076
        %v11333 = vunpack.c.l.b16 %v11077
        %v11334 = vunpack.c.l.b16 %v11078
        %v11335 = vunpack.c.l.b16 %v11079
        %v11336 = vunpack.c.l.b16 %v11080
        %v11337 = vunpack.c.l.b16 %v11081
        %v11338 = vunpack.c.l.b16 %v11082
        %v11339 = vunpack.c.l.b16 %v11083
        %v11340 = vunpack.c.l.b16 %v11084
        %v11341 = vunpack.c.l.b16 %v11085
        %v11342 = vunpack.c.l.b16 %v11086
        %v11343 = vunpack.c.l.b16 %v11087
        %v11344 = vunpack.c.l.b16 %v11088
        %v11345 = vunpack.c.l.b16 %v11089
        %v11346 = vunpack.c.l.b16 %v11090
        %v11347 = vunpack.c.l.b16 %v11091
        %v11348 = vunpack.c.l.b16 %v11092
        %v11349 = vunpack.c.l.b16 %v11093
        %v11350 = vunpack.c.l.b16 %v11094
        %v11351 = vunpack.c.l.b16 %v11095
        %v11352 = vunpack.c.l.b16 %v11096
        %v11353 = vunpack.c.l.b16 %v11097
        %v11354 = vunpack.c.l.b16 %v11098
        %v11355 = vunpack.c.l.b16 %v11099
        %v11356 = vunpack.c.l.b16 %v11100
        %v11357 = vunpack.c.l.b16 %v11101
        %v11358 = vunpack.c.l.b16 %v11102
        %v11359 = vunpack.c.l.b16 %v11103
        %v11360 = vunpack.c.l.b16 %v11104
        %v11361 = vunpack.c.l.b16 %v11105
        %v11362 = vunpack.c.l.b16 %v11106
        %v11363 = vunpack.c.l.b16 %v11107
        %v11364 = vunpack.c.l.b16 %v11108
        %v11365 = vunpack.c.l.b16 %v11109
        %v11366 = vunpack.c.l.b16 %v11110
        %v11367 = vunpack.c.l.b16 %v11111
        %v11368 = vunpack.c.l.b16 %v11112
        %v11369 = vunpack.c.l.b16 %v11113
        %v11370 = vunpack.c.l.b16 %v11114
        %v11371 = vunpack.c.l.b16 %v11115
        %v11372 = vunpack.c.l.b16 %v11116
        %v11373 = vunpack.c.l.b16 %v11117
        %v11374 = vunpack.c.l.b16 %v11118
        %v11375 = vunpack.c.l.b16 %v11119
        %v11376 = vunpack.c.l.b16 %v11120
        %v11377 = vunpack.c.l.b16 %v11121
        %v11378 = vunpack.c.l.b16 %v11122
        %v11379 = vunpack.c.l.b16 %v11123
        %v11380 = vunpack.c.l.b16 %v11124
        %v11381 = vunpack.c.l.b16 %v11125
        %v11382 = vunpack.c.l.b16 %v11126
        %v11383 = vunpack.c.l.b16 %v11127
        %v11384 = vunpack.c.l.b16 %v11128
        %v11385 = vunpack.c.l.b16 %v11129
        %v11386 = vunpack.c.l.b16 %v11130
        %v11387 = vunpack.c.l.b16 %v11131
        %v11388 = vunpack.c.l.b16 %v11132
        %v11389 = vunpack.c.l.b16 %v11133
        %v11390 = vunpack.c.l.b16 %v11134
        %v11391 = vunpack.c.l.b16 %v11135
        %v11392 = vunpack.c.l.b16 %v11136
        %v11393 = vunpack.c.l.b16 %v11137
        %v11394 = vunpack.c.l.b16 %v11138
        %v11395 = vunpack.c.l.b16 %v11139
        %v11396 = vunpack.c.l.b16 %v11140
        %v11397 = vunpack.c.l.b16 %v11141
        %v11398 = vunpack.c.l.b16 %v11142
        %v11399 = vunpack.c.l.b16 %v11143
        %v11400 = vunpack.c.l.b16 %v11144
        %v11401 = vunpack.c.l.b16 %v11145
        %v11402 = vunpack.c.l.b16 %v11146
        %v11403 = vunpack.c.l.b16 %v11147
        %v11404 = vunpack.c.l.b16 %v11148
        %v11405 = vunpack.c.l.b16 %v11149
        %v11406 = vunpack.c.l.b16 %v11150
        %v11407 = vunpack.c.l.b16 %v11151
        %v11408 = vunpack.c.l.b16 %v11152
        %v11409 = vunpack.c.l.b16 %v11153
        %v11410 = vunpack.c.l.b16 %v11154
        %v11411 = vpack.c.b16 %v11284, %v11283
        %v11412 = vpack.c.b16 %v11286, %v11285
        %v11413 = vpack.c.b16 %v11288, %v11287
        %v11414 = vpack.c.b16 %v11290, %v11289
        %v11415 = vpack.c.b16 %v11292, %v11291
        %v11416 = vpack.c.b16 %v11294, %v11293
        %v11417 = vpack.c.b16 %v11296, %v11295
        %v11418 = vpack.c.b16 %v11298, %v11297
        %v11419 = vpack.c.b16 %v11300, %v11299
        %v11420 = vpack.c.b16 %v11302, %v11301
        %v11421 = vpack.c.b16 %v11304, %v11303
        %v11422 = vpack.c.b16 %v11306, %v11305
        %v11423 = vpack.c.b16 %v11308, %v11307
        %v11424 = vpack.c.b16 %v11310, %v11309
        %v11425 = vpack.c.b16 %v11312, %v11311
        %v11426 = vpack.c.b16 %v11314, %v11313
        %v11427 = vpack.c.b16 %v11316, %v11315
        %v11428 = vpack.c.b16 %v11318, %v11317
        %v11429 = vpack.c.b16 %v11320, %v11319
        %v11430 = vpack.c.b16 %v11322, %v11321
        %v11431 = vpack.c.b16 %v11324, %v11323
        %v11432 = vpack.c.b16 %v11326, %v11325
        %v11433 = vpack.c.b16 %v11328, %v11327
        %v11434 = vpack.c.b16 %v11330, %v11329
        %v11435 = vpack.c.b16 %v11332, %v11331
        %v11436 = vpack.c.b16 %v11334, %v11333
        %v11437 = vpack.c.b16 %v11336, %v11335
        %v11438 = vpack.c.b16 %v11338, %v11337
        %v11439 = vpack.c.b16 %v11340, %v11339
        %v11440 = vpack.c.b16 %v11342, %v11341
        %v11441 = vpack.c.b16 %v11344, %v11343
        %v11442 = vpack.c.b16 %v11346, %v11345
        %v11443 = vpack.c.b16 %v11348, %v11347
        %v11444 = vpack.c.b16 %v11350, %v11349
        %v11445 = vpack.c.b16 %v11352, %v11351
        %v11446 = vpack.c.b16 %v11354, %v11353
        %v11447 = vpack.c.b16 %v11356, %v11355
        %v11448 = vpack.c.b16 %v11358, %v11357
        %v11449 = vpack.c.b16 %v11360, %v11359
        %v11450 = vpack.c.b16 %v11362, %v11361
        %v11451 = vpack.c.b16 %v11364, %v11363
        %v11452 = vpack.c.b16 %v11366, %v11365
        %v11453 = vpack.c.b16 %v11368, %v11367
        %v11454 = vpack.c.b16 %v11370, %v11369
        %v11455 = vpack.c.b16 %v11372, %v11371
        %v11456 = vpack.c.b16 %v11374, %v11373
        %v11457 = vpack.c.b16 %v11376, %v11375
        %v11458 = vpack.c.b16 %v11378, %v11377
        %v11459 = vpack.c.b16 %v11380, %v11379
        %v11460 = vpack.c.b16 %v11382, %v11381
        %v11461 = vpack.c.b16 %v11384, %v11383
        %v11462 = vpack.c.b16 %v11386, %v11385
        %v11463 = vpack.c.b16 %v11388, %v11387
        %v11464 = vpack.c.b16 %v11390, %v11389
        %v11465 = vpack.c.b16 %v11392, %v11391
        %v11466 = vpack.c.b16 %v11394, %v11393
        %v11467 = vpack.c.b16 %v11396, %v11395
        %v11468 = vpack.c.b16 %v11398, %v11397
        %v11469 = vpack.c.b16 %v11400, %v11399
        %v11470 = vpack.c.b16 %v11402, %v11401
        %v11471 = vpack.c.b16 %v11404, %v11403
        %v11472 = vpack.c.b16 %v11406, %v11405
        %v11473 = vpack.c.b16 %v11408, %v11407
        %v11474 = vpack.c.b16 %v11410, %v11409
        %11539 = vmatpush.bf16.msra.mxu0 %v11418
        %11540 = vmatpush.bf16.msra.mxu0 %v11417
        %11541 = vmatpush.bf16.msra.mxu0 %v11416
        %11542 = vmatpush.bf16.msra.mxu0 %v11415
        %11543 = vmatpush.bf16.msra.mxu0 %v11414
        %11544 = vmatpush.bf16.msra.mxu0 %v11413
        %11545 = vmatpush.bf16.msra.mxu0 %v11412
        %11546 = vmatpush.bf16.msra.mxu0 %v11411
        %11547 = vmatmul.bf16.gmra.mxu0 %v10987
        %v11548 = vpop.f32.mrf.mxu0
        %v11549 = vadd.f32 0.0, %v11548
        %v11550 = vpop.f32.mrf.mxu0
        %v11551 = vadd.f32 0.0, %v11550
        %11552 = vmatmul.bf16.gmra.mxu0 %v10995
        %v11553 = vpop.f32.mrf.mxu0
        %v11554 = vadd.f32 0.0, %v11553
        %v11555 = vpop.f32.mrf.mxu0
        %v11556 = vadd.f32 0.0, %v11555
        %11557 = vmatmul.bf16.gmra.mxu0 %v11003
        %v11558 = vpop.f32.mrf.mxu0
        %v11559 = vadd.f32 0.0, %v11558
        %v11560 = vpop.f32.mrf.mxu0
        %v11561 = vadd.f32 0.0, %v11560
        %11562 = vmatmul.bf16.gmra.mxu0 %v11011
        %v11563 = vpop.f32.mrf.mxu0
        %v11564 = vadd.f32 0.0, %v11563
        %v11565 = vpop.f32.mrf.mxu0
        %v11566 = vadd.f32 0.0, %v11565
        %11567 = vdwg.mxu0
        %11568 = vmatpush.bf16.msra.mxu0 %v11426
        %11569 = vmatpush.bf16.msra.mxu0 %v11425
        %11570 = vmatpush.bf16.msra.mxu0 %v11424
        %11571 = vmatpush.bf16.msra.mxu0 %v11423
        %11572 = vmatpush.bf16.msra.mxu0 %v11422
        %11573 = vmatpush.bf16.msra.mxu0 %v11421
        %11574 = vmatpush.bf16.msra.mxu0 %v11420
        %11575 = vmatpush.bf16.msra.mxu0 %v11419
        %11576 = vmatmul.bf16.gmra.mxu0 %v10988
        %v11577 = vpop.f32.mrf.mxu0
        %v11578 = vadd.f32 %v11549, %v11577
        %v11579 = vpop.f32.mrf.mxu0
        %v11580 = vadd.f32 %v11551, %v11579
        %11581 = vmatmul.bf16.gmra.mxu0 %v10996
        %v11582 = vpop.f32.mrf.mxu0
        %v11583 = vadd.f32 %v11554, %v11582
        %v11584 = vpop.f32.mrf.mxu0
        %v11585 = vadd.f32 %v11556, %v11584
        %11586 = vmatmul.bf16.gmra.mxu0 %v11004
        %v11587 = vpop.f32.mrf.mxu0
        %v11588 = vadd.f32 %v11559, %v11587
        %v11589 = vpop.f32.mrf.mxu0
        %v11590 = vadd.f32 %v11561, %v11589
        %11591 = vmatmul.bf16.gmra.mxu0 %v11012
        %v11592 = vpop.f32.mrf.mxu0
        %v11593 = vadd.f32 %v11564, %v11592
        %v11594 = vpop.f32.mrf.mxu0
        %v11595 = vadd.f32 %v11566, %v11594
        %11596 = vdwg.mxu0
        %11597 = vmatpush.bf16.msra.mxu0 %v11434
        %11598 = vmatpush.bf16.msra.mxu0 %v11433
        %11599 = vmatpush.bf16.msra.mxu0 %v11432
        %11600 = vmatpush.bf16.msra.mxu0 %v11431
        %11601 = vmatpush.bf16.msra.mxu0 %v11430
        %11602 = vmatpush.bf16.msra.mxu0 %v11429
        %11603 = vmatpush.bf16.msra.mxu0 %v11428
        %11604 = vmatpush.bf16.msra.mxu0 %v11427
        %11605 = vmatmul.bf16.gmra.mxu0 %v10989
        %v11606 = vpop.f32.mrf.mxu0
        %v11607 = vadd.f32 %v11578, %v11606
        %v11608 = vpop.f32.mrf.mxu0
        %v11609 = vadd.f32 %v11580, %v11608
        %11610 = vmatmul.bf16.gmra.mxu0 %v10997
        %v11611 = vpop.f32.mrf.mxu0
        %v11612 = vadd.f32 %v11583, %v11611
        %v11613 = vpop.f32.mrf.mxu0
        %v11614 = vadd.f32 %v11585, %v11613
        %11615 = vmatmul.bf16.gmra.mxu0 %v11005
        %v11616 = vpop.f32.mrf.mxu0
        %v11617 = vadd.f32 %v11588, %v11616
        %v11618 = vpop.f32.mrf.mxu0
        %v11619 = vadd.f32 %v11590, %v11618
        %11620 = vmatmul.bf16.gmra.mxu0 %v11013
        %v11621 = vpop.f32.mrf.mxu0
        %v11622 = vadd.f32 %v11593, %v11621
        %v11623 = vpop.f32.mrf.mxu0
        %v11624 = vadd.f32 %v11595, %v11623
        %11625 = vdwg.mxu0
        %11626 = vmatpush.bf16.msra.mxu0 %v11442
        %11627 = vmatpush.bf16.msra.mxu0 %v11441
        %11628 = vmatpush.bf16.msra.mxu0 %v11440
        %11629 = vmatpush.bf16.msra.mxu0 %v11439
        %11630 = vmatpush.bf16.msra.mxu0 %v11438
        %11631 = vmatpush.bf16.msra.mxu0 %v11437
        %11632 = vmatpush.bf16.msra.mxu0 %v11436
        %11633 = vmatpush.bf16.msra.mxu0 %v11435
        %11634 = vmatmul.bf16.gmra.mxu0 %v10990
        %v11635 = vpop.f32.mrf.mxu0
        %v11636 = vadd.f32 %v11607, %v11635
        %v11637 = vpop.f32.mrf.mxu0
        %v11638 = vadd.f32 %v11609, %v11637
        %11639 = vmatmul.bf16.gmra.mxu0 %v10998
        %v11640 = vpop.f32.mrf.mxu0
        %v11641 = vadd.f32 %v11612, %v11640
        %v11642 = vpop.f32.mrf.mxu0
        %v11643 = vadd.f32 %v11614, %v11642
        %11644 = vmatmul.bf16.gmra.mxu0 %v11006
        %v11645 = vpop.f32.mrf.mxu0
        %v11646 = vadd.f32 %v11617, %v11645
        %v11647 = vpop.f32.mrf.mxu0
        %v11648 = vadd.f32 %v11619, %v11647
        %11649 = vmatmul.bf16.gmra.mxu0 %v11014
        %v11650 = vpop.f32.mrf.mxu0
        %v11651 = vadd.f32 %v11622, %v11650
        %v11652 = vpop.f32.mrf.mxu0
        %v11653 = vadd.f32 %v11624, %v11652
        %11654 = vdwg.mxu0
        %11655 = vmatpush.bf16.msra.mxu0 %v11450
        %11656 = vmatpush.bf16.msra.mxu0 %v11449
        %11657 = vmatpush.bf16.msra.mxu0 %v11448
        %11658 = vmatpush.bf16.msra.mxu0 %v11447
        %11659 = vmatpush.bf16.msra.mxu0 %v11446
        %11660 = vmatpush.bf16.msra.mxu0 %v11445
        %11661 = vmatpush.bf16.msra.mxu0 %v11444
        %11662 = vmatpush.bf16.msra.mxu0 %v11443
        %11663 = vmatmul.bf16.gmra.mxu0 %v10991
        %v11664 = vpop.f32.mrf.mxu0
        %v11665 = vadd.f32 %v11636, %v11664
        %v11666 = vpop.f32.mrf.mxu0
        %v11667 = vadd.f32 %v11638, %v11666
        %11668 = vmatmul.bf16.gmra.mxu0 %v10999
        %v11669 = vpop.f32.mrf.mxu0
        %v11670 = vadd.f32 %v11641, %v11669
        %v11671 = vpop.f32.mrf.mxu0
        %v11672 = vadd.f32 %v11643, %v11671
        %11673 = vmatmul.bf16.gmra.mxu0 %v11007
        %v11674 = vpop.f32.mrf.mxu0
        %v11675 = vadd.f32 %v11646, %v11674
        %v11676 = vpop.f32.mrf.mxu0
        %v11677 = vadd.f32 %v11648, %v11676
        %11678 = vmatmul.bf16.gmra.mxu0 %v11015
        %v11679 = vpop.f32.mrf.mxu0
        %v11680 = vadd.f32 %v11651, %v11679
        %v11681 = vpop.f32.mrf.mxu0
        %v11682 = vadd.f32 %v11653, %v11681
        %11683 = vdwg.mxu0
        %11684 = vmatpush.bf16.msra.mxu0 %v11458
        %11685 = vmatpush.bf16.msra.mxu0 %v11457
        %11686 = vmatpush.bf16.msra.mxu0 %v11456
        %11687 = vmatpush.bf16.msra.mxu0 %v11455
        %11688 = vmatpush.bf16.msra.mxu0 %v11454
        %11689 = vmatpush.bf16.msra.mxu0 %v11453
        %11690 = vmatpush.bf16.msra.mxu0 %v11452
        %11691 = vmatpush.bf16.msra.mxu0 %v11451
        %11692 = vmatmul.bf16.gmra.mxu0 %v10992
        %v11693 = vpop.f32.mrf.mxu0
        %v11694 = vadd.f32 %v11665, %v11693
        %v11695 = vpop.f32.mrf.mxu0
        %v11696 = vadd.f32 %v11667, %v11695
        %11697 = vmatmul.bf16.gmra.mxu0 %v11000
        %v11698 = vpop.f32.mrf.mxu0
        %v11699 = vadd.f32 %v11670, %v11698
        %v11700 = vpop.f32.mrf.mxu0
        %v11701 = vadd.f32 %v11672, %v11700
        %11702 = vmatmul.bf16.gmra.mxu0 %v11008
        %v11703 = vpop.f32.mrf.mxu0
        %v11704 = vadd.f32 %v11675, %v11703
        %v11705 = vpop.f32.mrf.mxu0
        %v11706 = vadd.f32 %v11677, %v11705
        %11707 = vmatmul.bf16.gmra.mxu0 %v11016
        %v11708 = vpop.f32.mrf.mxu0
        %v11709 = vadd.f32 %v11680, %v11708
        %v11710 = vpop.f32.mrf.mxu0
        %v11711 = vadd.f32 %v11682, %v11710
        %11712 = vdwg.mxu0
        %11713 = vmatpush.bf16.msra.mxu0 %v11466
        %11714 = vmatpush.bf16.msra.mxu0 %v11465
        %11715 = vmatpush.bf16.msra.mxu0 %v11464
        %11716 = vmatpush.bf16.msra.mxu0 %v11463
        %11717 = vmatpush.bf16.msra.mxu0 %v11462
        %11718 = vmatpush.bf16.msra.mxu0 %v11461
        %11719 = vmatpush.bf16.msra.mxu0 %v11460
        %11720 = vmatpush.bf16.msra.mxu0 %v11459
        %11721 = vmatmul.bf16.gmra.mxu0 %v10993
        %v11722 = vpop.f32.mrf.mxu0
        %v11723 = vadd.f32 %v11694, %v11722
        %v11724 = vpop.f32.mrf.mxu0
        %v11725 = vadd.f32 %v11696, %v11724
        %11726 = vmatmul.bf16.gmra.mxu0 %v11001
        %v11727 = vpop.f32.mrf.mxu0
        %v11728 = vadd.f32 %v11699, %v11727
        %v11729 = vpop.f32.mrf.mxu0
        %v11730 = vadd.f32 %v11701, %v11729
        %11731 = vmatmul.bf16.gmra.mxu0 %v11009
        %v11732 = vpop.f32.mrf.mxu0
        %v11733 = vadd.f32 %v11704, %v11732
        %v11734 = vpop.f32.mrf.mxu0
        %v11735 = vadd.f32 %v11706, %v11734
        %11736 = vmatmul.bf16.gmra.mxu0 %v11017
        %v11737 = vpop.f32.mrf.mxu0
        %v11738 = vadd.f32 %v11709, %v11737
        %v11739 = vpop.f32.mrf.mxu0
        %v11740 = vadd.f32 %v11711, %v11739
        %11741 = vdwg.mxu0
        %11742 = vmatpush.bf16.msra.mxu0 %v11474
        %11743 = vmatpush.bf16.msra.mxu0 %v11473
        %11744 = vmatpush.bf16.msra.mxu0 %v11472
        %11745 = vmatpush.bf16.msra.mxu0 %v11471
        %11746 = vmatpush.bf16.msra.mxu0 %v11470
        %11747 = vmatpush.bf16.msra.mxu0 %v11469
        %11748 = vmatpush.bf16.msra.mxu0 %v11468
        %11749 = vmatpush.bf16.msra.mxu0 %v11467
        %11750 = vmatmul.bf16.gmra.mxu0 %v10994
        %v11751 = vpop.f32.mrf.mxu0
        %v11752 = vadd.f32 %v11723, %v11751
        %v11753 = vpop.f32.mrf.mxu0
        %v11754 = vadd.f32 %v11725, %v11753
        %11755 = vmatmul.bf16.gmra.mxu0 %v11002
        %v11756 = vpop.f32.mrf.mxu0
        %v11757 = vadd.f32 %v11728, %v11756
        %v11758 = vpop.f32.mrf.mxu0
        %v11759 = vadd.f32 %v11730, %v11758
        %11760 = vmatmul.bf16.gmra.mxu0 %v11010
        %v11761 = vpop.f32.mrf.mxu0
        %v11762 = vadd.f32 %v11733, %v11761
        %v11763 = vpop.f32.mrf.mxu0
        %v11764 = vadd.f32 %v11735, %v11763
        %11765 = vmatmul.bf16.gmra.mxu0 %v11018
        %v11766 = vpop.f32.mrf.mxu0
        %v11767 = vadd.f32 %v11738, %v11766
        %v11768 = vpop.f32.mrf.mxu0
        %v11769 = vadd.f32 %v11740, %v11768
        %11770 = vdwg.mxu0
        %v11771 = vadd.f32 %v11019, %v11752
        %v11772 = vadd.f32 %v11020, %v11754
        %v11773 = vadd.f32 %v11021, %v11757
        %v11774 = vadd.f32 %v11022, %v11759
        %v11775 = vadd.f32 %v11023, %v11762
        %v11776 = vadd.f32 %v11024, %v11764
        %v11777 = vadd.f32 %v11025, %v11767
        %v11778 = vadd.f32 %v11026, %v11769
        %11779 = vst [vmem:[#allocation3] sm:$0xff] %v11771
        %11780 = vst [vmem:[#allocation3 + $0x8] sm:$0xff] %v11772
        %11781 = vst [vmem:[#allocation3 + $0x10] sm:$0xff] %v11773
        %11782 = vst [vmem:[#allocation3 + $0x18] sm:$0xff] %v11774
        %11783 = vst [vmem:[#allocation3 + $0x20] sm:$0xff] %v11775
        %11784 = vst [vmem:[#allocation3 + $0x28] sm:$0xff] %v11776
        %11785 = vst [vmem:[#allocation3 + $0x30] sm:$0xff] %v11777
        %11786 = vst [vmem:[#allocation3 + $0x38] sm:$0xff] %v11778
        %p11787 = scmp.eq.s32.totalorder %s29, 1
        // Predicated region
        $region105: #{ssgcn_pallas.1} parent=63 // pred_check
          %p11788 = pneg %p11787
        $region106: #{ssgcn_pallas.1} parent=63 // pred_check_branch
          %11790 = sbr.rel (%p11788) target = $region108
        $region107: #{ssgcn_pallas.1} parent=63 // pred_region
          %v11791 = vld [vmem:[#allocation3] sm:$0xff]
          %v11792 = vld [vmem:[#allocation3 + $0x8] sm:$0xff]
          %v11793 = vld [vmem:[#allocation3 + $0x10] sm:$0xff]
          %v11794 = vld [vmem:[#allocation3 + $0x18] sm:$0xff]
          %v11795 = vld [vmem:[#allocation3 + $0x20] sm:$0xff]
          %v11796 = vld [vmem:[#allocation3 + $0x28] sm:$0xff]
          %v11797 = vld [vmem:[#allocation3 + $0x30] sm:$0xff]
          %v11798 = vld [vmem:[#allocation3 + $0x38] sm:$0xff]
          %v11799 = vlaneseq
          %v11800 = vand.u32 %v11799, 127
          %vm11801 = vcmp.lt.s32.totalorder %v11800, 100
          %v11802 = vsel %vm11801, 1, 0
          %v11803 = vcvt.s32.f32 %v11802
          %11804 = vadd.xlane.f32.xlu0 %v11791
          %v11805 = vpop.xlane.xlu0 %11804
          %11806 = vadd.xlane.f32.xlu0 %v11792
          %v11807 = vpop.xlane.xlu0 %11806
          %11808 = vadd.xlane.f32.xlu0 %v11793
          %v11809 = vpop.xlane.xlu0 %11808
          %11810 = vadd.xlane.f32.xlu0 %v11794
          %v11811 = vpop.xlane.xlu0 %11810
          %v11812 = vmul.f32 %v11805, 0.01
          %v11813 = vmul.f32 %v11807, 0.01
          %v11814 = vmul.f32 %v11809, 0.01
          %v11815 = vmul.f32 %v11811, 0.01
          %11816 = vadd.xlane.f32.xlu0 %v11795
          %v11817 = vpop.xlane.xlu0 %11816
          %11818 = vadd.xlane.f32.xlu0 %v11796
          %v11819 = vpop.xlane.xlu0 %11818
          %11820 = vadd.xlane.f32.xlu0 %v11797
          %v11821 = vpop.xlane.xlu0 %11820
          %11822 = vadd.xlane.f32.xlu0 %v11798
          %v11823 = vpop.xlane.xlu0 %11822
          %v11824 = vmul.f32 %v11817, 0.01
          %v11825 = vmul.f32 %v11819, 0.01
          %v11826 = vmul.f32 %v11821, 0.01
          %v11827 = vmul.f32 %v11823, 0.01
          %v11828 = vsub.f32 %v11791, %v11812
          %v11829 = vsub.f32 %v11792, %v11813
          %v11830 = vsub.f32 %v11793, %v11814
          %v11831 = vsub.f32 %v11794, %v11815
          %v11832 = vmul.f32 %v11828, %v11803
          %v11833 = vmul.f32 %v11829, %v11803
          %v11834 = vmul.f32 %v11830, %v11803
          %v11835 = vmul.f32 %v11831, %v11803
          %v11836 = vsub.f32 %v11795, %v11824
          %v11837 = vsub.f32 %v11796, %v11825
          %v11838 = vsub.f32 %v11797, %v11826
          %v11839 = vsub.f32 %v11798, %v11827
          %v11840 = vmul.f32 %v11836, %v11803
          %v11841 = vmul.f32 %v11837, %v11803
          %v11842 = vmul.f32 %v11838, %v11803
          %v11843 = vmul.f32 %v11839, %v11803
          %v11844 = vmul.f32 %v11832, %v11832
          %v11845 = vmul.f32 %v11833, %v11833
          %v11846 = vmul.f32 %v11834, %v11834
          %v11847 = vmul.f32 %v11835, %v11835
          %11848 = vadd.xlane.f32.xlu0 %v11844
          %v11849 = vpop.xlane.xlu0 %11848
          %11850 = vadd.xlane.f32.xlu0 %v11845
          %v11851 = vpop.xlane.xlu0 %11850
          %11852 = vadd.xlane.f32.xlu0 %v11846
          %v11853 = vpop.xlane.xlu0 %11852
          %11854 = vadd.xlane.f32.xlu0 %v11847
          %v11855 = vpop.xlane.xlu0 %11854
          %v11856 = vmul.f32 %v11840, %v11840
          %v11857 = vmul.f32 %v11841, %v11841
          %v11858 = vmul.f32 %v11842, %v11842
          %v11859 = vmul.f32 %v11843, %v11843
          %11860 = vadd.xlane.f32.xlu0 %v11856
          %v11861 = vpop.xlane.xlu0 %11860
          %11862 = vadd.xlane.f32.xlu0 %v11857
          %v11863 = vpop.xlane.xlu0 %11862
          %11864 = vadd.xlane.f32.xlu0 %v11858
          %v11865 = vpop.xlane.xlu0 %11864
          %11866 = vadd.xlane.f32.xlu0 %v11859
          %v11867 = vpop.xlane.xlu0 %11866
          %v11868 = vmul.f32 %v11832, %v11840
          %v11869 = vmul.f32 %v11833, %v11841
          %v11870 = vmul.f32 %v11834, %v11842
          %v11871 = vmul.f32 %v11835, %v11843
          %11872 = vadd.xlane.f32.xlu0 %v11868
          %v11873 = vpop.xlane.xlu0 %11872
          %11874 = vadd.xlane.f32.xlu0 %v11869
          %v11875 = vpop.xlane.xlu0 %11874
          %11876 = vadd.xlane.f32.xlu0 %v11870
          %v11877 = vpop.xlane.xlu0 %11876
          %11878 = vadd.xlane.f32.xlu0 %v11871
          %v11879 = vpop.xlane.xlu0 %11878
          %v11880 = vmul.f32 %v11873, %v11873
          %v11881 = vmul.f32 %v11875, %v11875
          %v11882 = vmul.f32 %v11877, %v11877
          %v11883 = vmul.f32 %v11879, %v11879
          %v11884 = vmul.f32 %v11849, %v11861
          %v11885 = vmul.f32 %v11851, %v11863
          %v11886 = vmul.f32 %v11853, %v11865
          %v11887 = vmul.f32 %v11855, %v11867
          %v11888 = vadd.f32 %v11884, 1e-12
          %v11889 = vadd.f32 %v11885, 1e-12
          %v11890 = vadd.f32 %v11886, 1e-12
          %v11891 = vadd.f32 %v11887, 1e-12
          %v11892 = vrcp.pop %v11888
          %v11893 = vrcp.pop %v11889
          %v11894 = vrcp.pop %v11890
          %v11895 = vrcp.pop %v11891
          %v11896 = vmul.f32 %v11880, %v11892
          %v11897 = vmul.f32 %v11881, %v11893
          %v11898 = vmul.f32 %v11882, %v11894
          %v11899 = vmul.f32 %v11883, %v11895
          %v11900 = vld [vmem:[#allocation11] sm:$0x1]
          %v11902 = vperm.slane %v11900, 0
          %v11904 = vmul.f32 %v11896, %v11902
          %v11905 = vmul.f32 %v11897, %v11902
          %v11906 = vmul.f32 %v11898, %v11902
          %v11907 = vmul.f32 %v11899, %v11902
          %v11908 = vld [vmem:[%s5] sm:$0xff]
          %v11909 = vld [vmem:[%s5 + $0x8] sm:$0xff]
          %v11910 = vld [vmem:[%s5 + $0x10] sm:$0xff]
          %v11911 = vld [vmem:[%s5 + $0x18] sm:$0xff]
          %v11912 = vld [vmem:[#allocation12] sm:$0xff]
          %vm11913 = vcmask 64512
          %v11915 = vsel %vm11913, %v11908, 0
          %v11918 = vsel %vm11913, %v11909, 0
          %v11921 = vsel %vm11913, %v11910, 0
          %v11924 = vsel %vm11913, %v11911, 0
          %11926 = vmatpush.msra.mxu0 0.0
          %11927 = vmatpush.msra.mxu0 0.0
          %11928 = vmatpush.msra.mxu0 0.0
          %11929 = vmatpush.msra.mxu0 0.0
          %11930 = vmatpush.msra.mxu0 0.0
          %11931 = vmatpush.msra.mxu0 0.0
          %11932 = vmatpush.msra.mxu0 0.0
          %11933 = vmatpush.msra.mxu0 0.0
          %11934 = vmatpush.msra.mxu0 0.0
          %11935 = vmatpush.msra.mxu0 0.0
          %11936 = vmatpush.msra.mxu0 0.0
          %11937 = vmatpush.msra.mxu0 0.0
          %11938 = vmatpush.msra.mxu0 0.0
          %11939 = vmatpush.msra.mxu0 0.0
          %11940 = vmatpush.msra.mxu0 0.0
          %11941 = vmatpush.msra.mxu0 %v11912
          %11942 = vmatmul.f32.gmra.mxu0 %v11915
          %v11943 = vpop.f32.mrf.mxu0
          %v11944 = vadd.f32 0.0, %v11943
          %11945 = vmatmul.f32.gmra.mxu0 %v11918
          %v11946 = vpop.f32.mrf.mxu0
          %v11947 = vadd.f32 0.0, %v11946
          %11948 = vmatmul.f32.gmra.mxu0 %v11921
          %v11949 = vpop.f32.mrf.mxu0
          %v11950 = vadd.f32 0.0, %v11949
          %11951 = vmatmul.f32.gmra.mxu0 %v11924
          %v11952 = vpop.f32.mrf.mxu0
          %v11953 = vadd.f32 0.0, %v11952
          %11954 = vdwg.mxu0
          %v11955 = vadd.f32 %v11904, %v11944
          %v11956 = vadd.f32 %v11905, %v11947
          %v11957 = vadd.f32 %v11906, %v11950
          %v11958 = vadd.f32 %v11907, %v11953
          %v11959 = vld [vmem:[#allocation14] sm:$0x1]
          %v11961 = vperm.slane %v11959, 0
          %v11963 = vadd.f32 %v11955, %v11961
          %v11964 = vadd.f32 %v11956, %v11961
          %v11965 = vadd.f32 %v11957, %v11961
          %v11966 = vadd.f32 %v11958, %v11961
          %v11967 = vmax.f32 %v11963, 0.0
          %v11968 = vmax.f32 %v11964, 0.0
          %v11969 = vmax.f32 %v11965, 0.0
          %v11970 = vmax.f32 %v11966, 0.0
          %v11971 = vld [vmem:[#allocation15] sm:$0xff]
          %v11972 = vld [vmem:[#allocation17] sm:$0x1]
          %v11974 = vperm.slane %v11972, 0
          %v11977 = vsel %vm11913, %v11967, 0
          %v11980 = vsel %vm11913, %v11968, 0
          %v11983 = vsel %vm11913, %v11969, 0
          %v11986 = vsel %vm11913, %v11970, 0
          %11988 = vmatpush.msra.mxu0 0.0
          %11989 = vmatpush.msra.mxu0 0.0
          %11990 = vmatpush.msra.mxu0 0.0
          %11991 = vmatpush.msra.mxu0 0.0
          %11992 = vmatpush.msra.mxu0 0.0
          %11993 = vmatpush.msra.mxu0 0.0
          %11994 = vmatpush.msra.mxu0 0.0
          %11995 = vmatpush.msra.mxu0 0.0
          %11996 = vmatpush.msra.mxu0 0.0
          %11997 = vmatpush.msra.mxu0 0.0
          %11998 = vmatpush.msra.mxu0 0.0
          %11999 = vmatpush.msra.mxu0 0.0
          %12000 = vmatpush.msra.mxu0 0.0
          %12001 = vmatpush.msra.mxu0 0.0
          %12002 = vmatpush.msra.mxu0 0.0
          %12003 = vmatpush.msra.mxu0 %v11971
          %12004 = vmatmul.f32.gmra.mxu0 %v11977
          %v12005 = vpop.f32.mrf.mxu0
          %v12006 = vadd.f32 %v11974, %v12005
          %12007 = vmatmul.f32.gmra.mxu0 %v11980
          %v12008 = vpop.f32.mrf.mxu0
          %v12009 = vadd.f32 %v11974, %v12008
          %12010 = vmatmul.f32.gmra.mxu0 %v11983
          %v12011 = vpop.f32.mrf.mxu0
          %v12012 = vadd.f32 %v11974, %v12011
          %12013 = vmatmul.f32.gmra.mxu0 %v11986
          %v12014 = vpop.f32.mrf.mxu0
          %v12015 = vadd.f32 %v11974, %v12014
          %12016 = vdwg.mxu0
          %12017 = vst [vmem:[%s11] sm:$0xff] %v12006
          %12018 = vst [vmem:[%s11 + $0x8] sm:$0xff] %v12009
          %12019 = vst [vmem:[%s11 + $0x10] sm:$0xff] %v12012
          %12020 = vst [vmem:[%s11 + $0x18] sm:$0xff] %v12015
        $region108: #{ssgcn_pallas.1} parent=63 // pred_fallthru
          _
        // Predicated region
        $region109: #{ssgcn_pallas.1} parent=63 // pred_check
          %p12021 = pneg %p283
        $region110: #{ssgcn_pallas.1} parent=63 // pred_check_branch
          %12023 = sbr.rel (%p12021) target = $region112
        $region111: #{ssgcn_pallas.1} parent=63 // pred_region
          _
        $region112: #{ssgcn_pallas.1} parent=63 // pred_fallthru
          _
        // Predicated region
        $region113: #{ssgcn_pallas.1} parent=63 // pred_check
          %p12024 = pneg %p283
        $region114: #{ssgcn_pallas.1} parent=63 // pred_check_branch
          %12026 = sbr.rel (%p12024) target = $region116
        $region115: #{ssgcn_pallas.1} parent=63 // pred_region
          _
        $region116: #{ssgcn_pallas.1} parent=63 // pred_fallthru
          _
      $region64: #{ssgcn_pallas.1} parent=5 // pred_fallthru
        _
      %p12027 = scmp.le.s32.totalorder 2, %s24
      // Predicated region
      $region117: #{ssgcn_pallas.1} parent=5 // pred_check
        %p12028 = pneg %p12027
      $region118: #{ssgcn_pallas.1} parent=5 // pred_check_branch
        %12030 = sbr.rel (%p12028) target = $region120
      $region119: #{ssgcn_pallas.1} parent=5 // pred_region
        %s12031 = ssub.s32 %s24, 2
      $region120: #{ssgcn_pallas.1} parent=5 // pred_fallthru
        _
    $region6: #{ssgcn_pallas.1} parent=1 // loop_footer
      %s28 = sadd.s32 1, %s24
    $region7: #{ssgcn_pallas.1} parent=1 // loop_footer_branch
      %23 = sbr.rel target = $region3
    $region8: #{ssgcn_pallas.1} parent=1 // loop_exit
      _
    %12032 = vsyncpa [#allocation5], 1
    %s12033 = scalar_lea.sflag [#allocation5], 1
    %12034 = vsyncpa %s12033, 1
    %12035 = vsyncpa [#allocation7], 1
    %s12036 = scalar_lea.sflag [#allocation7], 1
    %12037 = vsyncpa %s12036, 1
    %12038 = vsyncpa [#allocation10], 1
    %12039 = vsyncpa [#allocation13], 1
    %12040 = vsyncpa [#allocation16], 1

</llo_original>
